<compile_context>
chip_gen: v7x
topology: tpu7x:2x2x1
jax: 0.10.0
libtpu: 0.0.40
codegen_flags: <defaults>
</compile_context>

<pallas_src>
import jax
import jax.numpy as jnp
from jax.experimental import pallas as pl
from jax.experimental.pallas import tpu as pltpu

LN_EPS = 1e-5
LEAKY_SLOPE = 0.01  # nn.LeakyReLU default

WEIGHT_NAMES = (
    'cont_w', 'att_w', 'conv1_w', 'conv2_w',
    'cat_w', 'catatt_w', 'cat4_w', 'catbr_w',
    'cli_w', 'cliatt_w', 'cli5_w', 'cli8_w',
    'cli10_11_w', 'cli13_w', 'out_w',
)

VEC_NAMES = (
    'cont_b', 'in_ln_g', 'in_ln_b', 'att_b', 'next_ln_g', 'next_ln_b',
    'conv1_b', 'next2_ln_g', 'next2_ln_b', 'conv2_b',
    'cat_b', 'cat2_ln_g', 'cat2_ln_b', 'catatt_b', 'cat4_b',
    'catbr_ln_g', 'catbr_ln_b', 'catbr_b',
    'cli_b', 'cli2_ln_g', 'cli2_ln_b', 'cliatt_b', 'cli4_ln_g', 'cli4_ln_b',
    'cli5_b', 'cli7_ln_g', 'cli7_ln_b', 'cli8_b', 'cli9_ln_g', 'cli9_ln_b',
    'cli10_11_b', 'cli13_b', 'out_b',
)


def _round_up(x, m):
    return ((x + m - 1) // m) * m


# ---------------------------------------------------------------------------
# shared math (used inside the Pallas kernel AND as the pure-JAX reference)
# ---------------------------------------------------------------------------
def _layernorm(x, g, b):
    mean = jnp.mean(x, axis=-1, keepdims=True)
    xc = x - mean
    var = jnp.mean(xc * xc, axis=-1, keepdims=True)
    return xc * jax.lax.rsqrt(var + LN_EPS) * g + b


def _forward_fused(cont, cate, clin, w, v):
    """Forward pass on the fused parameter set.
    w: WEIGHT_NAMES -> bf16 (in,out) matrices; v: VEC_NAMES -> f32 (1,N) rows."""

    def lin(x, wn, bn):
        return jnp.dot(x.astype(jnp.bfloat16), w[wn],
                       preferred_element_type=jnp.float32) + v[bn]

    def ln(x, gn, bn):
        return _layernorm(x, v[gn], v[bn])

    # ---- continuousFeaturesForward ----
    x = lin(cont, 'cont_w', 'cont_b')                      # (B,128)
    sav0 = x
    x = ln(x, 'in_ln_g', 'in_ln_b')
    x = lin(x, 'att_w', 'att_b')                           # len-1 MHA == out_proj(v_proj(x))
    x = jnp.where(x >= 0.0, x, LEAKY_SLOPE * x)            # LeakyReLU; dropout1 -> identity
    add_out = x + sav0
    x = ln(add_out, 'next_ln_g', 'next_ln_b')
    x = jnp.maximum(lin(x, 'conv1_w', 'conv1_b'), 0.0)     # ReLU; dropout2 -> identity
    x = ln(x, 'next2_ln_g', 'next2_ln_b')
    cont_out = lin(x, 'conv2_w', 'conv2_b') + add_out      # (B,128)

    # ---- categoricalFeaturesForward ----
    xa = lin(cate, 'cat_w', 'cat_b')                       # (B,128)
    x = ln(xa, 'cat2_ln_g', 'cat2_ln_b')
    x = lin(x, 'catatt_w', 'catatt_b')
    xb = jnp.concatenate([x, xa], axis=1)                  # (B,256)
    x = jnp.maximum(lin(xb, 'cat4_w', 'cat4_b'), 0.0)      # cat_dropout -> identity
    xbran = ln(xb, 'catbr_ln_g', 'catbr_ln_b')
    ret1 = xbran + x                                       # (B,256)
    ret2 = jnp.maximum(lin(xbran, 'catbr_w', 'catbr_b'), 0.0)   # (B,384)

    # ---- clinicalFeaturesForward ----
    xa = lin(clin, 'cli_w', 'cli_b')                       # (B,128)
    x = ln(xa, 'cli2_ln_g', 'cli2_ln_b')
    x = lin(x, 'cliatt_w', 'cliatt_b') + xa
    xb = ln(x, 'cli4_ln_g', 'cli4_ln_b')                   # (B,128)
    x = jnp.maximum(lin(xb, 'cli5_w', 'cli5_b'), 0.0)      # (B,512)
    x = ln(x, 'cli7_ln_g', 'cli7_ln_b')
    x = lin(x, 'cli8_w', 'cli8_b') + xb                    # (B,128)
    xc = jnp.concatenate([x, ret1], axis=1)                # (B,384)
    x = ln(xc, 'cli9_ln_g', 'cli9_ln_b')
    y = lin(x, 'cli10_11_w', 'cli10_11_b')                 # fused conv3l|conv3r -> (B,1920)
    xdl, xdr = y[:, :1536], y[:, 1536:]
    x = lin(jnp.maximum(xdl, 0.0), 'cli13_w', 'cli13_b')   # (B,384)
    s = x + xc + xdr + ret2
    nc = cont_out.shape[1]
    s = jnp.concatenate([s[:, :nc] + cont_out, s[:, nc:]], axis=1)  # F.pad-add, zero-free

    # ---- output head (lane-padded to 128) ----
    return lin(s, 'out_w', 'out_b')                        # (B,out_pad)


# ---------------------------------------------------------------------------
# original (unfused, full f32) math — reference only, validates the fusions
# ---------------------------------------------------------------------------
def _linear_f32(x, w, b):
    return jnp.dot(x, w, preferred_element_type=jnp.float32) + b


def _attn_seq1_f32(x, wv, bv, wo, bo):
    return _linear_f32(_linear_f32(x, wv, bv), wo, bo)


def _forward_reference(cont_in, cate_in, clin_in, p):
    x = _linear_f32(cont_in, p['cont_w'], p['cont_b'])
    sav0 = x
    x = _layernorm(x, p['in_ln_g'], p['in_ln_b'])
    x = _attn_seq1_f32(x, p['att_wv'], p['att_bv'], p['att_wo'], p['att_bo'])
    x = jnp.where(x >= 0.0, x, LEAKY_SLOPE * x)
    add_out = x + sav0
    x = _layernorm(add_out, p['next_ln_g'], p['next_ln_b'])
    x = jnp.maximum(_linear_f32(x, p['conv1_w'], p['conv1_b']), 0.0)
    x = _layernorm(x, p['next2_ln_g'], p['next2_ln_b'])
    cont_out = _linear_f32(x, p['conv2_w'], p['conv2_b']) + add_out

    xa = _linear_f32(cate_in, p['cat_w'], p['cat_b'])
    x = _layernorm(xa, p['cat2_ln_g'], p['cat2_ln_b'])
    x = _attn_seq1_f32(x, p['catatt_wv'], p['catatt_bv'], p['catatt_wo'], p['catatt_bo'])
    xb = jnp.concatenate([x, xa], axis=1)
    x = jnp.maximum(_linear_f32(xb, p['cat4_w'], p['cat4_b']), 0.0)
    xbran = _layernorm(xb, p['catbr_ln_g'], p['catbr_ln_b'])
    ret1 = xbran + x
    ret2 = jnp.maximum(_linear_f32(xbran, p['catbr_w'], p['catbr_b']), 0.0)

    xa = _linear_f32(clin_in, p['cli_w'], p['cli_b'])
    x = _layernorm(xa, p['cli2_ln_g'], p['cli2_ln_b'])
    x = _attn_seq1_f32(x, p['cliatt_wv'], p['cliatt_bv'], p['cliatt_wo'], p['cliatt_bo'])
    x = x + xa
    xb = _layernorm(x, p['cli4_ln_g'], p['cli4_ln_b'])
    x = jnp.maximum(_linear_f32(xb, p['cli5_w'], p['cli5_b']), 0.0)
    x = _layernorm(x, p['cli7_ln_g'], p['cli7_ln_b'])
    x = _linear_f32(x, p['cli8_w'], p['cli8_b']) + xb
    xc = jnp.concatenate([x, ret1], axis=1)
    x = _layernorm(xc, p['cli9_ln_g'], p['cli9_ln_b'])
    xdl = _linear_f32(x, p['cli10_w'], p['cli10_b'])
    xdr = _linear_f32(x, p['cli11_w'], p['cli11_b'])
    x = _linear_f32(jnp.maximum(xdl, 0.0), p['cli13_w'], p['cli13_b'])
    pad = xc.shape[1] - cont_out.shape[1]
    cont_pad = jnp.concatenate(
        [cont_out, jnp.zeros((cont_out.shape[0], pad), cont_out.dtype)], axis=1)
    x = x + xc + cont_pad + xdr + ret2
    return _linear_f32(x, p['out_w'], p['out_b'])


# ---------------------------------------------------------------------------
# host-side parameter preparation (fusion, bf16 cast, vector packing)
# ---------------------------------------------------------------------------
def prepare_params(p):
    def fuse_attn(wv, bv, wo, bo):
        # length-1 MHA: softmax over a single key == 1 exactly, Q/K cancel.
        return wv @ wo, bv @ wo + bo

    att_w, att_b = fuse_attn(p['att_wv'], p['att_bv'], p['att_wo'], p['att_bo'])
    catatt_w, catatt_b = fuse_attn(p['catatt_wv'], p['catatt_bv'],
                                   p['catatt_wo'], p['catatt_bo'])
    cliatt_w, cliatt_b = fuse_attn(p['cliatt_wv'], p['cliatt_bv'],
                                   p['cliatt_wo'], p['cliatt_bo'])
    cli10_11_w = jnp.concatenate([p['cli10_w'], p['cli11_w']], axis=1)   # (384,1920)
    cli10_11_b = jnp.concatenate([p['cli10_b'], p['cli11_b']], axis=1)

    out_len = p['out_w'].shape[1]
    out_pad = max(128, _round_up(out_len, 128))
    out_w = jnp.pad(p['out_w'], ((0, 0), (0, out_pad - out_len)))
    out_b = jnp.pad(p['out_b'], ((0, 0), (0, out_pad - out_len)))

    weights = {
        'cont_w': p['cont_w'], 'att_w': att_w, 'conv1_w': p['conv1_w'],
        'conv2_w': p['conv2_w'],
        'cat_w': p['cat_w'], 'catatt_w': catatt_w, 'cat4_w': p['cat4_w'],
        'catbr_w': p['catbr_w'],
        'cli_w': p['cli_w'], 'cliatt_w': cliatt_w, 'cli5_w': p['cli5_w'],
        'cli8_w': p['cli8_w'], 'cli10_11_w': cli10_11_w, 'cli13_w': p['cli13_w'],
        'out_w': out_w,
    }
    weights = {k: v.astype(jnp.bfloat16) for k, v in weights.items()}

    vecs = {
        'cont_b': p['cont_b'], 'in_ln_g': p['in_ln_g'], 'in_ln_b': p['in_ln_b'],
        'att_b': att_b, 'next_ln_g': p['next_ln_g'], 'next_ln_b': p['next_ln_b'],
        'conv1_b': p['conv1_b'], 'next2_ln_g': p['next2_ln_g'],
        'next2_ln_b': p['next2_ln_b'], 'conv2_b': p['conv2_b'],
        'cat_b': p['cat_b'], 'cat2_ln_g': p['cat2_ln_g'], 'cat2_ln_b': p['cat2_ln_b'],
        'catatt_b': catatt_b, 'cat4_b': p['cat4_b'],
        'catbr_ln_g': p['catbr_ln_g'], 'catbr_ln_b': p['catbr_ln_b'],
        'catbr_b': p['catbr_b'],
        'cli_b': p['cli_b'], 'cli2_ln_g': p['cli2_ln_g'], 'cli2_ln_b': p['cli2_ln_b'],
        'cliatt_b': cliatt_b, 'cli4_ln_g': p['cli4_ln_g'], 'cli4_ln_b': p['cli4_ln_b'],
        'cli5_b': p['cli5_b'], 'cli7_ln_g': p['cli7_ln_g'], 'cli7_ln_b': p['cli7_ln_b'],
        'cli8_b': p['cli8_b'], 'cli9_ln_g': p['cli9_ln_g'], 'cli9_ln_b': p['cli9_ln_b'],
        'cli10_11_b': cli10_11_b, 'cli13_b': p['cli13_b'], 'out_b': out_b,
    }
    offsets, widths, parts, off = {}, {}, [], 0
    for name in VEC_NAMES:
        v = vecs[name].astype(jnp.float32).reshape(1, -1)
        offsets[name] = off          # every width is a multiple of 128 -> lane aligned
        widths[name] = v.shape[1]
        parts.append(v)
        off += v.shape[1]
    vec_slab = jnp.concatenate(parts, axis=1)       # single (1,TOTAL) f32 slab -> one DMA
    return weights, vec_slab, offsets, widths, out_len, out_pad


# ---------------------------------------------------------------------------
# Pallas kernel + wrapper
# ---------------------------------------------------------------------------
def _make_kernel(vec_offsets, vec_widths):
    n_w = len(WEIGHT_NAMES)

    def kernel(cont_ref, cate_ref, clin_ref, vec_ref, *rest):
        w_refs, out_ref = rest[:n_w], rest[n_w]
        w = {n: r[...] for n, r in zip(WEIGHT_NAMES, w_refs)}
        v = {n: vec_ref[:, vec_offsets[n]:vec_offsets[n] + vec_widths[n]]
             for n in VEC_NAMES}
        out_ref[...] = _forward_fused(cont_ref[...], cate_ref[...], clin_ref[...], w, v)

    return kernel


def model_dd_forward(cont_in, cate_in, clin_in, params, *, block_b=256):
    weights, vec_slab, offsets, widths, out_len, out_pad = prepare_params(params)
    w_list = [weights[n] for n in WEIGHT_NAMES]

    batch = cont_in.shape[0]
    tb = min(block_b, _round_up(batch, 8))          # batch tile, multiple of 8 sublanes
    bp = _round_up(batch, tb)
    if bp != batch:                                  # pad ragged batch; sliced off below
        pad = bp - batch
        cont_in = jnp.pad(cont_in, ((0, pad), (0, 0)))
        cate_in = jnp.pad(cate_in, ((0, pad), (0, 0)))
        clin_in = jnp.pad(clin_in, ((0, pad), (0, 0)))

    def act_spec(feat):
        return pl.BlockSpec((tb, feat), lambda i: (i, 0))

    def full_spec(arr):                              # VMEM-resident, grid-independent
        return pl.BlockSpec(arr.shape, lambda i: (0, 0))

    out = pl.pallas_call(
        _make_kernel(offsets, widths),
        grid=(bp // tb,),
        out_shape=jax.ShapeDtypeStruct((bp, out_pad), jnp.float32),
        in_specs=[act_spec(cont_in.shape[1]),
                  act_spec(cate_in.shape[1]),
                  act_spec(clin_in.shape[1]),
                  full_spec(vec_slab)] + [full_spec(w) for w in w_list],
        out_specs=pl.BlockSpec((tb, out_pad), lambda i: (i, 0)),
        compiler_params=pltpu.CompilerParams(
            dimension_semantics=("parallel",),
            vmem_limit_bytes=32 * 1024 * 1024),
    )(cont_in, cate_in, clin_in, vec_slab, *w_list)
    return out[:batch, :out_len]


# ---------------------------------------------------------------------------
# deterministic parameter init (raw / unfused, PyTorch-equivalent layout (in,out))
# ---------------------------------------------------------------------------
def param_shapes(cont_len, categ_len, clin_len, out_len):
    return {
        # continuous branch
        'cont_w': (cont_len, 128), 'cont_b': (1, 128),
        'in_ln_g': (1, 128), 'in_ln_b': (1, 128),
        'att_wv': (128, 128), 'att_bv': (1, 128),
        'att_wo': (128, 128), 'att_bo': (1, 128),
        'next_ln_g': (1, 128), 'next_ln_b': (1, 128),
        'conv1_w': (128, 512), 'conv1_b': (1, 512),
        'next2_ln_g': (1, 512), 'next2_ln_b': (1, 512),
        'conv2_w': (512, 128), 'conv2_b': (1, 128),
        # categorical branch
        'cat_w': (categ_len, 128), 'cat_b': (1, 128),
        'cat2_ln_g': (1, 128), 'cat2_ln_b': (1, 128),
        'catatt_wv': (128, 128), 'catatt_bv': (1, 128),
        'catatt_wo': (128, 128), 'catatt_bo': (1, 128),
        'cat4_w': (256, 256), 'cat4_b': (1, 256),
        'catbr_ln_g': (1, 256), 'catbr_ln_b': (1, 256),
        'catbr_w': (256, 384), 'catbr_b': (1, 384),
        # clinical branch
        'cli_w': (clin_len, 128), 'cli_b': (1, 128),
        'cli2_ln_g': (1, 128), 'cli2_ln_b': (1, 128),
        'cliatt_wv': (128, 128), 'cliatt_bv': (1, 128),
        'cliatt_wo': (128, 128), 'cliatt_bo': (1, 128),
        'cli4_ln_g': (1, 128), 'cli4_ln_b': (1, 128),
        'cli5_w': (128, 512), 'cli5_b': (1, 512),
        'cli7_ln_g': (1, 512), 'cli7_ln_b': (1, 512),
        'cli8_w': (512, 128), 'cli8_b': (1, 128),
        'cli9_ln_g': (1, 384), 'cli9_ln_b': (1, 384),
        'cli10_w': (384, 1536), 'cli10_b': (1, 1536),
        'cli11_w': (384, 384), 'cli11_b': (1, 384),
        'cli13_w': (1536, 384), 'cli13_b': (1, 384),
        # head
        'out_w': (384, out_len), 'out_b': (1, out_len),
    }


def init_params(key, cont_len, categ_len, clin_len, out_len):
    shapes = param_shapes(cont_len, categ_len, clin_len, out_len)
    keys = jax.random.split(key, len(shapes))
    params = {}
    for (name, shape), k in zip(shapes.items(), keys):
        if name.endswith('_ln_g'):
            params[name] = jnp.ones(shape, jnp.float32)    # LayerNorm weight
        elif name.endswith('_ln_b'):
            params[name] = jnp.zeros(shape, jnp.float32)   # LayerNorm bias
        else:
            params[name] = 0.05 * jax.random.normal(k, shape, jnp.float32)
    return params


if __name__ == "__main__":
    B = 8
    cont_len, categ_len, clin_len, out_len = 32, 16, 64, 16

    key = jax.random.PRNGKey(0)
    kp, k1, k2, k3 = jax.random.split(key, 4)
    params = init_params(kp, cont_len, categ_len, clin_len, out_len)

    cont_in = jax.random.normal(k1, (B, cont_len), jnp.float32)
    cate_in = jax.random.normal(k2, (B, categ_len), jnp.float32)
    clin_in = jax.random.normal(k3, (B, clin_len), jnp.float32)

    out = jax.block_until_ready(model_dd_forward(cont_in, cate_in, clin_in, params))

    # reference 1: identical fused/bf16 math in plain JAX (checks the Pallas lowering)
    weights, vec_slab, offsets, widths, _, _ = prepare_params(params)
    vdict = {n: vec_slab[:, offsets[n]:offsets[n] + widths[n]] for n in VEC_NAMES}
    ref_fused = _forward_fused(cont_in, cate_in, clin_in, weights, vdict)[:, :out_len]
    # reference 2: original unfused f32 math (checks attention/conv fusions + bf16 cast)
    ref_f32 = _forward_reference(cont_in, cate_in, clin_in, params)

    assert out.shape == (B, out_len)
    assert bool(jnp.all(jnp.isfinite(out)))
    assert bool(jnp.allclose(out, ref_fused, rtol=1e-2, atol=1e-2))
    assert bool(jnp.allclose(out, ref_f32, rtol=5e-2, atol=5e-2))

    print("KERNEL_OK")
</pallas_src>

<mosaic_0001>
module attributes {stable_mosaic.version = 11 : i64} {
  func.func @kernel(%arg0: i32, %arg1: memref<8x32xf32, #tpu.memory_space<vmem>>, %arg2: memref<8x16xf32, #tpu.memory_space<vmem>>, %arg3: memref<8x64xf32, #tpu.memory_space<vmem>>, %arg4: memref<1x9728xf32, #tpu.memory_space<vmem>>, %arg5: memref<32x128xbf16, #tpu.memory_space<vmem>>, %arg6: memref<128x128xbf16, #tpu.memory_space<vmem>>, %arg7: memref<128x512xbf16, #tpu.memory_space<vmem>>, %arg8: memref<512x128xbf16, #tpu.memory_space<vmem>>, %arg9: memref<16x128xbf16, #tpu.memory_space<vmem>>, %arg10: memref<128x128xbf16, #tpu.memory_space<vmem>>, %arg11: memref<256x256xbf16, #tpu.memory_space<vmem>>, %arg12: memref<256x384xbf16, #tpu.memory_space<vmem>>, %arg13: memref<64x128xbf16, #tpu.memory_space<vmem>>, %arg14: memref<128x128xbf16, #tpu.memory_space<vmem>>, %arg15: memref<128x512xbf16, #tpu.memory_space<vmem>>, %arg16: memref<512x128xbf16, #tpu.memory_space<vmem>>, %arg17: memref<384x1920xbf16, #tpu.memory_space<vmem>>, %arg18: memref<1536x384xbf16, #tpu.memory_space<vmem>>, %arg19: memref<384x128xbf16, #tpu.memory_space<vmem>>, %arg20: memref<8x128xf32, #tpu.memory_space<vmem>>) attributes {dimension_semantics = [#tpu.dimension_semantics<parallel>], iteration_bounds = array<i64: 1>, scalar_prefetch = 0 : i64, scratch_operands = 0 : i64, tpu.core_type = #tpu.core_type<tc>, window_params = [{transform_indices = @transform_0, window_bounds = array<i64: 8, 32>}, {transform_indices = @transform_1, window_bounds = array<i64: 8, 16>}, {transform_indices = @transform_2, window_bounds = array<i64: 8, 64>}, {pipeline_mode = #tpu.pipeline_mode<synchronous>, transform_indices = @transform_3, window_bounds = array<i64: 1, 9728>}, {pipeline_mode = #tpu.pipeline_mode<synchronous>, transform_indices = @transform_4, window_bounds = array<i64: 32, 128>}, {pipeline_mode = #tpu.pipeline_mode<synchronous>, transform_indices = @transform_5, window_bounds = array<i64: 128, 128>}, {pipeline_mode = #tpu.pipeline_mode<synchronous>, transform_indices = @transform_6, window_bounds = array<i64: 128, 512>}, {pipeline_mode = #tpu.pipeline_mode<synchronous>, transform_indices = @transform_7, window_bounds = array<i64: 512, 128>}, {pipeline_mode = #tpu.pipeline_mode<synchronous>, transform_indices = @transform_8, window_bounds = array<i64: 16, 128>}, {pipeline_mode = #tpu.pipeline_mode<synchronous>, transform_indices = @transform_9, window_bounds = array<i64: 128, 128>}, {pipeline_mode = #tpu.pipeline_mode<synchronous>, transform_indices = @transform_10, window_bounds = array<i64: 256, 256>}, {pipeline_mode = #tpu.pipeline_mode<synchronous>, transform_indices = @transform_11, window_bounds = array<i64: 256, 384>}, {pipeline_mode = #tpu.pipeline_mode<synchronous>, transform_indices = @transform_12, window_bounds = array<i64: 64, 128>}, {pipeline_mode = #tpu.pipeline_mode<synchronous>, transform_indices = @transform_13, window_bounds = array<i64: 128, 128>}, {pipeline_mode = #tpu.pipeline_mode<synchronous>, transform_indices = @transform_14, window_bounds = array<i64: 128, 512>}, {pipeline_mode = #tpu.pipeline_mode<synchronous>, transform_indices = @transform_15, window_bounds = array<i64: 512, 128>}, {pipeline_mode = #tpu.pipeline_mode<synchronous>, transform_indices = @transform_16, window_bounds = array<i64: 384, 1920>}, {pipeline_mode = #tpu.pipeline_mode<synchronous>, transform_indices = @transform_17, window_bounds = array<i64: 1536, 384>}, {pipeline_mode = #tpu.pipeline_mode<synchronous>, transform_indices = @transform_18, window_bounds = array<i64: 384, 128>}, {transform_indices = @transform_19, window_bounds = array<i64: 8, 128>}]} {
    %c0 = arith.constant 0 : index
    %c0_0 = arith.constant 0 : index
    %0 = vector.load %arg5[%c0, %c0_0] : memref<32x128xbf16, #tpu.memory_space<vmem>>, vector<32x128xbf16>
    %c0_1 = arith.constant 0 : index
    %c0_2 = arith.constant 0 : index
    %1 = vector.load %arg6[%c0_1, %c0_2] : memref<128x128xbf16, #tpu.memory_space<vmem>>, vector<128x128xbf16>
    %c0_3 = arith.constant 0 : index
    %c0_4 = arith.constant 0 : index
    %2 = vector.load %arg7[%c0_3, %c0_4] : memref<128x512xbf16, #tpu.memory_space<vmem>>, vector<128x512xbf16>
    %c0_5 = arith.constant 0 : index
    %c0_6 = arith.constant 0 : index
    %3 = vector.load %arg8[%c0_5, %c0_6] : memref<512x128xbf16, #tpu.memory_space<vmem>>, vector<512x128xbf16>
    %c0_7 = arith.constant 0 : index
    %c0_8 = arith.constant 0 : index
    %4 = vector.load %arg9[%c0_7, %c0_8] : memref<16x128xbf16, #tpu.memory_space<vmem>>, vector<16x128xbf16>
    %c0_9 = arith.constant 0 : index
    %c0_10 = arith.constant 0 : index
    %5 = vector.load %arg10[%c0_9, %c0_10] : memref<128x128xbf16, #tpu.memory_space<vmem>>, vector<128x128xbf16>
    %c0_11 = arith.constant 0 : index
    %c0_12 = arith.constant 0 : index
    %6 = vector.load %arg11[%c0_11, %c0_12] : memref<256x256xbf16, #tpu.memory_space<vmem>>, vector<256x256xbf16>
    %c0_13 = arith.constant 0 : index
    %c0_14 = arith.constant 0 : index
    %7 = vector.load %arg12[%c0_13, %c0_14] : memref<256x384xbf16, #tpu.memory_space<vmem>>, vector<256x384xbf16>
    %c0_15 = arith.constant 0 : index
    %c0_16 = arith.constant 0 : index
    %8 = vector.load %arg13[%c0_15, %c0_16] : memref<64x128xbf16, #tpu.memory_space<vmem>>, vector<64x128xbf16>
    %c0_17 = arith.constant 0 : index
    %c0_18 = arith.constant 0 : index
    %9 = vector.load %arg14[%c0_17, %c0_18] : memref<128x128xbf16, #tpu.memory_space<vmem>>, vector<128x128xbf16>
    %c0_19 = arith.constant 0 : index
    %c0_20 = arith.constant 0 : index
    %10 = vector.load %arg15[%c0_19, %c0_20] : memref<128x512xbf16, #tpu.memory_space<vmem>>, vector<128x512xbf16>
    %c0_21 = arith.constant 0 : index
    %c0_22 = arith.constant 0 : index
    %11 = vector.load %arg16[%c0_21, %c0_22] : memref<512x128xbf16, #tpu.memory_space<vmem>>, vector<512x128xbf16>
    %c0_23 = arith.constant 0 : index
    %c0_24 = arith.constant 0 : index
    %12 = vector.load %arg17[%c0_23, %c0_24] : memref<384x1920xbf16, #tpu.memory_space<vmem>>, vector<384x1920xbf16>
    %c0_25 = arith.constant 0 : index
    %c0_26 = arith.constant 0 : index
    %13 = vector.load %arg18[%c0_25, %c0_26] : memref<1536x384xbf16, #tpu.memory_space<vmem>>, vector<1536x384xbf16>
    %c0_27 = arith.constant 0 : index
    %c0_28 = arith.constant 0 : index
    %14 = vector.load %arg19[%c0_27, %c0_28] : memref<384x128xbf16, #tpu.memory_space<vmem>>, vector<384x128xbf16>
    %c0_29 = arith.constant 0 : index
    %c0_30 = arith.constant 0 : index
    %15 = vector.load %arg4[%c0_29, %c0_30] : memref<1x9728xf32, #tpu.memory_space<vmem>>, vector<1x128xf32>
    %c0_31 = arith.constant 0 : index
    %c128 = arith.constant 128 : index
    %16 = vector.load %arg4[%c0_31, %c128] : memref<1x9728xf32, #tpu.memory_space<vmem>>, vector<1x128xf32>
    %c0_32 = arith.constant 0 : index
    %c256 = arith.constant 256 : index
    %17 = vector.load %arg4[%c0_32, %c256] : memref<1x9728xf32, #tpu.memory_space<vmem>>, vector<1x128xf32>
    %c0_33 = arith.constant 0 : index
    %c384 = arith.constant 384 : index
    %18 = vector.load %arg4[%c0_33, %c384] : memref<1x9728xf32, #tpu.memory_space<vmem>>, vector<1x128xf32>
    %c0_34 = arith.constant 0 : index
    %c512 = arith.constant 512 : index
    %19 = vector.load %arg4[%c0_34, %c512] : memref<1x9728xf32, #tpu.memory_space<vmem>>, vector<1x128xf32>
    %c0_35 = arith.constant 0 : index
    %c640 = arith.constant 640 : index
    %20 = vector.load %arg4[%c0_35, %c640] : memref<1x9728xf32, #tpu.memory_space<vmem>>, vector<1x128xf32>
    %c0_36 = arith.constant 0 : index
    %c768 = arith.constant 768 : index
    %21 = vector.load %arg4[%c0_36, %c768] : memref<1x9728xf32, #tpu.memory_space<vmem>>, vector<1x512xf32>
    %c0_37 = arith.constant 0 : index
    %c1280 = arith.constant 1280 : index
    %22 = vector.load %arg4[%c0_37, %c1280] : memref<1x9728xf32, #tpu.memory_space<vmem>>, vector<1x512xf32>
    %c0_38 = arith.constant 0 : index
    %c1792 = arith.constant 1792 : index
    %23 = vector.load %arg4[%c0_38, %c1792] : memref<1x9728xf32, #tpu.memory_space<vmem>>, vector<1x512xf32>
    %c0_39 = arith.constant 0 : index
    %c2304 = arith.constant 2304 : index
    %24 = vector.load %arg4[%c0_39, %c2304] : memref<1x9728xf32, #tpu.memory_space<vmem>>, vector<1x128xf32>
    %c0_40 = arith.constant 0 : index
    %c2432 = arith.constant 2432 : index
    %25 = vector.load %arg4[%c0_40, %c2432] : memref<1x9728xf32, #tpu.memory_space<vmem>>, vector<1x128xf32>
    %c0_41 = arith.constant 0 : index
    %c2560 = arith.constant 2560 : index
    %26 = vector.load %arg4[%c0_41, %c2560] : memref<1x9728xf32, #tpu.memory_space<vmem>>, vector<1x128xf32>
    %c0_42 = arith.constant 0 : index
    %c2688 = arith.constant 2688 : index
    %27 = vector.load %arg4[%c0_42, %c2688] : memref<1x9728xf32, #tpu.memory_space<vmem>>, vector<1x128xf32>
    %c0_43 = arith.constant 0 : index
    %c2816 = arith.constant 2816 : index
    %28 = vector.load %arg4[%c0_43, %c2816] : memref<1x9728xf32, #tpu.memory_space<vmem>>, vector<1x128xf32>
    %c0_44 = arith.constant 0 : index
    %c2944 = arith.constant 2944 : index
    %29 = vector.load %arg4[%c0_44, %c2944] : memref<1x9728xf32, #tpu.memory_space<vmem>>, vector<1x256xf32>
    %c0_45 = arith.constant 0 : index
    %c3200 = arith.constant 3200 : index
    %30 = vector.load %arg4[%c0_45, %c3200] : memref<1x9728xf32, #tpu.memory_space<vmem>>, vector<1x256xf32>
    %c0_46 = arith.constant 0 : index
    %c3456 = arith.constant 3456 : index
    %31 = vector.load %arg4[%c0_46, %c3456] : memref<1x9728xf32, #tpu.memory_space<vmem>>, vector<1x256xf32>
    %c0_47 = arith.constant 0 : index
    %c3712 = arith.constant 3712 : index
    %32 = vector.load %arg4[%c0_47, %c3712] : memref<1x9728xf32, #tpu.memory_space<vmem>>, vector<1x384xf32>
    %c0_48 = arith.constant 0 : index
    %c4096 = arith.constant 4096 : index
    %33 = vector.load %arg4[%c0_48, %c4096] : memref<1x9728xf32, #tpu.memory_space<vmem>>, vector<1x128xf32>
    %c0_49 = arith.constant 0 : index
    %c4224 = arith.constant 4224 : index
    %34 = vector.load %arg4[%c0_49, %c4224] : memref<1x9728xf32, #tpu.memory_space<vmem>>, vector<1x128xf32>
    %c0_50 = arith.constant 0 : index
    %c4352 = arith.constant 4352 : index
    %35 = vector.load %arg4[%c0_50, %c4352] : memref<1x9728xf32, #tpu.memory_space<vmem>>, vector<1x128xf32>
    %c0_51 = arith.constant 0 : index
    %c4480 = arith.constant 4480 : index
    %36 = vector.load %arg4[%c0_51, %c4480] : memref<1x9728xf32, #tpu.memory_space<vmem>>, vector<1x128xf32>
    %c0_52 = arith.constant 0 : index
    %c4608 = arith.constant 4608 : index
    %37 = vector.load %arg4[%c0_52, %c4608] : memref<1x9728xf32, #tpu.memory_space<vmem>>, vector<1x128xf32>
    %c0_53 = arith.constant 0 : index
    %c4736 = arith.constant 4736 : index
    %38 = vector.load %arg4[%c0_53, %c4736] : memref<1x9728xf32, #tpu.memory_space<vmem>>, vector<1x128xf32>
    %c0_54 = arith.constant 0 : index
    %c4864 = arith.constant 4864 : index
    %39 = vector.load %arg4[%c0_54, %c4864] : memref<1x9728xf32, #tpu.memory_space<vmem>>, vector<1x512xf32>
    %c0_55 = arith.constant 0 : index
    %c5376 = arith.constant 5376 : index
    %40 = vector.load %arg4[%c0_55, %c5376] : memref<1x9728xf32, #tpu.memory_space<vmem>>, vector<1x512xf32>
    %c0_56 = arith.constant 0 : index
    %c5888 = arith.constant 5888 : index
    %41 = vector.load %arg4[%c0_56, %c5888] : memref<1x9728xf32, #tpu.memory_space<vmem>>, vector<1x512xf32>
    %c0_57 = arith.constant 0 : index
    %c6400 = arith.constant 6400 : index
    %42 = vector.load %arg4[%c0_57, %c6400] : memref<1x9728xf32, #tpu.memory_space<vmem>>, vector<1x128xf32>
    %c0_58 = arith.constant 0 : index
    %c6528 = arith.constant 6528 : index
    %43 = vector.load %arg4[%c0_58, %c6528] : memref<1x9728xf32, #tpu.memory_space<vmem>>, vector<1x384xf32>
    %c0_59 = arith.constant 0 : index
    %c6912 = arith.constant 6912 : index
    %44 = vector.load %arg4[%c0_59, %c6912] : memref<1x9728xf32, #tpu.memory_space<vmem>>, vector<1x384xf32>
    %c0_60 = arith.constant 0 : index
    %c7296 = arith.constant 7296 : index
    %45 = vector.load %arg4[%c0_60, %c7296] : memref<1x9728xf32, #tpu.memory_space<vmem>>, vector<1x1920xf32>
    %c0_61 = arith.constant 0 : index
    %c9216 = arith.constant 9216 : index
    %46 = vector.load %arg4[%c0_61, %c9216] : memref<1x9728xf32, #tpu.memory_space<vmem>>, vector<1x384xf32>
    %c0_62 = arith.constant 0 : index
    %c9600 = arith.constant 9600 : index
    %47 = vector.load %arg4[%c0_62, %c9600] : memref<1x9728xf32, #tpu.memory_space<vmem>>, vector<1x128xf32>
    %c0_63 = arith.constant 0 : index
    %c0_64 = arith.constant 0 : index
    %48 = vector.load %arg1[%c0_63, %c0_64] : memref<8x32xf32, #tpu.memory_space<vmem>>, vector<8x32xf32>
    %c0_65 = arith.constant 0 : index
    %c0_66 = arith.constant 0 : index
    %49 = vector.load %arg2[%c0_65, %c0_66] : memref<8x16xf32, #tpu.memory_space<vmem>>, vector<8x16xf32>
    %c0_67 = arith.constant 0 : index
    %c0_68 = arith.constant 0 : index
    %50 = vector.load %arg3[%c0_67, %c0_68] : memref<8x64xf32, #tpu.memory_space<vmem>>, vector<8x64xf32>
    %51 = arith.truncf %48 : vector<8x32xf32> to vector<8x32xbf16>
    %cst = arith.constant dense<0.000000e+00> : vector<8x128xf32>
    %52 = tpu.matmul %51, %0, %cst {dimension_numbers = #tpu.dot_dimension_numbers<[1], [0], [0], [1], [0, 0, 1, 1], [], []>} : vector<8x32xbf16>, vector<32x128xbf16>, vector<8x128xf32> -> vector<8x128xf32>
    %53 = vector.broadcast %15 : vector<1x128xf32> to vector<8x128xf32>
    %54 = arith.addf %52, %53 : vector<8x128xf32>
    %cst_69 = arith.constant dense<0.000000e+00> : vector<8xf32>
    %55 = vector.multi_reduction <add>, %54, %cst_69 [1] : vector<8x128xf32> to vector<8xf32>
    %56 = vector.shape_cast %55 : vector<8xf32> to vector<8x1xf32>
    %cst_70 = arith.constant 1.280000e+02 : f32
    %57 = vector.broadcast %cst_70 : f32 to vector<8x1xf32>
    %58 = arith.divf %56, %57 : vector<8x1xf32>
    %59 = vector.broadcast %58 : vector<8x1xf32> to vector<8x128xf32>
    %60 = arith.subf %54, %59 : vector<8x128xf32>
    %61 = arith.mulf %60, %60 : vector<8x128xf32>
    %cst_71 = arith.constant dense<0.000000e+00> : vector<8xf32>
    %62 = vector.multi_reduction <add>, %61, %cst_71 [1] : vector<8x128xf32> to vector<8xf32>
    %63 = vector.shape_cast %62 : vector<8xf32> to vector<8x1xf32>
    %cst_72 = arith.constant 1.280000e+02 : f32
    %64 = vector.broadcast %cst_72 : f32 to vector<8x1xf32>
    %65 = arith.divf %63, %64 : vector<8x1xf32>
    %cst_73 = arith.constant 9.99999974E-6 : f32
    %66 = vector.broadcast %cst_73 : f32 to vector<8x1xf32>
    %67 = arith.addf %65, %66 : vector<8x1xf32>
    %68 = math.rsqrt %67 : vector<8x1xf32>
    %69 = vector.broadcast %68 : vector<8x1xf32> to vector<8x128xf32>
    %70 = arith.mulf %60, %69 : vector<8x128xf32>
    %71 = vector.broadcast %16 : vector<1x128xf32> to vector<8x128xf32>
    %72 = arith.mulf %70, %71 : vector<8x128xf32>
    %73 = vector.broadcast %17 : vector<1x128xf32> to vector<8x128xf32>
    %74 = arith.addf %72, %73 : vector<8x128xf32>
    %75 = arith.truncf %74 : vector<8x128xf32> to vector<8x128xbf16>
    %cst_74 = arith.constant dense<0.000000e+00> : vector<8x128xf32>
    %76 = tpu.matmul %75, %1, %cst_74 {dimension_numbers = #tpu.dot_dimension_numbers<[1], [0], [0], [1], [0, 0, 1, 1], [], []>} : vector<8x128xbf16>, vector<128x128xbf16>, vector<8x128xf32> -> vector<8x128xf32>
    %77 = vector.broadcast %18 : vector<1x128xf32> to vector<8x128xf32>
    %78 = arith.addf %76, %77 : vector<8x128xf32>
    %cst_75 = arith.constant 0.000000e+00 : f32
    %79 = vector.broadcast %cst_75 : f32 to vector<8x128xf32>
    %80 = arith.cmpf oge, %78, %79 : vector<8x128xf32>
    %cst_76 = arith.constant 0.00999999977 : f32
    %81 = vector.broadcast %cst_76 : f32 to vector<8x128xf32>
    %82 = arith.mulf %81, %78 : vector<8x128xf32>
    %83 = arith.select %80, %78, %82 : vector<8x128xi1>, vector<8x128xf32>
    %84 = arith.addf %83, %54 : vector<8x128xf32>
    %cst_77 = arith.constant dense<0.000000e+00> : vector<8xf32>
    %85 = vector.multi_reduction <add>, %84, %cst_77 [1] : vector<8x128xf32> to vector<8xf32>
    %86 = vector.shape_cast %85 : vector<8xf32> to vector<8x1xf32>
    %cst_78 = arith.constant 1.280000e+02 : f32
    %87 = vector.broadcast %cst_78 : f32 to vector<8x1xf32>
    %88 = arith.divf %86, %87 : vector<8x1xf32>
    %89 = vector.broadcast %88 : vector<8x1xf32> to vector<8x128xf32>
    %90 = arith.subf %84, %89 : vector<8x128xf32>
    %91 = arith.mulf %90, %90 : vector<8x128xf32>
    %cst_79 = arith.constant dense<0.000000e+00> : vector<8xf32>
    %92 = vector.multi_reduction <add>, %91, %cst_79 [1] : vector<8x128xf32> to vector<8xf32>
    %93 = vector.shape_cast %92 : vector<8xf32> to vector<8x1xf32>
    %cst_80 = arith.constant 1.280000e+02 : f32
    %94 = vector.broadcast %cst_80 : f32 to vector<8x1xf32>
    %95 = arith.divf %93, %94 : vector<8x1xf32>
    %cst_81 = arith.constant 9.99999974E-6 : f32
    %96 = vector.broadcast %cst_81 : f32 to vector<8x1xf32>
    %97 = arith.addf %95, %96 : vector<8x1xf32>
    %98 = math.rsqrt %97 : vector<8x1xf32>
    %99 = vector.broadcast %98 : vector<8x1xf32> to vector<8x128xf32>
    %100 = arith.mulf %90, %99 : vector<8x128xf32>
    %101 = vector.broadcast %19 : vector<1x128xf32> to vector<8x128xf32>
    %102 = arith.mulf %100, %101 : vector<8x128xf32>
    %103 = vector.broadcast %20 : vector<1x128xf32> to vector<8x128xf32>
    %104 = arith.addf %102, %103 : vector<8x128xf32>
    %105 = arith.truncf %104 : vector<8x128xf32> to vector<8x128xbf16>
    %cst_82 = arith.constant dense<0.000000e+00> : vector<8x512xf32>
    %106 = tpu.matmul %105, %2, %cst_82 {dimension_numbers = #tpu.dot_dimension_numbers<[1], [0], [0], [1], [0, 0, 1, 1], [], []>} : vector<8x128xbf16>, vector<128x512xbf16>, vector<8x512xf32> -> vector<8x512xf32>
    %107 = vector.broadcast %21 : vector<1x512xf32> to vector<8x512xf32>
    %108 = arith.addf %106, %107 : vector<8x512xf32>
    %cst_83 = arith.constant 0.000000e+00 : f32
    %109 = vector.broadcast %cst_83 : f32 to vector<8x512xf32>
    %110 = arith.maximumf %108, %109 : vector<8x512xf32>
    %cst_84 = arith.constant dense<0.000000e+00> : vector<8xf32>
    %111 = vector.multi_reduction <add>, %110, %cst_84 [1] : vector<8x512xf32> to vector<8xf32>
    %112 = vector.shape_cast %111 : vector<8xf32> to vector<8x1xf32>
    %cst_85 = arith.constant 5.120000e+02 : f32
    %113 = vector.broadcast %cst_85 : f32 to vector<8x1xf32>
    %114 = arith.divf %112, %113 : vector<8x1xf32>
    %115 = vector.broadcast %114 : vector<8x1xf32> to vector<8x512xf32>
    %116 = arith.subf %110, %115 : vector<8x512xf32>
    %117 = arith.mulf %116, %116 : vector<8x512xf32>
    %cst_86 = arith.constant dense<0.000000e+00> : vector<8xf32>
    %118 = vector.multi_reduction <add>, %117, %cst_86 [1] : vector<8x512xf32> to vector<8xf32>
    %119 = vector.shape_cast %118 : vector<8xf32> to vector<8x1xf32>
    %cst_87 = arith.constant 5.120000e+02 : f32
    %120 = vector.broadcast %cst_87 : f32 to vector<8x1xf32>
    %121 = arith.divf %119, %120 : vector<8x1xf32>
    %cst_88 = arith.constant 9.99999974E-6 : f32
    %122 = vector.broadcast %cst_88 : f32 to vector<8x1xf32>
    %123 = arith.addf %121, %122 : vector<8x1xf32>
    %124 = math.rsqrt %123 : vector<8x1xf32>
    %125 = vector.broadcast %124 : vector<8x1xf32> to vector<8x512xf32>
    %126 = arith.mulf %116, %125 : vector<8x512xf32>
    %127 = vector.broadcast %22 : vector<1x512xf32> to vector<8x512xf32>
    %128 = arith.mulf %126, %127 : vector<8x512xf32>
    %129 = vector.broadcast %23 : vector<1x512xf32> to vector<8x512xf32>
    %130 = arith.addf %128, %129 : vector<8x512xf32>
    %131 = arith.truncf %130 : vector<8x512xf32> to vector<8x512xbf16>
    %cst_89 = arith.constant dense<0.000000e+00> : vector<8x128xf32>
    %132 = tpu.matmul %131, %3, %cst_89 {dimension_numbers = #tpu.dot_dimension_numbers<[1], [0], [0], [1], [0, 0, 1, 1], [], []>} : vector<8x512xbf16>, vector<512x128xbf16>, vector<8x128xf32> -> vector<8x128xf32>
    %133 = vector.broadcast %24 : vector<1x128xf32> to vector<8x128xf32>
    %134 = arith.addf %132, %133 : vector<8x128xf32>
    %135 = arith.addf %134, %84 : vector<8x128xf32>
    %136 = arith.truncf %49 : vector<8x16xf32> to vector<8x16xbf16>
    %cst_90 = arith.constant dense<0.000000e+00> : vector<8x128xf32>
    %137 = tpu.matmul %136, %4, %cst_90 {dimension_numbers = #tpu.dot_dimension_numbers<[1], [0], [0], [1], [0, 0, 1, 1], [], []>} : vector<8x16xbf16>, vector<16x128xbf16>, vector<8x128xf32> -> vector<8x128xf32>
    %138 = vector.broadcast %25 : vector<1x128xf32> to vector<8x128xf32>
    %139 = arith.addf %137, %138 : vector<8x128xf32>
    %cst_91 = arith.constant dense<0.000000e+00> : vector<8xf32>
    %140 = vector.multi_reduction <add>, %139, %cst_91 [1] : vector<8x128xf32> to vector<8xf32>
    %141 = vector.shape_cast %140 : vector<8xf32> to vector<8x1xf32>
    %cst_92 = arith.constant 1.280000e+02 : f32
    %142 = vector.broadcast %cst_92 : f32 to vector<8x1xf32>
    %143 = arith.divf %141, %142 : vector<8x1xf32>
    %144 = vector.broadcast %143 : vector<8x1xf32> to vector<8x128xf32>
    %145 = arith.subf %139, %144 : vector<8x128xf32>
    %146 = arith.mulf %145, %145 : vector<8x128xf32>
    %cst_93 = arith.constant dense<0.000000e+00> : vector<8xf32>
    %147 = vector.multi_reduction <add>, %146, %cst_93 [1] : vector<8x128xf32> to vector<8xf32>
    %148 = vector.shape_cast %147 : vector<8xf32> to vector<8x1xf32>
    %cst_94 = arith.constant 1.280000e+02 : f32
    %149 = vector.broadcast %cst_94 : f32 to vector<8x1xf32>
    %150 = arith.divf %148, %149 : vector<8x1xf32>
    %cst_95 = arith.constant 9.99999974E-6 : f32
    %151 = vector.broadcast %cst_95 : f32 to vector<8x1xf32>
    %152 = arith.addf %150, %151 : vector<8x1xf32>
    %153 = math.rsqrt %152 : vector<8x1xf32>
    %154 = vector.broadcast %153 : vector<8x1xf32> to vector<8x128xf32>
    %155 = arith.mulf %145, %154 : vector<8x128xf32>
    %156 = vector.broadcast %26 : vector<1x128xf32> to vector<8x128xf32>
    %157 = arith.mulf %155, %156 : vector<8x128xf32>
    %158 = vector.broadcast %27 : vector<1x128xf32> to vector<8x128xf32>
    %159 = arith.addf %157, %158 : vector<8x128xf32>
    %160 = arith.truncf %159 : vector<8x128xf32> to vector<8x128xbf16>
    %cst_96 = arith.constant dense<0.000000e+00> : vector<8x128xf32>
    %161 = tpu.matmul %160, %5, %cst_96 {dimension_numbers = #tpu.dot_dimension_numbers<[1], [0], [0], [1], [0, 0, 1, 1], [], []>} : vector<8x128xbf16>, vector<128x128xbf16>, vector<8x128xf32> -> vector<8x128xf32>
    %162 = vector.broadcast %28 : vector<1x128xf32> to vector<8x128xf32>
    %163 = arith.addf %161, %162 : vector<8x128xf32>
    %164 = tpu.concatenate %163, %139 in 1 : vector<8x128xf32>, vector<8x128xf32> -> vector<8x256xf32>
    %165 = arith.truncf %164 : vector<8x256xf32> to vector<8x256xbf16>
    %cst_97 = arith.constant dense<0.000000e+00> : vector<8x256xf32>
    %166 = tpu.matmul %165, %6, %cst_97 {dimension_numbers = #tpu.dot_dimension_numbers<[1], [0], [0], [1], [0, 0, 1, 1], [], []>} : vector<8x256xbf16>, vector<256x256xbf16>, vector<8x256xf32> -> vector<8x256xf32>
    %167 = vector.broadcast %29 : vector<1x256xf32> to vector<8x256xf32>
    %168 = arith.addf %166, %167 : vector<8x256xf32>
    %cst_98 = arith.constant 0.000000e+00 : f32
    %169 = vector.broadcast %cst_98 : f32 to vector<8x256xf32>
    %170 = arith.maximumf %168, %169 : vector<8x256xf32>
    %cst_99 = arith.constant dense<0.000000e+00> : vector<8xf32>
    %171 = vector.multi_reduction <add>, %164, %cst_99 [1] : vector<8x256xf32> to vector<8xf32>
    %172 = vector.shape_cast %171 : vector<8xf32> to vector<8x1xf32>
    %cst_100 = arith.constant 2.560000e+02 : f32
    %173 = vector.broadcast %cst_100 : f32 to vector<8x1xf32>
    %174 = arith.divf %172, %173 : vector<8x1xf32>
    %175 = vector.broadcast %174 : vector<8x1xf32> to vector<8x256xf32>
    %176 = arith.subf %164, %175 : vector<8x256xf32>
    %177 = arith.mulf %176, %176 : vector<8x256xf32>
    %cst_101 = arith.constant dense<0.000000e+00> : vector<8xf32>
    %178 = vector.multi_reduction <add>, %177, %cst_101 [1] : vector<8x256xf32> to vector<8xf32>
    %179 = vector.shape_cast %178 : vector<8xf32> to vector<8x1xf32>
    %cst_102 = arith.constant 2.560000e+02 : f32
    %180 = vector.broadcast %cst_102 : f32 to vector<8x1xf32>
    %181 = arith.divf %179, %180 : vector<8x1xf32>
    %cst_103 = arith.constant 9.99999974E-6 : f32
    %182 = vector.broadcast %cst_103 : f32 to vector<8x1xf32>
    %183 = arith.addf %181, %182 : vector<8x1xf32>
    %184 = math.rsqrt %183 : vector<8x1xf32>
    %185 = vector.broadcast %184 : vector<8x1xf32> to vector<8x256xf32>
    %186 = arith.mulf %176, %185 : vector<8x256xf32>
    %187 = vector.broadcast %30 : vector<1x256xf32> to vector<8x256xf32>
    %188 = arith.mulf %186, %187 : vector<8x256xf32>
    %189 = vector.broadcast %31 : vector<1x256xf32> to vector<8x256xf32>
    %190 = arith.addf %188, %189 : vector<8x256xf32>
    %191 = arith.addf %190, %170 : vector<8x256xf32>
    %192 = arith.truncf %190 : vector<8x256xf32> to vector<8x256xbf16>
    %cst_104 = arith.constant dense<0.000000e+00> : vector<8x384xf32>
    %193 = tpu.matmul %192, %7, %cst_104 {dimension_numbers = #tpu.dot_dimension_numbers<[1], [0], [0], [1], [0, 0, 1, 1], [], []>} : vector<8x256xbf16>, vector<256x384xbf16>, vector<8x384xf32> -> vector<8x384xf32>
    %194 = vector.broadcast %32 : vector<1x384xf32> to vector<8x384xf32>
    %195 = arith.addf %193, %194 : vector<8x384xf32>
    %cst_105 = arith.constant 0.000000e+00 : f32
    %196 = vector.broadcast %cst_105 : f32 to vector<8x384xf32>
    %197 = arith.maximumf %195, %196 : vector<8x384xf32>
    %198 = arith.truncf %50 : vector<8x64xf32> to vector<8x64xbf16>
    %cst_106 = arith.constant dense<0.000000e+00> : vector<8x128xf32>
    %199 = tpu.matmul %198, %8, %cst_106 {dimension_numbers = #tpu.dot_dimension_numbers<[1], [0], [0], [1], [0, 0, 1, 1], [], []>} : vector<8x64xbf16>, vector<64x128xbf16>, vector<8x128xf32> -> vector<8x128xf32>
    %200 = vector.broadcast %33 : vector<1x128xf32> to vector<8x128xf32>
    %201 = arith.addf %199, %200 : vector<8x128xf32>
    %cst_107 = arith.constant dense<0.000000e+00> : vector<8xf32>
    %202 = vector.multi_reduction <add>, %201, %cst_107 [1] : vector<8x128xf32> to vector<8xf32>
    %203 = vector.shape_cast %202 : vector<8xf32> to vector<8x1xf32>
    %cst_108 = arith.constant 1.280000e+02 : f32
    %204 = vector.broadcast %cst_108 : f32 to vector<8x1xf32>
    %205 = arith.divf %203, %204 : vector<8x1xf32>
    %206 = vector.broadcast %205 : vector<8x1xf32> to vector<8x128xf32>
    %207 = arith.subf %201, %206 : vector<8x128xf32>
    %208 = arith.mulf %207, %207 : vector<8x128xf32>
    %cst_109 = arith.constant dense<0.000000e+00> : vector<8xf32>
    %209 = vector.multi_reduction <add>, %208, %cst_109 [1] : vector<8x128xf32> to vector<8xf32>
    %210 = vector.shape_cast %209 : vector<8xf32> to vector<8x1xf32>
    %cst_110 = arith.constant 1.280000e+02 : f32
    %211 = vector.broadcast %cst_110 : f32 to vector<8x1xf32>
    %212 = arith.divf %210, %211 : vector<8x1xf32>
    %cst_111 = arith.constant 9.99999974E-6 : f32
    %213 = vector.broadcast %cst_111 : f32 to vector<8x1xf32>
    %214 = arith.addf %212, %213 : vector<8x1xf32>
    %215 = math.rsqrt %214 : vector<8x1xf32>
    %216 = vector.broadcast %215 : vector<8x1xf32> to vector<8x128xf32>
    %217 = arith.mulf %207, %216 : vector<8x128xf32>
    %218 = vector.broadcast %34 : vector<1x128xf32> to vector<8x128xf32>
    %219 = arith.mulf %217, %218 : vector<8x128xf32>
    %220 = vector.broadcast %35 : vector<1x128xf32> to vector<8x128xf32>
    %221 = arith.addf %219, %220 : vector<8x128xf32>
    %222 = arith.truncf %221 : vector<8x128xf32> to vector<8x128xbf16>
    %cst_112 = arith.constant dense<0.000000e+00> : vector<8x128xf32>
    %223 = tpu.matmul %222, %9, %cst_112 {dimension_numbers = #tpu.dot_dimension_numbers<[1], [0], [0], [1], [0, 0, 1, 1], [], []>} : vector<8x128xbf16>, vector<128x128xbf16>, vector<8x128xf32> -> vector<8x128xf32>
    %224 = vector.broadcast %36 : vector<1x128xf32> to vector<8x128xf32>
    %225 = arith.addf %223, %224 : vector<8x128xf32>
    %226 = arith.addf %225, %201 : vector<8x128xf32>
    %cst_113 = arith.constant dense<0.000000e+00> : vector<8xf32>
    %227 = vector.multi_reduction <add>, %226, %cst_113 [1] : vector<8x128xf32> to vector<8xf32>
    %228 = vector.shape_cast %227 : vector<8xf32> to vector<8x1xf32>
    %cst_114 = arith.constant 1.280000e+02 : f32
    %229 = vector.broadcast %cst_114 : f32 to vector<8x1xf32>
    %230 = arith.divf %228, %229 : vector<8x1xf32>
    %231 = vector.broadcast %230 : vector<8x1xf32> to vector<8x128xf32>
    %232 = arith.subf %226, %231 : vector<8x128xf32>
    %233 = arith.mulf %232, %232 : vector<8x128xf32>
    %cst_115 = arith.constant dense<0.000000e+00> : vector<8xf32>
    %234 = vector.multi_reduction <add>, %233, %cst_115 [1] : vector<8x128xf32> to vector<8xf32>
    %235 = vector.shape_cast %234 : vector<8xf32> to vector<8x1xf32>
    %cst_116 = arith.constant 1.280000e+02 : f32
    %236 = vector.broadcast %cst_116 : f32 to vector<8x1xf32>
    %237 = arith.divf %235, %236 : vector<8x1xf32>
    %cst_117 = arith.constant 9.99999974E-6 : f32
    %238 = vector.broadcast %cst_117 : f32 to vector<8x1xf32>
    %239 = arith.addf %237, %238 : vector<8x1xf32>
    %240 = math.rsqrt %239 : vector<8x1xf32>
    %241 = vector.broadcast %240 : vector<8x1xf32> to vector<8x128xf32>
    %242 = arith.mulf %232, %241 : vector<8x128xf32>
    %243 = vector.broadcast %37 : vector<1x128xf32> to vector<8x128xf32>
    %244 = arith.mulf %242, %243 : vector<8x128xf32>
    %245 = vector.broadcast %38 : vector<1x128xf32> to vector<8x128xf32>
    %246 = arith.addf %244, %245 : vector<8x128xf32>
    %247 = arith.truncf %246 : vector<8x128xf32> to vector<8x128xbf16>
    %cst_118 = arith.constant dense<0.000000e+00> : vector<8x512xf32>
    %248 = tpu.matmul %247, %10, %cst_118 {dimension_numbers = #tpu.dot_dimension_numbers<[1], [0], [0], [1], [0, 0, 1, 1], [], []>} : vector<8x128xbf16>, vector<128x512xbf16>, vector<8x512xf32> -> vector<8x512xf32>
    %249 = vector.broadcast %39 : vector<1x512xf32> to vector<8x512xf32>
    %250 = arith.addf %248, %249 : vector<8x512xf32>
    %cst_119 = arith.constant 0.000000e+00 : f32
    %251 = vector.broadcast %cst_119 : f32 to vector<8x512xf32>
    %252 = arith.maximumf %250, %251 : vector<8x512xf32>
    %cst_120 = arith.constant dense<0.000000e+00> : vector<8xf32>
    %253 = vector.multi_reduction <add>, %252, %cst_120 [1] : vector<8x512xf32> to vector<8xf32>
    %254 = vector.shape_cast %253 : vector<8xf32> to vector<8x1xf32>
    %cst_121 = arith.constant 5.120000e+02 : f32
    %255 = vector.broadcast %cst_121 : f32 to vector<8x1xf32>
    %256 = arith.divf %254, %255 : vector<8x1xf32>
    %257 = vector.broadcast %256 : vector<8x1xf32> to vector<8x512xf32>
    %258 = arith.subf %252, %257 : vector<8x512xf32>
    %259 = arith.mulf %258, %258 : vector<8x512xf32>
    %cst_122 = arith.constant dense<0.000000e+00> : vector<8xf32>
    %260 = vector.multi_reduction <add>, %259, %cst_122 [1] : vector<8x512xf32> to vector<8xf32>
    %261 = vector.shape_cast %260 : vector<8xf32> to vector<8x1xf32>
    %cst_123 = arith.constant 5.120000e+02 : f32
    %262 = vector.broadcast %cst_123 : f32 to vector<8x1xf32>
    %263 = arith.divf %261, %262 : vector<8x1xf32>
    %cst_124 = arith.constant 9.99999974E-6 : f32
    %264 = vector.broadcast %cst_124 : f32 to vector<8x1xf32>
    %265 = arith.addf %263, %264 : vector<8x1xf32>
    %266 = math.rsqrt %265 : vector<8x1xf32>
    %267 = vector.broadcast %266 : vector<8x1xf32> to vector<8x512xf32>
    %268 = arith.mulf %258, %267 : vector<8x512xf32>
    %269 = vector.broadcast %40 : vector<1x512xf32> to vector<8x512xf32>
    %270 = arith.mulf %268, %269 : vector<8x512xf32>
    %271 = vector.broadcast %41 : vector<1x512xf32> to vector<8x512xf32>
    %272 = arith.addf %270, %271 : vector<8x512xf32>
    %273 = arith.truncf %272 : vector<8x512xf32> to vector<8x512xbf16>
    %cst_125 = arith.constant dense<0.000000e+00> : vector<8x128xf32>
    %274 = tpu.matmul %273, %11, %cst_125 {dimension_numbers = #tpu.dot_dimension_numbers<[1], [0], [0], [1], [0, 0, 1, 1], [], []>} : vector<8x512xbf16>, vector<512x128xbf16>, vector<8x128xf32> -> vector<8x128xf32>
    %275 = vector.broadcast %42 : vector<1x128xf32> to vector<8x128xf32>
    %276 = arith.addf %274, %275 : vector<8x128xf32>
    %277 = arith.addf %276, %246 : vector<8x128xf32>
    %278 = tpu.concatenate %277, %191 in 1 : vector<8x128xf32>, vector<8x256xf32> -> vector<8x384xf32>
    %cst_126 = arith.constant dense<0.000000e+00> : vector<8xf32>
    %279 = vector.multi_reduction <add>, %278, %cst_126 [1] : vector<8x384xf32> to vector<8xf32>
    %280 = vector.shape_cast %279 : vector<8xf32> to vector<8x1xf32>
    %cst_127 = arith.constant 3.840000e+02 : f32
    %281 = vector.broadcast %cst_127 : f32 to vector<8x1xf32>
    %282 = arith.divf %280, %281 : vector<8x1xf32>
    %283 = vector.broadcast %282 : vector<8x1xf32> to vector<8x384xf32>
    %284 = arith.subf %278, %283 : vector<8x384xf32>
    %285 = arith.mulf %284, %284 : vector<8x384xf32>
    %cst_128 = arith.constant dense<0.000000e+00> : vector<8xf32>
    %286 = vector.multi_reduction <add>, %285, %cst_128 [1] : vector<8x384xf32> to vector<8xf32>
    %287 = vector.shape_cast %286 : vector<8xf32> to vector<8x1xf32>
    %cst_129 = arith.constant 3.840000e+02 : f32
    %288 = vector.broadcast %cst_129 : f32 to vector<8x1xf32>
    %289 = arith.divf %287, %288 : vector<8x1xf32>
    %cst_130 = arith.constant 9.99999974E-6 : f32
    %290 = vector.broadcast %cst_130 : f32 to vector<8x1xf32>
    %291 = arith.addf %289, %290 : vector<8x1xf32>
    %292 = math.rsqrt %291 : vector<8x1xf32>
    %293 = vector.broadcast %292 : vector<8x1xf32> to vector<8x384xf32>
    %294 = arith.mulf %284, %293 : vector<8x384xf32>
    %295 = vector.broadcast %43 : vector<1x384xf32> to vector<8x384xf32>
    %296 = arith.mulf %294, %295 : vector<8x384xf32>
    %297 = vector.broadcast %44 : vector<1x384xf32> to vector<8x384xf32>
    %298 = arith.addf %296, %297 : vector<8x384xf32>
    %299 = arith.truncf %298 : vector<8x384xf32> to vector<8x384xbf16>
    %cst_131 = arith.constant dense<0.000000e+00> : vector<8x1920xf32>
    %300 = tpu.matmul %299, %12, %cst_131 {dimension_numbers = #tpu.dot_dimension_numbers<[1], [0], [0], [1], [0, 0, 1, 1], [], []>} : vector<8x384xbf16>, vector<384x1920xbf16>, vector<8x1920xf32> -> vector<8x1920xf32>
    %301 = vector.broadcast %45 : vector<1x1920xf32> to vector<8x1920xf32>
    %302 = arith.addf %300, %301 : vector<8x1920xf32>
    %303 = vector.extract_strided_slice %302 {offsets = [0, 0], sizes = [8, 1536], strides = [1, 1]} : vector<8x1920xf32> to vector<8x1536xf32>
    %304 = vector.extract_strided_slice %302 {offsets = [0, 1536], sizes = [8, 384], strides = [1, 1]} : vector<8x1920xf32> to vector<8x384xf32>
    %cst_132 = arith.constant 0.000000e+00 : f32
    %305 = vector.broadcast %cst_132 : f32 to vector<8x1536xf32>
    %306 = arith.maximumf %303, %305 : vector<8x1536xf32>
    %307 = arith.truncf %306 : vector<8x1536xf32> to vector<8x1536xbf16>
    %cst_133 = arith.constant dense<0.000000e+00> : vector<8x384xf32>
    %308 = tpu.matmul %307, %13, %cst_133 {dimension_numbers = #tpu.dot_dimension_numbers<[1], [0], [0], [1], [0, 0, 1, 1], [], []>} : vector<8x1536xbf16>, vector<1536x384xbf16>, vector<8x384xf32> -> vector<8x384xf32>
    %309 = vector.broadcast %46 : vector<1x384xf32> to vector<8x384xf32>
    %310 = arith.addf %308, %309 : vector<8x384xf32>
    %311 = arith.addf %310, %278 : vector<8x384xf32>
    %312 = arith.addf %311, %304 : vector<8x384xf32>
    %313 = arith.addf %312, %197 : vector<8x384xf32>
    %314 = vector.extract_strided_slice %313 {offsets = [0, 0], sizes = [8, 128], strides = [1, 1]} : vector<8x384xf32> to vector<8x128xf32>
    %315 = arith.addf %314, %135 : vector<8x128xf32>
    %316 = vector.extract_strided_slice %313 {offsets = [0, 128], sizes = [8, 256], strides = [1, 1]} : vector<8x384xf32> to vector<8x256xf32>
    %317 = tpu.concatenate %315, %316 in 1 : vector<8x128xf32>, vector<8x256xf32> -> vector<8x384xf32>
    %318 = arith.truncf %317 : vector<8x384xf32> to vector<8x384xbf16>
    %cst_134 = arith.constant dense<0.000000e+00> : vector<8x128xf32>
    %319 = tpu.matmul %318, %14, %cst_134 {dimension_numbers = #tpu.dot_dimension_numbers<[1], [0], [0], [1], [0, 0, 1, 1], [], []>} : vector<8x384xbf16>, vector<384x128xbf16>, vector<8x128xf32> -> vector<8x128xf32>
    %320 = vector.broadcast %47 : vector<1x128xf32> to vector<8x128xf32>
    %321 = arith.addf %319, %320 : vector<8x128xf32>
    %c0_135 = arith.constant 0 : index
    %c0_136 = arith.constant 0 : index
    %322 = vector.load %arg20[%c0_135, %c0_136] : memref<8x128xf32, #tpu.memory_space<vmem>>, vector<8x128xf32>
    tpu.vector_store %arg20[%c0_135, %c0_136], %321 {strides = array<i32>} : memref<8x128xf32, #tpu.memory_space<vmem>>, vector<8x128xf32>,
    return
  }
  func.func @transform_0(%arg0: i32) -> (i32, i32) {
    %c0_i32 = arith.constant 0 : i32
    %c0_i32_0 = arith.constant 0 : i32
    return %arg0, %c0_i32 : i32, i32
  }
  func.func @transform_1(%arg0: i32) -> (i32, i32) {
    %c0_i32 = arith.constant 0 : i32
    %c0_i32_0 = arith.constant 0 : i32
    return %arg0, %c0_i32 : i32, i32
  }
  func.func @transform_2(%arg0: i32) -> (i32, i32) {
    %c0_i32 = arith.constant 0 : i32
    %c0_i32_0 = arith.constant 0 : i32
    return %arg0, %c0_i32 : i32, i32
  }
  func.func @transform_3(%arg0: i32) -> (i32, i32) {
    %c0_i32 = arith.constant 0 : i32
    %c0_i32_0 = arith.constant 0 : i32
    %c0_i32_1 = arith.constant 0 : i32
    return %c0_i32, %c0_i32_0 : i32, i32
  }
  func.func @transform_4(%arg0: i32) -> (i32, i32) {
    %c0_i32 = arith.constant 0 : i32
    %c0_i32_0 = arith.constant 0 : i32
    %c0_i32_1 = arith.constant 0 : i32
    return %c0_i32, %c0_i32_0 : i32, i32
  }
  func.func @transform_5(%arg0: i32) -> (i32, i32) {
    %c0_i32 = arith.constant 0 : i32
    %c0_i32_0 = arith.constant 0 : i32
    %c0_i32_1 = arith.constant 0 : i32
    return %c0_i32, %c0_i32_0 : i32, i32
  }
  func.func @transform_6(%arg0: i32) -> (i32, i32) {
    %c0_i32 = arith.constant 0 : i32
    %c0_i32_0 = arith.constant 0 : i32
    %c0_i32_1 = arith.constant 0 : i32
    return %c0_i32, %c0_i32_0 : i32, i32
  }
  func.func @transform_7(%arg0: i32) -> (i32, i32) {
    %c0_i32 = arith.constant 0 : i32
    %c0_i32_0 = arith.constant 0 : i32
    %c0_i32_1 = arith.constant 0 : i32
    return %c0_i32, %c0_i32_0 : i32, i32
  }
  func.func @transform_8(%arg0: i32) -> (i32, i32) {
    %c0_i32 = arith.constant 0 : i32
    %c0_i32_0 = arith.constant 0 : i32
    %c0_i32_1 = arith.constant 0 : i32
    return %c0_i32, %c0_i32_0 : i32, i32
  }
  func.func @transform_9(%arg0: i32) -> (i32, i32) {
    %c0_i32 = arith.constant 0 : i32
    %c0_i32_0 = arith.constant 0 : i32
    %c0_i32_1 = arith.constant 0 : i32
    return %c0_i32, %c0_i32_0 : i32, i32
  }
  func.func @transform_10(%arg0: i32) -> (i32, i32) {
    %c0_i32 = arith.constant 0 : i32
    %c0_i32_0 = arith.constant 0 : i32
    %c0_i32_1 = arith.constant 0 : i32
    return %c0_i32, %c0_i32_0 : i32, i32
  }
  func.func @transform_11(%arg0: i32) -> (i32, i32) {
    %c0_i32 = arith.constant 0 : i32
    %c0_i32_0 = arith.constant 0 : i32
    %c0_i32_1 = arith.constant 0 : i32
    return %c0_i32, %c0_i32_0 : i32, i32
  }
  func.func @transform_12(%arg0: i32) -> (i32, i32) {
    %c0_i32 = arith.constant 0 : i32
    %c0_i32_0 = arith.constant 0 : i32
    %c0_i32_1 = arith.constant 0 : i32
    return %c0_i32, %c0_i32_0 : i32, i32
  }
  func.func @transform_13(%arg0: i32) -> (i32, i32) {
    %c0_i32 = arith.constant 0 : i32
    %c0_i32_0 = arith.constant 0 : i32
    %c0_i32_1 = arith.constant 0 : i32
    return %c0_i32, %c0_i32_0 : i32, i32
  }
  func.func @transform_14(%arg0: i32) -> (i32, i32) {
    %c0_i32 = arith.constant 0 : i32
    %c0_i32_0 = arith.constant 0 : i32
    %c0_i32_1 = arith.constant 0 : i32
    return %c0_i32, %c0_i32_0 : i32, i32
  }
  func.func @transform_15(%arg0: i32) -> (i32, i32) {
    %c0_i32 = arith.constant 0 : i32
    %c0_i32_0 = arith.constant 0 : i32
    %c0_i32_1 = arith.constant 0 : i32
    return %c0_i32, %c0_i32_0 : i32, i32
  }
  func.func @transform_16(%arg0: i32) -> (i32, i32) {
    %c0_i32 = arith.constant 0 : i32
    %c0_i32_0 = arith.constant 0 : i32
    %c0_i32_1 = arith.constant 0 : i32
    return %c0_i32, %c0_i32_0 : i32, i32
  }
  func.func @transform_17(%arg0: i32) -> (i32, i32) {
    %c0_i32 = arith.constant 0 : i32
    %c0_i32_0 = arith.constant 0 : i32
    %c0_i32_1 = arith.constant 0 : i32
    return %c0_i32, %c0_i32_0 : i32, i32
  }
  func.func @transform_18(%arg0: i32) -> (i32, i32) {
    %c0_i32 = arith.constant 0 : i32
    %c0_i32_0 = arith.constant 0 : i32
    %c0_i32_1 = arith.constant 0 : i32
    return %c0_i32, %c0_i32_0 : i32, i32
  }
  func.func @transform_19(%arg0: i32) -> (i32, i32) {
    %c0_i32 = arith.constant 0 : i32
    %c0_i32_0 = arith.constant 0 : i32
    return %arg0, %c0_i32 : i32, i32
  }
}

</mosaic_0001>

<llo_original>
// kernel: tpu_custom_call.1
$region0: #{tpu_custom_call.1}
  #allocation0 [shape = 'u32[]', space=smem, size = 0x4, offset = 0x4, fixed_abs, tag = 'smem constant byte address 0x4 - core index']
  #allocation1 [shape = 'u32[144,128]{1,0:T(1,128)}', space=vmem, size = 0x12000, scoped, tag = 'internal scratch']
  %s0 = inlined_call_operand.hbm [shape: f32[8,32], index: 0, kind: input, shape index: {}]
  %s1 = inlined_call_operand.hbm [shape: f32[8,16], index: 1, kind: input, shape index: {}]
  %s2 = inlined_call_operand.hbm [shape: f32[8,64], index: 2, kind: input, shape index: {}]
  %s3 = inlined_call_operand.hbm [shape: f32[1,9728], index: 3, kind: input, shape index: {}]
  %s4 = inlined_call_operand.hbm [shape: bf16[32,128], index: 4, kind: input, shape index: {}]
  %s5 = inlined_call_operand.hbm [shape: bf16[128,128], index: 5, kind: input, shape index: {}]
  %s6 = inlined_call_operand.hbm [shape: bf16[128,512], index: 6, kind: input, shape index: {}]
  %s7 = inlined_call_operand.hbm [shape: bf16[512,128], index: 7, kind: input, shape index: {}]
  %s8 = inlined_call_operand.hbm [shape: bf16[16,128], index: 8, kind: input, shape index: {}]
  %s9 = inlined_call_operand.hbm [shape: bf16[128,128], index: 9, kind: input, shape index: {}]
  %s10 = inlined_call_operand.hbm [shape: bf16[256,256], index: 10, kind: input, shape index: {}]
  %s11 = inlined_call_operand.hbm [shape: bf16[256,384], index: 11, kind: input, shape index: {}]
  %s12 = inlined_call_operand.hbm [shape: bf16[64,128], index: 12, kind: input, shape index: {}]
  %s13 = inlined_call_operand.hbm [shape: bf16[128,128], index: 13, kind: input, shape index: {}]
  %s14 = inlined_call_operand.hbm [shape: bf16[128,512], index: 14, kind: input, shape index: {}]
  %s15 = inlined_call_operand.hbm [shape: bf16[512,128], index: 15, kind: input, shape index: {}]
  %s16 = inlined_call_operand.hbm [shape: bf16[384,1920], index: 16, kind: input, shape index: {}]
  %s17 = inlined_call_operand.hbm [shape: bf16[1536,384], index: 17, kind: input, shape index: {}]
  %s18 = inlined_call_operand.hbm [shape: bf16[384,128], index: 18, kind: input, shape index: {}]
  %s19 = inlined_call_operand.hbm [shape: f32[8,128], index: 19, kind: output, shape index: {}]
  %s20 = sld [smem:[#allocation0]]
  $region162: #{tpu_custom_call.1} parent=0
    _
  %s22 = ssub.s32 1, %s20
  %s23 = scalar_select 0, %s22, %s20
  $region1: #{tpu_custom_call.1} parent=0
    #allocation2 [shape = 'u8[4096]{0}', space=vmem, size = 0x1000, scoped, tag = 'input window, operand 0, single buffered']
    #allocation3 [shape = 's32[1]{0}', space=sflag, size = 0x4, scoped, tag = 'scoped memory for tpu_custom_call.1']
    #allocation4 [shape = 's32[1]{0}', space=sflag, size = 0x4, scoped, tag = 'scoped memory for tpu_custom_call.1']
    #allocation5 [shape = 'u8[4096]{0}', space=vmem, size = 0x1000, scoped, tag = 'input window, operand 1, single buffered']
    #allocation6 [shape = 's32[1]{0}', space=sflag, size = 0x4, scoped, tag = 'scoped memory for tpu_custom_call.1']
    #allocation7 [shape = 'u8[4096]{0}', space=vmem, size = 0x1000, scoped, tag = 'input window, operand 2, single buffered']
    #allocation8 [shape = 'u8[38912]{0}', space=vmem, size = 0x9800, scoped, tag = 'input window, operand 3, single buffered']
    #allocation9 [shape = 's32[1]{0}', space=sflag, size = 0x4, scoped, tag = 'scoped memory for tpu_custom_call.1']
    #allocation10 [shape = 'u8[8192]{0}', space=vmem, size = 0x2000, scoped, tag = 'input window, operand 4, single buffered']
    #allocation11 [shape = 'u8[32768]{0}', space=vmem, size = 0x8000, scoped, tag = 'input window, operand 5, single buffered']
    #allocation12 [shape = 's32[1]{0}', space=sflag, size = 0x4, scoped, tag = 'scoped memory for tpu_custom_call.1']
    #allocation13 [shape = 'u8[131072]{0}', space=vmem, size = 0x20000, scoped, tag = 'input window, operand 6, single buffered']
    #allocation14 [shape = 'u8[131072]{0}', space=vmem, size = 0x20000, scoped, tag = 'input window, operand 7, single buffered']
    #allocation15 [shape = 's32[1]{0}', space=sflag, size = 0x4, scoped, tag = 'scoped memory for tpu_custom_call.1']
    #allocation16 [shape = 'u8[4096]{0}', space=vmem, size = 0x1000, scoped, tag = 'input window, operand 8, single buffered']
    #allocation17 [shape = 'u8[32768]{0}', space=vmem, size = 0x8000, scoped, tag = 'input window, operand 9, single buffered']
    #allocation18 [shape = 's32[1]{0}', space=sflag, size = 0x4, scoped, tag = 'scoped memory for tpu_custom_call.1']
    #allocation19 [shape = 'u8[131072]{0}', space=vmem, size = 0x20000, scoped, tag = 'input window, operand 10, single buffered']
    #allocation20 [shape = 'u8[196608]{0}', space=vmem, size = 0x30000, scoped, tag = 'input window, operand 11, single buffered']
    #allocation21 [shape = 's32[1]{0}', space=sflag, size = 0x4, scoped, tag = 'scoped memory for tpu_custom_call.1']
    #allocation22 [shape = 'u8[16384]{0}', space=vmem, size = 0x4000, scoped, tag = 'input window, operand 12, single buffered']
    #allocation23 [shape = 'u8[32768]{0}', space=vmem, size = 0x8000, scoped, tag = 'input window, operand 13, single buffered']
    #allocation24 [shape = 's32[1]{0}', space=sflag, size = 0x4, scoped, tag = 'scoped memory for tpu_custom_call.1']
    #allocation25 [shape = 'u8[131072]{0}', space=vmem, size = 0x20000, scoped, tag = 'input window, operand 14, single buffered']
    #allocation26 [shape = 'u8[131072]{0}', space=vmem, size = 0x20000, scoped, tag = 'input window, operand 15, single buffered']
    #allocation27 [shape = 's32[1]{0}', space=sflag, size = 0x4, scoped, tag = 'scoped memory for tpu_custom_call.1']
    #allocation28 [shape = 'u8[1474560]{0}', space=vmem, size = 0x168000, scoped, tag = 'input window, operand 16, single buffered']
    #allocation29 [shape = 'u8[1179648]{0}', space=vmem, size = 0x120000, scoped, tag = 'input window, operand 17, single buffered']
    #allocation30 [shape = 's32[1]{0}', space=sflag, size = 0x4, scoped, tag = 'scoped memory for tpu_custom_call.1']
    #allocation31 [shape = 'u8[98304]{0}', space=vmem, size = 0x18000, scoped, tag = 'input window, operand 18, single buffered']
    #allocation32 [shape = 'u8[4096]{0}', space=vmem, size = 0x1000, scoped, tag = 'output window, operand 0, single buffered']
    %24 = vsyncpa [#allocation3], 0
    %25 = vsyncpa [#allocation6], 0
    %26 = vsyncpa [#allocation9], 0
    %27 = vsyncpa [#allocation12], 0
    %28 = vsyncpa [#allocation15], 0
    %29 = vsyncpa [#allocation18], 0
    %30 = vsyncpa [#allocation21], 0
    %31 = vsyncpa [#allocation24], 0
    %32 = vsyncpa [#allocation27], 0
    %33 = vsyncpa [#allocation30], 0
    %34 = vsyncpa [#allocation4], 0
    // Predicated region
    $region2: #{tpu_custom_call.1} parent=1 // pred_check
      _
    $region3: #{tpu_custom_call.1} parent=1 // pred_check_branch
      %36 = sbr.rel (0) target = $region5
    $region4: #{tpu_custom_call.1} parent=1 // pred_region
      %s38 = ssub.s32 128, 128
      %39 = vsyncadd [#allocation3], %s38
      %s41 = sshll.u32 [#allocation2], 4
      %s42 = int_to_ptr.vmem [resolvable:$true] %s41
      %44 = dma.hbm_to_vmem [thread:$0]  %s0, 128, %s42, [#allocation3]
    $region5: #{tpu_custom_call.1} parent=1 // pred_fallthru
      _
    // Predicated region
    $region6: #{tpu_custom_call.1} parent=1 // pred_check
      _
    $region7: #{tpu_custom_call.1} parent=1 // pred_check_branch
      %46 = sbr.rel (0) target = $region9
    $region8: #{tpu_custom_call.1} parent=1 // pred_region
      %s48 = ssub.s32 128, 128
      %49 = vsyncadd [#allocation6], %s48
      %s51 = sshll.u32 [#allocation5], 4
      %s52 = int_to_ptr.vmem [resolvable:$true] %s51
      %54 = dma.hbm_to_vmem [thread:$0]  %s1, 128, %s52, [#allocation6]
    $region9: #{tpu_custom_call.1} parent=1 // pred_fallthru
      _
    // Predicated region
    $region10: #{tpu_custom_call.1} parent=1 // pred_check
      _
    $region11: #{tpu_custom_call.1} parent=1 // pred_check_branch
      %56 = sbr.rel (0) target = $region13
    $region12: #{tpu_custom_call.1} parent=1 // pred_region
      %s58 = ssub.s32 128, 128
      %59 = vsyncadd [#allocation6], %s58
      %s61 = sshll.u32 [#allocation7], 4
      %s62 = int_to_ptr.vmem [resolvable:$true] %s61
      %64 = dma.hbm_to_vmem [thread:$0]  %s2, 128, %s62, [#allocation6]
    $region13: #{tpu_custom_call.1} parent=1 // pred_fallthru
      _
    // Predicated region
    $region14: #{tpu_custom_call.1} parent=1 // pred_check
      _
    $region15: #{tpu_custom_call.1} parent=1 // pred_check_branch
      %66 = sbr.rel (0) target = $region17
    $region16: #{tpu_custom_call.1} parent=1 // pred_region
      %s68 = ssub.s32 1216, 1216
      %69 = vsyncadd [#allocation9], %s68
      %s71 = sshll.u32 [#allocation8], 4
      %s72 = int_to_ptr.vmem [resolvable:$true] %s71
      %74 = dma.hbm_to_vmem [thread:$0]  %s3, 1216, %s72, [#allocation9]
    $region17: #{tpu_custom_call.1} parent=1 // pred_fallthru
      _
    // Predicated region
    $region18: #{tpu_custom_call.1} parent=1 // pred_check
      _
    $region19: #{tpu_custom_call.1} parent=1 // pred_check_branch
      %76 = sbr.rel (0) target = $region21
    $region20: #{tpu_custom_call.1} parent=1 // pred_region
      %s78 = ssub.s32 256, 256
      %79 = vsyncadd [#allocation9], %s78
      %s80 = sshll.u32 [#allocation10], 4
      %s81 = int_to_ptr.vmem [resolvable:$true] %s80
      %86 = dma.hbm_to_vmem [thread:$0]  %s4, 256, %s81, [#allocation9], 64, 64, 4
    $region21: #{tpu_custom_call.1} parent=1 // pred_fallthru
      _
    // Predicated region
    $region22: #{tpu_custom_call.1} parent=1 // pred_check
      _
    $region23: #{tpu_custom_call.1} parent=1 // pred_check_branch
      %88 = sbr.rel (0) target = $region25
    $region24: #{tpu_custom_call.1} parent=1 // pred_region
      %s90 = ssub.s32 1024, 1024
      %91 = vsyncadd [#allocation12], %s90
      %s92 = sshll.u32 [#allocation11], 4
      %s93 = int_to_ptr.vmem [resolvable:$true] %s92
      %98 = dma.hbm_to_vmem [thread:$0]  %s5, 1024, %s93, [#allocation12], 64, 64, 4
    $region25: #{tpu_custom_call.1} parent=1 // pred_fallthru
      _
    // Predicated region
    $region26: #{tpu_custom_call.1} parent=1 // pred_check
      _
    $region27: #{tpu_custom_call.1} parent=1 // pred_check_branch
      %100 = sbr.rel (0) target = $region29
    $region28: #{tpu_custom_call.1} parent=1 // pred_region
      %s102 = ssub.s32 4096, 4096
      %103 = vsyncadd [#allocation12], %s102
      %s104 = sshll.u32 [#allocation13], 4
      %s105 = int_to_ptr.vmem [resolvable:$true] %s104
      %110 = dma.hbm_to_vmem [thread:$0]  %s6, 4096, %s105, [#allocation12], 256, 256, 16
    $region29: #{tpu_custom_call.1} parent=1 // pred_fallthru
      _
    // Predicated region
    $region30: #{tpu_custom_call.1} parent=1 // pred_check
      _
    $region31: #{tpu_custom_call.1} parent=1 // pred_check_branch
      %112 = sbr.rel (0) target = $region33
    $region32: #{tpu_custom_call.1} parent=1 // pred_region
      %s114 = ssub.s32 4096, 4096
      %115 = vsyncadd [#allocation15], %s114
      %s116 = sshll.u32 [#allocation14], 4
      %s117 = int_to_ptr.vmem [resolvable:$true] %s116
      %122 = dma.hbm_to_vmem [thread:$0]  %s7, 4096, %s117, [#allocation15], 64, 64, 4
    $region33: #{tpu_custom_call.1} parent=1 // pred_fallthru
      _
    // Predicated region
    $region34: #{tpu_custom_call.1} parent=1 // pred_check
      _
    $region35: #{tpu_custom_call.1} parent=1 // pred_check_branch
      %124 = sbr.rel (0) target = $region37
    $region36: #{tpu_custom_call.1} parent=1 // pred_region
      %s126 = ssub.s32 128, 128
      %127 = vsyncadd [#allocation15], %s126
      %s128 = sshll.u32 [#allocation16], 4
      %s129 = int_to_ptr.vmem [resolvable:$true] %s128
      %134 = dma.hbm_to_vmem [thread:$0]  %s8, 128, %s129, [#allocation15], 64, 64, 4
    $region37: #{tpu_custom_call.1} parent=1 // pred_fallthru
      _
    // Predicated region
    $region38: #{tpu_custom_call.1} parent=1 // pred_check
      _
    $region39: #{tpu_custom_call.1} parent=1 // pred_check_branch
      %136 = sbr.rel (0) target = $region41
    $region40: #{tpu_custom_call.1} parent=1 // pred_region
      %s138 = ssub.s32 1024, 1024
      %139 = vsyncadd [#allocation18], %s138
      %s140 = sshll.u32 [#allocation17], 4
      %s141 = int_to_ptr.vmem [resolvable:$true] %s140
      %146 = dma.hbm_to_vmem [thread:$0]  %s9, 1024, %s141, [#allocation18], 64, 64, 4
    $region41: #{tpu_custom_call.1} parent=1 // pred_fallthru
      _
    // Predicated region
    $region42: #{tpu_custom_call.1} parent=1 // pred_check
      _
    $region43: #{tpu_custom_call.1} parent=1 // pred_check_branch
      %148 = sbr.rel (0) target = $region45
    $region44: #{tpu_custom_call.1} parent=1 // pred_region
      %s150 = ssub.s32 4096, 4096
      %151 = vsyncadd [#allocation18], %s150
      %s152 = sshll.u32 [#allocation19], 4
      %s153 = int_to_ptr.vmem [resolvable:$true] %s152
      %158 = dma.hbm_to_vmem [thread:$0]  %s10, 4096, %s153, [#allocation18], 128, 128, 8
    $region45: #{tpu_custom_call.1} parent=1 // pred_fallthru
      _
    // Predicated region
    $region46: #{tpu_custom_call.1} parent=1 // pred_check
      _
    $region47: #{tpu_custom_call.1} parent=1 // pred_check_branch
      %160 = sbr.rel (0) target = $region49
    $region48: #{tpu_custom_call.1} parent=1 // pred_region
      %s162 = ssub.s32 6144, 6144
      %163 = vsyncadd [#allocation21], %s162
      %s164 = sshll.u32 [#allocation20], 4
      %s165 = int_to_ptr.vmem [resolvable:$true] %s164
      %170 = dma.hbm_to_vmem [thread:$0]  %s11, 6144, %s165, [#allocation21], 192, 192, 12
    $region49: #{tpu_custom_call.1} parent=1 // pred_fallthru
      _
    // Predicated region
    $region50: #{tpu_custom_call.1} parent=1 // pred_check
      _
    $region51: #{tpu_custom_call.1} parent=1 // pred_check_branch
      %172 = sbr.rel (0) target = $region53
    $region52: #{tpu_custom_call.1} parent=1 // pred_region
      %s174 = ssub.s32 512, 512
      %175 = vsyncadd [#allocation21], %s174
      %s176 = sshll.u32 [#allocation22], 4
      %s177 = int_to_ptr.vmem [resolvable:$true] %s176
      %182 = dma.hbm_to_vmem [thread:$0]  %s12, 512, %s177, [#allocation21], 64, 64, 4
    $region53: #{tpu_custom_call.1} parent=1 // pred_fallthru
      _
    // Predicated region
    $region54: #{tpu_custom_call.1} parent=1 // pred_check
      _
    $region55: #{tpu_custom_call.1} parent=1 // pred_check_branch
      %184 = sbr.rel (0) target = $region57
    $region56: #{tpu_custom_call.1} parent=1 // pred_region
      %s186 = ssub.s32 1024, 1024
      %187 = vsyncadd [#allocation24], %s186
      %s188 = sshll.u32 [#allocation23], 4
      %s189 = int_to_ptr.vmem [resolvable:$true] %s188
      %194 = dma.hbm_to_vmem [thread:$0]  %s13, 1024, %s189, [#allocation24], 64, 64, 4
    $region57: #{tpu_custom_call.1} parent=1 // pred_fallthru
      _
    // Predicated region
    $region58: #{tpu_custom_call.1} parent=1 // pred_check
      _
    $region59: #{tpu_custom_call.1} parent=1 // pred_check_branch
      %196 = sbr.rel (0) target = $region61
    $region60: #{tpu_custom_call.1} parent=1 // pred_region
      %s198 = ssub.s32 4096, 4096
      %199 = vsyncadd [#allocation24], %s198
      %s200 = sshll.u32 [#allocation25], 4
      %s201 = int_to_ptr.vmem [resolvable:$true] %s200
      %206 = dma.hbm_to_vmem [thread:$0]  %s14, 4096, %s201, [#allocation24], 256, 256, 16
    $region61: #{tpu_custom_call.1} parent=1 // pred_fallthru
      _
    // Predicated region
    $region62: #{tpu_custom_call.1} parent=1 // pred_check
      _
    $region63: #{tpu_custom_call.1} parent=1 // pred_check_branch
      %208 = sbr.rel (0) target = $region65
    $region64: #{tpu_custom_call.1} parent=1 // pred_region
      %s210 = ssub.s32 4096, 4096
      %211 = vsyncadd [#allocation27], %s210
      %s212 = sshll.u32 [#allocation26], 4
      %s213 = int_to_ptr.vmem [resolvable:$true] %s212
      %218 = dma.hbm_to_vmem [thread:$0]  %s15, 4096, %s213, [#allocation27], 64, 64, 4
    $region65: #{tpu_custom_call.1} parent=1 // pred_fallthru
      _
    // Predicated region
    $region66: #{tpu_custom_call.1} parent=1 // pred_check
      _
    $region67: #{tpu_custom_call.1} parent=1 // pred_check_branch
      %220 = sbr.rel (0) target = $region69
    $region68: #{tpu_custom_call.1} parent=1 // pred_region
      %s222 = ssub.s32 46080, 46080
      %223 = vsyncadd [#allocation27], %s222
      %s224 = sshll.u32 [#allocation28], 4
      %s225 = int_to_ptr.vmem [resolvable:$true] %s224
      %230 = dma.hbm_to_vmem [thread:$0]  %s16, 46080, %s225, [#allocation27], 960, 960, 60
    $region69: #{tpu_custom_call.1} parent=1 // pred_fallthru
      _
    // Predicated region
    $region70: #{tpu_custom_call.1} parent=1 // pred_check
      _
    $region71: #{tpu_custom_call.1} parent=1 // pred_check_branch
      %232 = sbr.rel (0) target = $region73
    $region72: #{tpu_custom_call.1} parent=1 // pred_region
      %s234 = ssub.s32 36864, 36864
      %235 = vsyncadd [#allocation30], %s234
      %s236 = sshll.u32 [#allocation29], 4
      %s237 = int_to_ptr.vmem [resolvable:$true] %s236
      %242 = dma.hbm_to_vmem [thread:$0]  %s17, 36864, %s237, [#allocation30], 192, 192, 12
    $region73: #{tpu_custom_call.1} parent=1 // pred_fallthru
      _
    // Predicated region
    $region74: #{tpu_custom_call.1} parent=1 // pred_check
      _
    $region75: #{tpu_custom_call.1} parent=1 // pred_check_branch
      %244 = sbr.rel (0) target = $region77
    $region76: #{tpu_custom_call.1} parent=1 // pred_region
      %s246 = ssub.s32 3072, 3072
      %247 = vsyncadd [#allocation30], %s246
      %s248 = sshll.u32 [#allocation31], 4
      %s249 = int_to_ptr.vmem [resolvable:$true] %s248
      %254 = dma.hbm_to_vmem [thread:$0]  %s18, 3072, %s249, [#allocation30], 64, 64, 4
    $region77: #{tpu_custom_call.1} parent=1 // pred_fallthru
      _
    // Predicated region
    $region78: #{tpu_custom_call.1} parent=1 // pred_check
      _
    $region79: #{tpu_custom_call.1} parent=1 // pred_check_branch
      %256 = sbr.rel (0) target = $region81
    $region80: #{tpu_custom_call.1} parent=1 // pred_region
      %257 = dma.done [#allocation3], 128
    $region81: #{tpu_custom_call.1} parent=1 // pred_fallthru
      _
    // Predicated region
    $region82: #{tpu_custom_call.1} parent=1 // pred_check
      _
    $region83: #{tpu_custom_call.1} parent=1 // pred_check_branch
      %259 = sbr.rel (0) target = $region85
    $region84: #{tpu_custom_call.1} parent=1 // pred_region
      %260 = dma.done [#allocation6], 128
    $region85: #{tpu_custom_call.1} parent=1 // pred_fallthru
      _
    // Predicated region
    $region86: #{tpu_custom_call.1} parent=1 // pred_check
      _
    $region87: #{tpu_custom_call.1} parent=1 // pred_check_branch
      %262 = sbr.rel (0) target = $region89
    $region88: #{tpu_custom_call.1} parent=1 // pred_region
      %263 = dma.done [#allocation6], 128
    $region89: #{tpu_custom_call.1} parent=1 // pred_fallthru
      _
    // Predicated region
    $region90: #{tpu_custom_call.1} parent=1 // pred_check
      _
    $region91: #{tpu_custom_call.1} parent=1 // pred_check_branch
      %265 = sbr.rel (0) target = $region93
    $region92: #{tpu_custom_call.1} parent=1 // pred_region
      %266 = dma.done [#allocation9], 1216
    $region93: #{tpu_custom_call.1} parent=1 // pred_fallthru
      _
    // Predicated region
    $region94: #{tpu_custom_call.1} parent=1 // pred_check
      _
    $region95: #{tpu_custom_call.1} parent=1 // pred_check_branch
      %268 = sbr.rel (0) target = $region97
    $region96: #{tpu_custom_call.1} parent=1 // pred_region
      %269 = dma.done [#allocation9], 256
    $region97: #{tpu_custom_call.1} parent=1 // pred_fallthru
      _
    // Predicated region
    $region98: #{tpu_custom_call.1} parent=1 // pred_check
      _
    $region99: #{tpu_custom_call.1} parent=1 // pred_check_branch
      %271 = sbr.rel (0) target = $region101
    $region100: #{tpu_custom_call.1} parent=1 // pred_region
      %272 = dma.done [#allocation12], 1024
    $region101: #{tpu_custom_call.1} parent=1 // pred_fallthru
      _
    // Predicated region
    $region102: #{tpu_custom_call.1} parent=1 // pred_check
      _
    $region103: #{tpu_custom_call.1} parent=1 // pred_check_branch
      %274 = sbr.rel (0) target = $region105
    $region104: #{tpu_custom_call.1} parent=1 // pred_region
      %275 = dma.done [#allocation12], 4096
    $region105: #{tpu_custom_call.1} parent=1 // pred_fallthru
      _
    // Predicated region
    $region106: #{tpu_custom_call.1} parent=1 // pred_check
      _
    $region107: #{tpu_custom_call.1} parent=1 // pred_check_branch
      %277 = sbr.rel (0) target = $region109
    $region108: #{tpu_custom_call.1} parent=1 // pred_region
      %278 = dma.done [#allocation15], 4096
    $region109: #{tpu_custom_call.1} parent=1 // pred_fallthru
      _
    // Predicated region
    $region110: #{tpu_custom_call.1} parent=1 // pred_check
      _
    $region111: #{tpu_custom_call.1} parent=1 // pred_check_branch
      %280 = sbr.rel (0) target = $region113
    $region112: #{tpu_custom_call.1} parent=1 // pred_region
      %281 = dma.done [#allocation15], 128
    $region113: #{tpu_custom_call.1} parent=1 // pred_fallthru
      _
    // Predicated region
    $region114: #{tpu_custom_call.1} parent=1 // pred_check
      _
    $region115: #{tpu_custom_call.1} parent=1 // pred_check_branch
      %283 = sbr.rel (0) target = $region117
    $region116: #{tpu_custom_call.1} parent=1 // pred_region
      %284 = dma.done [#allocation18], 1024
    $region117: #{tpu_custom_call.1} parent=1 // pred_fallthru
      _
    // Predicated region
    $region118: #{tpu_custom_call.1} parent=1 // pred_check
      _
    $region119: #{tpu_custom_call.1} parent=1 // pred_check_branch
      %286 = sbr.rel (0) target = $region121
    $region120: #{tpu_custom_call.1} parent=1 // pred_region
      %287 = dma.done [#allocation18], 4096
    $region121: #{tpu_custom_call.1} parent=1 // pred_fallthru
      _
    // Predicated region
    $region122: #{tpu_custom_call.1} parent=1 // pred_check
      _
    $region123: #{tpu_custom_call.1} parent=1 // pred_check_branch
      %289 = sbr.rel (0) target = $region125
    $region124: #{tpu_custom_call.1} parent=1 // pred_region
      %290 = dma.done [#allocation21], 6144
    $region125: #{tpu_custom_call.1} parent=1 // pred_fallthru
      _
    // Predicated region
    $region126: #{tpu_custom_call.1} parent=1 // pred_check
      _
    $region127: #{tpu_custom_call.1} parent=1 // pred_check_branch
      %292 = sbr.rel (0) target = $region129
    $region128: #{tpu_custom_call.1} parent=1 // pred_region
      %293 = dma.done [#allocation21], 512
    $region129: #{tpu_custom_call.1} parent=1 // pred_fallthru
      _
    // Predicated region
    $region130: #{tpu_custom_call.1} parent=1 // pred_check
      _
    $region131: #{tpu_custom_call.1} parent=1 // pred_check_branch
      %295 = sbr.rel (0) target = $region133
    $region132: #{tpu_custom_call.1} parent=1 // pred_region
      %296 = dma.done [#allocation24], 1024
    $region133: #{tpu_custom_call.1} parent=1 // pred_fallthru
      _
    // Predicated region
    $region134: #{tpu_custom_call.1} parent=1 // pred_check
      _
    $region135: #{tpu_custom_call.1} parent=1 // pred_check_branch
      %298 = sbr.rel (0) target = $region137
    $region136: #{tpu_custom_call.1} parent=1 // pred_region
      %299 = dma.done [#allocation24], 4096
    $region137: #{tpu_custom_call.1} parent=1 // pred_fallthru
      _
    // Predicated region
    $region138: #{tpu_custom_call.1} parent=1 // pred_check
      _
    $region139: #{tpu_custom_call.1} parent=1 // pred_check_branch
      %301 = sbr.rel (0) target = $region141
    $region140: #{tpu_custom_call.1} parent=1 // pred_region
      %302 = dma.done [#allocation27], 4096
    $region141: #{tpu_custom_call.1} parent=1 // pred_fallthru
      _
    // Predicated region
    $region142: #{tpu_custom_call.1} parent=1 // pred_check
      _
    $region143: #{tpu_custom_call.1} parent=1 // pred_check_branch
      %304 = sbr.rel (0) target = $region145
    $region144: #{tpu_custom_call.1} parent=1 // pred_region
      %305 = dma.done [#allocation27], 46080
    $region145: #{tpu_custom_call.1} parent=1 // pred_fallthru
      _
    // Predicated region
    $region146: #{tpu_custom_call.1} parent=1 // pred_check
      _
    $region147: #{tpu_custom_call.1} parent=1 // pred_check_branch
      %307 = sbr.rel (0) target = $region149
    $region148: #{tpu_custom_call.1} parent=1 // pred_region
      %308 = dma.done [#allocation30], 36864
    $region149: #{tpu_custom_call.1} parent=1 // pred_fallthru
      _
    // Predicated region
    $region150: #{tpu_custom_call.1} parent=1 // pred_check
      _
    $region151: #{tpu_custom_call.1} parent=1 // pred_check_branch
      %310 = sbr.rel (0) target = $region153
    $region152: #{tpu_custom_call.1} parent=1 // pred_region
      %311 = dma.done [#allocation30], 3072
    $region153: #{tpu_custom_call.1} parent=1 // pred_fallthru
      _
    %v313 = vld [vmem:[#allocation10] sm:$0xf]
    %v314 = vld [vmem:[#allocation10 + $0x4] sm:$0xf]
    %v315 = vld [vmem:[#allocation10 + $0x8] sm:$0xf]
    %v316 = vld [vmem:[#allocation10 + $0xc] sm:$0xf]
    %v317 = vld [vmem:[#allocation11] sm:$0xf]
    %v318 = vld [vmem:[#allocation11 + $0x4] sm:$0xf]
    %v319 = vld [vmem:[#allocation11 + $0x8] sm:$0xf]
    %v320 = vld [vmem:[#allocation11 + $0xc] sm:$0xf]
    %v321 = vld [vmem:[#allocation11 + $0x10] sm:$0xf]
    %v322 = vld [vmem:[#allocation11 + $0x14] sm:$0xf]
    %v323 = vld [vmem:[#allocation11 + $0x18] sm:$0xf]
    %v324 = vld [vmem:[#allocation11 + $0x1c] sm:$0xf]
    %v325 = vld [vmem:[#allocation11 + $0x20] sm:$0xf]
    %v326 = vld [vmem:[#allocation11 + $0x24] sm:$0xf]
    %v327 = vld [vmem:[#allocation11 + $0x28] sm:$0xf]
    %v328 = vld [vmem:[#allocation11 + $0x2c] sm:$0xf]
    %v329 = vld [vmem:[#allocation11 + $0x30] sm:$0xf]
    %v330 = vld [vmem:[#allocation11 + $0x34] sm:$0xf]
    %v331 = vld [vmem:[#allocation11 + $0x38] sm:$0xf]
    %v332 = vld [vmem:[#allocation11 + $0x3c] sm:$0xf]
    %v333 = vld [vmem:[#allocation13] sm:$0xff]
    %v334 = vld [vmem:[#allocation13 + $0x8] sm:$0xff]
    %v335 = vld [vmem:[#allocation13 + $0x10] sm:$0xff]
    %v336 = vld [vmem:[#allocation13 + $0x18] sm:$0xff]
    %v337 = vld [vmem:[#allocation13 + $0x20] sm:$0xff]
    %v338 = vld [vmem:[#allocation13 + $0x28] sm:$0xff]
    %v339 = vld [vmem:[#allocation13 + $0x30] sm:$0xff]
    %v340 = vld [vmem:[#allocation13 + $0x38] sm:$0xff]
    %v341 = vld [vmem:[#allocation13 + $0x40] sm:$0xff]
    %v342 = vld [vmem:[#allocation13 + $0x48] sm:$0xff]
    %v343 = vld [vmem:[#allocation13 + $0x50] sm:$0xff]
    %v344 = vld [vmem:[#allocation13 + $0x58] sm:$0xff]
    %v345 = vld [vmem:[#allocation13 + $0x60] sm:$0xff]
    %v346 = vld [vmem:[#allocation13 + $0x68] sm:$0xff]
    %v347 = vld [vmem:[#allocation13 + $0x70] sm:$0xff]
    %v348 = vld [vmem:[#allocation13 + $0x78] sm:$0xff]
    %v349 = vld [vmem:[#allocation13 + $0x80] sm:$0xff]
    %v350 = vld [vmem:[#allocation13 + $0x88] sm:$0xff]
    %v351 = vld [vmem:[#allocation13 + $0x90] sm:$0xff]
    %v352 = vld [vmem:[#allocation13 + $0x98] sm:$0xff]
    %v353 = vld [vmem:[#allocation13 + $0xa0] sm:$0xff]
    %v354 = vld [vmem:[#allocation13 + $0xa8] sm:$0xff]
    %v355 = vld [vmem:[#allocation13 + $0xb0] sm:$0xff]
    %v356 = vld [vmem:[#allocation13 + $0xb8] sm:$0xff]
    %v357 = vld [vmem:[#allocation13 + $0xc0] sm:$0xff]
    %v358 = vld [vmem:[#allocation13 + $0xc8] sm:$0xff]
    %v359 = vld [vmem:[#allocation13 + $0xd0] sm:$0xff]
    %v360 = vld [vmem:[#allocation13 + $0xd8] sm:$0xff]
    %v361 = vld [vmem:[#allocation13 + $0xe0] sm:$0xff]
    %v362 = vld [vmem:[#allocation13 + $0xe8] sm:$0xff]
    %v363 = vld [vmem:[#allocation13 + $0xf0] sm:$0xff]
    %v364 = vld [vmem:[#allocation13 + $0xf8] sm:$0xff]
    %v365 = vld [vmem:[#allocation14] sm:$0xf]
    %v366 = vld [vmem:[#allocation14 + $0x4] sm:$0xf]
    %v367 = vld [vmem:[#allocation14 + $0x8] sm:$0xf]
    %v368 = vld [vmem:[#allocation14 + $0xc] sm:$0xf]
    %v369 = vld [vmem:[#allocation14 + $0x10] sm:$0xf]
    %v370 = vld [vmem:[#allocation14 + $0x14] sm:$0xf]
    %v371 = vld [vmem:[#allocation14 + $0x18] sm:$0xf]
    %v372 = vld [vmem:[#allocation14 + $0x1c] sm:$0xf]
    %v373 = vld [vmem:[#allocation14 + $0x20] sm:$0xf]
    %v374 = vld [vmem:[#allocation14 + $0x24] sm:$0xf]
    %v375 = vld [vmem:[#allocation14 + $0x28] sm:$0xf]
    %v376 = vld [vmem:[#allocation14 + $0x2c] sm:$0xf]
    %v377 = vld [vmem:[#allocation14 + $0x30] sm:$0xf]
    %v378 = vld [vmem:[#allocation14 + $0x34] sm:$0xf]
    %v379 = vld [vmem:[#allocation14 + $0x38] sm:$0xf]
    %v380 = vld [vmem:[#allocation14 + $0x3c] sm:$0xf]
    %v381 = vld [vmem:[#allocation14 + $0x40] sm:$0xf]
    %v382 = vld [vmem:[#allocation14 + $0x44] sm:$0xf]
    %v383 = vld [vmem:[#allocation14 + $0x48] sm:$0xf]
    %v384 = vld [vmem:[#allocation14 + $0x4c] sm:$0xf]
    %v385 = vld [vmem:[#allocation14 + $0x50] sm:$0xf]
    %v386 = vld [vmem:[#allocation14 + $0x54] sm:$0xf]
    %v387 = vld [vmem:[#allocation14 + $0x58] sm:$0xf]
    %v388 = vld [vmem:[#allocation14 + $0x5c] sm:$0xf]
    %v389 = vld [vmem:[#allocation14 + $0x60] sm:$0xf]
    %v390 = vld [vmem:[#allocation14 + $0x64] sm:$0xf]
    %v391 = vld [vmem:[#allocation14 + $0x68] sm:$0xf]
    %v392 = vld [vmem:[#allocation14 + $0x6c] sm:$0xf]
    %v393 = vld [vmem:[#allocation14 + $0x70] sm:$0xf]
    %v394 = vld [vmem:[#allocation14 + $0x74] sm:$0xf]
    %v395 = vld [vmem:[#allocation14 + $0x78] sm:$0xf]
    %v396 = vld [vmem:[#allocation14 + $0x7c] sm:$0xf]
    %v397 = vld [vmem:[#allocation14 + $0x80] sm:$0xf]
    %v398 = vld [vmem:[#allocation14 + $0x84] sm:$0xf]
    %v399 = vld [vmem:[#allocation14 + $0x88] sm:$0xf]
    %v400 = vld [vmem:[#allocation14 + $0x8c] sm:$0xf]
    %v401 = vld [vmem:[#allocation14 + $0x90] sm:$0xf]
    %v402 = vld [vmem:[#allocation14 + $0x94] sm:$0xf]
    %v403 = vld [vmem:[#allocation14 + $0x98] sm:$0xf]
    %v404 = vld [vmem:[#allocation14 + $0x9c] sm:$0xf]
    %v405 = vld [vmem:[#allocation14 + $0xa0] sm:$0xf]
    %v406 = vld [vmem:[#allocation14 + $0xa4] sm:$0xf]
    %v407 = vld [vmem:[#allocation14 + $0xa8] sm:$0xf]
    %v408 = vld [vmem:[#allocation14 + $0xac] sm:$0xf]
    %v409 = vld [vmem:[#allocation14 + $0xb0] sm:$0xf]
    %v410 = vld [vmem:[#allocation14 + $0xb4] sm:$0xf]
    %v411 = vld [vmem:[#allocation14 + $0xb8] sm:$0xf]
    %v412 = vld [vmem:[#allocation14 + $0xbc] sm:$0xf]
    %v413 = vld [vmem:[#allocation14 + $0xc0] sm:$0xf]
    %v414 = vld [vmem:[#allocation14 + $0xc4] sm:$0xf]
    %v415 = vld [vmem:[#allocation14 + $0xc8] sm:$0xf]
    %v416 = vld [vmem:[#allocation14 + $0xcc] sm:$0xf]
    %v417 = vld [vmem:[#allocation14 + $0xd0] sm:$0xf]
    %v418 = vld [vmem:[#allocation14 + $0xd4] sm:$0xf]
    %v419 = vld [vmem:[#allocation14 + $0xd8] sm:$0xf]
    %v420 = vld [vmem:[#allocation14 + $0xdc] sm:$0xf]
    %v421 = vld [vmem:[#allocation14 + $0xe0] sm:$0xf]
    %v422 = vld [vmem:[#allocation14 + $0xe4] sm:$0xf]
    %v423 = vld [vmem:[#allocation14 + $0xe8] sm:$0xf]
    %v424 = vld [vmem:[#allocation14 + $0xec] sm:$0xf]
    %v425 = vld [vmem:[#allocation14 + $0xf0] sm:$0xf]
    %v426 = vld [vmem:[#allocation14 + $0xf4] sm:$0xf]
    %v427 = vld [vmem:[#allocation14 + $0xf8] sm:$0xf]
    %v428 = vld [vmem:[#allocation14 + $0xfc] sm:$0xf]
    %v429 = vld [vmem:[#allocation16] sm:$0xf]
    %v430 = vld [vmem:[#allocation16 + $0x4] sm:$0xf]
    %v431 = vld [vmem:[#allocation17] sm:$0xf]
    %v432 = vld [vmem:[#allocation17 + $0x4] sm:$0xf]
    %v433 = vld [vmem:[#allocation17 + $0x8] sm:$0xf]
    %v434 = vld [vmem:[#allocation17 + $0xc] sm:$0xf]
    %v435 = vld [vmem:[#allocation17 + $0x10] sm:$0xf]
    %v436 = vld [vmem:[#allocation17 + $0x14] sm:$0xf]
    %v437 = vld [vmem:[#allocation17 + $0x18] sm:$0xf]
    %v438 = vld [vmem:[#allocation17 + $0x1c] sm:$0xf]
    %v439 = vld [vmem:[#allocation17 + $0x20] sm:$0xf]
    %v440 = vld [vmem:[#allocation17 + $0x24] sm:$0xf]
    %v441 = vld [vmem:[#allocation17 + $0x28] sm:$0xf]
    %v442 = vld [vmem:[#allocation17 + $0x2c] sm:$0xf]
    %v443 = vld [vmem:[#allocation17 + $0x30] sm:$0xf]
    %v444 = vld [vmem:[#allocation17 + $0x34] sm:$0xf]
    %v445 = vld [vmem:[#allocation17 + $0x38] sm:$0xf]
    %v446 = vld [vmem:[#allocation17 + $0x3c] sm:$0xf]
    %v447 = vld [vmem:[#allocation19] sm:$0xff]
    %v448 = vld [vmem:[#allocation19 + $0x8] sm:$0xff]
    %v449 = vld [vmem:[#allocation19 + $0x10] sm:$0xff]
    %v450 = vld [vmem:[#allocation19 + $0x18] sm:$0xff]
    %v451 = vld [vmem:[#allocation19 + $0x20] sm:$0xff]
    %v452 = vld [vmem:[#allocation19 + $0x28] sm:$0xff]
    %v453 = vld [vmem:[#allocation19 + $0x30] sm:$0xff]
    %v454 = vld [vmem:[#allocation19 + $0x38] sm:$0xff]
    %v455 = vld [vmem:[#allocation19 + $0x40] sm:$0xff]
    %v456 = vld [vmem:[#allocation19 + $0x48] sm:$0xff]
    %v457 = vld [vmem:[#allocation19 + $0x50] sm:$0xff]
    %v458 = vld [vmem:[#allocation19 + $0x58] sm:$0xff]
    %v459 = vld [vmem:[#allocation19 + $0x60] sm:$0xff]
    %v460 = vld [vmem:[#allocation19 + $0x68] sm:$0xff]
    %v461 = vld [vmem:[#allocation19 + $0x70] sm:$0xff]
    %v462 = vld [vmem:[#allocation19 + $0x78] sm:$0xff]
    %v463 = vld [vmem:[#allocation19 + $0x80] sm:$0xff]
    %v464 = vld [vmem:[#allocation19 + $0x88] sm:$0xff]
    %v465 = vld [vmem:[#allocation19 + $0x90] sm:$0xff]
    %v466 = vld [vmem:[#allocation19 + $0x98] sm:$0xff]
    %v467 = vld [vmem:[#allocation19 + $0xa0] sm:$0xff]
    %v468 = vld [vmem:[#allocation19 + $0xa8] sm:$0xff]
    %v469 = vld [vmem:[#allocation19 + $0xb0] sm:$0xff]
    %v470 = vld [vmem:[#allocation19 + $0xb8] sm:$0xff]
    %v471 = vld [vmem:[#allocation19 + $0xc0] sm:$0xff]
    %v472 = vld [vmem:[#allocation19 + $0xc8] sm:$0xff]
    %v473 = vld [vmem:[#allocation19 + $0xd0] sm:$0xff]
    %v474 = vld [vmem:[#allocation19 + $0xd8] sm:$0xff]
    %v475 = vld [vmem:[#allocation19 + $0xe0] sm:$0xff]
    %v476 = vld [vmem:[#allocation19 + $0xe8] sm:$0xff]
    %v477 = vld [vmem:[#allocation19 + $0xf0] sm:$0xff]
    %v478 = vld [vmem:[#allocation19 + $0xf8] sm:$0xff]
    %v479 = vld [vmem:[#allocation20] sm:$0xff]
    %v480 = vld [vmem:[#allocation20 + $0x8] sm:$0xf]
    %v481 = vld [vmem:[#allocation20 + $0xc] sm:$0xff]
    %v482 = vld [vmem:[#allocation20 + $0x14] sm:$0xf]
    %v483 = vld [vmem:[#allocation20 + $0x18] sm:$0xff]
    %v484 = vld [vmem:[#allocation20 + $0x20] sm:$0xf]
    %v485 = vld [vmem:[#allocation20 + $0x24] sm:$0xff]
    %v486 = vld [vmem:[#allocation20 + $0x2c] sm:$0xf]
    %v487 = vld [vmem:[#allocation20 + $0x30] sm:$0xff]
    %v488 = vld [vmem:[#allocation20 + $0x38] sm:$0xf]
    %v489 = vld [vmem:[#allocation20 + $0x3c] sm:$0xff]
    %v490 = vld [vmem:[#allocation20 + $0x44] sm:$0xf]
    %v491 = vld [vmem:[#allocation20 + $0x48] sm:$0xff]
    %v492 = vld [vmem:[#allocation20 + $0x50] sm:$0xf]
    %v493 = vld [vmem:[#allocation20 + $0x54] sm:$0xff]
    %v494 = vld [vmem:[#allocation20 + $0x5c] sm:$0xf]
    %v495 = vld [vmem:[#allocation20 + $0x60] sm:$0xff]
    %v496 = vld [vmem:[#allocation20 + $0x68] sm:$0xf]
    %v497 = vld [vmem:[#allocation20 + $0x6c] sm:$0xff]
    %v498 = vld [vmem:[#allocation20 + $0x74] sm:$0xf]
    %v499 = vld [vmem:[#allocation20 + $0x78] sm:$0xff]
    %v500 = vld [vmem:[#allocation20 + $0x80] sm:$0xf]
    %v501 = vld [vmem:[#allocation20 + $0x84] sm:$0xff]
    %v502 = vld [vmem:[#allocation20 + $0x8c] sm:$0xf]
    %v503 = vld [vmem:[#allocation20 + $0x90] sm:$0xff]
    %v504 = vld [vmem:[#allocation20 + $0x98] sm:$0xf]
    %v505 = vld [vmem:[#allocation20 + $0x9c] sm:$0xff]
    %v506 = vld [vmem:[#allocation20 + $0xa4] sm:$0xf]
    %v507 = vld [vmem:[#allocation20 + $0xa8] sm:$0xff]
    %v508 = vld [vmem:[#allocation20 + $0xb0] sm:$0xf]
    %v509 = vld [vmem:[#allocation20 + $0xb4] sm:$0xff]
    %v510 = vld [vmem:[#allocation20 + $0xbc] sm:$0xf]
    %v511 = vld [vmem:[#allocation20 + $0xc0] sm:$0xff]
    %v512 = vld [vmem:[#allocation20 + $0xc8] sm:$0xf]
    %v513 = vld [vmem:[#allocation20 + $0xcc] sm:$0xff]
    %v514 = vld [vmem:[#allocation20 + $0xd4] sm:$0xf]
    %v515 = vld [vmem:[#allocation20 + $0xd8] sm:$0xff]
    %v516 = vld [vmem:[#allocation20 + $0xe0] sm:$0xf]
    %v517 = vld [vmem:[#allocation20 + $0xe4] sm:$0xff]
    %v518 = vld [vmem:[#allocation20 + $0xec] sm:$0xf]
    %v519 = vld [vmem:[#allocation20 + $0xf0] sm:$0xff]
    %v520 = vld [vmem:[#allocation20 + $0xf8] sm:$0xf]
    %v521 = vld [vmem:[#allocation20 + $0xfc] sm:$0xff]
    %v522 = vld [vmem:[#allocation20 + $0x104] sm:$0xf]
    %v523 = vld [vmem:[#allocation20 + $0x108] sm:$0xff]
    %v524 = vld [vmem:[#allocation20 + $0x110] sm:$0xf]
    %v525 = vld [vmem:[#allocation20 + $0x114] sm:$0xff]
    %v526 = vld [vmem:[#allocation20 + $0x11c] sm:$0xf]
    %v527 = vld [vmem:[#allocation20 + $0x120] sm:$0xff]
    %v528 = vld [vmem:[#allocation20 + $0x128] sm:$0xf]
    %v529 = vld [vmem:[#allocation20 + $0x12c] sm:$0xff]
    %v530 = vld [vmem:[#allocation20 + $0x134] sm:$0xf]
    %v531 = vld [vmem:[#allocation20 + $0x138] sm:$0xff]
    %v532 = vld [vmem:[#allocation20 + $0x140] sm:$0xf]
    %v533 = vld [vmem:[#allocation20 + $0x144] sm:$0xff]
    %v534 = vld [vmem:[#allocation20 + $0x14c] sm:$0xf]
    %v535 = vld [vmem:[#allocation20 + $0x150] sm:$0xff]
    %v536 = vld [vmem:[#allocation20 + $0x158] sm:$0xf]
    %v537 = vld [vmem:[#allocation20 + $0x15c] sm:$0xff]
    %v538 = vld [vmem:[#allocation20 + $0x164] sm:$0xf]
    %v539 = vld [vmem:[#allocation20 + $0x168] sm:$0xff]
    %v540 = vld [vmem:[#allocation20 + $0x170] sm:$0xf]
    %v541 = vld [vmem:[#allocation20 + $0x174] sm:$0xff]
    %v542 = vld [vmem:[#allocation20 + $0x17c] sm:$0xf]
    %v543 = vld [vmem:[#allocation22] sm:$0xf]
    %v544 = vld [vmem:[#allocation22 + $0x4] sm:$0xf]
    %v545 = vld [vmem:[#allocation22 + $0x8] sm:$0xf]
    %v546 = vld [vmem:[#allocation22 + $0xc] sm:$0xf]
    %v547 = vld [vmem:[#allocation22 + $0x10] sm:$0xf]
    %v548 = vld [vmem:[#allocation22 + $0x14] sm:$0xf]
    %v549 = vld [vmem:[#allocation22 + $0x18] sm:$0xf]
    %v550 = vld [vmem:[#allocation22 + $0x1c] sm:$0xf]
    %v551 = vld [vmem:[#allocation23] sm:$0xf]
    %v552 = vld [vmem:[#allocation23 + $0x4] sm:$0xf]
    %v553 = vld [vmem:[#allocation23 + $0x8] sm:$0xf]
    %v554 = vld [vmem:[#allocation23 + $0xc] sm:$0xf]
    %v555 = vld [vmem:[#allocation23 + $0x10] sm:$0xf]
    %v556 = vld [vmem:[#allocation23 + $0x14] sm:$0xf]
    %v557 = vld [vmem:[#allocation23 + $0x18] sm:$0xf]
    %v558 = vld [vmem:[#allocation23 + $0x1c] sm:$0xf]
    %v559 = vld [vmem:[#allocation23 + $0x20] sm:$0xf]
    %v560 = vld [vmem:[#allocation23 + $0x24] sm:$0xf]
    %v561 = vld [vmem:[#allocation23 + $0x28] sm:$0xf]
    %v562 = vld [vmem:[#allocation23 + $0x2c] sm:$0xf]
    %v563 = vld [vmem:[#allocation23 + $0x30] sm:$0xf]
    %v564 = vld [vmem:[#allocation23 + $0x34] sm:$0xf]
    %v565 = vld [vmem:[#allocation23 + $0x38] sm:$0xf]
    %v566 = vld [vmem:[#allocation23 + $0x3c] sm:$0xf]
    %v567 = vld [vmem:[#allocation25] sm:$0xff]
    %v568 = vld [vmem:[#allocation25 + $0x8] sm:$0xff]
    %v569 = vld [vmem:[#allocation25 + $0x10] sm:$0xff]
    %v570 = vld [vmem:[#allocation25 + $0x18] sm:$0xff]
    %v571 = vld [vmem:[#allocation25 + $0x20] sm:$0xff]
    %v572 = vld [vmem:[#allocation25 + $0x28] sm:$0xff]
    %v573 = vld [vmem:[#allocation25 + $0x30] sm:$0xff]
    %v574 = vld [vmem:[#allocation25 + $0x38] sm:$0xff]
    %v575 = vld [vmem:[#allocation25 + $0x40] sm:$0xff]
    %v576 = vld [vmem:[#allocation25 + $0x48] sm:$0xff]
    %v577 = vld [vmem:[#allocation25 + $0x50] sm:$0xff]
    %v578 = vld [vmem:[#allocation25 + $0x58] sm:$0xff]
    %v579 = vld [vmem:[#allocation25 + $0x60] sm:$0xff]
    %v580 = vld [vmem:[#allocation25 + $0x68] sm:$0xff]
    %v581 = vld [vmem:[#allocation25 + $0x70] sm:$0xff]
    %v582 = vld [vmem:[#allocation25 + $0x78] sm:$0xff]
    %v583 = vld [vmem:[#allocation25 + $0x80] sm:$0xff]
    %v584 = vld [vmem:[#allocation25 + $0x88] sm:$0xff]
    %v585 = vld [vmem:[#allocation25 + $0x90] sm:$0xff]
    %v586 = vld [vmem:[#allocation25 + $0x98] sm:$0xff]
    %v587 = vld [vmem:[#allocation25 + $0xa0] sm:$0xff]
    %v588 = vld [vmem:[#allocation25 + $0xa8] sm:$0xff]
    %v589 = vld [vmem:[#allocation25 + $0xb0] sm:$0xff]
    %v590 = vld [vmem:[#allocation25 + $0xb8] sm:$0xff]
    %v591 = vld [vmem:[#allocation25 + $0xc0] sm:$0xff]
    %v592 = vld [vmem:[#allocation25 + $0xc8] sm:$0xff]
    %v593 = vld [vmem:[#allocation25 + $0xd0] sm:$0xff]
    %v594 = vld [vmem:[#allocation25 + $0xd8] sm:$0xff]
    %v595 = vld [vmem:[#allocation25 + $0xe0] sm:$0xff]
    %v596 = vld [vmem:[#allocation25 + $0xe8] sm:$0xff]
    %v597 = vld [vmem:[#allocation25 + $0xf0] sm:$0xff]
    %v598 = vld [vmem:[#allocation25 + $0xf8] sm:$0xff]
    %v599 = vld [vmem:[#allocation26] sm:$0xf]
    %v600 = vld [vmem:[#allocation26 + $0x4] sm:$0xf]
    %v601 = vld [vmem:[#allocation26 + $0x8] sm:$0xf]
    %v602 = vld [vmem:[#allocation26 + $0xc] sm:$0xf]
    %v603 = vld [vmem:[#allocation26 + $0x10] sm:$0xf]
    %v604 = vld [vmem:[#allocation26 + $0x14] sm:$0xf]
    %v605 = vld [vmem:[#allocation26 + $0x18] sm:$0xf]
    %v606 = vld [vmem:[#allocation26 + $0x1c] sm:$0xf]
    %v607 = vld [vmem:[#allocation26 + $0x20] sm:$0xf]
    %v608 = vld [vmem:[#allocation26 + $0x24] sm:$0xf]
    %v609 = vld [vmem:[#allocation26 + $0x28] sm:$0xf]
    %v610 = vld [vmem:[#allocation26 + $0x2c] sm:$0xf]
    %v611 = vld [vmem:[#allocation26 + $0x30] sm:$0xf]
    %v612 = vld [vmem:[#allocation26 + $0x34] sm:$0xf]
    %v613 = vld [vmem:[#allocation26 + $0x38] sm:$0xf]
    %v614 = vld [vmem:[#allocation26 + $0x3c] sm:$0xf]
    %v615 = vld [vmem:[#allocation26 + $0x40] sm:$0xf]
    %v616 = vld [vmem:[#allocation26 + $0x44] sm:$0xf]
    %v617 = vld [vmem:[#allocation26 + $0x48] sm:$0xf]
    %v618 = vld [vmem:[#allocation26 + $0x4c] sm:$0xf]
    %v619 = vld [vmem:[#allocation26 + $0x50] sm:$0xf]
    %v620 = vld [vmem:[#allocation26 + $0x54] sm:$0xf]
    %v621 = vld [vmem:[#allocation26 + $0x58] sm:$0xf]
    %v622 = vld [vmem:[#allocation26 + $0x5c] sm:$0xf]
    %v623 = vld [vmem:[#allocation26 + $0x60] sm:$0xf]
    %v624 = vld [vmem:[#allocation26 + $0x64] sm:$0xf]
    %v625 = vld [vmem:[#allocation26 + $0x68] sm:$0xf]
    %v626 = vld [vmem:[#allocation26 + $0x6c] sm:$0xf]
    %v627 = vld [vmem:[#allocation26 + $0x70] sm:$0xf]
    %v628 = vld [vmem:[#allocation26 + $0x74] sm:$0xf]
    %v629 = vld [vmem:[#allocation26 + $0x78] sm:$0xf]
    %v630 = vld [vmem:[#allocation26 + $0x7c] sm:$0xf]
    %v631 = vld [vmem:[#allocation26 + $0x80] sm:$0xf]
    %v632 = vld [vmem:[#allocation26 + $0x84] sm:$0xf]
    %v633 = vld [vmem:[#allocation26 + $0x88] sm:$0xf]
    %v634 = vld [vmem:[#allocation26 + $0x8c] sm:$0xf]
    %v635 = vld [vmem:[#allocation26 + $0x90] sm:$0xf]
    %v636 = vld [vmem:[#allocation26 + $0x94] sm:$0xf]
    %v637 = vld [vmem:[#allocation26 + $0x98] sm:$0xf]
    %v638 = vld [vmem:[#allocation26 + $0x9c] sm:$0xf]
    %v639 = vld [vmem:[#allocation26 + $0xa0] sm:$0xf]
    %v640 = vld [vmem:[#allocation26 + $0xa4] sm:$0xf]
    %v641 = vld [vmem:[#allocation26 + $0xa8] sm:$0xf]
    %v642 = vld [vmem:[#allocation26 + $0xac] sm:$0xf]
    %v643 = vld [vmem:[#allocation26 + $0xb0] sm:$0xf]
    %v644 = vld [vmem:[#allocation26 + $0xb4] sm:$0xf]
    %v645 = vld [vmem:[#allocation26 + $0xb8] sm:$0xf]
    %v646 = vld [vmem:[#allocation26 + $0xbc] sm:$0xf]
    %v647 = vld [vmem:[#allocation26 + $0xc0] sm:$0xf]
    %v648 = vld [vmem:[#allocation26 + $0xc4] sm:$0xf]
    %v649 = vld [vmem:[#allocation26 + $0xc8] sm:$0xf]
    %v650 = vld [vmem:[#allocation26 + $0xcc] sm:$0xf]
    %v651 = vld [vmem:[#allocation26 + $0xd0] sm:$0xf]
    %v652 = vld [vmem:[#allocation26 + $0xd4] sm:$0xf]
    %v653 = vld [vmem:[#allocation26 + $0xd8] sm:$0xf]
    %v654 = vld [vmem:[#allocation26 + $0xdc] sm:$0xf]
    %v655 = vld [vmem:[#allocation26 + $0xe0] sm:$0xf]
    %v656 = vld [vmem:[#allocation26 + $0xe4] sm:$0xf]
    %v657 = vld [vmem:[#allocation26 + $0xe8] sm:$0xf]
    %v658 = vld [vmem:[#allocation26 + $0xec] sm:$0xf]
    %v659 = vld [vmem:[#allocation26 + $0xf0] sm:$0xf]
    %v660 = vld [vmem:[#allocation26 + $0xf4] sm:$0xf]
    %v661 = vld [vmem:[#allocation26 + $0xf8] sm:$0xf]
    %v662 = vld [vmem:[#allocation26 + $0xfc] sm:$0xf]
    %v663 = vld [vmem:[#allocation28] sm:$0xff]
    %v664 = vld [vmem:[#allocation28 + $0x8] sm:$0xff]
    %v665 = vld [vmem:[#allocation28 + $0x10] sm:$0xff]
    %v666 = vld [vmem:[#allocation28 + $0x18] sm:$0xff]
    %v667 = vld [vmem:[#allocation28 + $0x20] sm:$0xff]
    %v668 = vld [vmem:[#allocation28 + $0x28] sm:$0xff]
    %v669 = vld [vmem:[#allocation28 + $0x30] sm:$0xff]
    %v670 = vld [vmem:[#allocation28 + $0x38] sm:$0xf]
    %v671 = vld [vmem:[#allocation28 + $0x3c] sm:$0xff]
    %v672 = vld [vmem:[#allocation28 + $0x44] sm:$0xff]
    %v673 = vld [vmem:[#allocation28 + $0x4c] sm:$0xff]
    %v674 = vld [vmem:[#allocation28 + $0x54] sm:$0xff]
    %v675 = vld [vmem:[#allocation28 + $0x5c] sm:$0xff]
    %v676 = vld [vmem:[#allocation28 + $0x64] sm:$0xff]
    %v677 = vld [vmem:[#allocation28 + $0x6c] sm:$0xff]
    %v678 = vld [vmem:[#allocation28 + $0x74] sm:$0xf]
    %v679 = vld [vmem:[#allocation28 + $0x78] sm:$0xff]
    %v680 = vld [vmem:[#allocation28 + $0x80] sm:$0xff]
    %v681 = vld [vmem:[#allocation28 + $0x88] sm:$0xff]
    %v682 = vld [vmem:[#allocation28 + $0x90] sm:$0xff]
    %v683 = vld [vmem:[#allocation28 + $0x98] sm:$0xff]
    %v684 = vld [vmem:[#allocation28 + $0xa0] sm:$0xff]
    %v685 = vld [vmem:[#allocation28 + $0xa8] sm:$0xff]
    %v686 = vld [vmem:[#allocation28 + $0xb0] sm:$0xf]
    %v687 = vld [vmem:[#allocation28 + $0xb4] sm:$0xff]
    %v688 = vld [vmem:[#allocation28 + $0xbc] sm:$0xff]
    %v689 = vld [vmem:[#allocation28 + $0xc4] sm:$0xff]
    %v690 = vld [vmem:[#allocation28 + $0xcc] sm:$0xff]
    %v691 = vld [vmem:[#allocation28 + $0xd4] sm:$0xff]
    %v692 = vld [vmem:[#allocation28 + $0xdc] sm:$0xff]
    %v693 = vld [vmem:[#allocation28 + $0xe4] sm:$0xff]
    %v694 = vld [vmem:[#allocation28 + $0xec] sm:$0xf]
    %v695 = vld [vmem:[#allocation28 + $0xf0] sm:$0xff]
    %v696 = vld [vmem:[#allocation28 + $0xf8] sm:$0xff]
    %v697 = vld [vmem:[#allocation28 + $0x100] sm:$0xff]
    %v698 = vld [vmem:[#allocation28 + $0x108] sm:$0xff]
    %v699 = vld [vmem:[#allocation28 + $0x110] sm:$0xff]
    %v700 = vld [vmem:[#allocation28 + $0x118] sm:$0xff]
    %v701 = vld [vmem:[#allocation28 + $0x120] sm:$0xff]
    %v702 = vld [vmem:[#allocation28 + $0x128] sm:$0xf]
    %v703 = vld [vmem:[#allocation28 + $0x12c] sm:$0xff]
    %v704 = vld [vmem:[#allocation28 + $0x134] sm:$0xff]
    %v705 = vld [vmem:[#allocation28 + $0x13c] sm:$0xff]
    %v706 = vld [vmem:[#allocation28 + $0x144] sm:$0xff]
    %v707 = vld [vmem:[#allocation28 + $0x14c] sm:$0xff]
    %v708 = vld [vmem:[#allocation28 + $0x154] sm:$0xff]
    %v709 = vld [vmem:[#allocation28 + $0x15c] sm:$0xff]
    %v710 = vld [vmem:[#allocation28 + $0x164] sm:$0xf]
    %v711 = vld [vmem:[#allocation28 + $0x168] sm:$0xff]
    %v712 = vld [vmem:[#allocation28 + $0x170] sm:$0xff]
    %v713 = vld [vmem:[#allocation28 + $0x178] sm:$0xff]
    %v714 = vld [vmem:[#allocation28 + $0x180] sm:$0xff]
    %v715 = vld [vmem:[#allocation28 + $0x188] sm:$0xff]
    %v716 = vld [vmem:[#allocation28 + $0x190] sm:$0xff]
    %v717 = vld [vmem:[#allocation28 + $0x198] sm:$0xff]
    %v718 = vld [vmem:[#allocation28 + $0x1a0] sm:$0xf]
    %v719 = vld [vmem:[#allocation28 + $0x1a4] sm:$0xff]
    %v720 = vld [vmem:[#allocation28 + $0x1ac] sm:$0xff]
    %v721 = vld [vmem:[#allocation28 + $0x1b4] sm:$0xff]
    %v722 = vld [vmem:[#allocation28 + $0x1bc] sm:$0xff]
    %v723 = vld [vmem:[#allocation28 + $0x1c4] sm:$0xff]
    %v724 = vld [vmem:[#allocation28 + $0x1cc] sm:$0xff]
    %v725 = vld [vmem:[#allocation28 + $0x1d4] sm:$0xff]
    %v726 = vld [vmem:[#allocation28 + $0x1dc] sm:$0xf]
    %v727 = vld [vmem:[#allocation28 + $0x1e0] sm:$0xff]
    %v728 = vld [vmem:[#allocation28 + $0x1e8] sm:$0xff]
    %v729 = vld [vmem:[#allocation28 + $0x1f0] sm:$0xff]
    %v730 = vld [vmem:[#allocation28 + $0x1f8] sm:$0xff]
    %v731 = vld [vmem:[#allocation28 + $0x200] sm:$0xff]
    %v732 = vld [vmem:[#allocation28 + $0x208] sm:$0xff]
    %v733 = vld [vmem:[#allocation28 + $0x210] sm:$0xff]
    %v734 = vld [vmem:[#allocation28 + $0x218] sm:$0xf]
    %v735 = vld [vmem:[#allocation28 + $0x21c] sm:$0xff]
    %v736 = vld [vmem:[#allocation28 + $0x224] sm:$0xff]
    %v737 = vld [vmem:[#allocation28 + $0x22c] sm:$0xff]
    %v738 = vld [vmem:[#allocation28 + $0x234] sm:$0xff]
    %v739 = vld [vmem:[#allocation28 + $0x23c] sm:$0xff]
    %v740 = vld [vmem:[#allocation28 + $0x244] sm:$0xff]
    %v741 = vld [vmem:[#allocation28 + $0x24c] sm:$0xff]
    %v742 = vld [vmem:[#allocation28 + $0x254] sm:$0xf]
    %v743 = vld [vmem:[#allocation28 + $0x258] sm:$0xff]
    %v744 = vld [vmem:[#allocation28 + $0x260] sm:$0xff]
    %v745 = vld [vmem:[#allocation28 + $0x268] sm:$0xff]
    %v746 = vld [vmem:[#allocation28 + $0x270] sm:$0xff]
    %v747 = vld [vmem:[#allocation28 + $0x278] sm:$0xff]
    %v748 = vld [vmem:[#allocation28 + $0x280] sm:$0xff]
    %v749 = vld [vmem:[#allocation28 + $0x288] sm:$0xff]
    %v750 = vld [vmem:[#allocation28 + $0x290] sm:$0xf]
    %v751 = vld [vmem:[#allocation28 + $0x294] sm:$0xff]
    %v752 = vld [vmem:[#allocation28 + $0x29c] sm:$0xff]
    %v753 = vld [vmem:[#allocation28 + $0x2a4] sm:$0xff]
    %v754 = vld [vmem:[#allocation28 + $0x2ac] sm:$0xff]
    %v755 = vld [vmem:[#allocation28 + $0x2b4] sm:$0xff]
    %v756 = vld [vmem:[#allocation28 + $0x2bc] sm:$0xff]
    %v757 = vld [vmem:[#allocation28 + $0x2c4] sm:$0xff]
    %v758 = vld [vmem:[#allocation28 + $0x2cc] sm:$0xf]
    %v759 = vld [vmem:[#allocation28 + $0x2d0] sm:$0xff]
    %v760 = vld [vmem:[#allocation28 + $0x2d8] sm:$0xff]
    %v761 = vld [vmem:[#allocation28 + $0x2e0] sm:$0xff]
    %v762 = vld [vmem:[#allocation28 + $0x2e8] sm:$0xff]
    %v763 = vld [vmem:[#allocation28 + $0x2f0] sm:$0xff]
    %v764 = vld [vmem:[#allocation28 + $0x2f8] sm:$0xff]
    %v765 = vld [vmem:[#allocation28 + $0x300] sm:$0xff]
    %v766 = vld [vmem:[#allocation28 + $0x308] sm:$0xf]
    %v767 = vld [vmem:[#allocation28 + $0x30c] sm:$0xff]
    %v768 = vld [vmem:[#allocation28 + $0x314] sm:$0xff]
    %v769 = vld [vmem:[#allocation28 + $0x31c] sm:$0xff]
    %v770 = vld [vmem:[#allocation28 + $0x324] sm:$0xff]
    %v771 = vld [vmem:[#allocation28 + $0x32c] sm:$0xff]
    %v772 = vld [vmem:[#allocation28 + $0x334] sm:$0xff]
    %v773 = vld [vmem:[#allocation28 + $0x33c] sm:$0xff]
    %v774 = vld [vmem:[#allocation28 + $0x344] sm:$0xf]
    %v775 = vld [vmem:[#allocation28 + $0x348] sm:$0xff]
    %v776 = vld [vmem:[#allocation28 + $0x350] sm:$0xff]
    %v777 = vld [vmem:[#allocation28 + $0x358] sm:$0xff]
    %v778 = vld [vmem:[#allocation28 + $0x360] sm:$0xff]
    %v779 = vld [vmem:[#allocation28 + $0x368] sm:$0xff]
    %v780 = vld [vmem:[#allocation28 + $0x370] sm:$0xff]
    %v781 = vld [vmem:[#allocation28 + $0x378] sm:$0xff]
    %v782 = vld [vmem:[#allocation28 + $0x380] sm:$0xf]
    %v783 = vld [vmem:[#allocation28 + $0x384] sm:$0xff]
    %v784 = vld [vmem:[#allocation28 + $0x38c] sm:$0xff]
    %v785 = vld [vmem:[#allocation28 + $0x394] sm:$0xff]
    %v786 = vld [vmem:[#allocation28 + $0x39c] sm:$0xff]
    %v787 = vld [vmem:[#allocation28 + $0x3a4] sm:$0xff]
    %v788 = vld [vmem:[#allocation28 + $0x3ac] sm:$0xff]
    %v789 = vld [vmem:[#allocation28 + $0x3b4] sm:$0xff]
    %v790 = vld [vmem:[#allocation28 + $0x3bc] sm:$0xf]
    %v791 = vld [vmem:[#allocation28 + $0x3c0] sm:$0xff]
    %v792 = vld [vmem:[#allocation28 + $0x3c8] sm:$0xff]
    %v793 = vld [vmem:[#allocation28 + $0x3d0] sm:$0xff]
    %v794 = vld [vmem:[#allocation28 + $0x3d8] sm:$0xff]
    %v795 = vld [vmem:[#allocation28 + $0x3e0] sm:$0xff]
    %v796 = vld [vmem:[#allocation28 + $0x3e8] sm:$0xff]
    %v797 = vld [vmem:[#allocation28 + $0x3f0] sm:$0xff]
    %v798 = vld [vmem:[#allocation28 + $0x3f8] sm:$0xf]
    %v799 = vld [vmem:[#allocation28 + $0x3fc] sm:$0xff]
    %v800 = vld [vmem:[#allocation28 + $0x404] sm:$0xff]
    %v801 = vld [vmem:[#allocation28 + $0x40c] sm:$0xff]
    %v802 = vld [vmem:[#allocation28 + $0x414] sm:$0xff]
    %v803 = vld [vmem:[#allocation28 + $0x41c] sm:$0xff]
    %v804 = vld [vmem:[#allocation28 + $0x424] sm:$0xff]
    %v805 = vld [vmem:[#allocation28 + $0x42c] sm:$0xff]
    %v806 = vld [vmem:[#allocation28 + $0x434] sm:$0xf]
    %v807 = vld [vmem:[#allocation28 + $0x438] sm:$0xff]
    %v808 = vld [vmem:[#allocation28 + $0x440] sm:$0xff]
    %v809 = vld [vmem:[#allocation28 + $0x448] sm:$0xff]
    %v810 = vld [vmem:[#allocation28 + $0x450] sm:$0xff]
    %v811 = vld [vmem:[#allocation28 + $0x458] sm:$0xff]
    %v812 = vld [vmem:[#allocation28 + $0x460] sm:$0xff]
    %v813 = vld [vmem:[#allocation28 + $0x468] sm:$0xff]
    %v814 = vld [vmem:[#allocation28 + $0x470] sm:$0xf]
    %v815 = vld [vmem:[#allocation28 + $0x474] sm:$0xff]
    %v816 = vld [vmem:[#allocation28 + $0x47c] sm:$0xff]
    %v817 = vld [vmem:[#allocation28 + $0x484] sm:$0xff]
    %v818 = vld [vmem:[#allocation28 + $0x48c] sm:$0xff]
    %v819 = vld [vmem:[#allocation28 + $0x494] sm:$0xff]
    %v820 = vld [vmem:[#allocation28 + $0x49c] sm:$0xff]
    %v821 = vld [vmem:[#allocation28 + $0x4a4] sm:$0xff]
    %v822 = vld [vmem:[#allocation28 + $0x4ac] sm:$0xf]
    %v823 = vld [vmem:[#allocation28 + $0x4b0] sm:$0xff]
    %v824 = vld [vmem:[#allocation28 + $0x4b8] sm:$0xff]
    %v825 = vld [vmem:[#allocation28 + $0x4c0] sm:$0xff]
    %v826 = vld [vmem:[#allocation28 + $0x4c8] sm:$0xff]
    %v827 = vld [vmem:[#allocation28 + $0x4d0] sm:$0xff]
    %v828 = vld [vmem:[#allocation28 + $0x4d8] sm:$0xff]
    %v829 = vld [vmem:[#allocation28 + $0x4e0] sm:$0xff]
    %v830 = vld [vmem:[#allocation28 + $0x4e8] sm:$0xf]
    %v831 = vld [vmem:[#allocation28 + $0x4ec] sm:$0xff]
    %v832 = vld [vmem:[#allocation28 + $0x4f4] sm:$0xff]
    %v833 = vld [vmem:[#allocation28 + $0x4fc] sm:$0xff]
    %v834 = vld [vmem:[#allocation28 + $0x504] sm:$0xff]
    %v835 = vld [vmem:[#allocation28 + $0x50c] sm:$0xff]
    %v836 = vld [vmem:[#allocation28 + $0x514] sm:$0xff]
    %v837 = vld [vmem:[#allocation28 + $0x51c] sm:$0xff]
    %v838 = vld [vmem:[#allocation28 + $0x524] sm:$0xf]
    %v839 = vld [vmem:[#allocation28 + $0x528] sm:$0xff]
    %v840 = vld [vmem:[#allocation28 + $0x530] sm:$0xff]
    %v841 = vld [vmem:[#allocation28 + $0x538] sm:$0xff]
    %v842 = vld [vmem:[#allocation28 + $0x540] sm:$0xff]
    %v843 = vld [vmem:[#allocation28 + $0x548] sm:$0xff]
    %v844 = vld [vmem:[#allocation28 + $0x550] sm:$0xff]
    %v845 = vld [vmem:[#allocation28 + $0x558] sm:$0xff]
    %v846 = vld [vmem:[#allocation28 + $0x560] sm:$0xf]
    %v847 = vld [vmem:[#allocation28 + $0x564] sm:$0xff]
    %v848 = vld [vmem:[#allocation28 + $0x56c] sm:$0xff]
    %v849 = vld [vmem:[#allocation28 + $0x574] sm:$0xff]
    %v850 = vld [vmem:[#allocation28 + $0x57c] sm:$0xff]
    %v851 = vld [vmem:[#allocation28 + $0x584] sm:$0xff]
    %v852 = vld [vmem:[#allocation28 + $0x58c] sm:$0xff]
    %v853 = vld [vmem:[#allocation28 + $0x594] sm:$0xff]
    %v854 = vld [vmem:[#allocation28 + $0x59c] sm:$0xf]
    %v855 = vld [vmem:[#allocation28 + $0x5a0] sm:$0xff]
    %v856 = vld [vmem:[#allocation28 + $0x5a8] sm:$0xff]
    %v857 = vld [vmem:[#allocation28 + $0x5b0] sm:$0xff]
    %v858 = vld [vmem:[#allocation28 + $0x5b8] sm:$0xff]
    %v859 = vld [vmem:[#allocation28 + $0x5c0] sm:$0xff]
    %v860 = vld [vmem:[#allocation28 + $0x5c8] sm:$0xff]
    %v861 = vld [vmem:[#allocation28 + $0x5d0] sm:$0xff]
    %v862 = vld [vmem:[#allocation28 + $0x5d8] sm:$0xf]
    %v863 = vld [vmem:[#allocation28 + $0x5dc] sm:$0xff]
    %v864 = vld [vmem:[#allocation28 + $0x5e4] sm:$0xff]
    %v865 = vld [vmem:[#allocation28 + $0x5ec] sm:$0xff]
    %v866 = vld [vmem:[#allocation28 + $0x5f4] sm:$0xff]
    %v867 = vld [vmem:[#allocation28 + $0x5fc] sm:$0xff]
    %v868 = vld [vmem:[#allocation28 + $0x604] sm:$0xff]
    %v869 = vld [vmem:[#allocation28 + $0x60c] sm:$0xff]
    %v870 = vld [vmem:[#allocation28 + $0x614] sm:$0xf]
    %v871 = vld [vmem:[#allocation28 + $0x618] sm:$0xff]
    %v872 = vld [vmem:[#allocation28 + $0x620] sm:$0xff]
    %v873 = vld [vmem:[#allocation28 + $0x628] sm:$0xff]
    %v874 = vld [vmem:[#allocation28 + $0x630] sm:$0xff]
    %v875 = vld [vmem:[#allocation28 + $0x638] sm:$0xff]
    %v876 = vld [vmem:[#allocation28 + $0x640] sm:$0xff]
    %v877 = vld [vmem:[#allocation28 + $0x648] sm:$0xff]
    %v878 = vld [vmem:[#allocation28 + $0x650] sm:$0xf]
    %v879 = vld [vmem:[#allocation28 + $0x654] sm:$0xff]
    %v880 = vld [vmem:[#allocation28 + $0x65c] sm:$0xff]
    %v881 = vld [vmem:[#allocation28 + $0x664] sm:$0xff]
    %v882 = vld [vmem:[#allocation28 + $0x66c] sm:$0xff]
    %v883 = vld [vmem:[#allocation28 + $0x674] sm:$0xff]
    %v884 = vld [vmem:[#allocation28 + $0x67c] sm:$0xff]
    %v885 = vld [vmem:[#allocation28 + $0x684] sm:$0xff]
    %v886 = vld [vmem:[#allocation28 + $0x68c] sm:$0xf]
    %v887 = vld [vmem:[#allocation28 + $0x690] sm:$0xff]
    %v888 = vld [vmem:[#allocation28 + $0x698] sm:$0xff]
    %v889 = vld [vmem:[#allocation28 + $0x6a0] sm:$0xff]
    %v890 = vld [vmem:[#allocation28 + $0x6a8] sm:$0xff]
    %v891 = vld [vmem:[#allocation28 + $0x6b0] sm:$0xff]
    %v892 = vld [vmem:[#allocation28 + $0x6b8] sm:$0xff]
    %v893 = vld [vmem:[#allocation28 + $0x6c0] sm:$0xff]
    %v894 = vld [vmem:[#allocation28 + $0x6c8] sm:$0xf]
    %v895 = vld [vmem:[#allocation28 + $0x6cc] sm:$0xff]
    %v896 = vld [vmem:[#allocation28 + $0x6d4] sm:$0xff]
    %v897 = vld [vmem:[#allocation28 + $0x6dc] sm:$0xff]
    %v898 = vld [vmem:[#allocation28 + $0x6e4] sm:$0xff]
    %v899 = vld [vmem:[#allocation28 + $0x6ec] sm:$0xff]
    %v900 = vld [vmem:[#allocation28 + $0x6f4] sm:$0xff]
    %v901 = vld [vmem:[#allocation28 + $0x6fc] sm:$0xff]
    %v902 = vld [vmem:[#allocation28 + $0x704] sm:$0xf]
    %v903 = vld [vmem:[#allocation28 + $0x708] sm:$0xff]
    %v904 = vld [vmem:[#allocation28 + $0x710] sm:$0xff]
    %v905 = vld [vmem:[#allocation28 + $0x718] sm:$0xff]
    %v906 = vld [vmem:[#allocation28 + $0x720] sm:$0xff]
    %v907 = vld [vmem:[#allocation28 + $0x728] sm:$0xff]
    %v908 = vld [vmem:[#allocation28 + $0x730] sm:$0xff]
    %v909 = vld [vmem:[#allocation28 + $0x738] sm:$0xff]
    %v910 = vld [vmem:[#allocation28 + $0x740] sm:$0xf]
    %v911 = vld [vmem:[#allocation28 + $0x744] sm:$0xff]
    %v912 = vld [vmem:[#allocation28 + $0x74c] sm:$0xff]
    %v913 = vld [vmem:[#allocation28 + $0x754] sm:$0xff]
    %v914 = vld [vmem:[#allocation28 + $0x75c] sm:$0xff]
    %v915 = vld [vmem:[#allocation28 + $0x764] sm:$0xff]
    %v916 = vld [vmem:[#allocation28 + $0x76c] sm:$0xff]
    %v917 = vld [vmem:[#allocation28 + $0x774] sm:$0xff]
    %v918 = vld [vmem:[#allocation28 + $0x77c] sm:$0xf]
    %v919 = vld [vmem:[#allocation28 + $0x780] sm:$0xff]
    %v920 = vld [vmem:[#allocation28 + $0x788] sm:$0xff]
    %v921 = vld [vmem:[#allocation28 + $0x790] sm:$0xff]
    %v922 = vld [vmem:[#allocation28 + $0x798] sm:$0xff]
    %v923 = vld [vmem:[#allocation28 + $0x7a0] sm:$0xff]
    %v924 = vld [vmem:[#allocation28 + $0x7a8] sm:$0xff]
    %v925 = vld [vmem:[#allocation28 + $0x7b0] sm:$0xff]
    %v926 = vld [vmem:[#allocation28 + $0x7b8] sm:$0xf]
    %v927 = vld [vmem:[#allocation28 + $0x7bc] sm:$0xff]
    %v928 = vld [vmem:[#allocation28 + $0x7c4] sm:$0xff]
    %v929 = vld [vmem:[#allocation28 + $0x7cc] sm:$0xff]
    %v930 = vld [vmem:[#allocation28 + $0x7d4] sm:$0xff]
    %v931 = vld [vmem:[#allocation28 + $0x7dc] sm:$0xff]
    %v932 = vld [vmem:[#allocation28 + $0x7e4] sm:$0xff]
    %v933 = vld [vmem:[#allocation28 + $0x7ec] sm:$0xff]
    %v934 = vld [vmem:[#allocation28 + $0x7f4] sm:$0xf]
    %v935 = vld [vmem:[#allocation28 + $0x7f8] sm:$0xff]
    %v936 = vld [vmem:[#allocation28 + $0x800] sm:$0xff]
    %v937 = vld [vmem:[#allocation28 + $0x808] sm:$0xff]
    %v938 = vld [vmem:[#allocation28 + $0x810] sm:$0xff]
    %v939 = vld [vmem:[#allocation28 + $0x818] sm:$0xff]
    %v940 = vld [vmem:[#allocation28 + $0x820] sm:$0xff]
    %v941 = vld [vmem:[#allocation28 + $0x828] sm:$0xff]
    %v942 = vld [vmem:[#allocation28 + $0x830] sm:$0xf]
    %v943 = vld [vmem:[#allocation28 + $0x834] sm:$0xff]
    %v944 = vld [vmem:[#allocation28 + $0x83c] sm:$0xff]
    %v945 = vld [vmem:[#allocation28 + $0x844] sm:$0xff]
    %v946 = vld [vmem:[#allocation28 + $0x84c] sm:$0xff]
    %v947 = vld [vmem:[#allocation28 + $0x854] sm:$0xff]
    %v948 = vld [vmem:[#allocation28 + $0x85c] sm:$0xff]
    %v949 = vld [vmem:[#allocation28 + $0x864] sm:$0xff]
    %v950 = vld [vmem:[#allocation28 + $0x86c] sm:$0xf]
    %v951 = vld [vmem:[#allocation28 + $0x870] sm:$0xff]
    %v952 = vld [vmem:[#allocation28 + $0x878] sm:$0xff]
    %v953 = vld [vmem:[#allocation28 + $0x880] sm:$0xff]
    %v954 = vld [vmem:[#allocation28 + $0x888] sm:$0xff]
    %v955 = vld [vmem:[#allocation28 + $0x890] sm:$0xff]
    %v956 = vld [vmem:[#allocation28 + $0x898] sm:$0xff]
    %v957 = vld [vmem:[#allocation28 + $0x8a0] sm:$0xff]
    %v958 = vld [vmem:[#allocation28 + $0x8a8] sm:$0xf]
    %v959 = vld [vmem:[#allocation28 + $0x8ac] sm:$0xff]
    %v960 = vld [vmem:[#allocation28 + $0x8b4] sm:$0xff]
    %v961 = vld [vmem:[#allocation28 + $0x8bc] sm:$0xff]
    %v962 = vld [vmem:[#allocation28 + $0x8c4] sm:$0xff]
    %v963 = vld [vmem:[#allocation28 + $0x8cc] sm:$0xff]
    %v964 = vld [vmem:[#allocation28 + $0x8d4] sm:$0xff]
    %v965 = vld [vmem:[#allocation28 + $0x8dc] sm:$0xff]
    %v966 = vld [vmem:[#allocation28 + $0x8e4] sm:$0xf]
    %v967 = vld [vmem:[#allocation28 + $0x8e8] sm:$0xff]
    %v968 = vld [vmem:[#allocation28 + $0x8f0] sm:$0xff]
    %v969 = vld [vmem:[#allocation28 + $0x8f8] sm:$0xff]
    %v970 = vld [vmem:[#allocation28 + $0x900] sm:$0xff]
    %v971 = vld [vmem:[#allocation28 + $0x908] sm:$0xff]
    %v972 = vld [vmem:[#allocation28 + $0x910] sm:$0xff]
    %v973 = vld [vmem:[#allocation28 + $0x918] sm:$0xff]
    %v974 = vld [vmem:[#allocation28 + $0x920] sm:$0xf]
    %v975 = vld [vmem:[#allocation28 + $0x924] sm:$0xff]
    %v976 = vld [vmem:[#allocation28 + $0x92c] sm:$0xff]
    %v977 = vld [vmem:[#allocation28 + $0x934] sm:$0xff]
    %v978 = vld [vmem:[#allocation28 + $0x93c] sm:$0xff]
    %v979 = vld [vmem:[#allocation28 + $0x944] sm:$0xff]
    %v980 = vld [vmem:[#allocation28 + $0x94c] sm:$0xff]
    %v981 = vld [vmem:[#allocation28 + $0x954] sm:$0xff]
    %v982 = vld [vmem:[#allocation28 + $0x95c] sm:$0xf]
    %v983 = vld [vmem:[#allocation28 + $0x960] sm:$0xff]
    %v984 = vld [vmem:[#allocation28 + $0x968] sm:$0xff]
    %v985 = vld [vmem:[#allocation28 + $0x970] sm:$0xff]
    %v986 = vld [vmem:[#allocation28 + $0x978] sm:$0xff]
    %v987 = vld [vmem:[#allocation28 + $0x980] sm:$0xff]
    %v988 = vld [vmem:[#allocation28 + $0x988] sm:$0xff]
    %v989 = vld [vmem:[#allocation28 + $0x990] sm:$0xff]
    %v990 = vld [vmem:[#allocation28 + $0x998] sm:$0xf]
    %v991 = vld [vmem:[#allocation28 + $0x99c] sm:$0xff]
    %v992 = vld [vmem:[#allocation28 + $0x9a4] sm:$0xff]
    %v993 = vld [vmem:[#allocation28 + $0x9ac] sm:$0xff]
    %v994 = vld [vmem:[#allocation28 + $0x9b4] sm:$0xff]
    %v995 = vld [vmem:[#allocation28 + $0x9bc] sm:$0xff]
    %v996 = vld [vmem:[#allocation28 + $0x9c4] sm:$0xff]
    %v997 = vld [vmem:[#allocation28 + $0x9cc] sm:$0xff]
    %v998 = vld [vmem:[#allocation28 + $0x9d4] sm:$0xf]
    %v999 = vld [vmem:[#allocation28 + $0x9d8] sm:$0xff]
    %v1000 = vld [vmem:[#allocation28 + $0x9e0] sm:$0xff]
    %v1001 = vld [vmem:[#allocation28 + $0x9e8] sm:$0xff]
    %v1002 = vld [vmem:[#allocation28 + $0x9f0] sm:$0xff]
    %v1003 = vld [vmem:[#allocation28 + $0x9f8] sm:$0xff]
    %v1004 = vld [vmem:[#allocation28 + $0xa00] sm:$0xff]
    %v1005 = vld [vmem:[#allocation28 + $0xa08] sm:$0xff]
    %v1006 = vld [vmem:[#allocation28 + $0xa10] sm:$0xf]
    %v1007 = vld [vmem:[#allocation28 + $0xa14] sm:$0xff]
    %v1008 = vld [vmem:[#allocation28 + $0xa1c] sm:$0xff]
    %v1009 = vld [vmem:[#allocation28 + $0xa24] sm:$0xff]
    %v1010 = vld [vmem:[#allocation28 + $0xa2c] sm:$0xff]
    %v1011 = vld [vmem:[#allocation28 + $0xa34] sm:$0xff]
    %v1012 = vld [vmem:[#allocation28 + $0xa3c] sm:$0xff]
    %v1013 = vld [vmem:[#allocation28 + $0xa44] sm:$0xff]
    %v1014 = vld [vmem:[#allocation28 + $0xa4c] sm:$0xf]
    %v1015 = vld [vmem:[#allocation28 + $0xa50] sm:$0xff]
    %v1016 = vld [vmem:[#allocation28 + $0xa58] sm:$0xff]
    %v1017 = vld [vmem:[#allocation28 + $0xa60] sm:$0xff]
    %v1018 = vld [vmem:[#allocation28 + $0xa68] sm:$0xff]
    %v1019 = vld [vmem:[#allocation28 + $0xa70] sm:$0xff]
    %v1020 = vld [vmem:[#allocation28 + $0xa78] sm:$0xff]
    %v1021 = vld [vmem:[#allocation28 + $0xa80] sm:$0xff]
    %v1022 = vld [vmem:[#allocation28 + $0xa88] sm:$0xf]
    %v1023 = vld [vmem:[#allocation28 + $0xa8c] sm:$0xff]
    %v1024 = vld [vmem:[#allocation28 + $0xa94] sm:$0xff]
    %v1025 = vld [vmem:[#allocation28 + $0xa9c] sm:$0xff]
    %v1026 = vld [vmem:[#allocation28 + $0xaa4] sm:$0xff]
    %v1027 = vld [vmem:[#allocation28 + $0xaac] sm:$0xff]
    %v1028 = vld [vmem:[#allocation28 + $0xab4] sm:$0xff]
    %v1029 = vld [vmem:[#allocation28 + $0xabc] sm:$0xff]
    %v1030 = vld [vmem:[#allocation28 + $0xac4] sm:$0xf]
    %v1031 = vld [vmem:[#allocation28 + $0xac8] sm:$0xff]
    %v1032 = vld [vmem:[#allocation28 + $0xad0] sm:$0xff]
    %v1033 = vld [vmem:[#allocation28 + $0xad8] sm:$0xff]
    %v1034 = vld [vmem:[#allocation28 + $0xae0] sm:$0xff]
    %v1035 = vld [vmem:[#allocation28 + $0xae8] sm:$0xff]
    %v1036 = vld [vmem:[#allocation28 + $0xaf0] sm:$0xff]
    %v1037 = vld [vmem:[#allocation28 + $0xaf8] sm:$0xff]
    %v1038 = vld [vmem:[#allocation28 + $0xb00] sm:$0xf]
    %v1039 = vld [vmem:[#allocation28 + $0xb04] sm:$0xff]
    %v1040 = vld [vmem:[#allocation28 + $0xb0c] sm:$0xff]
    %v1041 = vld [vmem:[#allocation28 + $0xb14] sm:$0xff]
    %v1042 = vld [vmem:[#allocation28 + $0xb1c] sm:$0xff]
    %v1043 = vld [vmem:[#allocation28 + $0xb24] sm:$0xff]
    %v1044 = vld [vmem:[#allocation28 + $0xb2c] sm:$0xff]
    %v1045 = vld [vmem:[#allocation28 + $0xb34] sm:$0xff]
    %v1046 = vld [vmem:[#allocation28 + $0xb3c] sm:$0xf]
    %v1047 = vld [vmem:[#allocation29] sm:$0xff]
    %v1048 = vld [vmem:[#allocation29 + $0x8] sm:$0xf]
    %v1049 = vld [vmem:[#allocation29 + $0xc] sm:$0xff]
    %v1050 = vld [vmem:[#allocation29 + $0x14] sm:$0xf]
    %v1051 = vld [vmem:[#allocation29 + $0x18] sm:$0xff]
    %v1052 = vld [vmem:[#allocation29 + $0x20] sm:$0xf]
    %v1053 = vld [vmem:[#allocation29 + $0x24] sm:$0xff]
    %v1054 = vld [vmem:[#allocation29 + $0x2c] sm:$0xf]
    %v1055 = vld [vmem:[#allocation29 + $0x30] sm:$0xff]
    %v1056 = vld [vmem:[#allocation29 + $0x38] sm:$0xf]
    %v1057 = vld [vmem:[#allocation29 + $0x3c] sm:$0xff]
    %v1058 = vld [vmem:[#allocation29 + $0x44] sm:$0xf]
    %v1059 = vld [vmem:[#allocation29 + $0x48] sm:$0xff]
    %v1060 = vld [vmem:[#allocation29 + $0x50] sm:$0xf]
    %v1061 = vld [vmem:[#allocation29 + $0x54] sm:$0xff]
    %v1062 = vld [vmem:[#allocation29 + $0x5c] sm:$0xf]
    %v1063 = vld [vmem:[#allocation29 + $0x60] sm:$0xff]
    %v1064 = vld [vmem:[#allocation29 + $0x68] sm:$0xf]
    %v1065 = vld [vmem:[#allocation29 + $0x6c] sm:$0xff]
    %v1066 = vld [vmem:[#allocation29 + $0x74] sm:$0xf]
    %v1067 = vld [vmem:[#allocation29 + $0x78] sm:$0xff]
    %v1068 = vld [vmem:[#allocation29 + $0x80] sm:$0xf]
    %v1069 = vld [vmem:[#allocation29 + $0x84] sm:$0xff]
    %v1070 = vld [vmem:[#allocation29 + $0x8c] sm:$0xf]
    %v1071 = vld [vmem:[#allocation29 + $0x90] sm:$0xff]
    %v1072 = vld [vmem:[#allocation29 + $0x98] sm:$0xf]
    %v1073 = vld [vmem:[#allocation29 + $0x9c] sm:$0xff]
    %v1074 = vld [vmem:[#allocation29 + $0xa4] sm:$0xf]
    %v1075 = vld [vmem:[#allocation29 + $0xa8] sm:$0xff]
    %v1076 = vld [vmem:[#allocation29 + $0xb0] sm:$0xf]
    %v1077 = vld [vmem:[#allocation29 + $0xb4] sm:$0xff]
    %v1078 = vld [vmem:[#allocation29 + $0xbc] sm:$0xf]
    %v1079 = vld [vmem:[#allocation29 + $0xc0] sm:$0xff]
    %v1080 = vld [vmem:[#allocation29 + $0xc8] sm:$0xf]
    %v1081 = vld [vmem:[#allocation29 + $0xcc] sm:$0xff]
    %v1082 = vld [vmem:[#allocation29 + $0xd4] sm:$0xf]
    %v1083 = vld [vmem:[#allocation29 + $0xd8] sm:$0xff]
    %v1084 = vld [vmem:[#allocation29 + $0xe0] sm:$0xf]
    %v1085 = vld [vmem:[#allocation29 + $0xe4] sm:$0xff]
    %v1086 = vld [vmem:[#allocation29 + $0xec] sm:$0xf]
    %v1087 = vld [vmem:[#allocation29 + $0xf0] sm:$0xff]
    %v1088 = vld [vmem:[#allocation29 + $0xf8] sm:$0xf]
    %v1089 = vld [vmem:[#allocation29 + $0xfc] sm:$0xff]
    %v1090 = vld [vmem:[#allocation29 + $0x104] sm:$0xf]
    %v1091 = vld [vmem:[#allocation29 + $0x108] sm:$0xff]
    %v1092 = vld [vmem:[#allocation29 + $0x110] sm:$0xf]
    %v1093 = vld [vmem:[#allocation29 + $0x114] sm:$0xff]
    %v1094 = vld [vmem:[#allocation29 + $0x11c] sm:$0xf]
    %v1095 = vld [vmem:[#allocation29 + $0x120] sm:$0xff]
    %v1096 = vld [vmem:[#allocation29 + $0x128] sm:$0xf]
    %v1097 = vld [vmem:[#allocation29 + $0x12c] sm:$0xff]
    %v1098 = vld [vmem:[#allocation29 + $0x134] sm:$0xf]
    %v1099 = vld [vmem:[#allocation29 + $0x138] sm:$0xff]
    %v1100 = vld [vmem:[#allocation29 + $0x140] sm:$0xf]
    %v1101 = vld [vmem:[#allocation29 + $0x144] sm:$0xff]
    %v1102 = vld [vmem:[#allocation29 + $0x14c] sm:$0xf]
    %v1103 = vld [vmem:[#allocation29 + $0x150] sm:$0xff]
    %v1104 = vld [vmem:[#allocation29 + $0x158] sm:$0xf]
    %v1105 = vld [vmem:[#allocation29 + $0x15c] sm:$0xff]
    %v1106 = vld [vmem:[#allocation29 + $0x164] sm:$0xf]
    %v1107 = vld [vmem:[#allocation29 + $0x168] sm:$0xff]
    %v1108 = vld [vmem:[#allocation29 + $0x170] sm:$0xf]
    %v1109 = vld [vmem:[#allocation29 + $0x174] sm:$0xff]
    %v1110 = vld [vmem:[#allocation29 + $0x17c] sm:$0xf]
    %v1111 = vld [vmem:[#allocation29 + $0x180] sm:$0xff]
    %v1112 = vld [vmem:[#allocation29 + $0x188] sm:$0xf]
    %v1113 = vld [vmem:[#allocation29 + $0x18c] sm:$0xff]
    %v1114 = vld [vmem:[#allocation29 + $0x194] sm:$0xf]
    %v1115 = vld [vmem:[#allocation29 + $0x198] sm:$0xff]
    %v1116 = vld [vmem:[#allocation29 + $0x1a0] sm:$0xf]
    %v1117 = vld [vmem:[#allocation29 + $0x1a4] sm:$0xff]
    %v1118 = vld [vmem:[#allocation29 + $0x1ac] sm:$0xf]
    %v1119 = vld [vmem:[#allocation29 + $0x1b0] sm:$0xff]
    %v1120 = vld [vmem:[#allocation29 + $0x1b8] sm:$0xf]
    %v1121 = vld [vmem:[#allocation29 + $0x1bc] sm:$0xff]
    %v1122 = vld [vmem:[#allocation29 + $0x1c4] sm:$0xf]
    %v1123 = vld [vmem:[#allocation29 + $0x1c8] sm:$0xff]
    %v1124 = vld [vmem:[#allocation29 + $0x1d0] sm:$0xf]
    %v1125 = vld [vmem:[#allocation29 + $0x1d4] sm:$0xff]
    %v1126 = vld [vmem:[#allocation29 + $0x1dc] sm:$0xf]
    %v1127 = vld [vmem:[#allocation29 + $0x1e0] sm:$0xff]
    %v1128 = vld [vmem:[#allocation29 + $0x1e8] sm:$0xf]
    %v1129 = vld [vmem:[#allocation29 + $0x1ec] sm:$0xff]
    %v1130 = vld [vmem:[#allocation29 + $0x1f4] sm:$0xf]
    %v1131 = vld [vmem:[#allocation29 + $0x1f8] sm:$0xff]
    %v1132 = vld [vmem:[#allocation29 + $0x200] sm:$0xf]
    %v1133 = vld [vmem:[#allocation29 + $0x204] sm:$0xff]
    %v1134 = vld [vmem:[#allocation29 + $0x20c] sm:$0xf]
    %v1135 = vld [vmem:[#allocation29 + $0x210] sm:$0xff]
    %v1136 = vld [vmem:[#allocation29 + $0x218] sm:$0xf]
    %v1137 = vld [vmem:[#allocation29 + $0x21c] sm:$0xff]
    %v1138 = vld [vmem:[#allocation29 + $0x224] sm:$0xf]
    %v1139 = vld [vmem:[#allocation29 + $0x228] sm:$0xff]
    %v1140 = vld [vmem:[#allocation29 + $0x230] sm:$0xf]
    %v1141 = vld [vmem:[#allocation29 + $0x234] sm:$0xff]
    %v1142 = vld [vmem:[#allocation29 + $0x23c] sm:$0xf]
    %v1143 = vld [vmem:[#allocation29 + $0x240] sm:$0xff]
    %v1144 = vld [vmem:[#allocation29 + $0x248] sm:$0xf]
    %v1145 = vld [vmem:[#allocation29 + $0x24c] sm:$0xff]
    %v1146 = vld [vmem:[#allocation29 + $0x254] sm:$0xf]
    %v1147 = vld [vmem:[#allocation29 + $0x258] sm:$0xff]
    %v1148 = vld [vmem:[#allocation29 + $0x260] sm:$0xf]
    %v1149 = vld [vmem:[#allocation29 + $0x264] sm:$0xff]
    %v1150 = vld [vmem:[#allocation29 + $0x26c] sm:$0xf]
    %v1151 = vld [vmem:[#allocation29 + $0x270] sm:$0xff]
    %v1152 = vld [vmem:[#allocation29 + $0x278] sm:$0xf]
    %v1153 = vld [vmem:[#allocation29 + $0x27c] sm:$0xff]
    %v1154 = vld [vmem:[#allocation29 + $0x284] sm:$0xf]
    %v1155 = vld [vmem:[#allocation29 + $0x288] sm:$0xff]
    %v1156 = vld [vmem:[#allocation29 + $0x290] sm:$0xf]
    %v1157 = vld [vmem:[#allocation29 + $0x294] sm:$0xff]
    %v1158 = vld [vmem:[#allocation29 + $0x29c] sm:$0xf]
    %v1159 = vld [vmem:[#allocation29 + $0x2a0] sm:$0xff]
    %v1160 = vld [vmem:[#allocation29 + $0x2a8] sm:$0xf]
    %v1161 = vld [vmem:[#allocation29 + $0x2ac] sm:$0xff]
    %v1162 = vld [vmem:[#allocation29 + $0x2b4] sm:$0xf]
    %v1163 = vld [vmem:[#allocation29 + $0x2b8] sm:$0xff]
    %v1164 = vld [vmem:[#allocation29 + $0x2c0] sm:$0xf]
    %v1165 = vld [vmem:[#allocation29 + $0x2c4] sm:$0xff]
    %v1166 = vld [vmem:[#allocation29 + $0x2cc] sm:$0xf]
    %v1167 = vld [vmem:[#allocation29 + $0x2d0] sm:$0xff]
    %v1168 = vld [vmem:[#allocation29 + $0x2d8] sm:$0xf]
    %v1169 = vld [vmem:[#allocation29 + $0x2dc] sm:$0xff]
    %v1170 = vld [vmem:[#allocation29 + $0x2e4] sm:$0xf]
    %v1171 = vld [vmem:[#allocation29 + $0x2e8] sm:$0xff]
    %v1172 = vld [vmem:[#allocation29 + $0x2f0] sm:$0xf]
    %v1173 = vld [vmem:[#allocation29 + $0x2f4] sm:$0xff]
    %v1174 = vld [vmem:[#allocation29 + $0x2fc] sm:$0xf]
    %v1175 = vld [vmem:[#allocation29 + $0x300] sm:$0xff]
    %v1176 = vld [vmem:[#allocation29 + $0x308] sm:$0xf]
    %v1177 = vld [vmem:[#allocation29 + $0x30c] sm:$0xff]
    %v1178 = vld [vmem:[#allocation29 + $0x314] sm:$0xf]
    %v1179 = vld [vmem:[#allocation29 + $0x318] sm:$0xff]
    %v1180 = vld [vmem:[#allocation29 + $0x320] sm:$0xf]
    %v1181 = vld [vmem:[#allocation29 + $0x324] sm:$0xff]
    %v1182 = vld [vmem:[#allocation29 + $0x32c] sm:$0xf]
    %v1183 = vld [vmem:[#allocation29 + $0x330] sm:$0xff]
    %v1184 = vld [vmem:[#allocation29 + $0x338] sm:$0xf]
    %v1185 = vld [vmem:[#allocation29 + $0x33c] sm:$0xff]
    %v1186 = vld [vmem:[#allocation29 + $0x344] sm:$0xf]
    %v1187 = vld [vmem:[#allocation29 + $0x348] sm:$0xff]
    %v1188 = vld [vmem:[#allocation29 + $0x350] sm:$0xf]
    %v1189 = vld [vmem:[#allocation29 + $0x354] sm:$0xff]
    %v1190 = vld [vmem:[#allocation29 + $0x35c] sm:$0xf]
    %v1191 = vld [vmem:[#allocation29 + $0x360] sm:$0xff]
    %v1192 = vld [vmem:[#allocation29 + $0x368] sm:$0xf]
    %v1193 = vld [vmem:[#allocation29 + $0x36c] sm:$0xff]
    %v1194 = vld [vmem:[#allocation29 + $0x374] sm:$0xf]
    %v1195 = vld [vmem:[#allocation29 + $0x378] sm:$0xff]
    %v1196 = vld [vmem:[#allocation29 + $0x380] sm:$0xf]
    %v1197 = vld [vmem:[#allocation29 + $0x384] sm:$0xff]
    %v1198 = vld [vmem:[#allocation29 + $0x38c] sm:$0xf]
    %v1199 = vld [vmem:[#allocation29 + $0x390] sm:$0xff]
    %v1200 = vld [vmem:[#allocation29 + $0x398] sm:$0xf]
    %v1201 = vld [vmem:[#allocation29 + $0x39c] sm:$0xff]
    %v1202 = vld [vmem:[#allocation29 + $0x3a4] sm:$0xf]
    %v1203 = vld [vmem:[#allocation29 + $0x3a8] sm:$0xff]
    %v1204 = vld [vmem:[#allocation29 + $0x3b0] sm:$0xf]
    %v1205 = vld [vmem:[#allocation29 + $0x3b4] sm:$0xff]
    %v1206 = vld [vmem:[#allocation29 + $0x3bc] sm:$0xf]
    %v1207 = vld [vmem:[#allocation29 + $0x3c0] sm:$0xff]
    %v1208 = vld [vmem:[#allocation29 + $0x3c8] sm:$0xf]
    %v1209 = vld [vmem:[#allocation29 + $0x3cc] sm:$0xff]
    %v1210 = vld [vmem:[#allocation29 + $0x3d4] sm:$0xf]
    %v1211 = vld [vmem:[#allocation29 + $0x3d8] sm:$0xff]
    %v1212 = vld [vmem:[#allocation29 + $0x3e0] sm:$0xf]
    %v1213 = vld [vmem:[#allocation29 + $0x3e4] sm:$0xff]
    %v1214 = vld [vmem:[#allocation29 + $0x3ec] sm:$0xf]
    %v1215 = vld [vmem:[#allocation29 + $0x3f0] sm:$0xff]
    %v1216 = vld [vmem:[#allocation29 + $0x3f8] sm:$0xf]
    %v1217 = vld [vmem:[#allocation29 + $0x3fc] sm:$0xff]
    %v1218 = vld [vmem:[#allocation29 + $0x404] sm:$0xf]
    %v1219 = vld [vmem:[#allocation29 + $0x408] sm:$0xff]
    %v1220 = vld [vmem:[#allocation29 + $0x410] sm:$0xf]
    %v1221 = vld [vmem:[#allocation29 + $0x414] sm:$0xff]
    %v1222 = vld [vmem:[#allocation29 + $0x41c] sm:$0xf]
    %v1223 = vld [vmem:[#allocation29 + $0x420] sm:$0xff]
    %v1224 = vld [vmem:[#allocation29 + $0x428] sm:$0xf]
    %v1225 = vld [vmem:[#allocation29 + $0x42c] sm:$0xff]
    %v1226 = vld [vmem:[#allocation29 + $0x434] sm:$0xf]
    %v1227 = vld [vmem:[#allocation29 + $0x438] sm:$0xff]
    %v1228 = vld [vmem:[#allocation29 + $0x440] sm:$0xf]
    %v1229 = vld [vmem:[#allocation29 + $0x444] sm:$0xff]
    %v1230 = vld [vmem:[#allocation29 + $0x44c] sm:$0xf]
    %v1231 = vld [vmem:[#allocation29 + $0x450] sm:$0xff]
    %v1232 = vld [vmem:[#allocation29 + $0x458] sm:$0xf]
    %v1233 = vld [vmem:[#allocation29 + $0x45c] sm:$0xff]
    %v1234 = vld [vmem:[#allocation29 + $0x464] sm:$0xf]
    %v1235 = vld [vmem:[#allocation29 + $0x468] sm:$0xff]
    %v1236 = vld [vmem:[#allocation29 + $0x470] sm:$0xf]
    %v1237 = vld [vmem:[#allocation29 + $0x474] sm:$0xff]
    %v1238 = vld [vmem:[#allocation29 + $0x47c] sm:$0xf]
    %v1239 = vld [vmem:[#allocation29 + $0x480] sm:$0xff]
    %v1240 = vld [vmem:[#allocation29 + $0x488] sm:$0xf]
    %v1241 = vld [vmem:[#allocation29 + $0x48c] sm:$0xff]
    %v1242 = vld [vmem:[#allocation29 + $0x494] sm:$0xf]
    %v1243 = vld [vmem:[#allocation29 + $0x498] sm:$0xff]
    %v1244 = vld [vmem:[#allocation29 + $0x4a0] sm:$0xf]
    %v1245 = vld [vmem:[#allocation29 + $0x4a4] sm:$0xff]
    %v1246 = vld [vmem:[#allocation29 + $0x4ac] sm:$0xf]
    %v1247 = vld [vmem:[#allocation29 + $0x4b0] sm:$0xff]
    %v1248 = vld [vmem:[#allocation29 + $0x4b8] sm:$0xf]
    %v1249 = vld [vmem:[#allocation29 + $0x4bc] sm:$0xff]
    %v1250 = vld [vmem:[#allocation29 + $0x4c4] sm:$0xf]
    %v1251 = vld [vmem:[#allocation29 + $0x4c8] sm:$0xff]
    %v1252 = vld [vmem:[#allocation29 + $0x4d0] sm:$0xf]
    %v1253 = vld [vmem:[#allocation29 + $0x4d4] sm:$0xff]
    %v1254 = vld [vmem:[#allocation29 + $0x4dc] sm:$0xf]
    %v1255 = vld [vmem:[#allocation29 + $0x4e0] sm:$0xff]
    %v1256 = vld [vmem:[#allocation29 + $0x4e8] sm:$0xf]
    %v1257 = vld [vmem:[#allocation29 + $0x4ec] sm:$0xff]
    %v1258 = vld [vmem:[#allocation29 + $0x4f4] sm:$0xf]
    %v1259 = vld [vmem:[#allocation29 + $0x4f8] sm:$0xff]
    %v1260 = vld [vmem:[#allocation29 + $0x500] sm:$0xf]
    %v1261 = vld [vmem:[#allocation29 + $0x504] sm:$0xff]
    %v1262 = vld [vmem:[#allocation29 + $0x50c] sm:$0xf]
    %v1263 = vld [vmem:[#allocation29 + $0x510] sm:$0xff]
    %v1264 = vld [vmem:[#allocation29 + $0x518] sm:$0xf]
    %v1265 = vld [vmem:[#allocation29 + $0x51c] sm:$0xff]
    %v1266 = vld [vmem:[#allocation29 + $0x524] sm:$0xf]
    %v1267 = vld [vmem:[#allocation29 + $0x528] sm:$0xff]
    %v1268 = vld [vmem:[#allocation29 + $0x530] sm:$0xf]
    %v1269 = vld [vmem:[#allocation29 + $0x534] sm:$0xff]
    %v1270 = vld [vmem:[#allocation29 + $0x53c] sm:$0xf]
    %v1271 = vld [vmem:[#allocation29 + $0x540] sm:$0xff]
    %v1272 = vld [vmem:[#allocation29 + $0x548] sm:$0xf]
    %v1273 = vld [vmem:[#allocation29 + $0x54c] sm:$0xff]
    %v1274 = vld [vmem:[#allocation29 + $0x554] sm:$0xf]
    %v1275 = vld [vmem:[#allocation29 + $0x558] sm:$0xff]
    %v1276 = vld [vmem:[#allocation29 + $0x560] sm:$0xf]
    %v1277 = vld [vmem:[#allocation29 + $0x564] sm:$0xff]
    %v1278 = vld [vmem:[#allocation29 + $0x56c] sm:$0xf]
    %v1279 = vld [vmem:[#allocation29 + $0x570] sm:$0xff]
    %v1280 = vld [vmem:[#allocation29 + $0x578] sm:$0xf]
    %v1281 = vld [vmem:[#allocation29 + $0x57c] sm:$0xff]
    %v1282 = vld [vmem:[#allocation29 + $0x584] sm:$0xf]
    %v1283 = vld [vmem:[#allocation29 + $0x588] sm:$0xff]
    %v1284 = vld [vmem:[#allocation29 + $0x590] sm:$0xf]
    %v1285 = vld [vmem:[#allocation29 + $0x594] sm:$0xff]
    %v1286 = vld [vmem:[#allocation29 + $0x59c] sm:$0xf]
    %v1287 = vld [vmem:[#allocation29 + $0x5a0] sm:$0xff]
    %v1288 = vld [vmem:[#allocation29 + $0x5a8] sm:$0xf]
    %v1289 = vld [vmem:[#allocation29 + $0x5ac] sm:$0xff]
    %v1290 = vld [vmem:[#allocation29 + $0x5b4] sm:$0xf]
    %v1291 = vld [vmem:[#allocation29 + $0x5b8] sm:$0xff]
    %v1292 = vld [vmem:[#allocation29 + $0x5c0] sm:$0xf]
    %v1293 = vld [vmem:[#allocation29 + $0x5c4] sm:$0xff]
    %v1294 = vld [vmem:[#allocation29 + $0x5cc] sm:$0xf]
    %v1295 = vld [vmem:[#allocation29 + $0x5d0] sm:$0xff]
    %v1296 = vld [vmem:[#allocation29 + $0x5d8] sm:$0xf]
    %v1297 = vld [vmem:[#allocation29 + $0x5dc] sm:$0xff]
    %v1298 = vld [vmem:[#allocation29 + $0x5e4] sm:$0xf]
    %v1299 = vld [vmem:[#allocation29 + $0x5e8] sm:$0xff]
    %v1300 = vld [vmem:[#allocation29 + $0x5f0] sm:$0xf]
    %v1301 = vld [vmem:[#allocation29 + $0x5f4] sm:$0xff]
    %v1302 = vld [vmem:[#allocation29 + $0x5fc] sm:$0xf]
    %v1303 = vld [vmem:[#allocation29 + $0x600] sm:$0xff]
    %v1304 = vld [vmem:[#allocation29 + $0x608] sm:$0xf]
    %v1305 = vld [vmem:[#allocation29 + $0x60c] sm:$0xff]
    %v1306 = vld [vmem:[#allocation29 + $0x614] sm:$0xf]
    %v1307 = vld [vmem:[#allocation29 + $0x618] sm:$0xff]
    %v1308 = vld [vmem:[#allocation29 + $0x620] sm:$0xf]
    %v1309 = vld [vmem:[#allocation29 + $0x624] sm:$0xff]
    %v1310 = vld [vmem:[#allocation29 + $0x62c] sm:$0xf]
    %v1311 = vld [vmem:[#allocation29 + $0x630] sm:$0xff]
    %v1312 = vld [vmem:[#allocation29 + $0x638] sm:$0xf]
    %v1313 = vld [vmem:[#allocation29 + $0x63c] sm:$0xff]
    %v1314 = vld [vmem:[#allocation29 + $0x644] sm:$0xf]
    %v1315 = vld [vmem:[#allocation29 + $0x648] sm:$0xff]
    %v1316 = vld [vmem:[#allocation29 + $0x650] sm:$0xf]
    %v1317 = vld [vmem:[#allocation29 + $0x654] sm:$0xff]
    %v1318 = vld [vmem:[#allocation29 + $0x65c] sm:$0xf]
    %v1319 = vld [vmem:[#allocation29 + $0x660] sm:$0xff]
    %v1320 = vld [vmem:[#allocation29 + $0x668] sm:$0xf]
    %v1321 = vld [vmem:[#allocation29 + $0x66c] sm:$0xff]
    %v1322 = vld [vmem:[#allocation29 + $0x674] sm:$0xf]
    %v1323 = vld [vmem:[#allocation29 + $0x678] sm:$0xff]
    %v1324 = vld [vmem:[#allocation29 + $0x680] sm:$0xf]
    %v1325 = vld [vmem:[#allocation29 + $0x684] sm:$0xff]
    %v1326 = vld [vmem:[#allocation29 + $0x68c] sm:$0xf]
    %v1327 = vld [vmem:[#allocation29 + $0x690] sm:$0xff]
    %v1328 = vld [vmem:[#allocation29 + $0x698] sm:$0xf]
    %v1329 = vld [vmem:[#allocation29 + $0x69c] sm:$0xff]
    %v1330 = vld [vmem:[#allocation29 + $0x6a4] sm:$0xf]
    %v1331 = vld [vmem:[#allocation29 + $0x6a8] sm:$0xff]
    %v1332 = vld [vmem:[#allocation29 + $0x6b0] sm:$0xf]
    %v1333 = vld [vmem:[#allocation29 + $0x6b4] sm:$0xff]
    %v1334 = vld [vmem:[#allocation29 + $0x6bc] sm:$0xf]
    %v1335 = vld [vmem:[#allocation29 + $0x6c0] sm:$0xff]
    %v1336 = vld [vmem:[#allocation29 + $0x6c8] sm:$0xf]
    %v1337 = vld [vmem:[#allocation29 + $0x6cc] sm:$0xff]
    %v1338 = vld [vmem:[#allocation29 + $0x6d4] sm:$0xf]
    %v1339 = vld [vmem:[#allocation29 + $0x6d8] sm:$0xff]
    %v1340 = vld [vmem:[#allocation29 + $0x6e0] sm:$0xf]
    %v1341 = vld [vmem:[#allocation29 + $0x6e4] sm:$0xff]
    %v1342 = vld [vmem:[#allocation29 + $0x6ec] sm:$0xf]
    %v1343 = vld [vmem:[#allocation29 + $0x6f0] sm:$0xff]
    %v1344 = vld [vmem:[#allocation29 + $0x6f8] sm:$0xf]
    %v1345 = vld [vmem:[#allocation29 + $0x6fc] sm:$0xff]
    %v1346 = vld [vmem:[#allocation29 + $0x704] sm:$0xf]
    %v1347 = vld [vmem:[#allocation29 + $0x708] sm:$0xff]
    %v1348 = vld [vmem:[#allocation29 + $0x710] sm:$0xf]
    %v1349 = vld [vmem:[#allocation29 + $0x714] sm:$0xff]
    %v1350 = vld [vmem:[#allocation29 + $0x71c] sm:$0xf]
    %v1351 = vld [vmem:[#allocation29 + $0x720] sm:$0xff]
    %v1352 = vld [vmem:[#allocation29 + $0x728] sm:$0xf]
    %v1353 = vld [vmem:[#allocation29 + $0x72c] sm:$0xff]
    %v1354 = vld [vmem:[#allocation29 + $0x734] sm:$0xf]
    %v1355 = vld [vmem:[#allocation29 + $0x738] sm:$0xff]
    %v1356 = vld [vmem:[#allocation29 + $0x740] sm:$0xf]
    %v1357 = vld [vmem:[#allocation29 + $0x744] sm:$0xff]
    %v1358 = vld [vmem:[#allocation29 + $0x74c] sm:$0xf]
    %v1359 = vld [vmem:[#allocation29 + $0x750] sm:$0xff]
    %v1360 = vld [vmem:[#allocation29 + $0x758] sm:$0xf]
    %v1361 = vld [vmem:[#allocation29 + $0x75c] sm:$0xff]
    %v1362 = vld [vmem:[#allocation29 + $0x764] sm:$0xf]
    %v1363 = vld [vmem:[#allocation29 + $0x768] sm:$0xff]
    %v1364 = vld [vmem:[#allocation29 + $0x770] sm:$0xf]
    %v1365 = vld [vmem:[#allocation29 + $0x774] sm:$0xff]
    %v1366 = vld [vmem:[#allocation29 + $0x77c] sm:$0xf]
    %v1367 = vld [vmem:[#allocation29 + $0x780] sm:$0xff]
    %v1368 = vld [vmem:[#allocation29 + $0x788] sm:$0xf]
    %v1369 = vld [vmem:[#allocation29 + $0x78c] sm:$0xff]
    %v1370 = vld [vmem:[#allocation29 + $0x794] sm:$0xf]
    %v1371 = vld [vmem:[#allocation29 + $0x798] sm:$0xff]
    %v1372 = vld [vmem:[#allocation29 + $0x7a0] sm:$0xf]
    %v1373 = vld [vmem:[#allocation29 + $0x7a4] sm:$0xff]
    %v1374 = vld [vmem:[#allocation29 + $0x7ac] sm:$0xf]
    %v1375 = vld [vmem:[#allocation29 + $0x7b0] sm:$0xff]
    %v1376 = vld [vmem:[#allocation29 + $0x7b8] sm:$0xf]
    %v1377 = vld [vmem:[#allocation29 + $0x7bc] sm:$0xff]
    %v1378 = vld [vmem:[#allocation29 + $0x7c4] sm:$0xf]
    %v1379 = vld [vmem:[#allocation29 + $0x7c8] sm:$0xff]
    %v1380 = vld [vmem:[#allocation29 + $0x7d0] sm:$0xf]
    %v1381 = vld [vmem:[#allocation29 + $0x7d4] sm:$0xff]
    %v1382 = vld [vmem:[#allocation29 + $0x7dc] sm:$0xf]
    %v1383 = vld [vmem:[#allocation29 + $0x7e0] sm:$0xff]
    %v1384 = vld [vmem:[#allocation29 + $0x7e8] sm:$0xf]
    %v1385 = vld [vmem:[#allocation29 + $0x7ec] sm:$0xff]
    %v1386 = vld [vmem:[#allocation29 + $0x7f4] sm:$0xf]
    %v1387 = vld [vmem:[#allocation29 + $0x7f8] sm:$0xff]
    %v1388 = vld [vmem:[#allocation29 + $0x800] sm:$0xf]
    %v1389 = vld [vmem:[#allocation29 + $0x804] sm:$0xff]
    %v1390 = vld [vmem:[#allocation29 + $0x80c] sm:$0xf]
    %v1391 = vld [vmem:[#allocation29 + $0x810] sm:$0xff]
    %v1392 = vld [vmem:[#allocation29 + $0x818] sm:$0xf]
    %v1393 = vld [vmem:[#allocation29 + $0x81c] sm:$0xff]
    %v1394 = vld [vmem:[#allocation29 + $0x824] sm:$0xf]
    %v1395 = vld [vmem:[#allocation29 + $0x828] sm:$0xff]
    %v1396 = vld [vmem:[#allocation29 + $0x830] sm:$0xf]
    %v1397 = vld [vmem:[#allocation29 + $0x834] sm:$0xff]
    %v1398 = vld [vmem:[#allocation29 + $0x83c] sm:$0xf]
    %v1399 = vld [vmem:[#allocation29 + $0x840] sm:$0xff]
    %v1400 = vld [vmem:[#allocation29 + $0x848] sm:$0xf]
    %v1401 = vld [vmem:[#allocation29 + $0x84c] sm:$0xff]
    %v1402 = vld [vmem:[#allocation29 + $0x854] sm:$0xf]
    %v1403 = vld [vmem:[#allocation29 + $0x858] sm:$0xff]
    %v1404 = vld [vmem:[#allocation29 + $0x860] sm:$0xf]
    %v1405 = vld [vmem:[#allocation29 + $0x864] sm:$0xff]
    %v1406 = vld [vmem:[#allocation29 + $0x86c] sm:$0xf]
    %v1407 = vld [vmem:[#allocation29 + $0x870] sm:$0xff]
    %v1408 = vld [vmem:[#allocation29 + $0x878] sm:$0xf]
    %v1409 = vld [vmem:[#allocation29 + $0x87c] sm:$0xff]
    %v1410 = vld [vmem:[#allocation29 + $0x884] sm:$0xf]
    %v1411 = vld [vmem:[#allocation29 + $0x888] sm:$0xff]
    %v1412 = vld [vmem:[#allocation29 + $0x890] sm:$0xf]
    %v1413 = vld [vmem:[#allocation29 + $0x894] sm:$0xff]
    %v1414 = vld [vmem:[#allocation29 + $0x89c] sm:$0xf]
    %v1415 = vld [vmem:[#allocation29 + $0x8a0] sm:$0xff]
    %v1416 = vld [vmem:[#allocation29 + $0x8a8] sm:$0xf]
    %v1417 = vld [vmem:[#allocation29 + $0x8ac] sm:$0xff]
    %v1418 = vld [vmem:[#allocation29 + $0x8b4] sm:$0xf]
    %v1419 = vld [vmem:[#allocation29 + $0x8b8] sm:$0xff]
    %v1420 = vld [vmem:[#allocation29 + $0x8c0] sm:$0xf]
    %v1421 = vld [vmem:[#allocation29 + $0x8c4] sm:$0xff]
    %v1422 = vld [vmem:[#allocation29 + $0x8cc] sm:$0xf]
    %v1423 = vld [vmem:[#allocation29 + $0x8d0] sm:$0xff]
    %v1424 = vld [vmem:[#allocation29 + $0x8d8] sm:$0xf]
    %v1425 = vld [vmem:[#allocation29 + $0x8dc] sm:$0xff]
    %v1426 = vld [vmem:[#allocation29 + $0x8e4] sm:$0xf]
    %v1427 = vld [vmem:[#allocation29 + $0x8e8] sm:$0xff]
    %v1428 = vld [vmem:[#allocation29 + $0x8f0] sm:$0xf]
    %v1429 = vld [vmem:[#allocation29 + $0x8f4] sm:$0xff]
    %v1430 = vld [vmem:[#allocation29 + $0x8fc] sm:$0xf]
    %v1431 = vld [vmem:[#allocation31] sm:$0xf]
    %v1432 = vld [vmem:[#allocation31 + $0x4] sm:$0xf]
    %v1433 = vld [vmem:[#allocation31 + $0x8] sm:$0xf]
    %v1434 = vld [vmem:[#allocation31 + $0xc] sm:$0xf]
    %v1435 = vld [vmem:[#allocation31 + $0x10] sm:$0xf]
    %v1436 = vld [vmem:[#allocation31 + $0x14] sm:$0xf]
    %v1437 = vld [vmem:[#allocation31 + $0x18] sm:$0xf]
    %v1438 = vld [vmem:[#allocation31 + $0x1c] sm:$0xf]
    %v1439 = vld [vmem:[#allocation31 + $0x20] sm:$0xf]
    %v1440 = vld [vmem:[#allocation31 + $0x24] sm:$0xf]
    %v1441 = vld [vmem:[#allocation31 + $0x28] sm:$0xf]
    %v1442 = vld [vmem:[#allocation31 + $0x2c] sm:$0xf]
    %v1443 = vld [vmem:[#allocation31 + $0x30] sm:$0xf]
    %v1444 = vld [vmem:[#allocation31 + $0x34] sm:$0xf]
    %v1445 = vld [vmem:[#allocation31 + $0x38] sm:$0xf]
    %v1446 = vld [vmem:[#allocation31 + $0x3c] sm:$0xf]
    %v1447 = vld [vmem:[#allocation31 + $0x40] sm:$0xf]
    %v1448 = vld [vmem:[#allocation31 + $0x44] sm:$0xf]
    %v1449 = vld [vmem:[#allocation31 + $0x48] sm:$0xf]
    %v1450 = vld [vmem:[#allocation31 + $0x4c] sm:$0xf]
    %v1451 = vld [vmem:[#allocation31 + $0x50] sm:$0xf]
    %v1452 = vld [vmem:[#allocation31 + $0x54] sm:$0xf]
    %v1453 = vld [vmem:[#allocation31 + $0x58] sm:$0xf]
    %v1454 = vld [vmem:[#allocation31 + $0x5c] sm:$0xf]
    %v1455 = vld [vmem:[#allocation31 + $0x60] sm:$0xf]
    %v1456 = vld [vmem:[#allocation31 + $0x64] sm:$0xf]
    %v1457 = vld [vmem:[#allocation31 + $0x68] sm:$0xf]
    %v1458 = vld [vmem:[#allocation31 + $0x6c] sm:$0xf]
    %v1459 = vld [vmem:[#allocation31 + $0x70] sm:$0xf]
    %v1460 = vld [vmem:[#allocation31 + $0x74] sm:$0xf]
    %v1461 = vld [vmem:[#allocation31 + $0x78] sm:$0xf]
    %v1462 = vld [vmem:[#allocation31 + $0x7c] sm:$0xf]
    %v1463 = vld [vmem:[#allocation31 + $0x80] sm:$0xf]
    %v1464 = vld [vmem:[#allocation31 + $0x84] sm:$0xf]
    %v1465 = vld [vmem:[#allocation31 + $0x88] sm:$0xf]
    %v1466 = vld [vmem:[#allocation31 + $0x8c] sm:$0xf]
    %v1467 = vld [vmem:[#allocation31 + $0x90] sm:$0xf]
    %v1468 = vld [vmem:[#allocation31 + $0x94] sm:$0xf]
    %v1469 = vld [vmem:[#allocation31 + $0x98] sm:$0xf]
    %v1470 = vld [vmem:[#allocation31 + $0x9c] sm:$0xf]
    %v1471 = vld [vmem:[#allocation31 + $0xa0] sm:$0xf]
    %v1472 = vld [vmem:[#allocation31 + $0xa4] sm:$0xf]
    %v1473 = vld [vmem:[#allocation31 + $0xa8] sm:$0xf]
    %v1474 = vld [vmem:[#allocation31 + $0xac] sm:$0xf]
    %v1475 = vld [vmem:[#allocation31 + $0xb0] sm:$0xf]
    %v1476 = vld [vmem:[#allocation31 + $0xb4] sm:$0xf]
    %v1477 = vld [vmem:[#allocation31 + $0xb8] sm:$0xf]
    %v1478 = vld [vmem:[#allocation31 + $0xbc] sm:$0xf]
    %v1479 = vld [vmem:[#allocation8] sm:$0x1]
    %v1480 = vld [vmem:[#allocation8 + $0x1] sm:$0x1]
    %v1481 = vld [vmem:[#allocation8 + $0x2] sm:$0x1]
    %v1482 = vld [vmem:[#allocation8 + $0x3] sm:$0x1]
    %v1483 = vld [vmem:[#allocation8 + $0x4] sm:$0x1]
    %v1484 = vld [vmem:[#allocation8 + $0x5] sm:$0x1]
    %v1485 = vld [vmem:[#allocation8 + $0x6] sm:$0xf]
    %v1486 = vld [vmem:[#allocation8 + $0xa] sm:$0xf]
    %v1487 = vld [vmem:[#allocation8 + $0xe] sm:$0xf]
    %v1488 = vld [vmem:[#allocation8 + $0x12] sm:$0x1]
    %v1489 = vld [vmem:[#allocation8 + $0x13] sm:$0x1]
    %v1490 = vld [vmem:[#allocation8 + $0x14] sm:$0x1]
    %v1491 = vld [vmem:[#allocation8 + $0x15] sm:$0x1]
    %v1492 = vld [vmem:[#allocation8 + $0x16] sm:$0x1]
    %v1493 = vld [vmem:[#allocation8 + $0x17] sm:$0x3]
    %v1494 = vld [vmem:[#allocation8 + $0x19] sm:$0x3]
    %v1495 = vld [vmem:[#allocation8 + $0x1b] sm:$0x3]
    %v1496 = vld [vmem:[#allocation8 + $0x1d] sm:$0x7]
    %v1497 = vld [vmem:[#allocation8 + $0x20] sm:$0x1]
    %v1498 = vld [vmem:[#allocation8 + $0x21] sm:$0x1]
    %v1499 = vld [vmem:[#allocation8 + $0x22] sm:$0x1]
    %v1500 = vld [vmem:[#allocation8 + $0x23] sm:$0x1]
    %v1501 = vld [vmem:[#allocation8 + $0x24] sm:$0x1]
    %v1502 = vld [vmem:[#allocation8 + $0x25] sm:$0x1]
    %v1503 = vld [vmem:[#allocation8 + $0x26] sm:$0xf]
    %v1504 = vld [vmem:[#allocation8 + $0x2a] sm:$0xf]
    %v1505 = vld [vmem:[#allocation8 + $0x2e] sm:$0xf]
    %v1506 = vld [vmem:[#allocation8 + $0x32] sm:$0x1]
    %v1507 = vld [vmem:[#allocation8 + $0x33] sm:$0x7]
    %v1508 = vld [vmem:[#allocation8 + $0x36] sm:$0x7]
    %v1509 = vld [vmem:[#allocation8 + $0x39] sm:$0xff]
    %v1510 = vld [vmem:[#allocation8 + $0x41] sm:$0xff]
    %v1511 = vld [vmem:[#allocation8 + $0x48] sm:$0x7]
    %v1512 = vld [vmem:[#allocation8 + $0x4b] sm:$0x1]
    %v1513 = vld [vmem:[#allocation2] sm:$0xff]
    %v1514 = vld [vmem:[#allocation5] sm:$0xff]
    %v1515 = vld [vmem:[#allocation7] sm:$0xff]
    %v1516 = vpack.c.bf16 %v1513, %v1513
    %v1518 = vlaneseq
    %v1519 = vshrl.u32 %v1518, 7
    %v1520 = vsub.s32 0, %v1519
    %v1521 = vrot.slane %v1479, %v1520
    %v1527 = vunpack.c.l.b16 %v313
    %v1528 = vunpack.c.l.b16 %v314
    %v1529 = vunpack.c.l.b16 %v315
    %v1530 = vunpack.c.l.b16 %v316
    %v1531 = vpack.c.b16 %v1528, %v1527
    %v1532 = vpack.c.b16 %v1530, %v1529
    %vm1535 = vcmask 261120
    %v1537 = vsel %vm1535, %v1516, 0
    %1539 = vmatprep.subr.bf16.mxu0 0
    %1540 = vmatpush1.bf16.msra.mxu0 %v1531
    %1541 = vmatprep.subr.bf16.mxu0 0
    %1542 = vmatpush1.bf16.msra.mxu0 %v1532
    %1543 = vmatprep.subr.bf16.mxu0 0
    %1544 = vmatpush1.bf16.msra.mxu0 0
    %1545 = vmatprep.subr.bf16.mxu0 0
    %1546 = vmatpush1.bf16.msra.mxu0 0
    %1547 = vmatprep.subr.bf16.mxu0 0
    %1548 = vmatpush1.bf16.msra.mxu0 0
    %1549 = vmatprep.subr.bf16.mxu0 0
    %1550 = vmatpush1.bf16.msra.mxu0 0
    %1551 = vmatprep.subr.bf16.mxu0 0
    %1552 = vmatpush1.bf16.msra.mxu0 0
    %1553 = vmatprep.subr.bf16.mxu0 0
    %1554 = vmatpush1.bf16.msra.mxu0 0
    %1555 = vmatprep.subr.bf16.mxu0 0
    %1556 = vmatpush1.bf16.msra.mxu0 0
    %1557 = vmatprep.subr.bf16.mxu0 0
    %1558 = vmatpush1.bf16.msra.mxu0 0
    %1559 = vmatprep.subr.bf16.mxu0 0
    %1560 = vmatpush1.bf16.msra.mxu0 0
    %1561 = vmatprep.subr.bf16.mxu0 0
    %1562 = vmatpush1.bf16.msra.mxu0 0
    %1563 = vmatprep.subr.bf16.mxu0 0
    %1564 = vmatpush1.bf16.msra.mxu0 0
    %1565 = vmatprep.subr.bf16.mxu0 0
    %1566 = vmatpush1.bf16.msra.mxu0 0
    %1567 = vmatprep.subr.bf16.mxu0 0
    %1568 = vmatpush1.bf16.msra.mxu0 0
    %1569 = vmatprep.subr.bf16.mxu0 0
    %1570 = vmatpush1.bf16.msra.mxu0 0
    %1571 = vmatprep.mubr.bf16.mxu0 0
    %1572 = vmatmul.mubr.bf16.gmra.mrb[0].mxu0 %v1537
    %v1573 = vpop.f32.mrb[0].mxu0
    %v1574 = vadd.f32 %v1521, %v1573
    %v1575 = vpop.f32.mrb[0].mxu0
    %v1576 = vpop.f32.mrb[0].mxu0
    %v1577 = vpop.f32.mrb[0].mxu0
    %1578 = vdwg.mxu0
    %1579 = vadd.xlane.f32.xlu0 %v1574
    %v1580 = vpop.xlane.xlu0 %1579
    %v1581 = vrcp.pop 128.0
    %v1582 = vmul.f32 %v1580, %v1581
    %v1583 = vsub.f32 %v1574, %v1582
    %v1584 = vmul.f32 %v1583, %v1583
    %1585 = vadd.xlane.f32.xlu0 %v1584
    %v1586 = vpop.xlane.xlu0 %1585
    %v1587 = vmul.f32 %v1586, %v1581
    %v1588 = vadd.f32 %v1587, 1e-05
    %v1589 = vrsqrt.pop %v1588
    %v1590 = vmul.f32 %v1583, %v1589
    %v1592 = vlaneseq
    %v1593 = vshrl.u32 %v1592, 7
    %v1594 = vsub.s32 0, %v1593
    %v1595 = vrot.slane %v1480, %v1594
    %v1597 = vmul.f32 %v1590, %v1595
    %v1599 = vlaneseq
    %v1600 = vshrl.u32 %v1599, 7
    %v1601 = vsub.s32 0, %v1600
    %v1602 = vrot.slane %v1481, %v1601
    %v1604 = vadd.f32 %v1597, %v1602
    %v1605 = vpack.c.bf16 %v1604, %v1604
    %v1607 = vlaneseq
    %v1608 = vshrl.u32 %v1607, 7
    %v1609 = vsub.s32 0, %v1608
    %v1610 = vrot.slane %v1482, %v1609
    %v1628 = vunpack.c.l.b16 %v317
    %v1629 = vunpack.c.l.b16 %v318
    %v1630 = vunpack.c.l.b16 %v319
    %v1631 = vunpack.c.l.b16 %v320
    %v1632 = vunpack.c.l.b16 %v321
    %v1633 = vunpack.c.l.b16 %v322
    %v1634 = vunpack.c.l.b16 %v323
    %v1635 = vunpack.c.l.b16 %v324
    %v1636 = vunpack.c.l.b16 %v325
    %v1637 = vunpack.c.l.b16 %v326
    %v1638 = vunpack.c.l.b16 %v327
    %v1639 = vunpack.c.l.b16 %v328
    %v1640 = vunpack.c.l.b16 %v329
    %v1641 = vunpack.c.l.b16 %v330
    %v1642 = vunpack.c.l.b16 %v331
    %v1643 = vunpack.c.l.b16 %v332
    %v1644 = vpack.c.b16 %v1629, %v1628
    %v1645 = vpack.c.b16 %v1631, %v1630
    %v1646 = vpack.c.b16 %v1633, %v1632
    %v1647 = vpack.c.b16 %v1635, %v1634
    %v1648 = vpack.c.b16 %v1637, %v1636
    %v1649 = vpack.c.b16 %v1639, %v1638
    %v1650 = vpack.c.b16 %v1641, %v1640
    %v1651 = vpack.c.b16 %v1643, %v1642
    %1660 = vmatprep.subr.bf16.mxu0 0
    %1661 = vmatpush1.bf16.msra.mxu0 %v1644
    %1662 = vmatprep.subr.bf16.mxu0 0
    %1663 = vmatpush1.bf16.msra.mxu0 %v1645
    %1664 = vmatprep.subr.bf16.mxu0 0
    %1665 = vmatpush1.bf16.msra.mxu0 %v1646
    %1666 = vmatprep.subr.bf16.mxu0 0
    %1667 = vmatpush1.bf16.msra.mxu0 %v1647
    %1668 = vmatprep.subr.bf16.mxu0 0
    %1669 = vmatpush1.bf16.msra.mxu0 %v1648
    %1670 = vmatprep.subr.bf16.mxu0 0
    %1671 = vmatpush1.bf16.msra.mxu0 %v1649
    %1672 = vmatprep.subr.bf16.mxu0 0
    %1673 = vmatpush1.bf16.msra.mxu0 %v1650
    %1674 = vmatprep.subr.bf16.mxu0 0
    %1675 = vmatpush1.bf16.msra.mxu0 %v1651
    %1676 = vmatprep.subr.bf16.mxu0 0
    %1677 = vmatpush1.bf16.msra.mxu0 0
    %1678 = vmatprep.subr.bf16.mxu0 0
    %1679 = vmatpush1.bf16.msra.mxu0 0
    %1680 = vmatprep.subr.bf16.mxu0 0
    %1681 = vmatpush1.bf16.msra.mxu0 0
    %1682 = vmatprep.subr.bf16.mxu0 0
    %1683 = vmatpush1.bf16.msra.mxu0 0
    %1684 = vmatprep.subr.bf16.mxu0 0
    %1685 = vmatpush1.bf16.msra.mxu0 0
    %1686 = vmatprep.subr.bf16.mxu0 0
    %1687 = vmatpush1.bf16.msra.mxu0 0
    %1688 = vmatprep.subr.bf16.mxu0 0
    %1689 = vmatpush1.bf16.msra.mxu0 0
    %1690 = vmatprep.subr.bf16.mxu0 0
    %1691 = vmatpush1.bf16.msra.mxu0 0
    %1692 = vmatprep.mubr.bf16.mxu0 0
    %1693 = vmatmul.mubr.bf16.gmra.mrb[0].mxu0 %v1605
    %v1694 = vpop.f32.mrb[0].mxu0
    %v1695 = vadd.f32 %v1610, %v1694
    %v1696 = vpop.f32.mrb[0].mxu0
    %v1697 = vpop.f32.mrb[0].mxu0
    %v1698 = vpop.f32.mrb[0].mxu0
    %1699 = vdwg.mxu0
    %vm1700 = vcmp.ge.f32.partialorder %v1695, 0.0
    %v1701 = vmul.f32 %v1695, 0.01
    %v1702 = vsel %vm1700, %v1695, %v1701
    %v1703 = vadd.f32 %v1702, %v1574
    %1704 = vadd.xlane.f32.xlu0 %v1703
    %v1705 = vpop.xlane.xlu0 %1704
    %v1706 = vmul.f32 %v1705, %v1581
    %v1707 = vsub.f32 %v1703, %v1706
    %v1708 = vmul.f32 %v1707, %v1707
    %1709 = vadd.xlane.f32.xlu0 %v1708
    %v1710 = vpop.xlane.xlu0 %1709
    %v1711 = vmul.f32 %v1710, %v1581
    %v1712 = vadd.f32 %v1711, 1e-05
    %v1713 = vrsqrt.pop %v1712
    %v1714 = vmul.f32 %v1707, %v1713
    %v1716 = vlaneseq
    %v1717 = vshrl.u32 %v1716, 7
    %v1718 = vsub.s32 0, %v1717
    %v1719 = vrot.slane %v1483, %v1718
    %v1721 = vmul.f32 %v1714, %v1719
    %v1723 = vlaneseq
    %v1724 = vshrl.u32 %v1723, 7
    %v1725 = vsub.s32 0, %v1724
    %v1726 = vrot.slane %v1484, %v1725
    %v1728 = vadd.f32 %v1721, %v1726
    %v1729 = vpack.c.bf16 %v1728, %v1728
    %v1731 = vlaneseq
    %v1732 = vshrl.u32 %v1731, 7
    %v1733 = vsub.s32 0, %v1732
    %v1734 = vrot.slane %v1485, %v1733
    %v1735 = vlaneseq
    %v1736 = vshrl.u32 %v1735, 7
    %v1737 = vsub.s32 1, %v1736
    %v1738 = vrot.slane %v1485, %v1737
    %v1739 = vlaneseq
    %v1740 = vshrl.u32 %v1739, 7
    %v1741 = vsub.s32 2, %v1740
    %v1742 = vrot.slane %v1485, %v1741
    %v1743 = vlaneseq
    %v1744 = vshrl.u32 %v1743, 7
    %v1745 = vsub.s32 3, %v1744
    %v1746 = vrot.slane %v1485, %v1745
    %v1783 = vunpack.c.l.b16 %v333
    %v1784 = vunpack.c.h.b16 %v333
    %v1785 = vunpack.c.l.b16 %v334
    %v1786 = vunpack.c.h.b16 %v334
    %v1787 = vunpack.c.l.b16 %v335
    %v1788 = vunpack.c.h.b16 %v335
    %v1789 = vunpack.c.l.b16 %v336
    %v1790 = vunpack.c.h.b16 %v336
    %v1791 = vunpack.c.l.b16 %v337
    %v1792 = vunpack.c.h.b16 %v337
    %v1793 = vunpack.c.l.b16 %v338
    %v1794 = vunpack.c.h.b16 %v338
    %v1795 = vunpack.c.l.b16 %v339
    %v1796 = vunpack.c.h.b16 %v339
    %v1797 = vunpack.c.l.b16 %v340
    %v1798 = vunpack.c.h.b16 %v340
    %v1799 = vunpack.c.l.b16 %v341
    %v1800 = vunpack.c.h.b16 %v341
    %v1801 = vunpack.c.l.b16 %v342
    %v1802 = vunpack.c.h.b16 %v342
    %v1803 = vunpack.c.l.b16 %v343
    %v1804 = vunpack.c.h.b16 %v343
    %v1805 = vunpack.c.l.b16 %v344
    %v1806 = vunpack.c.h.b16 %v344
    %v1807 = vunpack.c.l.b16 %v345
    %v1808 = vunpack.c.h.b16 %v345
    %v1809 = vunpack.c.l.b16 %v346
    %v1810 = vunpack.c.h.b16 %v346
    %v1811 = vunpack.c.l.b16 %v347
    %v1812 = vunpack.c.h.b16 %v347
    %v1813 = vunpack.c.l.b16 %v348
    %v1814 = vunpack.c.h.b16 %v348
    %v1815 = vunpack.c.l.b16 %v349
    %v1816 = vunpack.c.h.b16 %v349
    %v1817 = vunpack.c.l.b16 %v350
    %v1818 = vunpack.c.h.b16 %v350
    %v1819 = vunpack.c.l.b16 %v351
    %v1820 = vunpack.c.h.b16 %v351
    %v1821 = vunpack.c.l.b16 %v352
    %v1822 = vunpack.c.h.b16 %v352
    %v1823 = vunpack.c.l.b16 %v353
    %v1824 = vunpack.c.h.b16 %v353
    %v1825 = vunpack.c.l.b16 %v354
    %v1826 = vunpack.c.h.b16 %v354
    %v1827 = vunpack.c.l.b16 %v355
    %v1828 = vunpack.c.h.b16 %v355
    %v1829 = vunpack.c.l.b16 %v356
    %v1830 = vunpack.c.h.b16 %v356
    %v1831 = vunpack.c.l.b16 %v357
    %v1832 = vunpack.c.h.b16 %v357
    %v1833 = vunpack.c.l.b16 %v358
    %v1834 = vunpack.c.h.b16 %v358
    %v1835 = vunpack.c.l.b16 %v359
    %v1836 = vunpack.c.h.b16 %v359
    %v1837 = vunpack.c.l.b16 %v360
    %v1838 = vunpack.c.h.b16 %v360
    %v1839 = vunpack.c.l.b16 %v361
    %v1840 = vunpack.c.h.b16 %v361
    %v1841 = vunpack.c.l.b16 %v362
    %v1842 = vunpack.c.h.b16 %v362
    %v1843 = vunpack.c.l.b16 %v363
    %v1844 = vunpack.c.h.b16 %v363
    %v1845 = vunpack.c.l.b16 %v364
    %v1846 = vunpack.c.h.b16 %v364
    %v1847 = vpack.c.b16 %v1787, %v1783
    %v1848 = vpack.c.b16 %v1788, %v1784
    %v1849 = vpack.c.b16 %v1789, %v1785
    %v1850 = vpack.c.b16 %v1790, %v1786
    %v1851 = vpack.c.b16 %v1795, %v1791
    %v1852 = vpack.c.b16 %v1796, %v1792
    %v1853 = vpack.c.b16 %v1797, %v1793
    %v1854 = vpack.c.b16 %v1798, %v1794
    %v1855 = vpack.c.b16 %v1803, %v1799
    %v1856 = vpack.c.b16 %v1804, %v1800
    %v1857 = vpack.c.b16 %v1805, %v1801
    %v1858 = vpack.c.b16 %v1806, %v1802
    %v1859 = vpack.c.b16 %v1811, %v1807
    %v1860 = vpack.c.b16 %v1812, %v1808
    %v1861 = vpack.c.b16 %v1813, %v1809
    %v1862 = vpack.c.b16 %v1814, %v1810
    %v1863 = vpack.c.b16 %v1819, %v1815
    %v1864 = vpack.c.b16 %v1820, %v1816
    %v1865 = vpack.c.b16 %v1821, %v1817
    %v1866 = vpack.c.b16 %v1822, %v1818
    %v1867 = vpack.c.b16 %v1827, %v1823
    %v1868 = vpack.c.b16 %v1828, %v1824
    %v1869 = vpack.c.b16 %v1829, %v1825
    %v1870 = vpack.c.b16 %v1830, %v1826
    %v1871 = vpack.c.b16 %v1835, %v1831
    %v1872 = vpack.c.b16 %v1836, %v1832
    %v1873 = vpack.c.b16 %v1837, %v1833
    %v1874 = vpack.c.b16 %v1838, %v1834
    %v1875 = vpack.c.b16 %v1843, %v1839
    %v1876 = vpack.c.b16 %v1844, %v1840
    %v1877 = vpack.c.b16 %v1845, %v1841
    %v1878 = vpack.c.b16 %v1846, %v1842
    %1911 = vmatprep.subr.bf16.mxu0 %v1848
    %1912 = vmatpush1.bf16.msra.mxu0 %v1847
    %1913 = vmatprep.subr.bf16.mxu0 %v1852
    %1914 = vmatpush1.bf16.msra.mxu0 %v1851
    %1915 = vmatprep.subr.bf16.mxu0 %v1856
    %1916 = vmatpush1.bf16.msra.mxu0 %v1855
    %1917 = vmatprep.subr.bf16.mxu0 %v1860
    %1918 = vmatpush1.bf16.msra.mxu0 %v1859
    %1919 = vmatprep.subr.bf16.mxu0 %v1864
    %1920 = vmatpush1.bf16.msra.mxu0 %v1863
    %1921 = vmatprep.subr.bf16.mxu0 %v1868
    %1922 = vmatpush1.bf16.msra.mxu0 %v1867
    %1923 = vmatprep.subr.bf16.mxu0 %v1872
    %1924 = vmatpush1.bf16.msra.mxu0 %v1871
    %1925 = vmatprep.subr.bf16.mxu0 %v1876
    %1926 = vmatpush1.bf16.msra.mxu0 %v1875
    %1927 = vmatprep.subr.bf16.mxu0 0
    %1928 = vmatpush1.bf16.msra.mxu0 0
    %1929 = vmatprep.subr.bf16.mxu0 0
    %1930 = vmatpush1.bf16.msra.mxu0 0
    %1931 = vmatprep.subr.bf16.mxu0 0
    %1932 = vmatpush1.bf16.msra.mxu0 0
    %1933 = vmatprep.subr.bf16.mxu0 0
    %1934 = vmatpush1.bf16.msra.mxu0 0
    %1935 = vmatprep.subr.bf16.mxu0 0
    %1936 = vmatpush1.bf16.msra.mxu0 0
    %1937 = vmatprep.subr.bf16.mxu0 0
    %1938 = vmatpush1.bf16.msra.mxu0 0
    %1939 = vmatprep.subr.bf16.mxu0 0
    %1940 = vmatpush1.bf16.msra.mxu0 0
    %1941 = vmatprep.subr.bf16.mxu0 0
    %1942 = vmatpush1.bf16.msra.mxu0 0
    %1943 = vmatprep.mubr.bf16.mxu0 0
    %1944 = vmatmul.mubr.bf16.gmra.mrb[0].mxu0 %v1729
    %v1945 = vpop.f32.mrb[0].mxu0
    %v1946 = vadd.f32 %v1734, %v1945
    %v1947 = vpop.f32.mrb[0].mxu0
    %v1948 = vadd.f32 %v1738, %v1947
    %v1949 = vpop.f32.mrb[0].mxu0
    %v1950 = vpop.f32.mrb[0].mxu0
    %1951 = vdwg.mxu0
    %1952 = vmatprep.subr.bf16.mxu0 %v1850
    %1953 = vmatpush1.bf16.msra.mxu0 %v1849
    %1954 = vmatprep.subr.bf16.mxu0 %v1854
    %1955 = vmatpush1.bf16.msra.mxu0 %v1853
    %1956 = vmatprep.subr.bf16.mxu0 %v1858
    %1957 = vmatpush1.bf16.msra.mxu0 %v1857
    %1958 = vmatprep.subr.bf16.mxu0 %v1862
    %1959 = vmatpush1.bf16.msra.mxu0 %v1861
    %1960 = vmatprep.subr.bf16.mxu0 %v1866
    %1961 = vmatpush1.bf16.msra.mxu0 %v1865
    %1962 = vmatprep.subr.bf16.mxu0 %v1870
    %1963 = vmatpush1.bf16.msra.mxu0 %v1869
    %1964 = vmatprep.subr.bf16.mxu0 %v1874
    %1965 = vmatpush1.bf16.msra.mxu0 %v1873
    %1966 = vmatprep.subr.bf16.mxu0 %v1878
    %1967 = vmatpush1.bf16.msra.mxu0 %v1877
    %1968 = vmatprep.subr.bf16.mxu0 0
    %1969 = vmatpush1.bf16.msra.mxu0 0
    %1970 = vmatprep.subr.bf16.mxu0 0
    %1971 = vmatpush1.bf16.msra.mxu0 0
    %1972 = vmatprep.subr.bf16.mxu0 0
    %1973 = vmatpush1.bf16.msra.mxu0 0
    %1974 = vmatprep.subr.bf16.mxu0 0
    %1975 = vmatpush1.bf16.msra.mxu0 0
    %1976 = vmatprep.subr.bf16.mxu0 0
    %1977 = vmatpush1.bf16.msra.mxu0 0
    %1978 = vmatprep.subr.bf16.mxu0 0
    %1979 = vmatpush1.bf16.msra.mxu0 0
    %1980 = vmatprep.subr.bf16.mxu0 0
    %1981 = vmatpush1.bf16.msra.mxu0 0
    %1982 = vmatprep.subr.bf16.mxu0 0
    %1983 = vmatpush1.bf16.msra.mxu0 0
    %1984 = vmatprep.mubr.bf16.mxu0 0
    %1985 = vmatmul.mubr.bf16.gmra.mrb[0].mxu0 %v1729
    %v1986 = vpop.f32.mrb[0].mxu0
    %v1987 = vadd.f32 %v1742, %v1986
    %v1988 = vpop.f32.mrb[0].mxu0
    %v1989 = vadd.f32 %v1746, %v1988
    %v1990 = vpop.f32.mrb[0].mxu0
    %v1991 = vpop.f32.mrb[0].mxu0
    %1992 = vdwg.mxu0
    %v1993 = vmax.f32 %v1946, 0.0
    %v1994 = vmax.f32 %v1948, 0.0
    %v1995 = vmax.f32 %v1987, 0.0
    %v1996 = vmax.f32 %v1989, 0.0
    %v1997 = vadd.f32 %v1993, %v1994
    %v1998 = vadd.f32 %v1997, %v1995
    %v1999 = vadd.f32 %v1998, %v1996
    %2000 = vadd.xlane.f32.xlu0 %v1999
    %v2001 = vpop.xlane.xlu0 %2000
    %v2002 = vrcp.pop 512.0
    %v2003 = vmul.f32 %v2001, %v2002
    %v2004 = vsub.f32 %v1993, %v2003
    %v2005 = vsub.f32 %v1994, %v2003
    %v2006 = vsub.f32 %v1995, %v2003
    %v2007 = vsub.f32 %v1996, %v2003
    %v2008 = vmul.f32 %v2004, %v2004
    %v2009 = vmul.f32 %v2005, %v2005
    %v2010 = vmul.f32 %v2006, %v2006
    %v2011 = vmul.f32 %v2007, %v2007
    %v2012 = vadd.f32 %v2008, %v2009
    %v2013 = vadd.f32 %v2012, %v2010
    %v2014 = vadd.f32 %v2013, %v2011
    %2015 = vadd.xlane.f32.xlu0 %v2014
    %v2016 = vpop.xlane.xlu0 %2015
    %v2017 = vmul.f32 %v2016, %v2002
    %v2018 = vadd.f32 %v2017, 1e-05
    %v2019 = vrsqrt.pop %v2018
    %v2020 = vmul.f32 %v2004, %v2019
    %v2021 = vmul.f32 %v2005, %v2019
    %v2022 = vmul.f32 %v2006, %v2019
    %v2023 = vmul.f32 %v2007, %v2019
    %v2025 = vlaneseq
    %v2026 = vshrl.u32 %v2025, 7
    %v2027 = vsub.s32 0, %v2026
    %v2028 = vrot.slane %v1486, %v2027
    %v2029 = vlaneseq
    %v2030 = vshrl.u32 %v2029, 7
    %v2031 = vsub.s32 1, %v2030
    %v2032 = vrot.slane %v1486, %v2031
    %v2033 = vlaneseq
    %v2034 = vshrl.u32 %v2033, 7
    %v2035 = vsub.s32 2, %v2034
    %v2036 = vrot.slane %v1486, %v2035
    %v2037 = vlaneseq
    %v2038 = vshrl.u32 %v2037, 7
    %v2039 = vsub.s32 3, %v2038
    %v2040 = vrot.slane %v1486, %v2039
    %v2045 = vmul.f32 %v2020, %v2028
    %v2046 = vmul.f32 %v2021, %v2032
    %v2047 = vmul.f32 %v2022, %v2036
    %v2048 = vmul.f32 %v2023, %v2040
    %v2050 = vlaneseq
    %v2051 = vshrl.u32 %v2050, 7
    %v2052 = vsub.s32 0, %v2051
    %v2053 = vrot.slane %v1487, %v2052
    %v2054 = vlaneseq
    %v2055 = vshrl.u32 %v2054, 7
    %v2056 = vsub.s32 1, %v2055
    %v2057 = vrot.slane %v1487, %v2056
    %v2058 = vlaneseq
    %v2059 = vshrl.u32 %v2058, 7
    %v2060 = vsub.s32 2, %v2059
    %v2061 = vrot.slane %v1487, %v2060
    %v2062 = vlaneseq
    %v2063 = vshrl.u32 %v2062, 7
    %v2064 = vsub.s32 3, %v2063
    %v2065 = vrot.slane %v1487, %v2064
    %v2070 = vadd.f32 %v2045, %v2053
    %v2071 = vadd.f32 %v2046, %v2057
    %v2072 = vadd.f32 %v2047, %v2061
    %v2073 = vadd.f32 %v2048, %v2065
    %v2074 = vpack.c.bf16 %v2070, %v2070
    %v2075 = vpack.c.bf16 %v2071, %v2071
    %v2076 = vpack.c.bf16 %v2072, %v2072
    %v2077 = vpack.c.bf16 %v2073, %v2073
    %v2079 = vlaneseq
    %v2080 = vshrl.u32 %v2079, 7
    %v2081 = vsub.s32 0, %v2080
    %v2082 = vrot.slane %v1488, %v2081
    %v2148 = vunpack.c.l.b16 %v365
    %v2149 = vunpack.c.l.b16 %v366
    %v2150 = vunpack.c.l.b16 %v367
    %v2151 = vunpack.c.l.b16 %v368
    %v2152 = vunpack.c.l.b16 %v369
    %v2153 = vunpack.c.l.b16 %v370
    %v2154 = vunpack.c.l.b16 %v371
    %v2155 = vunpack.c.l.b16 %v372
    %v2156 = vunpack.c.l.b16 %v373
    %v2157 = vunpack.c.l.b16 %v374
    %v2158 = vunpack.c.l.b16 %v375
    %v2159 = vunpack.c.l.b16 %v376
    %v2160 = vunpack.c.l.b16 %v377
    %v2161 = vunpack.c.l.b16 %v378
    %v2162 = vunpack.c.l.b16 %v379
    %v2163 = vunpack.c.l.b16 %v380
    %v2164 = vunpack.c.l.b16 %v381
    %v2165 = vunpack.c.l.b16 %v382
    %v2166 = vunpack.c.l.b16 %v383
    %v2167 = vunpack.c.l.b16 %v384
    %v2168 = vunpack.c.l.b16 %v385
    %v2169 = vunpack.c.l.b16 %v386
    %v2170 = vunpack.c.l.b16 %v387
    %v2171 = vunpack.c.l.b16 %v388
    %v2172 = vunpack.c.l.b16 %v389
    %v2173 = vunpack.c.l.b16 %v390
    %v2174 = vunpack.c.l.b16 %v391
    %v2175 = vunpack.c.l.b16 %v392
    %v2176 = vunpack.c.l.b16 %v393
    %v2177 = vunpack.c.l.b16 %v394
    %v2178 = vunpack.c.l.b16 %v395
    %v2179 = vunpack.c.l.b16 %v396
    %v2180 = vunpack.c.l.b16 %v397
    %v2181 = vunpack.c.l.b16 %v398
    %v2182 = vunpack.c.l.b16 %v399
    %v2183 = vunpack.c.l.b16 %v400
    %v2184 = vunpack.c.l.b16 %v401
    %v2185 = vunpack.c.l.b16 %v402
    %v2186 = vunpack.c.l.b16 %v403
    %v2187 = vunpack.c.l.b16 %v404
    %v2188 = vunpack.c.l.b16 %v405
    %v2189 = vunpack.c.l.b16 %v406
    %v2190 = vunpack.c.l.b16 %v407
    %v2191 = vunpack.c.l.b16 %v408
    %v2192 = vunpack.c.l.b16 %v409
    %v2193 = vunpack.c.l.b16 %v410
    %v2194 = vunpack.c.l.b16 %v411
    %v2195 = vunpack.c.l.b16 %v412
    %v2196 = vunpack.c.l.b16 %v413
    %v2197 = vunpack.c.l.b16 %v414
    %v2198 = vunpack.c.l.b16 %v415
    %v2199 = vunpack.c.l.b16 %v416
    %v2200 = vunpack.c.l.b16 %v417
    %v2201 = vunpack.c.l.b16 %v418
    %v2202 = vunpack.c.l.b16 %v419
    %v2203 = vunpack.c.l.b16 %v420
    %v2204 = vunpack.c.l.b16 %v421
    %v2205 = vunpack.c.l.b16 %v422
    %v2206 = vunpack.c.l.b16 %v423
    %v2207 = vunpack.c.l.b16 %v424
    %v2208 = vunpack.c.l.b16 %v425
    %v2209 = vunpack.c.l.b16 %v426
    %v2210 = vunpack.c.l.b16 %v427
    %v2211 = vunpack.c.l.b16 %v428
    %v2212 = vpack.c.b16 %v2149, %v2148
    %v2213 = vpack.c.b16 %v2151, %v2150
    %v2214 = vpack.c.b16 %v2153, %v2152
    %v2215 = vpack.c.b16 %v2155, %v2154
    %v2216 = vpack.c.b16 %v2157, %v2156
    %v2217 = vpack.c.b16 %v2159, %v2158
    %v2218 = vpack.c.b16 %v2161, %v2160
    %v2219 = vpack.c.b16 %v2163, %v2162
    %v2220 = vpack.c.b16 %v2165, %v2164
    %v2221 = vpack.c.b16 %v2167, %v2166
    %v2222 = vpack.c.b16 %v2169, %v2168
    %v2223 = vpack.c.b16 %v2171, %v2170
    %v2224 = vpack.c.b16 %v2173, %v2172
    %v2225 = vpack.c.b16 %v2175, %v2174
    %v2226 = vpack.c.b16 %v2177, %v2176
    %v2227 = vpack.c.b16 %v2179, %v2178
    %v2228 = vpack.c.b16 %v2181, %v2180
    %v2229 = vpack.c.b16 %v2183, %v2182
    %v2230 = vpack.c.b16 %v2185, %v2184
    %v2231 = vpack.c.b16 %v2187, %v2186
    %v2232 = vpack.c.b16 %v2189, %v2188
    %v2233 = vpack.c.b16 %v2191, %v2190
    %v2234 = vpack.c.b16 %v2193, %v2192
    %v2235 = vpack.c.b16 %v2195, %v2194
    %v2236 = vpack.c.b16 %v2197, %v2196
    %v2237 = vpack.c.b16 %v2199, %v2198
    %v2238 = vpack.c.b16 %v2201, %v2200
    %v2239 = vpack.c.b16 %v2203, %v2202
    %v2240 = vpack.c.b16 %v2205, %v2204
    %v2241 = vpack.c.b16 %v2207, %v2206
    %v2242 = vpack.c.b16 %v2209, %v2208
    %v2243 = vpack.c.b16 %v2211, %v2210
    %2276 = vmatprep.subr.bf16.mxu0 0
    %2277 = vmatpush1.bf16.msra.mxu0 %v2212
    %2278 = vmatprep.subr.bf16.mxu0 0
    %2279 = vmatpush1.bf16.msra.mxu0 %v2213
    %2280 = vmatprep.subr.bf16.mxu0 0
    %2281 = vmatpush1.bf16.msra.mxu0 %v2214
    %2282 = vmatprep.subr.bf16.mxu0 0
    %2283 = vmatpush1.bf16.msra.mxu0 %v2215
    %2284 = vmatprep.subr.bf16.mxu0 0
    %2285 = vmatpush1.bf16.msra.mxu0 %v2216
    %2286 = vmatprep.subr.bf16.mxu0 0
    %2287 = vmatpush1.bf16.msra.mxu0 %v2217
    %2288 = vmatprep.subr.bf16.mxu0 0
    %2289 = vmatpush1.bf16.msra.mxu0 %v2218
    %2290 = vmatprep.subr.bf16.mxu0 0
    %2291 = vmatpush1.bf16.msra.mxu0 %v2219
    %2292 = vmatprep.subr.bf16.mxu0 0
    %2293 = vmatpush1.bf16.msra.mxu0 %v2220
    %2294 = vmatprep.subr.bf16.mxu0 0
    %2295 = vmatpush1.bf16.msra.mxu0 %v2221
    %2296 = vmatprep.subr.bf16.mxu0 0
    %2297 = vmatpush1.bf16.msra.mxu0 %v2222
    %2298 = vmatprep.subr.bf16.mxu0 0
    %2299 = vmatpush1.bf16.msra.mxu0 %v2223
    %2300 = vmatprep.subr.bf16.mxu0 0
    %2301 = vmatpush1.bf16.msra.mxu0 %v2224
    %2302 = vmatprep.subr.bf16.mxu0 0
    %2303 = vmatpush1.bf16.msra.mxu0 %v2225
    %2304 = vmatprep.subr.bf16.mxu0 0
    %2305 = vmatpush1.bf16.msra.mxu0 %v2226
    %2306 = vmatprep.subr.bf16.mxu0 0
    %2307 = vmatpush1.bf16.msra.mxu0 %v2227
    %2308 = vmatprep.mubr.bf16.mxu0 %v2075
    %2309 = vmatmul.mubr.bf16.gmra.mrb[0].mxu0 %v2074
    %v2310 = vpop.f32.mrb[0].mxu0
    %v2311 = vadd.f32 %v2082, %v2310
    %v2312 = vpop.f32.mrb[0].mxu0
    %v2313 = vpop.f32.mrb[0].mxu0
    %v2314 = vpop.f32.mrb[0].mxu0
    %2315 = vdwg.mxu0
    %2316 = vmatprep.subr.bf16.mxu0 0
    %2317 = vmatpush1.bf16.msra.mxu0 %v2228
    %2318 = vmatprep.subr.bf16.mxu0 0
    %2319 = vmatpush1.bf16.msra.mxu0 %v2229
    %2320 = vmatprep.subr.bf16.mxu0 0
    %2321 = vmatpush1.bf16.msra.mxu0 %v2230
    %2322 = vmatprep.subr.bf16.mxu0 0
    %2323 = vmatpush1.bf16.msra.mxu0 %v2231
    %2324 = vmatprep.subr.bf16.mxu0 0
    %2325 = vmatpush1.bf16.msra.mxu0 %v2232
    %2326 = vmatprep.subr.bf16.mxu0 0
    %2327 = vmatpush1.bf16.msra.mxu0 %v2233
    %2328 = vmatprep.subr.bf16.mxu0 0
    %2329 = vmatpush1.bf16.msra.mxu0 %v2234
    %2330 = vmatprep.subr.bf16.mxu0 0
    %2331 = vmatpush1.bf16.msra.mxu0 %v2235
    %2332 = vmatprep.subr.bf16.mxu0 0
    %2333 = vmatpush1.bf16.msra.mxu0 %v2236
    %2334 = vmatprep.subr.bf16.mxu0 0
    %2335 = vmatpush1.bf16.msra.mxu0 %v2237
    %2336 = vmatprep.subr.bf16.mxu0 0
    %2337 = vmatpush1.bf16.msra.mxu0 %v2238
    %2338 = vmatprep.subr.bf16.mxu0 0
    %2339 = vmatpush1.bf16.msra.mxu0 %v2239
    %2340 = vmatprep.subr.bf16.mxu0 0
    %2341 = vmatpush1.bf16.msra.mxu0 %v2240
    %2342 = vmatprep.subr.bf16.mxu0 0
    %2343 = vmatpush1.bf16.msra.mxu0 %v2241
    %2344 = vmatprep.subr.bf16.mxu0 0
    %2345 = vmatpush1.bf16.msra.mxu0 %v2242
    %2346 = vmatprep.subr.bf16.mxu0 0
    %2347 = vmatpush1.bf16.msra.mxu0 %v2243
    %2348 = vmatprep.mubr.bf16.mxu0 %v2077
    %2349 = vmatmul.mubr.bf16.gmra.mrb[0].mxu0 %v2076
    %v2350 = vpop.f32.mrb[0].mxu0
    %v2351 = vadd.f32 %v2311, %v2350
    %v2352 = vpop.f32.mrb[0].mxu0
    %v2353 = vpop.f32.mrb[0].mxu0
    %v2354 = vpop.f32.mrb[0].mxu0
    %2355 = vdwg.mxu0
    %v2356 = vadd.f32 %v2351, %v1703
    %v2357 = vpack.c.bf16 %v1514, %v1514
    %v2359 = vlaneseq
    %v2360 = vshrl.u32 %v2359, 7
    %v2361 = vsub.s32 0, %v2360
    %v2362 = vrot.slane %v1489, %v2361
    %v2366 = vunpack.c.l.b16 %v429
    %v2367 = vunpack.c.l.b16 %v430
    %v2368 = vpack.c.b16 %v2367, %v2366
    %vm2370 = vcmask 130048
    %v2372 = vsel %vm2370, %v2357, 0
    %2374 = vmatprep.subr.bf16.mxu0 0
    %2375 = vmatpush1.bf16.msra.mxu0 %v2368
    %2376 = vmatprep.subr.bf16.mxu0 0
    %2377 = vmatpush1.bf16.msra.mxu0 0
    %2378 = vmatprep.subr.bf16.mxu0 0
    %2379 = vmatpush1.bf16.msra.mxu0 0
    %2380 = vmatprep.subr.bf16.mxu0 0
    %2381 = vmatpush1.bf16.msra.mxu0 0
    %2382 = vmatprep.subr.bf16.mxu0 0
    %2383 = vmatpush1.bf16.msra.mxu0 0
    %2384 = vmatprep.subr.bf16.mxu0 0
    %2385 = vmatpush1.bf16.msra.mxu0 0
    %2386 = vmatprep.subr.bf16.mxu0 0
    %2387 = vmatpush1.bf16.msra.mxu0 0
    %2388 = vmatprep.subr.bf16.mxu0 0
    %2389 = vmatpush1.bf16.msra.mxu0 0
    %2390 = vmatprep.subr.bf16.mxu0 0
    %2391 = vmatpush1.bf16.msra.mxu0 0
    %2392 = vmatprep.subr.bf16.mxu0 0
    %2393 = vmatpush1.bf16.msra.mxu0 0
    %2394 = vmatprep.subr.bf16.mxu0 0
    %2395 = vmatpush1.bf16.msra.mxu0 0
    %2396 = vmatprep.subr.bf16.mxu0 0
    %2397 = vmatpush1.bf16.msra.mxu0 0
    %2398 = vmatprep.subr.bf16.mxu0 0
    %2399 = vmatpush1.bf16.msra.mxu0 0
    %2400 = vmatprep.subr.bf16.mxu0 0
    %2401 = vmatpush1.bf16.msra.mxu0 0
    %2402 = vmatprep.subr.bf16.mxu0 0
    %2403 = vmatpush1.bf16.msra.mxu0 0
    %2404 = vmatprep.subr.bf16.mxu0 0
    %2405 = vmatpush1.bf16.msra.mxu0 0
    %2406 = vmatprep.mubr.bf16.mxu0 0
    %2407 = vmatmul.mubr.bf16.gmra.mrb[0].mxu0 %v2372
    %v2408 = vpop.f32.mrb[0].mxu0
    %v2409 = vadd.f32 %v2362, %v2408
    %v2410 = vpop.f32.mrb[0].mxu0
    %v2411 = vpop.f32.mrb[0].mxu0
    %v2412 = vpop.f32.mrb[0].mxu0
    %2413 = vdwg.mxu0
    %2414 = vadd.xlane.f32.xlu0 %v2409
    %v2415 = vpop.xlane.xlu0 %2414
    %v2416 = vmul.f32 %v2415, %v1581
    %v2417 = vsub.f32 %v2409, %v2416
    %v2418 = vmul.f32 %v2417, %v2417
    %2419 = vadd.xlane.f32.xlu0 %v2418
    %v2420 = vpop.xlane.xlu0 %2419
    %v2421 = vmul.f32 %v2420, %v1581
    %v2422 = vadd.f32 %v2421, 1e-05
    %v2423 = vrsqrt.pop %v2422
    %v2424 = vmul.f32 %v2417, %v2423
    %v2426 = vlaneseq
    %v2427 = vshrl.u32 %v2426, 7
    %v2428 = vsub.s32 0, %v2427
    %v2429 = vrot.slane %v1490, %v2428
    %v2431 = vmul.f32 %v2424, %v2429
    %v2433 = vlaneseq
    %v2434 = vshrl.u32 %v2433, 7
    %v2435 = vsub.s32 0, %v2434
    %v2436 = vrot.slane %v1491, %v2435
    %v2438 = vadd.f32 %v2431, %v2436
    %v2439 = vpack.c.bf16 %v2438, %v2438
    %v2441 = vlaneseq
    %v2442 = vshrl.u32 %v2441, 7
    %v2443 = vsub.s32 0, %v2442
    %v2444 = vrot.slane %v1492, %v2443
    %v2462 = vunpack.c.l.b16 %v431
    %v2463 = vunpack.c.l.b16 %v432
    %v2464 = vunpack.c.l.b16 %v433
    %v2465 = vunpack.c.l.b16 %v434
    %v2466 = vunpack.c.l.b16 %v435
    %v2467 = vunpack.c.l.b16 %v436
    %v2468 = vunpack.c.l.b16 %v437
    %v2469 = vunpack.c.l.b16 %v438
    %v2470 = vunpack.c.l.b16 %v439
    %v2471 = vunpack.c.l.b16 %v440
    %v2472 = vunpack.c.l.b16 %v441
    %v2473 = vunpack.c.l.b16 %v442
    %v2474 = vunpack.c.l.b16 %v443
    %v2475 = vunpack.c.l.b16 %v444
    %v2476 = vunpack.c.l.b16 %v445
    %v2477 = vunpack.c.l.b16 %v446
    %v2478 = vpack.c.b16 %v2463, %v2462
    %v2479 = vpack.c.b16 %v2465, %v2464
    %v2480 = vpack.c.b16 %v2467, %v2466
    %v2481 = vpack.c.b16 %v2469, %v2468
    %v2482 = vpack.c.b16 %v2471, %v2470
    %v2483 = vpack.c.b16 %v2473, %v2472
    %v2484 = vpack.c.b16 %v2475, %v2474
    %v2485 = vpack.c.b16 %v2477, %v2476
    %2494 = vmatprep.subr.bf16.mxu0 0
    %2495 = vmatpush1.bf16.msra.mxu0 %v2478
    %2496 = vmatprep.subr.bf16.mxu0 0
    %2497 = vmatpush1.bf16.msra.mxu0 %v2479
    %2498 = vmatprep.subr.bf16.mxu0 0
    %2499 = vmatpush1.bf16.msra.mxu0 %v2480
    %2500 = vmatprep.subr.bf16.mxu0 0
    %2501 = vmatpush1.bf16.msra.mxu0 %v2481
    %2502 = vmatprep.subr.bf16.mxu0 0
    %2503 = vmatpush1.bf16.msra.mxu0 %v2482
    %2504 = vmatprep.subr.bf16.mxu0 0
    %2505 = vmatpush1.bf16.msra.mxu0 %v2483
    %2506 = vmatprep.subr.bf16.mxu0 0
    %2507 = vmatpush1.bf16.msra.mxu0 %v2484
    %2508 = vmatprep.subr.bf16.mxu0 0
    %2509 = vmatpush1.bf16.msra.mxu0 %v2485
    %2510 = vmatprep.subr.bf16.mxu0 0
    %2511 = vmatpush1.bf16.msra.mxu0 0
    %2512 = vmatprep.subr.bf16.mxu0 0
    %2513 = vmatpush1.bf16.msra.mxu0 0
    %2514 = vmatprep.subr.bf16.mxu0 0
    %2515 = vmatpush1.bf16.msra.mxu0 0
    %2516 = vmatprep.subr.bf16.mxu0 0
    %2517 = vmatpush1.bf16.msra.mxu0 0
    %2518 = vmatprep.subr.bf16.mxu0 0
    %2519 = vmatpush1.bf16.msra.mxu0 0
    %2520 = vmatprep.subr.bf16.mxu0 0
    %2521 = vmatpush1.bf16.msra.mxu0 0
    %2522 = vmatprep.subr.bf16.mxu0 0
    %2523 = vmatpush1.bf16.msra.mxu0 0
    %2524 = vmatprep.subr.bf16.mxu0 0
    %2525 = vmatpush1.bf16.msra.mxu0 0
    %2526 = vmatprep.mubr.bf16.mxu0 0
    %2527 = vmatmul.mubr.bf16.gmra.mrb[0].mxu0 %v2439
    %v2528 = vpop.f32.mrb[0].mxu0
    %v2529 = vadd.f32 %v2444, %v2528
    %v2530 = vpop.f32.mrb[0].mxu0
    %v2531 = vpop.f32.mrb[0].mxu0
    %v2532 = vpop.f32.mrb[0].mxu0
    %2533 = vdwg.mxu0
    %v2534 = vpack.c.bf16 %v2529, %v2529
    %v2535 = vpack.c.bf16 %v2409, %v2409
    %v2537 = vlaneseq
    %v2538 = vshrl.u32 %v2537, 7
    %v2539 = vsub.s32 0, %v2538
    %v2540 = vrot.slane %v1493, %v2539
    %v2541 = vlaneseq
    %v2542 = vshrl.u32 %v2541, 7
    %v2543 = vsub.s32 1, %v2542
    %v2544 = vrot.slane %v1493, %v2543
    %v2579 = vunpack.c.l.b16 %v447
    %v2580 = vunpack.c.h.b16 %v447
    %v2581 = vunpack.c.l.b16 %v448
    %v2582 = vunpack.c.h.b16 %v448
    %v2583 = vunpack.c.l.b16 %v449
    %v2584 = vunpack.c.h.b16 %v449
    %v2585 = vunpack.c.l.b16 %v450
    %v2586 = vunpack.c.h.b16 %v450
    %v2587 = vunpack.c.l.b16 %v451
    %v2588 = vunpack.c.h.b16 %v451
    %v2589 = vunpack.c.l.b16 %v452
    %v2590 = vunpack.c.h.b16 %v452
    %v2591 = vunpack.c.l.b16 %v453
    %v2592 = vunpack.c.h.b16 %v453
    %v2593 = vunpack.c.l.b16 %v454
    %v2594 = vunpack.c.h.b16 %v454
    %v2595 = vunpack.c.l.b16 %v455
    %v2596 = vunpack.c.h.b16 %v455
    %v2597 = vunpack.c.l.b16 %v456
    %v2598 = vunpack.c.h.b16 %v456
    %v2599 = vunpack.c.l.b16 %v457
    %v2600 = vunpack.c.h.b16 %v457
    %v2601 = vunpack.c.l.b16 %v458
    %v2602 = vunpack.c.h.b16 %v458
    %v2603 = vunpack.c.l.b16 %v459
    %v2604 = vunpack.c.h.b16 %v459
    %v2605 = vunpack.c.l.b16 %v460
    %v2606 = vunpack.c.h.b16 %v460
    %v2607 = vunpack.c.l.b16 %v461
    %v2608 = vunpack.c.h.b16 %v461
    %v2609 = vunpack.c.l.b16 %v462
    %v2610 = vunpack.c.h.b16 %v462
    %v2611 = vunpack.c.l.b16 %v463
    %v2612 = vunpack.c.h.b16 %v463
    %v2613 = vunpack.c.l.b16 %v464
    %v2614 = vunpack.c.h.b16 %v464
    %v2615 = vunpack.c.l.b16 %v465
    %v2616 = vunpack.c.h.b16 %v465
    %v2617 = vunpack.c.l.b16 %v466
    %v2618 = vunpack.c.h.b16 %v466
    %v2619 = vunpack.c.l.b16 %v467
    %v2620 = vunpack.c.h.b16 %v467
    %v2621 = vunpack.c.l.b16 %v468
    %v2622 = vunpack.c.h.b16 %v468
    %v2623 = vunpack.c.l.b16 %v469
    %v2624 = vunpack.c.h.b16 %v469
    %v2625 = vunpack.c.l.b16 %v470
    %v2626 = vunpack.c.h.b16 %v470
    %v2627 = vunpack.c.l.b16 %v471
    %v2628 = vunpack.c.h.b16 %v471
    %v2629 = vunpack.c.l.b16 %v472
    %v2630 = vunpack.c.h.b16 %v472
    %v2631 = vunpack.c.l.b16 %v473
    %v2632 = vunpack.c.h.b16 %v473
    %v2633 = vunpack.c.l.b16 %v474
    %v2634 = vunpack.c.h.b16 %v474
    %v2635 = vunpack.c.l.b16 %v475
    %v2636 = vunpack.c.h.b16 %v475
    %v2637 = vunpack.c.l.b16 %v476
    %v2638 = vunpack.c.h.b16 %v476
    %v2639 = vunpack.c.l.b16 %v477
    %v2640 = vunpack.c.h.b16 %v477
    %v2641 = vunpack.c.l.b16 %v478
    %v2642 = vunpack.c.h.b16 %v478
    %v2643 = vpack.c.b16 %v2581, %v2579
    %v2644 = vpack.c.b16 %v2582, %v2580
    %v2645 = vpack.c.b16 %v2585, %v2583
    %v2646 = vpack.c.b16 %v2586, %v2584
    %v2647 = vpack.c.b16 %v2589, %v2587
    %v2648 = vpack.c.b16 %v2590, %v2588
    %v2649 = vpack.c.b16 %v2593, %v2591
    %v2650 = vpack.c.b16 %v2594, %v2592
    %v2651 = vpack.c.b16 %v2597, %v2595
    %v2652 = vpack.c.b16 %v2598, %v2596
    %v2653 = vpack.c.b16 %v2601, %v2599
    %v2654 = vpack.c.b16 %v2602, %v2600
    %v2655 = vpack.c.b16 %v2605, %v2603
    %v2656 = vpack.c.b16 %v2606, %v2604
    %v2657 = vpack.c.b16 %v2609, %v2607
    %v2658 = vpack.c.b16 %v2610, %v2608
    %v2659 = vpack.c.b16 %v2613, %v2611
    %v2660 = vpack.c.b16 %v2614, %v2612
    %v2661 = vpack.c.b16 %v2617, %v2615
    %v2662 = vpack.c.b16 %v2618, %v2616
    %v2663 = vpack.c.b16 %v2621, %v2619
    %v2664 = vpack.c.b16 %v2622, %v2620
    %v2665 = vpack.c.b16 %v2625, %v2623
    %v2666 = vpack.c.b16 %v2626, %v2624
    %v2667 = vpack.c.b16 %v2629, %v2627
    %v2668 = vpack.c.b16 %v2630, %v2628
    %v2669 = vpack.c.b16 %v2633, %v2631
    %v2670 = vpack.c.b16 %v2634, %v2632
    %v2671 = vpack.c.b16 %v2637, %v2635
    %v2672 = vpack.c.b16 %v2638, %v2636
    %v2673 = vpack.c.b16 %v2641, %v2639
    %v2674 = vpack.c.b16 %v2642, %v2640
    %2707 = vmatprep.subr.bf16.mxu0 %v2644
    %2708 = vmatpush1.bf16.msra.mxu0 %v2643
    %2709 = vmatprep.subr.bf16.mxu0 %v2646
    %2710 = vmatpush1.bf16.msra.mxu0 %v2645
    %2711 = vmatprep.subr.bf16.mxu0 %v2648
    %2712 = vmatpush1.bf16.msra.mxu0 %v2647
    %2713 = vmatprep.subr.bf16.mxu0 %v2650
    %2714 = vmatpush1.bf16.msra.mxu0 %v2649
    %2715 = vmatprep.subr.bf16.mxu0 %v2652
    %2716 = vmatpush1.bf16.msra.mxu0 %v2651
    %2717 = vmatprep.subr.bf16.mxu0 %v2654
    %2718 = vmatpush1.bf16.msra.mxu0 %v2653
    %2719 = vmatprep.subr.bf16.mxu0 %v2656
    %2720 = vmatpush1.bf16.msra.mxu0 %v2655
    %2721 = vmatprep.subr.bf16.mxu0 %v2658
    %2722 = vmatpush1.bf16.msra.mxu0 %v2657
    %2723 = vmatprep.subr.bf16.mxu0 %v2660
    %2724 = vmatpush1.bf16.msra.mxu0 %v2659
    %2725 = vmatprep.subr.bf16.mxu0 %v2662
    %2726 = vmatpush1.bf16.msra.mxu0 %v2661
    %2727 = vmatprep.subr.bf16.mxu0 %v2664
    %2728 = vmatpush1.bf16.msra.mxu0 %v2663
    %2729 = vmatprep.subr.bf16.mxu0 %v2666
    %2730 = vmatpush1.bf16.msra.mxu0 %v2665
    %2731 = vmatprep.subr.bf16.mxu0 %v2668
    %2732 = vmatpush1.bf16.msra.mxu0 %v2667
    %2733 = vmatprep.subr.bf16.mxu0 %v2670
    %2734 = vmatpush1.bf16.msra.mxu0 %v2669
    %2735 = vmatprep.subr.bf16.mxu0 %v2672
    %2736 = vmatpush1.bf16.msra.mxu0 %v2671
    %2737 = vmatprep.subr.bf16.mxu0 %v2674
    %2738 = vmatpush1.bf16.msra.mxu0 %v2673
    %2739 = vmatprep.mubr.bf16.mxu0 %v2535
    %2740 = vmatmul.mubr.bf16.gmra.mrb[0].mxu0 %v2534
    %v2741 = vpop.f32.mrb[0].mxu0
    %v2742 = vadd.f32 %v2540, %v2741
    %v2743 = vpop.f32.mrb[0].mxu0
    %v2744 = vadd.f32 %v2544, %v2743
    %v2745 = vpop.f32.mrb[0].mxu0
    %v2746 = vpop.f32.mrb[0].mxu0
    %2747 = vdwg.mxu0
    %v2748 = vmax.f32 %v2742, 0.0
    %v2749 = vmax.f32 %v2744, 0.0
    %v2750 = vadd.f32 %v2529, %v2409
    %2751 = vadd.xlane.f32.xlu0 %v2750
    %v2752 = vpop.xlane.xlu0 %2751
    %v2753 = vrcp.pop 256.0
    %v2754 = vmul.f32 %v2752, %v2753
    %v2755 = vsub.f32 %v2529, %v2754
    %v2756 = vsub.f32 %v2409, %v2754
    %v2757 = vmul.f32 %v2755, %v2755
    %v2758 = vmul.f32 %v2756, %v2756
    %v2759 = vadd.f32 %v2757, %v2758
    %2760 = vadd.xlane.f32.xlu0 %v2759
    %v2761 = vpop.xlane.xlu0 %2760
    %v2762 = vmul.f32 %v2761, %v2753
    %v2763 = vadd.f32 %v2762, 1e-05
    %v2764 = vrsqrt.pop %v2763
    %v2765 = vmul.f32 %v2755, %v2764
    %v2766 = vmul.f32 %v2756, %v2764
    %v2768 = vlaneseq
    %v2769 = vshrl.u32 %v2768, 7
    %v2770 = vsub.s32 0, %v2769
    %v2771 = vrot.slane %v1494, %v2770
    %v2772 = vlaneseq
    %v2773 = vshrl.u32 %v2772, 7
    %v2774 = vsub.s32 1, %v2773
    %v2775 = vrot.slane %v1494, %v2774
    %v2778 = vmul.f32 %v2765, %v2771
    %v2779 = vmul.f32 %v2766, %v2775
    %v2781 = vlaneseq
    %v2782 = vshrl.u32 %v2781, 7
    %v2783 = vsub.s32 0, %v2782
    %v2784 = vrot.slane %v1495, %v2783
    %v2785 = vlaneseq
    %v2786 = vshrl.u32 %v2785, 7
    %v2787 = vsub.s32 1, %v2786
    %v2788 = vrot.slane %v1495, %v2787
    %v2791 = vadd.f32 %v2778, %v2784
    %v2792 = vadd.f32 %v2779, %v2788
    %v2793 = vadd.f32 %v2791, %v2748
    %v2794 = vadd.f32 %v2792, %v2749
    %v2795 = vpack.c.bf16 %v2791, %v2791
    %v2796 = vpack.c.bf16 %v2792, %v2792
    %v2798 = vlaneseq
    %v2799 = vshrl.u32 %v2798, 7
    %v2800 = vsub.s32 0, %v2799
    %v2801 = vrot.slane %v1496, %v2800
    %v2802 = vlaneseq
    %v2803 = vshrl.u32 %v2802, 7
    %v2804 = vsub.s32 1, %v2803
    %v2805 = vrot.slane %v1496, %v2804
    %v2806 = vlaneseq
    %v2807 = vshrl.u32 %v2806, 7
    %v2808 = vsub.s32 2, %v2807
    %v2809 = vrot.slane %v1496, %v2808
    %v2877 = vunpack.c.l.b16 %v479
    %v2878 = vunpack.c.h.b16 %v479
    %v2879 = vunpack.c.l.b16 %v480
    %v2880 = vunpack.c.l.b16 %v481
    %v2881 = vunpack.c.h.b16 %v481
    %v2882 = vunpack.c.l.b16 %v482
    %v2883 = vunpack.c.l.b16 %v483
    %v2884 = vunpack.c.h.b16 %v483
    %v2885 = vunpack.c.l.b16 %v484
    %v2886 = vunpack.c.l.b16 %v485
    %v2887 = vunpack.c.h.b16 %v485
    %v2888 = vunpack.c.l.b16 %v486
    %v2889 = vunpack.c.l.b16 %v487
    %v2890 = vunpack.c.h.b16 %v487
    %v2891 = vunpack.c.l.b16 %v488
    %v2892 = vunpack.c.l.b16 %v489
    %v2893 = vunpack.c.h.b16 %v489
    %v2894 = vunpack.c.l.b16 %v490
    %v2895 = vunpack.c.l.b16 %v491
    %v2896 = vunpack.c.h.b16 %v491
    %v2897 = vunpack.c.l.b16 %v492
    %v2898 = vunpack.c.l.b16 %v493
    %v2899 = vunpack.c.h.b16 %v493
    %v2900 = vunpack.c.l.b16 %v494
    %v2901 = vunpack.c.l.b16 %v495
    %v2902 = vunpack.c.h.b16 %v495
    %v2903 = vunpack.c.l.b16 %v496
    %v2904 = vunpack.c.l.b16 %v497
    %v2905 = vunpack.c.h.b16 %v497
    %v2906 = vunpack.c.l.b16 %v498
    %v2907 = vunpack.c.l.b16 %v499
    %v2908 = vunpack.c.h.b16 %v499
    %v2909 = vunpack.c.l.b16 %v500
    %v2910 = vunpack.c.l.b16 %v501
    %v2911 = vunpack.c.h.b16 %v501
    %v2912 = vunpack.c.l.b16 %v502
    %v2913 = vunpack.c.l.b16 %v503
    %v2914 = vunpack.c.h.b16 %v503
    %v2915 = vunpack.c.l.b16 %v504
    %v2916 = vunpack.c.l.b16 %v505
    %v2917 = vunpack.c.h.b16 %v505
    %v2918 = vunpack.c.l.b16 %v506
    %v2919 = vunpack.c.l.b16 %v507
    %v2920 = vunpack.c.h.b16 %v507
    %v2921 = vunpack.c.l.b16 %v508
    %v2922 = vunpack.c.l.b16 %v509
    %v2923 = vunpack.c.h.b16 %v509
    %v2924 = vunpack.c.l.b16 %v510
    %v2925 = vunpack.c.l.b16 %v511
    %v2926 = vunpack.c.h.b16 %v511
    %v2927 = vunpack.c.l.b16 %v512
    %v2928 = vunpack.c.l.b16 %v513
    %v2929 = vunpack.c.h.b16 %v513
    %v2930 = vunpack.c.l.b16 %v514
    %v2931 = vunpack.c.l.b16 %v515
    %v2932 = vunpack.c.h.b16 %v515
    %v2933 = vunpack.c.l.b16 %v516
    %v2934 = vunpack.c.l.b16 %v517
    %v2935 = vunpack.c.h.b16 %v517
    %v2936 = vunpack.c.l.b16 %v518
    %v2937 = vunpack.c.l.b16 %v519
    %v2938 = vunpack.c.h.b16 %v519
    %v2939 = vunpack.c.l.b16 %v520
    %v2940 = vunpack.c.l.b16 %v521
    %v2941 = vunpack.c.h.b16 %v521
    %v2942 = vunpack.c.l.b16 %v522
    %v2943 = vunpack.c.l.b16 %v523
    %v2944 = vunpack.c.h.b16 %v523
    %v2945 = vunpack.c.l.b16 %v524
    %v2946 = vunpack.c.l.b16 %v525
    %v2947 = vunpack.c.h.b16 %v525
    %v2948 = vunpack.c.l.b16 %v526
    %v2949 = vunpack.c.l.b16 %v527
    %v2950 = vunpack.c.h.b16 %v527
    %v2951 = vunpack.c.l.b16 %v528
    %v2952 = vunpack.c.l.b16 %v529
    %v2953 = vunpack.c.h.b16 %v529
    %v2954 = vunpack.c.l.b16 %v530
    %v2955 = vunpack.c.l.b16 %v531
    %v2956 = vunpack.c.h.b16 %v531
    %v2957 = vunpack.c.l.b16 %v532
    %v2958 = vunpack.c.l.b16 %v533
    %v2959 = vunpack.c.h.b16 %v533
    %v2960 = vunpack.c.l.b16 %v534
    %v2961 = vunpack.c.l.b16 %v535
    %v2962 = vunpack.c.h.b16 %v535
    %v2963 = vunpack.c.l.b16 %v536
    %v2964 = vunpack.c.l.b16 %v537
    %v2965 = vunpack.c.h.b16 %v537
    %v2966 = vunpack.c.l.b16 %v538
    %v2967 = vunpack.c.l.b16 %v539
    %v2968 = vunpack.c.h.b16 %v539
    %v2969 = vunpack.c.l.b16 %v540
    %v2970 = vunpack.c.l.b16 %v541
    %v2971 = vunpack.c.h.b16 %v541
    %v2972 = vunpack.c.l.b16 %v542
    %v2973 = vpack.c.b16 %v2880, %v2877
    %v2974 = vpack.c.b16 %v2881, %v2878
    %v2975 = vpack.c.b16 %v2882, %v2879
    %v2976 = vpack.c.b16 %v2886, %v2883
    %v2977 = vpack.c.b16 %v2887, %v2884
    %v2978 = vpack.c.b16 %v2888, %v2885
    %v2979 = vpack.c.b16 %v2892, %v2889
    %v2980 = vpack.c.b16 %v2893, %v2890
    %v2981 = vpack.c.b16 %v2894, %v2891
    %v2982 = vpack.c.b16 %v2898, %v2895
    %v2983 = vpack.c.b16 %v2899, %v2896
    %v2984 = vpack.c.b16 %v2900, %v2897
    %v2985 = vpack.c.b16 %v2904, %v2901
    %v2986 = vpack.c.b16 %v2905, %v2902
    %v2987 = vpack.c.b16 %v2906, %v2903
    %v2988 = vpack.c.b16 %v2910, %v2907
    %v2989 = vpack.c.b16 %v2911, %v2908
    %v2990 = vpack.c.b16 %v2912, %v2909
    %v2991 = vpack.c.b16 %v2916, %v2913
    %v2992 = vpack.c.b16 %v2917, %v2914
    %v2993 = vpack.c.b16 %v2918, %v2915
    %v2994 = vpack.c.b16 %v2922, %v2919
    %v2995 = vpack.c.b16 %v2923, %v2920
    %v2996 = vpack.c.b16 %v2924, %v2921
    %v2997 = vpack.c.b16 %v2928, %v2925
    %v2998 = vpack.c.b16 %v2929, %v2926
    %v2999 = vpack.c.b16 %v2930, %v2927
    %v3000 = vpack.c.b16 %v2934, %v2931
    %v3001 = vpack.c.b16 %v2935, %v2932
    %v3002 = vpack.c.b16 %v2936, %v2933
    %v3003 = vpack.c.b16 %v2940, %v2937
    %v3004 = vpack.c.b16 %v2941, %v2938
    %v3005 = vpack.c.b16 %v2942, %v2939
    %v3006 = vpack.c.b16 %v2946, %v2943
    %v3007 = vpack.c.b16 %v2947, %v2944
    %v3008 = vpack.c.b16 %v2948, %v2945
    %v3009 = vpack.c.b16 %v2952, %v2949
    %v3010 = vpack.c.b16 %v2953, %v2950
    %v3011 = vpack.c.b16 %v2954, %v2951
    %v3012 = vpack.c.b16 %v2958, %v2955
    %v3013 = vpack.c.b16 %v2959, %v2956
    %v3014 = vpack.c.b16 %v2960, %v2957
    %v3015 = vpack.c.b16 %v2964, %v2961
    %v3016 = vpack.c.b16 %v2965, %v2962
    %v3017 = vpack.c.b16 %v2966, %v2963
    %v3018 = vpack.c.b16 %v2970, %v2967
    %v3019 = vpack.c.b16 %v2971, %v2968
    %v3020 = vpack.c.b16 %v2972, %v2969
    %3069 = vmatprep.subr.bf16.mxu0 %v2974
    %3070 = vmatpush1.bf16.msra.mxu0 %v2973
    %3071 = vmatprep.subr.bf16.mxu0 %v2977
    %3072 = vmatpush1.bf16.msra.mxu0 %v2976
    %3073 = vmatprep.subr.bf16.mxu0 %v2980
    %3074 = vmatpush1.bf16.msra.mxu0 %v2979
    %3075 = vmatprep.subr.bf16.mxu0 %v2983
    %3076 = vmatpush1.bf16.msra.mxu0 %v2982
    %3077 = vmatprep.subr.bf16.mxu0 %v2986
    %3078 = vmatpush1.bf16.msra.mxu0 %v2985
    %3079 = vmatprep.subr.bf16.mxu0 %v2989
    %3080 = vmatpush1.bf16.msra.mxu0 %v2988
    %3081 = vmatprep.subr.bf16.mxu0 %v2992
    %3082 = vmatpush1.bf16.msra.mxu0 %v2991
    %3083 = vmatprep.subr.bf16.mxu0 %v2995
    %3084 = vmatpush1.bf16.msra.mxu0 %v2994
    %3085 = vmatprep.subr.bf16.mxu0 %v2998
    %3086 = vmatpush1.bf16.msra.mxu0 %v2997
    %3087 = vmatprep.subr.bf16.mxu0 %v3001
    %3088 = vmatpush1.bf16.msra.mxu0 %v3000
    %3089 = vmatprep.subr.bf16.mxu0 %v3004
    %3090 = vmatpush1.bf16.msra.mxu0 %v3003
    %3091 = vmatprep.subr.bf16.mxu0 %v3007
    %3092 = vmatpush1.bf16.msra.mxu0 %v3006
    %3093 = vmatprep.subr.bf16.mxu0 %v3010
    %3094 = vmatpush1.bf16.msra.mxu0 %v3009
    %3095 = vmatprep.subr.bf16.mxu0 %v3013
    %3096 = vmatpush1.bf16.msra.mxu0 %v3012
    %3097 = vmatprep.subr.bf16.mxu0 %v3016
    %3098 = vmatpush1.bf16.msra.mxu0 %v3015
    %3099 = vmatprep.subr.bf16.mxu0 %v3019
    %3100 = vmatpush1.bf16.msra.mxu0 %v3018
    %3101 = vmatprep.mubr.bf16.mxu0 %v2796
    %3102 = vmatmul.mubr.bf16.gmra.mrb[0].mxu0 %v2795
    %v3103 = vpop.f32.mrb[0].mxu0
    %v3104 = vadd.f32 %v2801, %v3103
    %v3105 = vpop.f32.mrb[0].mxu0
    %v3106 = vadd.f32 %v2805, %v3105
    %v3107 = vpop.f32.mrb[0].mxu0
    %v3108 = vpop.f32.mrb[0].mxu0
    %3109 = vdwg.mxu0
    %3110 = vmatprep.subr.bf16.mxu0 0
    %3111 = vmatpush1.bf16.msra.mxu0 %v2975
    %3112 = vmatprep.subr.bf16.mxu0 0
    %3113 = vmatpush1.bf16.msra.mxu0 %v2978
    %3114 = vmatprep.subr.bf16.mxu0 0
    %3115 = vmatpush1.bf16.msra.mxu0 %v2981
    %3116 = vmatprep.subr.bf16.mxu0 0
    %3117 = vmatpush1.bf16.msra.mxu0 %v2984
    %3118 = vmatprep.subr.bf16.mxu0 0
    %3119 = vmatpush1.bf16.msra.mxu0 %v2987
    %3120 = vmatprep.subr.bf16.mxu0 0
    %3121 = vmatpush1.bf16.msra.mxu0 %v2990
    %3122 = vmatprep.subr.bf16.mxu0 0
    %3123 = vmatpush1.bf16.msra.mxu0 %v2993
    %3124 = vmatprep.subr.bf16.mxu0 0
    %3125 = vmatpush1.bf16.msra.mxu0 %v2996
    %3126 = vmatprep.subr.bf16.mxu0 0
    %3127 = vmatpush1.bf16.msra.mxu0 %v2999
    %3128 = vmatprep.subr.bf16.mxu0 0
    %3129 = vmatpush1.bf16.msra.mxu0 %v3002
    %3130 = vmatprep.subr.bf16.mxu0 0
    %3131 = vmatpush1.bf16.msra.mxu0 %v3005
    %3132 = vmatprep.subr.bf16.mxu0 0
    %3133 = vmatpush1.bf16.msra.mxu0 %v3008
    %3134 = vmatprep.subr.bf16.mxu0 0
    %3135 = vmatpush1.bf16.msra.mxu0 %v3011
    %3136 = vmatprep.subr.bf16.mxu0 0
    %3137 = vmatpush1.bf16.msra.mxu0 %v3014
    %3138 = vmatprep.subr.bf16.mxu0 0
    %3139 = vmatpush1.bf16.msra.mxu0 %v3017
    %3140 = vmatprep.subr.bf16.mxu0 0
    %3141 = vmatpush1.bf16.msra.mxu0 %v3020
    %3142 = vmatprep.mubr.bf16.mxu0 %v2796
    %3143 = vmatmul.mubr.bf16.gmra.mrb[0].mxu0 %v2795
    %v3144 = vpop.f32.mrb[0].mxu0
    %v3145 = vadd.f32 %v2809, %v3144
    %v3146 = vpop.f32.mrb[0].mxu0
    %v3147 = vpop.f32.mrb[0].mxu0
    %v3148 = vpop.f32.mrb[0].mxu0
    %3149 = vdwg.mxu0
    %v3150 = vmax.f32 %v3104, 0.0
    %v3151 = vmax.f32 %v3106, 0.0
    %v3152 = vmax.f32 %v3145, 0.0
    %v3153 = vpack.c.bf16 %v1515, %v1515
    %v3155 = vlaneseq
    %v3156 = vshrl.u32 %v3155, 7
    %v3157 = vsub.s32 0, %v3156
    %v3158 = vrot.slane %v1497, %v3157
    %v3168 = vunpack.c.l.b16 %v543
    %v3169 = vunpack.c.l.b16 %v544
    %v3170 = vunpack.c.l.b16 %v545
    %v3171 = vunpack.c.l.b16 %v546
    %v3172 = vunpack.c.l.b16 %v547
    %v3173 = vunpack.c.l.b16 %v548
    %v3174 = vunpack.c.l.b16 %v549
    %v3175 = vunpack.c.l.b16 %v550
    %v3176 = vpack.c.b16 %v3169, %v3168
    %v3177 = vpack.c.b16 %v3171, %v3170
    %v3178 = vpack.c.b16 %v3173, %v3172
    %v3179 = vpack.c.b16 %v3175, %v3174
    %vm3184 = vcmask 523264
    %v3186 = vsel %vm3184, %v3153, 0
    %3188 = vmatprep.subr.bf16.mxu0 0
    %3189 = vmatpush1.bf16.msra.mxu0 %v3176
    %3190 = vmatprep.subr.bf16.mxu0 0
    %3191 = vmatpush1.bf16.msra.mxu0 %v3177
    %3192 = vmatprep.subr.bf16.mxu0 0
    %3193 = vmatpush1.bf16.msra.mxu0 %v3178
    %3194 = vmatprep.subr.bf16.mxu0 0
    %3195 = vmatpush1.bf16.msra.mxu0 %v3179
    %3196 = vmatprep.subr.bf16.mxu0 0
    %3197 = vmatpush1.bf16.msra.mxu0 0
    %3198 = vmatprep.subr.bf16.mxu0 0
    %3199 = vmatpush1.bf16.msra.mxu0 0
    %3200 = vmatprep.subr.bf16.mxu0 0
    %3201 = vmatpush1.bf16.msra.mxu0 0
    %3202 = vmatprep.subr.bf16.mxu0 0
    %3203 = vmatpush1.bf16.msra.mxu0 0
    %3204 = vmatprep.subr.bf16.mxu0 0
    %3205 = vmatpush1.bf16.msra.mxu0 0
    %3206 = vmatprep.subr.bf16.mxu0 0
    %3207 = vmatpush1.bf16.msra.mxu0 0
    %3208 = vmatprep.subr.bf16.mxu0 0
    %3209 = vmatpush1.bf16.msra.mxu0 0
    %3210 = vmatprep.subr.bf16.mxu0 0
    %3211 = vmatpush1.bf16.msra.mxu0 0
    %3212 = vmatprep.subr.bf16.mxu0 0
    %3213 = vmatpush1.bf16.msra.mxu0 0
    %3214 = vmatprep.subr.bf16.mxu0 0
    %3215 = vmatpush1.bf16.msra.mxu0 0
    %3216 = vmatprep.subr.bf16.mxu0 0
    %3217 = vmatpush1.bf16.msra.mxu0 0
    %3218 = vmatprep.subr.bf16.mxu0 0
    %3219 = vmatpush1.bf16.msra.mxu0 0
    %3220 = vmatprep.mubr.bf16.mxu0 0
    %3221 = vmatmul.mubr.bf16.gmra.mrb[0].mxu0 %v3186
    %v3222 = vpop.f32.mrb[0].mxu0
    %v3223 = vadd.f32 %v3158, %v3222
    %v3224 = vpop.f32.mrb[0].mxu0
    %v3225 = vpop.f32.mrb[0].mxu0
    %v3226 = vpop.f32.mrb[0].mxu0
    %3227 = vdwg.mxu0
    %3228 = vadd.xlane.f32.xlu0 %v3223
    %v3229 = vpop.xlane.xlu0 %3228
    %v3230 = vmul.f32 %v3229, %v1581
    %v3231 = vsub.f32 %v3223, %v3230
    %v3232 = vmul.f32 %v3231, %v3231
    %3233 = vadd.xlane.f32.xlu0 %v3232
    %v3234 = vpop.xlane.xlu0 %3233
    %v3235 = vmul.f32 %v3234, %v1581
    %v3236 = vadd.f32 %v3235, 1e-05
    %v3237 = vrsqrt.pop %v3236
    %v3238 = vmul.f32 %v3231, %v3237
    %v3240 = vlaneseq
    %v3241 = vshrl.u32 %v3240, 7
    %v3242 = vsub.s32 0, %v3241
    %v3243 = vrot.slane %v1498, %v3242
    %v3245 = vmul.f32 %v3238, %v3243
    %v3247 = vlaneseq
    %v3248 = vshrl.u32 %v3247, 7
    %v3249 = vsub.s32 0, %v3248
    %v3250 = vrot.slane %v1499, %v3249
    %v3252 = vadd.f32 %v3245, %v3250
    %v3253 = vpack.c.bf16 %v3252, %v3252
    %v3255 = vlaneseq
    %v3256 = vshrl.u32 %v3255, 7
    %v3257 = vsub.s32 0, %v3256
    %v3258 = vrot.slane %v1500, %v3257
    %v3276 = vunpack.c.l.b16 %v551
    %v3277 = vunpack.c.l.b16 %v552
    %v3278 = vunpack.c.l.b16 %v553
    %v3279 = vunpack.c.l.b16 %v554
    %v3280 = vunpack.c.l.b16 %v555
    %v3281 = vunpack.c.l.b16 %v556
    %v3282 = vunpack.c.l.b16 %v557
    %v3283 = vunpack.c.l.b16 %v558
    %v3284 = vunpack.c.l.b16 %v559
    %v3285 = vunpack.c.l.b16 %v560
    %v3286 = vunpack.c.l.b16 %v561
    %v3287 = vunpack.c.l.b16 %v562
    %v3288 = vunpack.c.l.b16 %v563
    %v3289 = vunpack.c.l.b16 %v564
    %v3290 = vunpack.c.l.b16 %v565
    %v3291 = vunpack.c.l.b16 %v566
    %v3292 = vpack.c.b16 %v3277, %v3276
    %v3293 = vpack.c.b16 %v3279, %v3278
    %v3294 = vpack.c.b16 %v3281, %v3280
    %v3295 = vpack.c.b16 %v3283, %v3282
    %v3296 = vpack.c.b16 %v3285, %v3284
    %v3297 = vpack.c.b16 %v3287, %v3286
    %v3298 = vpack.c.b16 %v3289, %v3288
    %v3299 = vpack.c.b16 %v3291, %v3290
    %3308 = vmatprep.subr.bf16.mxu0 0
    %3309 = vmatpush1.bf16.msra.mxu0 %v3292
    %3310 = vmatprep.subr.bf16.mxu0 0
    %3311 = vmatpush1.bf16.msra.mxu0 %v3293
    %3312 = vmatprep.subr.bf16.mxu0 0
    %3313 = vmatpush1.bf16.msra.mxu0 %v3294
    %3314 = vmatprep.subr.bf16.mxu0 0
    %3315 = vmatpush1.bf16.msra.mxu0 %v3295
    %3316 = vmatprep.subr.bf16.mxu0 0
    %3317 = vmatpush1.bf16.msra.mxu0 %v3296
    %3318 = vmatprep.subr.bf16.mxu0 0
    %3319 = vmatpush1.bf16.msra.mxu0 %v3297
    %3320 = vmatprep.subr.bf16.mxu0 0
    %3321 = vmatpush1.bf16.msra.mxu0 %v3298
    %3322 = vmatprep.subr.bf16.mxu0 0
    %3323 = vmatpush1.bf16.msra.mxu0 %v3299
    %3324 = vmatprep.subr.bf16.mxu0 0
    %3325 = vmatpush1.bf16.msra.mxu0 0
    %3326 = vmatprep.subr.bf16.mxu0 0
    %3327 = vmatpush1.bf16.msra.mxu0 0
    %3328 = vmatprep.subr.bf16.mxu0 0
    %3329 = vmatpush1.bf16.msra.mxu0 0
    %3330 = vmatprep.subr.bf16.mxu0 0
    %3331 = vmatpush1.bf16.msra.mxu0 0
    %3332 = vmatprep.subr.bf16.mxu0 0
    %3333 = vmatpush1.bf16.msra.mxu0 0
    %3334 = vmatprep.subr.bf16.mxu0 0
    %3335 = vmatpush1.bf16.msra.mxu0 0
    %3336 = vmatprep.subr.bf16.mxu0 0
    %3337 = vmatpush1.bf16.msra.mxu0 0
    %3338 = vmatprep.subr.bf16.mxu0 0
    %3339 = vmatpush1.bf16.msra.mxu0 0
    %3340 = vmatprep.mubr.bf16.mxu0 0
    %3341 = vmatmul.mubr.bf16.gmra.mrb[0].mxu0 %v3253
    %v3342 = vpop.f32.mrb[0].mxu0
    %v3343 = vadd.f32 %v3258, %v3342
    %v3344 = vpop.f32.mrb[0].mxu0
    %v3345 = vpop.f32.mrb[0].mxu0
    %v3346 = vpop.f32.mrb[0].mxu0
    %3347 = vdwg.mxu0
    %v3348 = vadd.f32 %v3343, %v3223
    %3349 = vadd.xlane.f32.xlu0 %v3348
    %v3350 = vpop.xlane.xlu0 %3349
    %v3351 = vmul.f32 %v3350, %v1581
    %v3352 = vsub.f32 %v3348, %v3351
    %v3353 = vmul.f32 %v3352, %v3352
    %3354 = vadd.xlane.f32.xlu0 %v3353
    %v3355 = vpop.xlane.xlu0 %3354
    %v3356 = vmul.f32 %v3355, %v1581
    %v3357 = vadd.f32 %v3356, 1e-05
    %v3358 = vrsqrt.pop %v3357
    %v3359 = vmul.f32 %v3352, %v3358
    %v3361 = vlaneseq
    %v3362 = vshrl.u32 %v3361, 7
    %v3363 = vsub.s32 0, %v3362
    %v3364 = vrot.slane %v1501, %v3363
    %v3366 = vmul.f32 %v3359, %v3364
    %v3368 = vlaneseq
    %v3369 = vshrl.u32 %v3368, 7
    %v3370 = vsub.s32 0, %v3369
    %v3371 = vrot.slane %v1502, %v3370
    %v3373 = vadd.f32 %v3366, %v3371
    %v3374 = vpack.c.bf16 %v3373, %v3373
    %v3376 = vlaneseq
    %v3377 = vshrl.u32 %v3376, 7
    %v3378 = vsub.s32 0, %v3377
    %v3379 = vrot.slane %v1503, %v3378
    %v3380 = vlaneseq
    %v3381 = vshrl.u32 %v3380, 7
    %v3382 = vsub.s32 1, %v3381
    %v3383 = vrot.slane %v1503, %v3382
    %v3384 = vlaneseq
    %v3385 = vshrl.u32 %v3384, 7
    %v3386 = vsub.s32 2, %v3385
    %v3387 = vrot.slane %v1503, %v3386
    %v3388 = vlaneseq
    %v3389 = vshrl.u32 %v3388, 7
    %v3390 = vsub.s32 3, %v3389
    %v3391 = vrot.slane %v1503, %v3390
    %v3428 = vunpack.c.l.b16 %v567
    %v3429 = vunpack.c.h.b16 %v567
    %v3430 = vunpack.c.l.b16 %v568
    %v3431 = vunpack.c.h.b16 %v568
    %v3432 = vunpack.c.l.b16 %v569
    %v3433 = vunpack.c.h.b16 %v569
    %v3434 = vunpack.c.l.b16 %v570
    %v3435 = vunpack.c.h.b16 %v570
    %v3436 = vunpack.c.l.b16 %v571
    %v3437 = vunpack.c.h.b16 %v571
    %v3438 = vunpack.c.l.b16 %v572
    %v3439 = vunpack.c.h.b16 %v572
    %v3440 = vunpack.c.l.b16 %v573
    %v3441 = vunpack.c.h.b16 %v573
    %v3442 = vunpack.c.l.b16 %v574
    %v3443 = vunpack.c.h.b16 %v574
    %v3444 = vunpack.c.l.b16 %v575
    %v3445 = vunpack.c.h.b16 %v575
    %v3446 = vunpack.c.l.b16 %v576
    %v3447 = vunpack.c.h.b16 %v576
    %v3448 = vunpack.c.l.b16 %v577
    %v3449 = vunpack.c.h.b16 %v577
    %v3450 = vunpack.c.l.b16 %v578
    %v3451 = vunpack.c.h.b16 %v578
    %v3452 = vunpack.c.l.b16 %v579
    %v3453 = vunpack.c.h.b16 %v579
    %v3454 = vunpack.c.l.b16 %v580
    %v3455 = vunpack.c.h.b16 %v580
    %v3456 = vunpack.c.l.b16 %v581
    %v3457 = vunpack.c.h.b16 %v581
    %v3458 = vunpack.c.l.b16 %v582
    %v3459 = vunpack.c.h.b16 %v582
    %v3460 = vunpack.c.l.b16 %v583
    %v3461 = vunpack.c.h.b16 %v583
    %v3462 = vunpack.c.l.b16 %v584
    %v3463 = vunpack.c.h.b16 %v584
    %v3464 = vunpack.c.l.b16 %v585
    %v3465 = vunpack.c.h.b16 %v585
    %v3466 = vunpack.c.l.b16 %v586
    %v3467 = vunpack.c.h.b16 %v586
    %v3468 = vunpack.c.l.b16 %v587
    %v3469 = vunpack.c.h.b16 %v587
    %v3470 = vunpack.c.l.b16 %v588
    %v3471 = vunpack.c.h.b16 %v588
    %v3472 = vunpack.c.l.b16 %v589
    %v3473 = vunpack.c.h.b16 %v589
    %v3474 = vunpack.c.l.b16 %v590
    %v3475 = vunpack.c.h.b16 %v590
    %v3476 = vunpack.c.l.b16 %v591
    %v3477 = vunpack.c.h.b16 %v591
    %v3478 = vunpack.c.l.b16 %v592
    %v3479 = vunpack.c.h.b16 %v592
    %v3480 = vunpack.c.l.b16 %v593
    %v3481 = vunpack.c.h.b16 %v593
    %v3482 = vunpack.c.l.b16 %v594
    %v3483 = vunpack.c.h.b16 %v594
    %v3484 = vunpack.c.l.b16 %v595
    %v3485 = vunpack.c.h.b16 %v595
    %v3486 = vunpack.c.l.b16 %v596
    %v3487 = vunpack.c.h.b16 %v596
    %v3488 = vunpack.c.l.b16 %v597
    %v3489 = vunpack.c.h.b16 %v597
    %v3490 = vunpack.c.l.b16 %v598
    %v3491 = vunpack.c.h.b16 %v598
    %v3492 = vpack.c.b16 %v3432, %v3428
    %v3493 = vpack.c.b16 %v3433, %v3429
    %v3494 = vpack.c.b16 %v3434, %v3430
    %v3495 = vpack.c.b16 %v3435, %v3431
    %v3496 = vpack.c.b16 %v3440, %v3436
    %v3497 = vpack.c.b16 %v3441, %v3437
    %v3498 = vpack.c.b16 %v3442, %v3438
    %v3499 = vpack.c.b16 %v3443, %v3439
    %v3500 = vpack.c.b16 %v3448, %v3444
    %v3501 = vpack.c.b16 %v3449, %v3445
    %v3502 = vpack.c.b16 %v3450, %v3446
    %v3503 = vpack.c.b16 %v3451, %v3447
    %v3504 = vpack.c.b16 %v3456, %v3452
    %v3505 = vpack.c.b16 %v3457, %v3453
    %v3506 = vpack.c.b16 %v3458, %v3454
    %v3507 = vpack.c.b16 %v3459, %v3455
    %v3508 = vpack.c.b16 %v3464, %v3460
    %v3509 = vpack.c.b16 %v3465, %v3461
    %v3510 = vpack.c.b16 %v3466, %v3462
    %v3511 = vpack.c.b16 %v3467, %v3463
    %v3512 = vpack.c.b16 %v3472, %v3468
    %v3513 = vpack.c.b16 %v3473, %v3469
    %v3514 = vpack.c.b16 %v3474, %v3470
    %v3515 = vpack.c.b16 %v3475, %v3471
    %v3516 = vpack.c.b16 %v3480, %v3476
    %v3517 = vpack.c.b16 %v3481, %v3477
    %v3518 = vpack.c.b16 %v3482, %v3478
    %v3519 = vpack.c.b16 %v3483, %v3479
    %v3520 = vpack.c.b16 %v3488, %v3484
    %v3521 = vpack.c.b16 %v3489, %v3485
    %v3522 = vpack.c.b16 %v3490, %v3486
    %v3523 = vpack.c.b16 %v3491, %v3487
    %3556 = vmatprep.subr.bf16.mxu0 %v3493
    %3557 = vmatpush1.bf16.msra.mxu0 %v3492
    %3558 = vmatprep.subr.bf16.mxu0 %v3497
    %3559 = vmatpush1.bf16.msra.mxu0 %v3496
    %3560 = vmatprep.subr.bf16.mxu0 %v3501
    %3561 = vmatpush1.bf16.msra.mxu0 %v3500
    %3562 = vmatprep.subr.bf16.mxu0 %v3505
    %3563 = vmatpush1.bf16.msra.mxu0 %v3504
    %3564 = vmatprep.subr.bf16.mxu0 %v3509
    %3565 = vmatpush1.bf16.msra.mxu0 %v3508
    %3566 = vmatprep.subr.bf16.mxu0 %v3513
    %3567 = vmatpush1.bf16.msra.mxu0 %v3512
    %3568 = vmatprep.subr.bf16.mxu0 %v3517
    %3569 = vmatpush1.bf16.msra.mxu0 %v3516
    %3570 = vmatprep.subr.bf16.mxu0 %v3521
    %3571 = vmatpush1.bf16.msra.mxu0 %v3520
    %3572 = vmatprep.subr.bf16.mxu0 0
    %3573 = vmatpush1.bf16.msra.mxu0 0
    %3574 = vmatprep.subr.bf16.mxu0 0
    %3575 = vmatpush1.bf16.msra.mxu0 0
    %3576 = vmatprep.subr.bf16.mxu0 0
    %3577 = vmatpush1.bf16.msra.mxu0 0
    %3578 = vmatprep.subr.bf16.mxu0 0
    %3579 = vmatpush1.bf16.msra.mxu0 0
    %3580 = vmatprep.subr.bf16.mxu0 0
    %3581 = vmatpush1.bf16.msra.mxu0 0
    %3582 = vmatprep.subr.bf16.mxu0 0
    %3583 = vmatpush1.bf16.msra.mxu0 0
    %3584 = vmatprep.subr.bf16.mxu0 0
    %3585 = vmatpush1.bf16.msra.mxu0 0
    %3586 = vmatprep.subr.bf16.mxu0 0
    %3587 = vmatpush1.bf16.msra.mxu0 0
    %3588 = vmatprep.mubr.bf16.mxu0 0
    %3589 = vmatmul.mubr.bf16.gmra.mrb[0].mxu0 %v3374
    %v3590 = vpop.f32.mrb[0].mxu0
    %v3591 = vadd.f32 %v3379, %v3590
    %v3592 = vpop.f32.mrb[0].mxu0
    %v3593 = vadd.f32 %v3383, %v3592
    %v3594 = vpop.f32.mrb[0].mxu0
    %v3595 = vpop.f32.mrb[0].mxu0
    %3596 = vdwg.mxu0
    %3597 = vmatprep.subr.bf16.mxu0 %v3495
    %3598 = vmatpush1.bf16.msra.mxu0 %v3494
    %3599 = vmatprep.subr.bf16.mxu0 %v3499
    %3600 = vmatpush1.bf16.msra.mxu0 %v3498
    %3601 = vmatprep.subr.bf16.mxu0 %v3503
    %3602 = vmatpush1.bf16.msra.mxu0 %v3502
    %3603 = vmatprep.subr.bf16.mxu0 %v3507
    %3604 = vmatpush1.bf16.msra.mxu0 %v3506
    %3605 = vmatprep.subr.bf16.mxu0 %v3511
    %3606 = vmatpush1.bf16.msra.mxu0 %v3510
    %3607 = vmatprep.subr.bf16.mxu0 %v3515
    %3608 = vmatpush1.bf16.msra.mxu0 %v3514
    %3609 = vmatprep.subr.bf16.mxu0 %v3519
    %3610 = vmatpush1.bf16.msra.mxu0 %v3518
    %3611 = vmatprep.subr.bf16.mxu0 %v3523
    %3612 = vmatpush1.bf16.msra.mxu0 %v3522
    %3613 = vmatprep.subr.bf16.mxu0 0
    %3614 = vmatpush1.bf16.msra.mxu0 0
    %3615 = vmatprep.subr.bf16.mxu0 0
    %3616 = vmatpush1.bf16.msra.mxu0 0
    %3617 = vmatprep.subr.bf16.mxu0 0
    %3618 = vmatpush1.bf16.msra.mxu0 0
    %3619 = vmatprep.subr.bf16.mxu0 0
    %3620 = vmatpush1.bf16.msra.mxu0 0
    %3621 = vmatprep.subr.bf16.mxu0 0
    %3622 = vmatpush1.bf16.msra.mxu0 0
    %3623 = vmatprep.subr.bf16.mxu0 0
    %3624 = vmatpush1.bf16.msra.mxu0 0
    %3625 = vmatprep.subr.bf16.mxu0 0
    %3626 = vmatpush1.bf16.msra.mxu0 0
    %3627 = vmatprep.subr.bf16.mxu0 0
    %3628 = vmatpush1.bf16.msra.mxu0 0
    %3629 = vmatprep.mubr.bf16.mxu0 0
    %3630 = vmatmul.mubr.bf16.gmra.mrb[0].mxu0 %v3374
    %v3631 = vpop.f32.mrb[0].mxu0
    %v3632 = vadd.f32 %v3387, %v3631
    %v3633 = vpop.f32.mrb[0].mxu0
    %v3634 = vadd.f32 %v3391, %v3633
    %v3635 = vpop.f32.mrb[0].mxu0
    %v3636 = vpop.f32.mrb[0].mxu0
    %3637 = vdwg.mxu0
    %v3638 = vmax.f32 %v3591, 0.0
    %v3639 = vmax.f32 %v3593, 0.0
    %v3640 = vmax.f32 %v3632, 0.0
    %v3641 = vmax.f32 %v3634, 0.0
    %v3642 = vadd.f32 %v3638, %v3639
    %v3643 = vadd.f32 %v3642, %v3640
    %v3644 = vadd.f32 %v3643, %v3641
    %3645 = vadd.xlane.f32.xlu0 %v3644
    %v3646 = vpop.xlane.xlu0 %3645
    %v3647 = vmul.f32 %v3646, %v2002
    %v3648 = vsub.f32 %v3638, %v3647
    %v3649 = vsub.f32 %v3639, %v3647
    %v3650 = vsub.f32 %v3640, %v3647
    %v3651 = vsub.f32 %v3641, %v3647
    %v3652 = vmul.f32 %v3648, %v3648
    %v3653 = vmul.f32 %v3649, %v3649
    %v3654 = vmul.f32 %v3650, %v3650
    %v3655 = vmul.f32 %v3651, %v3651
    %v3656 = vadd.f32 %v3652, %v3653
    %v3657 = vadd.f32 %v3656, %v3654
    %v3658 = vadd.f32 %v3657, %v3655
    %3659 = vadd.xlane.f32.xlu0 %v3658
    %v3660 = vpop.xlane.xlu0 %3659
    %v3661 = vmul.f32 %v3660, %v2002
    %v3662 = vadd.f32 %v3661, 1e-05
    %v3663 = vrsqrt.pop %v3662
    %v3664 = vmul.f32 %v3648, %v3663
    %v3665 = vmul.f32 %v3649, %v3663
    %v3666 = vmul.f32 %v3650, %v3663
    %v3667 = vmul.f32 %v3651, %v3663
    %v3669 = vlaneseq
    %v3670 = vshrl.u32 %v3669, 7
    %v3671 = vsub.s32 0, %v3670
    %v3672 = vrot.slane %v1504, %v3671
    %v3673 = vlaneseq
    %v3674 = vshrl.u32 %v3673, 7
    %v3675 = vsub.s32 1, %v3674
    %v3676 = vrot.slane %v1504, %v3675
    %v3677 = vlaneseq
    %v3678 = vshrl.u32 %v3677, 7
    %v3679 = vsub.s32 2, %v3678
    %v3680 = vrot.slane %v1504, %v3679
    %v3681 = vlaneseq
    %v3682 = vshrl.u32 %v3681, 7
    %v3683 = vsub.s32 3, %v3682
    %v3684 = vrot.slane %v1504, %v3683
    %v3689 = vmul.f32 %v3664, %v3672
    %v3690 = vmul.f32 %v3665, %v3676
    %v3691 = vmul.f32 %v3666, %v3680
    %v3692 = vmul.f32 %v3667, %v3684
    %v3694 = vlaneseq
    %v3695 = vshrl.u32 %v3694, 7
    %v3696 = vsub.s32 0, %v3695
    %v3697 = vrot.slane %v1505, %v3696
    %v3698 = vlaneseq
    %v3699 = vshrl.u32 %v3698, 7
    %v3700 = vsub.s32 1, %v3699
    %v3701 = vrot.slane %v1505, %v3700
    %v3702 = vlaneseq
    %v3703 = vshrl.u32 %v3702, 7
    %v3704 = vsub.s32 2, %v3703
    %v3705 = vrot.slane %v1505, %v3704
    %v3706 = vlaneseq
    %v3707 = vshrl.u32 %v3706, 7
    %v3708 = vsub.s32 3, %v3707
    %v3709 = vrot.slane %v1505, %v3708
    %v3714 = vadd.f32 %v3689, %v3697
    %v3715 = vadd.f32 %v3690, %v3701
    %v3716 = vadd.f32 %v3691, %v3705
    %v3717 = vadd.f32 %v3692, %v3709
    %v3718 = vpack.c.bf16 %v3714, %v3714
    %v3719 = vpack.c.bf16 %v3715, %v3715
    %v3720 = vpack.c.bf16 %v3716, %v3716
    %v3721 = vpack.c.bf16 %v3717, %v3717
    %v3723 = vlaneseq
    %v3724 = vshrl.u32 %v3723, 7
    %v3725 = vsub.s32 0, %v3724
    %v3726 = vrot.slane %v1506, %v3725
    %v3792 = vunpack.c.l.b16 %v599
    %v3793 = vunpack.c.l.b16 %v600
    %v3794 = vunpack.c.l.b16 %v601
    %v3795 = vunpack.c.l.b16 %v602
    %v3796 = vunpack.c.l.b16 %v603
    %v3797 = vunpack.c.l.b16 %v604
    %v3798 = vunpack.c.l.b16 %v605
    %v3799 = vunpack.c.l.b16 %v606
    %v3800 = vunpack.c.l.b16 %v607
    %v3801 = vunpack.c.l.b16 %v608
    %v3802 = vunpack.c.l.b16 %v609
    %v3803 = vunpack.c.l.b16 %v610
    %v3804 = vunpack.c.l.b16 %v611
    %v3805 = vunpack.c.l.b16 %v612
    %v3806 = vunpack.c.l.b16 %v613
    %v3807 = vunpack.c.l.b16 %v614
    %v3808 = vunpack.c.l.b16 %v615
    %v3809 = vunpack.c.l.b16 %v616
    %v3810 = vunpack.c.l.b16 %v617
    %v3811 = vunpack.c.l.b16 %v618
    %v3812 = vunpack.c.l.b16 %v619
    %v3813 = vunpack.c.l.b16 %v620
    %v3814 = vunpack.c.l.b16 %v621
    %v3815 = vunpack.c.l.b16 %v622
    %v3816 = vunpack.c.l.b16 %v623
    %v3817 = vunpack.c.l.b16 %v624
    %v3818 = vunpack.c.l.b16 %v625
    %v3819 = vunpack.c.l.b16 %v626
    %v3820 = vunpack.c.l.b16 %v627
    %v3821 = vunpack.c.l.b16 %v628
    %v3822 = vunpack.c.l.b16 %v629
    %v3823 = vunpack.c.l.b16 %v630
    %v3824 = vunpack.c.l.b16 %v631
    %v3825 = vunpack.c.l.b16 %v632
    %v3826 = vunpack.c.l.b16 %v633
    %v3827 = vunpack.c.l.b16 %v634
    %v3828 = vunpack.c.l.b16 %v635
    %v3829 = vunpack.c.l.b16 %v636
    %v3830 = vunpack.c.l.b16 %v637
    %v3831 = vunpack.c.l.b16 %v638
    %v3832 = vunpack.c.l.b16 %v639
    %v3833 = vunpack.c.l.b16 %v640
    %v3834 = vunpack.c.l.b16 %v641
    %v3835 = vunpack.c.l.b16 %v642
    %v3836 = vunpack.c.l.b16 %v643
    %v3837 = vunpack.c.l.b16 %v644
    %v3838 = vunpack.c.l.b16 %v645
    %v3839 = vunpack.c.l.b16 %v646
    %v3840 = vunpack.c.l.b16 %v647
    %v3841 = vunpack.c.l.b16 %v648
    %v3842 = vunpack.c.l.b16 %v649
    %v3843 = vunpack.c.l.b16 %v650
    %v3844 = vunpack.c.l.b16 %v651
    %v3845 = vunpack.c.l.b16 %v652
    %v3846 = vunpack.c.l.b16 %v653
    %v3847 = vunpack.c.l.b16 %v654
    %v3848 = vunpack.c.l.b16 %v655
    %v3849 = vunpack.c.l.b16 %v656
    %v3850 = vunpack.c.l.b16 %v657
    %v3851 = vunpack.c.l.b16 %v658
    %v3852 = vunpack.c.l.b16 %v659
    %v3853 = vunpack.c.l.b16 %v660
    %v3854 = vunpack.c.l.b16 %v661
    %v3855 = vunpack.c.l.b16 %v662
    %v3856 = vpack.c.b16 %v3793, %v3792
    %v3857 = vpack.c.b16 %v3795, %v3794
    %v3858 = vpack.c.b16 %v3797, %v3796
    %v3859 = vpack.c.b16 %v3799, %v3798
    %v3860 = vpack.c.b16 %v3801, %v3800
    %v3861 = vpack.c.b16 %v3803, %v3802
    %v3862 = vpack.c.b16 %v3805, %v3804
    %v3863 = vpack.c.b16 %v3807, %v3806
    %v3864 = vpack.c.b16 %v3809, %v3808
    %v3865 = vpack.c.b16 %v3811, %v3810
    %v3866 = vpack.c.b16 %v3813, %v3812
    %v3867 = vpack.c.b16 %v3815, %v3814
    %v3868 = vpack.c.b16 %v3817, %v3816
    %v3869 = vpack.c.b16 %v3819, %v3818
    %v3870 = vpack.c.b16 %v3821, %v3820
    %v3871 = vpack.c.b16 %v3823, %v3822
    %v3872 = vpack.c.b16 %v3825, %v3824
    %v3873 = vpack.c.b16 %v3827, %v3826
    %v3874 = vpack.c.b16 %v3829, %v3828
    %v3875 = vpack.c.b16 %v3831, %v3830
    %v3876 = vpack.c.b16 %v3833, %v3832
    %v3877 = vpack.c.b16 %v3835, %v3834
    %v3878 = vpack.c.b16 %v3837, %v3836
    %v3879 = vpack.c.b16 %v3839, %v3838
    %v3880 = vpack.c.b16 %v3841, %v3840
    %v3881 = vpack.c.b16 %v3843, %v3842
    %v3882 = vpack.c.b16 %v3845, %v3844
    %v3883 = vpack.c.b16 %v3847, %v3846
    %v3884 = vpack.c.b16 %v3849, %v3848
    %v3885 = vpack.c.b16 %v3851, %v3850
    %v3886 = vpack.c.b16 %v3853, %v3852
    %v3887 = vpack.c.b16 %v3855, %v3854
    %3920 = vmatprep.subr.bf16.mxu0 0
    %3921 = vmatpush1.bf16.msra.mxu0 %v3856
    %3922 = vmatprep.subr.bf16.mxu0 0
    %3923 = vmatpush1.bf16.msra.mxu0 %v3857
    %3924 = vmatprep.subr.bf16.mxu0 0
    %3925 = vmatpush1.bf16.msra.mxu0 %v3858
    %3926 = vmatprep.subr.bf16.mxu0 0
    %3927 = vmatpush1.bf16.msra.mxu0 %v3859
    %3928 = vmatprep.subr.bf16.mxu0 0
    %3929 = vmatpush1.bf16.msra.mxu0 %v3860
    %3930 = vmatprep.subr.bf16.mxu0 0
    %3931 = vmatpush1.bf16.msra.mxu0 %v3861
    %3932 = vmatprep.subr.bf16.mxu0 0
    %3933 = vmatpush1.bf16.msra.mxu0 %v3862
    %3934 = vmatprep.subr.bf16.mxu0 0
    %3935 = vmatpush1.bf16.msra.mxu0 %v3863
    %3936 = vmatprep.subr.bf16.mxu0 0
    %3937 = vmatpush1.bf16.msra.mxu0 %v3864
    %3938 = vmatprep.subr.bf16.mxu0 0
    %3939 = vmatpush1.bf16.msra.mxu0 %v3865
    %3940 = vmatprep.subr.bf16.mxu0 0
    %3941 = vmatpush1.bf16.msra.mxu0 %v3866
    %3942 = vmatprep.subr.bf16.mxu0 0
    %3943 = vmatpush1.bf16.msra.mxu0 %v3867
    %3944 = vmatprep.subr.bf16.mxu0 0
    %3945 = vmatpush1.bf16.msra.mxu0 %v3868
    %3946 = vmatprep.subr.bf16.mxu0 0
    %3947 = vmatpush1.bf16.msra.mxu0 %v3869
    %3948 = vmatprep.subr.bf16.mxu0 0
    %3949 = vmatpush1.bf16.msra.mxu0 %v3870
    %3950 = vmatprep.subr.bf16.mxu0 0
    %3951 = vmatpush1.bf16.msra.mxu0 %v3871
    %3952 = vmatprep.mubr.bf16.mxu0 %v3719
    %3953 = vmatmul.mubr.bf16.gmra.mrb[0].mxu0 %v3718
    %v3954 = vpop.f32.mrb[0].mxu0
    %v3955 = vadd.f32 %v3726, %v3954
    %v3956 = vpop.f32.mrb[0].mxu0
    %v3957 = vpop.f32.mrb[0].mxu0
    %v3958 = vpop.f32.mrb[0].mxu0
    %3959 = vdwg.mxu0
    %3960 = vmatprep.subr.bf16.mxu0 0
    %3961 = vmatpush1.bf16.msra.mxu0 %v3872
    %3962 = vmatprep.subr.bf16.mxu0 0
    %3963 = vmatpush1.bf16.msra.mxu0 %v3873
    %3964 = vmatprep.subr.bf16.mxu0 0
    %3965 = vmatpush1.bf16.msra.mxu0 %v3874
    %3966 = vmatprep.subr.bf16.mxu0 0
    %3967 = vmatpush1.bf16.msra.mxu0 %v3875
    %3968 = vmatprep.subr.bf16.mxu0 0
    %3969 = vmatpush1.bf16.msra.mxu0 %v3876
    %3970 = vmatprep.subr.bf16.mxu0 0
    %3971 = vmatpush1.bf16.msra.mxu0 %v3877
    %3972 = vmatprep.subr.bf16.mxu0 0
    %3973 = vmatpush1.bf16.msra.mxu0 %v3878
    %3974 = vmatprep.subr.bf16.mxu0 0
    %3975 = vmatpush1.bf16.msra.mxu0 %v3879
    %3976 = vmatprep.subr.bf16.mxu0 0
    %3977 = vmatpush1.bf16.msra.mxu0 %v3880
    %3978 = vmatprep.subr.bf16.mxu0 0
    %3979 = vmatpush1.bf16.msra.mxu0 %v3881
    %3980 = vmatprep.subr.bf16.mxu0 0
    %3981 = vmatpush1.bf16.msra.mxu0 %v3882
    %3982 = vmatprep.subr.bf16.mxu0 0
    %3983 = vmatpush1.bf16.msra.mxu0 %v3883
    %3984 = vmatprep.subr.bf16.mxu0 0
    %3985 = vmatpush1.bf16.msra.mxu0 %v3884
    %3986 = vmatprep.subr.bf16.mxu0 0
    %3987 = vmatpush1.bf16.msra.mxu0 %v3885
    %3988 = vmatprep.subr.bf16.mxu0 0
    %3989 = vmatpush1.bf16.msra.mxu0 %v3886
    %3990 = vmatprep.subr.bf16.mxu0 0
    %3991 = vmatpush1.bf16.msra.mxu0 %v3887
    %3992 = vmatprep.mubr.bf16.mxu0 %v3721
    %3993 = vmatmul.mubr.bf16.gmra.mrb[0].mxu0 %v3720
    %v3994 = vpop.f32.mrb[0].mxu0
    %v3995 = vadd.f32 %v3955, %v3994
    %v3996 = vpop.f32.mrb[0].mxu0
    %v3997 = vpop.f32.mrb[0].mxu0
    %v3998 = vpop.f32.mrb[0].mxu0
    %3999 = vdwg.mxu0
    %v4000 = vadd.f32 %v3995, %v3373
    %v4001 = vadd.f32 %v4000, %v2793
    %v4002 = vadd.f32 %v4001, %v2794
    %4003 = vadd.xlane.f32.xlu0 %v4002
    %v4004 = vpop.xlane.xlu0 %4003
    %v4005 = vrcp.pop 384.0
    %v4006 = vmul.f32 %v4004, %v4005
    %v4007 = vsub.f32 %v4000, %v4006
    %v4008 = vsub.f32 %v2793, %v4006
    %v4009 = vsub.f32 %v2794, %v4006
    %v4010 = vmul.f32 %v4007, %v4007
    %v4011 = vmul.f32 %v4008, %v4008
    %v4012 = vmul.f32 %v4009, %v4009
    %v4013 = vadd.f32 %v4010, %v4011
    %v4014 = vadd.f32 %v4013, %v4012
    %4015 = vadd.xlane.f32.xlu0 %v4014
    %v4016 = vpop.xlane.xlu0 %4015
    %v4017 = vmul.f32 %v4016, %v4005
    %v4018 = vadd.f32 %v4017, 1e-05
    %v4019 = vrsqrt.pop %v4018
    %v4020 = vmul.f32 %v4007, %v4019
    %v4021 = vmul.f32 %v4008, %v4019
    %v4022 = vmul.f32 %v4009, %v4019
    %v4024 = vlaneseq
    %v4025 = vshrl.u32 %v4024, 7
    %v4026 = vsub.s32 0, %v4025
    %v4027 = vrot.slane %v1507, %v4026
    %v4028 = vlaneseq
    %v4029 = vshrl.u32 %v4028, 7
    %v4030 = vsub.s32 1, %v4029
    %v4031 = vrot.slane %v1507, %v4030
    %v4032 = vlaneseq
    %v4033 = vshrl.u32 %v4032, 7
    %v4034 = vsub.s32 2, %v4033
    %v4035 = vrot.slane %v1507, %v4034
    %v4039 = vmul.f32 %v4020, %v4027
    %v4040 = vmul.f32 %v4021, %v4031
    %v4041 = vmul.f32 %v4022, %v4035
    %v4043 = vlaneseq
    %v4044 = vshrl.u32 %v4043, 7
    %v4045 = vsub.s32 0, %v4044
    %v4046 = vrot.slane %v1508, %v4045
    %v4047 = vlaneseq
    %v4048 = vshrl.u32 %v4047, 7
    %v4049 = vsub.s32 1, %v4048
    %v4050 = vrot.slane %v1508, %v4049
    %v4051 = vlaneseq
    %v4052 = vshrl.u32 %v4051, 7
    %v4053 = vsub.s32 2, %v4052
    %v4054 = vrot.slane %v1508, %v4053
    %v4058 = vadd.f32 %v4039, %v4046
    %v4059 = vadd.f32 %v4040, %v4050
    %v4060 = vadd.f32 %v4041, %v4054
    %v4061 = vpack.c.bf16 %v4058, %v4058
    %v4062 = vpack.c.bf16 %v4059, %v4059
    %v4063 = vpack.c.bf16 %v4060, %v4060
    %v4066 = vlaneseq
    %v4067 = vshrl.u32 %v4066, 7
    %v4068 = vsub.s32 0, %v4067
    %v4069 = vrot.slane %v1509, %v4068
    %v4070 = vlaneseq
    %v4071 = vshrl.u32 %v4070, 7
    %v4072 = vsub.s32 1, %v4071
    %v4073 = vrot.slane %v1509, %v4072
    %v4074 = vlaneseq
    %v4075 = vshrl.u32 %v4074, 7
    %v4076 = vsub.s32 2, %v4075
    %v4077 = vrot.slane %v1509, %v4076
    %v4078 = vlaneseq
    %v4079 = vshrl.u32 %v4078, 7
    %v4080 = vsub.s32 3, %v4079
    %v4081 = vrot.slane %v1509, %v4080
    %v4082 = vlaneseq
    %v4083 = vshrl.u32 %v4082, 7
    %v4084 = vsub.s32 4, %v4083
    %v4085 = vrot.slane %v1509, %v4084
    %v4086 = vlaneseq
    %v4087 = vshrl.u32 %v4086, 7
    %v4088 = vsub.s32 5, %v4087
    %v4089 = vrot.slane %v1509, %v4088
    %v4090 = vlaneseq
    %v4091 = vshrl.u32 %v4090, 7
    %v4092 = vsub.s32 6, %v4091
    %v4093 = vrot.slane %v1509, %v4092
    %v4094 = vlaneseq
    %v4095 = vshrl.u32 %v4094, 7
    %v4096 = vsub.s32 7, %v4095
    %v4097 = vrot.slane %v1509, %v4096
    %v4098 = vlaneseq
    %v4099 = vshrl.u32 %v4098, 7
    %v4100 = vsub.s32 0, %v4099
    %v4101 = vrot.slane %v1510, %v4100
    %v4102 = vlaneseq
    %v4103 = vshrl.u32 %v4102, 7
    %v4104 = vsub.s32 1, %v4103
    %v4105 = vrot.slane %v1510, %v4104
    %v4106 = vlaneseq
    %v4107 = vshrl.u32 %v4106, 7
    %v4108 = vsub.s32 2, %v4107
    %v4109 = vrot.slane %v1510, %v4108
    %v4110 = vlaneseq
    %v4111 = vshrl.u32 %v4110, 7
    %v4112 = vsub.s32 3, %v4111
    %v4113 = vrot.slane %v1510, %v4112
    %v4114 = vlaneseq
    %v4115 = vshrl.u32 %v4114, 7
    %v4116 = vsub.s32 4, %v4115
    %v4117 = vrot.slane %v1510, %v4116
    %v4118 = vlaneseq
    %v4119 = vshrl.u32 %v4118, 7
    %v4120 = vsub.s32 5, %v4119
    %v4121 = vrot.slane %v1510, %v4120
    %v4122 = vlaneseq
    %v4123 = vshrl.u32 %v4122, 7
    %v4124 = vsub.s32 6, %v4123
    %v4125 = vrot.slane %v1510, %v4124
    %v4525 = vunpack.c.l.b16 %v663
    %v4526 = vunpack.c.h.b16 %v663
    %v4527 = vunpack.c.l.b16 %v664
    %v4528 = vunpack.c.h.b16 %v664
    %v4529 = vunpack.c.l.b16 %v665
    %v4530 = vunpack.c.h.b16 %v665
    %v4531 = vunpack.c.l.b16 %v666
    %v4532 = vunpack.c.h.b16 %v666
    %v4533 = vunpack.c.l.b16 %v667
    %v4534 = vunpack.c.h.b16 %v667
    %v4535 = vunpack.c.l.b16 %v668
    %v4536 = vunpack.c.h.b16 %v668
    %v4537 = vunpack.c.l.b16 %v669
    %v4538 = vunpack.c.h.b16 %v669
    %v4539 = vunpack.c.l.b16 %v670
    %v4540 = vunpack.c.l.b16 %v671
    %v4541 = vunpack.c.h.b16 %v671
    %v4542 = vunpack.c.l.b16 %v672
    %v4543 = vunpack.c.h.b16 %v672
    %v4544 = vunpack.c.l.b16 %v673
    %v4545 = vunpack.c.h.b16 %v673
    %v4546 = vunpack.c.l.b16 %v674
    %v4547 = vunpack.c.h.b16 %v674
    %v4548 = vunpack.c.l.b16 %v675
    %v4549 = vunpack.c.h.b16 %v675
    %v4550 = vunpack.c.l.b16 %v676
    %v4551 = vunpack.c.h.b16 %v676
    %v4552 = vunpack.c.l.b16 %v677
    %v4553 = vunpack.c.h.b16 %v677
    %v4554 = vunpack.c.l.b16 %v678
    %v4555 = vunpack.c.l.b16 %v679
    %v4556 = vunpack.c.h.b16 %v679
    %v4557 = vunpack.c.l.b16 %v680
    %v4558 = vunpack.c.h.b16 %v680
    %v4559 = vunpack.c.l.b16 %v681
    %v4560 = vunpack.c.h.b16 %v681
    %v4561 = vunpack.c.l.b16 %v682
    %v4562 = vunpack.c.h.b16 %v682
    %v4563 = vunpack.c.l.b16 %v683
    %v4564 = vunpack.c.h.b16 %v683
    %v4565 = vunpack.c.l.b16 %v684
    %v4566 = vunpack.c.h.b16 %v684
    %v4567 = vunpack.c.l.b16 %v685
    %v4568 = vunpack.c.h.b16 %v685
    %v4569 = vunpack.c.l.b16 %v686
    %v4570 = vunpack.c.l.b16 %v687
    %v4571 = vunpack.c.h.b16 %v687
    %v4572 = vunpack.c.l.b16 %v688
    %v4573 = vunpack.c.h.b16 %v688
    %v4574 = vunpack.c.l.b16 %v689
    %v4575 = vunpack.c.h.b16 %v689
    %v4576 = vunpack.c.l.b16 %v690
    %v4577 = vunpack.c.h.b16 %v690
    %v4578 = vunpack.c.l.b16 %v691
    %v4579 = vunpack.c.h.b16 %v691
    %v4580 = vunpack.c.l.b16 %v692
    %v4581 = vunpack.c.h.b16 %v692
    %v4582 = vunpack.c.l.b16 %v693
    %v4583 = vunpack.c.h.b16 %v693
    %v4584 = vunpack.c.l.b16 %v694
    %v4585 = vunpack.c.l.b16 %v695
    %v4586 = vunpack.c.h.b16 %v695
    %v4587 = vunpack.c.l.b16 %v696
    %v4588 = vunpack.c.h.b16 %v696
    %v4589 = vunpack.c.l.b16 %v697
    %v4590 = vunpack.c.h.b16 %v697
    %v4591 = vunpack.c.l.b16 %v698
    %v4592 = vunpack.c.h.b16 %v698
    %v4593 = vunpack.c.l.b16 %v699
    %v4594 = vunpack.c.h.b16 %v699
    %v4595 = vunpack.c.l.b16 %v700
    %v4596 = vunpack.c.h.b16 %v700
    %v4597 = vunpack.c.l.b16 %v701
    %v4598 = vunpack.c.h.b16 %v701
    %v4599 = vunpack.c.l.b16 %v702
    %v4600 = vunpack.c.l.b16 %v703
    %v4601 = vunpack.c.h.b16 %v703
    %v4602 = vunpack.c.l.b16 %v704
    %v4603 = vunpack.c.h.b16 %v704
    %v4604 = vunpack.c.l.b16 %v705
    %v4605 = vunpack.c.h.b16 %v705
    %v4606 = vunpack.c.l.b16 %v706
    %v4607 = vunpack.c.h.b16 %v706
    %v4608 = vunpack.c.l.b16 %v707
    %v4609 = vunpack.c.h.b16 %v707
    %v4610 = vunpack.c.l.b16 %v708
    %v4611 = vunpack.c.h.b16 %v708
    %v4612 = vunpack.c.l.b16 %v709
    %v4613 = vunpack.c.h.b16 %v709
    %v4614 = vunpack.c.l.b16 %v710
    %v4615 = vunpack.c.l.b16 %v711
    %v4616 = vunpack.c.h.b16 %v711
    %v4617 = vunpack.c.l.b16 %v712
    %v4618 = vunpack.c.h.b16 %v712
    %v4619 = vunpack.c.l.b16 %v713
    %v4620 = vunpack.c.h.b16 %v713
    %v4621 = vunpack.c.l.b16 %v714
    %v4622 = vunpack.c.h.b16 %v714
    %v4623 = vunpack.c.l.b16 %v715
    %v4624 = vunpack.c.h.b16 %v715
    %v4625 = vunpack.c.l.b16 %v716
    %v4626 = vunpack.c.h.b16 %v716
    %v4627 = vunpack.c.l.b16 %v717
    %v4628 = vunpack.c.h.b16 %v717
    %v4629 = vunpack.c.l.b16 %v718
    %v4630 = vunpack.c.l.b16 %v719
    %v4631 = vunpack.c.h.b16 %v719
    %v4632 = vunpack.c.l.b16 %v720
    %v4633 = vunpack.c.h.b16 %v720
    %v4634 = vunpack.c.l.b16 %v721
    %v4635 = vunpack.c.h.b16 %v721
    %v4636 = vunpack.c.l.b16 %v722
    %v4637 = vunpack.c.h.b16 %v722
    %v4638 = vunpack.c.l.b16 %v723
    %v4639 = vunpack.c.h.b16 %v723
    %v4640 = vunpack.c.l.b16 %v724
    %v4641 = vunpack.c.h.b16 %v724
    %v4642 = vunpack.c.l.b16 %v725
    %v4643 = vunpack.c.h.b16 %v725
    %v4644 = vunpack.c.l.b16 %v726
    %v4645 = vunpack.c.l.b16 %v727
    %v4646 = vunpack.c.h.b16 %v727
    %v4647 = vunpack.c.l.b16 %v728
    %v4648 = vunpack.c.h.b16 %v728
    %v4649 = vunpack.c.l.b16 %v729
    %v4650 = vunpack.c.h.b16 %v729
    %v4651 = vunpack.c.l.b16 %v730
    %v4652 = vunpack.c.h.b16 %v730
    %v4653 = vunpack.c.l.b16 %v731
    %v4654 = vunpack.c.h.b16 %v731
    %v4655 = vunpack.c.l.b16 %v732
    %v4656 = vunpack.c.h.b16 %v732
    %v4657 = vunpack.c.l.b16 %v733
    %v4658 = vunpack.c.h.b16 %v733
    %v4659 = vunpack.c.l.b16 %v734
    %v4660 = vunpack.c.l.b16 %v735
    %v4661 = vunpack.c.h.b16 %v735
    %v4662 = vunpack.c.l.b16 %v736
    %v4663 = vunpack.c.h.b16 %v736
    %v4664 = vunpack.c.l.b16 %v737
    %v4665 = vunpack.c.h.b16 %v737
    %v4666 = vunpack.c.l.b16 %v738
    %v4667 = vunpack.c.h.b16 %v738
    %v4668 = vunpack.c.l.b16 %v739
    %v4669 = vunpack.c.h.b16 %v739
    %v4670 = vunpack.c.l.b16 %v740
    %v4671 = vunpack.c.h.b16 %v740
    %v4672 = vunpack.c.l.b16 %v741
    %v4673 = vunpack.c.h.b16 %v741
    %v4674 = vunpack.c.l.b16 %v742
    %v4675 = vunpack.c.l.b16 %v743
    %v4676 = vunpack.c.h.b16 %v743
    %v4677 = vunpack.c.l.b16 %v744
    %v4678 = vunpack.c.h.b16 %v744
    %v4679 = vunpack.c.l.b16 %v745
    %v4680 = vunpack.c.h.b16 %v745
    %v4681 = vunpack.c.l.b16 %v746
    %v4682 = vunpack.c.h.b16 %v746
    %v4683 = vunpack.c.l.b16 %v747
    %v4684 = vunpack.c.h.b16 %v747
    %v4685 = vunpack.c.l.b16 %v748
    %v4686 = vunpack.c.h.b16 %v748
    %v4687 = vunpack.c.l.b16 %v749
    %v4688 = vunpack.c.h.b16 %v749
    %v4689 = vunpack.c.l.b16 %v750
    %v4690 = vunpack.c.l.b16 %v751
    %v4691 = vunpack.c.h.b16 %v751
    %v4692 = vunpack.c.l.b16 %v752
    %v4693 = vunpack.c.h.b16 %v752
    %v4694 = vunpack.c.l.b16 %v753
    %v4695 = vunpack.c.h.b16 %v753
    %v4696 = vunpack.c.l.b16 %v754
    %v4697 = vunpack.c.h.b16 %v754
    %v4698 = vunpack.c.l.b16 %v755
    %v4699 = vunpack.c.h.b16 %v755
    %v4700 = vunpack.c.l.b16 %v756
    %v4701 = vunpack.c.h.b16 %v756
    %v4702 = vunpack.c.l.b16 %v757
    %v4703 = vunpack.c.h.b16 %v757
    %v4704 = vunpack.c.l.b16 %v758
    %v4705 = vunpack.c.l.b16 %v759
    %v4706 = vunpack.c.h.b16 %v759
    %v4707 = vunpack.c.l.b16 %v760
    %v4708 = vunpack.c.h.b16 %v760
    %v4709 = vunpack.c.l.b16 %v761
    %v4710 = vunpack.c.h.b16 %v761
    %v4711 = vunpack.c.l.b16 %v762
    %v4712 = vunpack.c.h.b16 %v762
    %v4713 = vunpack.c.l.b16 %v763
    %v4714 = vunpack.c.h.b16 %v763
    %v4715 = vunpack.c.l.b16 %v764
    %v4716 = vunpack.c.h.b16 %v764
    %v4717 = vunpack.c.l.b16 %v765
    %v4718 = vunpack.c.h.b16 %v765
    %v4719 = vunpack.c.l.b16 %v766
    %v4720 = vunpack.c.l.b16 %v767
    %v4721 = vunpack.c.h.b16 %v767
    %v4722 = vunpack.c.l.b16 %v768
    %v4723 = vunpack.c.h.b16 %v768
    %v4724 = vunpack.c.l.b16 %v769
    %v4725 = vunpack.c.h.b16 %v769
    %v4726 = vunpack.c.l.b16 %v770
    %v4727 = vunpack.c.h.b16 %v770
    %v4728 = vunpack.c.l.b16 %v771
    %v4729 = vunpack.c.h.b16 %v771
    %v4730 = vunpack.c.l.b16 %v772
    %v4731 = vunpack.c.h.b16 %v772
    %v4732 = vunpack.c.l.b16 %v773
    %v4733 = vunpack.c.h.b16 %v773
    %v4734 = vunpack.c.l.b16 %v774
    %v4735 = vunpack.c.l.b16 %v775
    %v4736 = vunpack.c.h.b16 %v775
    %v4737 = vunpack.c.l.b16 %v776
    %v4738 = vunpack.c.h.b16 %v776
    %v4739 = vunpack.c.l.b16 %v777
    %v4740 = vunpack.c.h.b16 %v777
    %v4741 = vunpack.c.l.b16 %v778
    %v4742 = vunpack.c.h.b16 %v778
    %v4743 = vunpack.c.l.b16 %v779
    %v4744 = vunpack.c.h.b16 %v779
    %v4745 = vunpack.c.l.b16 %v780
    %v4746 = vunpack.c.h.b16 %v780
    %v4747 = vunpack.c.l.b16 %v781
    %v4748 = vunpack.c.h.b16 %v781
    %v4749 = vunpack.c.l.b16 %v782
    %v4750 = vunpack.c.l.b16 %v783
    %v4751 = vunpack.c.h.b16 %v783
    %v4752 = vunpack.c.l.b16 %v784
    %v4753 = vunpack.c.h.b16 %v784
    %v4754 = vunpack.c.l.b16 %v785
    %v4755 = vunpack.c.h.b16 %v785
    %v4756 = vunpack.c.l.b16 %v786
    %v4757 = vunpack.c.h.b16 %v786
    %v4758 = vunpack.c.l.b16 %v787
    %v4759 = vunpack.c.h.b16 %v787
    %v4760 = vunpack.c.l.b16 %v788
    %v4761 = vunpack.c.h.b16 %v788
    %v4762 = vunpack.c.l.b16 %v789
    %v4763 = vunpack.c.h.b16 %v789
    %v4764 = vunpack.c.l.b16 %v790
    %v4765 = vunpack.c.l.b16 %v791
    %v4766 = vunpack.c.h.b16 %v791
    %v4767 = vunpack.c.l.b16 %v792
    %v4768 = vunpack.c.h.b16 %v792
    %v4769 = vunpack.c.l.b16 %v793
    %v4770 = vunpack.c.h.b16 %v793
    %v4771 = vunpack.c.l.b16 %v794
    %v4772 = vunpack.c.h.b16 %v794
    %v4773 = vunpack.c.l.b16 %v795
    %v4774 = vunpack.c.h.b16 %v795
    %v4775 = vunpack.c.l.b16 %v796
    %v4776 = vunpack.c.h.b16 %v796
    %v4777 = vunpack.c.l.b16 %v797
    %v4778 = vunpack.c.h.b16 %v797
    %v4779 = vunpack.c.l.b16 %v798
    %v4780 = vunpack.c.l.b16 %v799
    %v4781 = vunpack.c.h.b16 %v799
    %v4782 = vunpack.c.l.b16 %v800
    %v4783 = vunpack.c.h.b16 %v800
    %v4784 = vunpack.c.l.b16 %v801
    %v4785 = vunpack.c.h.b16 %v801
    %v4786 = vunpack.c.l.b16 %v802
    %v4787 = vunpack.c.h.b16 %v802
    %v4788 = vunpack.c.l.b16 %v803
    %v4789 = vunpack.c.h.b16 %v803
    %v4790 = vunpack.c.l.b16 %v804
    %v4791 = vunpack.c.h.b16 %v804
    %v4792 = vunpack.c.l.b16 %v805
    %v4793 = vunpack.c.h.b16 %v805
    %v4794 = vunpack.c.l.b16 %v806
    %v4795 = vunpack.c.l.b16 %v807
    %v4796 = vunpack.c.h.b16 %v807
    %v4797 = vunpack.c.l.b16 %v808
    %v4798 = vunpack.c.h.b16 %v808
    %v4799 = vunpack.c.l.b16 %v809
    %v4800 = vunpack.c.h.b16 %v809
    %v4801 = vunpack.c.l.b16 %v810
    %v4802 = vunpack.c.h.b16 %v810
    %v4803 = vunpack.c.l.b16 %v811
    %v4804 = vunpack.c.h.b16 %v811
    %v4805 = vunpack.c.l.b16 %v812
    %v4806 = vunpack.c.h.b16 %v812
    %v4807 = vunpack.c.l.b16 %v813
    %v4808 = vunpack.c.h.b16 %v813
    %v4809 = vunpack.c.l.b16 %v814
    %v4810 = vunpack.c.l.b16 %v815
    %v4811 = vunpack.c.h.b16 %v815
    %v4812 = vunpack.c.l.b16 %v816
    %v4813 = vunpack.c.h.b16 %v816
    %v4814 = vunpack.c.l.b16 %v817
    %v4815 = vunpack.c.h.b16 %v817
    %v4816 = vunpack.c.l.b16 %v818
    %v4817 = vunpack.c.h.b16 %v818
    %v4818 = vunpack.c.l.b16 %v819
    %v4819 = vunpack.c.h.b16 %v819
    %v4820 = vunpack.c.l.b16 %v820
    %v4821 = vunpack.c.h.b16 %v820
    %v4822 = vunpack.c.l.b16 %v821
    %v4823 = vunpack.c.h.b16 %v821
    %v4824 = vunpack.c.l.b16 %v822
    %v4825 = vunpack.c.l.b16 %v823
    %v4826 = vunpack.c.h.b16 %v823
    %v4827 = vunpack.c.l.b16 %v824
    %v4828 = vunpack.c.h.b16 %v824
    %v4829 = vunpack.c.l.b16 %v825
    %v4830 = vunpack.c.h.b16 %v825
    %v4831 = vunpack.c.l.b16 %v826
    %v4832 = vunpack.c.h.b16 %v826
    %v4833 = vunpack.c.l.b16 %v827
    %v4834 = vunpack.c.h.b16 %v827
    %v4835 = vunpack.c.l.b16 %v828
    %v4836 = vunpack.c.h.b16 %v828
    %v4837 = vunpack.c.l.b16 %v829
    %v4838 = vunpack.c.h.b16 %v829
    %v4839 = vunpack.c.l.b16 %v830
    %v4840 = vunpack.c.l.b16 %v831
    %v4841 = vunpack.c.h.b16 %v831
    %v4842 = vunpack.c.l.b16 %v832
    %v4843 = vunpack.c.h.b16 %v832
    %v4844 = vunpack.c.l.b16 %v833
    %v4845 = vunpack.c.h.b16 %v833
    %v4846 = vunpack.c.l.b16 %v834
    %v4847 = vunpack.c.h.b16 %v834
    %v4848 = vunpack.c.l.b16 %v835
    %v4849 = vunpack.c.h.b16 %v835
    %v4850 = vunpack.c.l.b16 %v836
    %v4851 = vunpack.c.h.b16 %v836
    %v4852 = vunpack.c.l.b16 %v837
    %v4853 = vunpack.c.h.b16 %v837
    %v4854 = vunpack.c.l.b16 %v838
    %v4855 = vunpack.c.l.b16 %v839
    %v4856 = vunpack.c.h.b16 %v839
    %v4857 = vunpack.c.l.b16 %v840
    %v4858 = vunpack.c.h.b16 %v840
    %v4859 = vunpack.c.l.b16 %v841
    %v4860 = vunpack.c.h.b16 %v841
    %v4861 = vunpack.c.l.b16 %v842
    %v4862 = vunpack.c.h.b16 %v842
    %v4863 = vunpack.c.l.b16 %v843
    %v4864 = vunpack.c.h.b16 %v843
    %v4865 = vunpack.c.l.b16 %v844
    %v4866 = vunpack.c.h.b16 %v844
    %v4867 = vunpack.c.l.b16 %v845
    %v4868 = vunpack.c.h.b16 %v845
    %v4869 = vunpack.c.l.b16 %v846
    %v4870 = vunpack.c.l.b16 %v847
    %v4871 = vunpack.c.h.b16 %v847
    %v4872 = vunpack.c.l.b16 %v848
    %v4873 = vunpack.c.h.b16 %v848
    %v4874 = vunpack.c.l.b16 %v849
    %v4875 = vunpack.c.h.b16 %v849
    %v4876 = vunpack.c.l.b16 %v850
    %v4877 = vunpack.c.h.b16 %v850
    %v4878 = vunpack.c.l.b16 %v851
    %v4879 = vunpack.c.h.b16 %v851
    %v4880 = vunpack.c.l.b16 %v852
    %v4881 = vunpack.c.h.b16 %v852
    %v4882 = vunpack.c.l.b16 %v853
    %v4883 = vunpack.c.h.b16 %v853
    %v4884 = vunpack.c.l.b16 %v854
    %v4885 = vunpack.c.l.b16 %v855
    %v4886 = vunpack.c.h.b16 %v855
    %v4887 = vunpack.c.l.b16 %v856
    %v4888 = vunpack.c.h.b16 %v856
    %v4889 = vunpack.c.l.b16 %v857
    %v4890 = vunpack.c.h.b16 %v857
    %v4891 = vunpack.c.l.b16 %v858
    %v4892 = vunpack.c.h.b16 %v858
    %v4893 = vunpack.c.l.b16 %v859
    %v4894 = vunpack.c.h.b16 %v859
    %v4895 = vunpack.c.l.b16 %v860
    %v4896 = vunpack.c.h.b16 %v860
    %v4897 = vunpack.c.l.b16 %v861
    %v4898 = vunpack.c.h.b16 %v861
    %v4899 = vunpack.c.l.b16 %v862
    %v4900 = vunpack.c.l.b16 %v863
    %v4901 = vunpack.c.h.b16 %v863
    %v4902 = vunpack.c.l.b16 %v864
    %v4903 = vunpack.c.h.b16 %v864
    %v4904 = vunpack.c.l.b16 %v865
    %v4905 = vunpack.c.h.b16 %v865
    %v4906 = vunpack.c.l.b16 %v866
    %v4907 = vunpack.c.h.b16 %v866
    %v4908 = vunpack.c.l.b16 %v867
    %v4909 = vunpack.c.h.b16 %v867
    %v4910 = vunpack.c.l.b16 %v868
    %v4911 = vunpack.c.h.b16 %v868
    %v4912 = vunpack.c.l.b16 %v869
    %v4913 = vunpack.c.h.b16 %v869
    %v4914 = vunpack.c.l.b16 %v870
    %v4915 = vunpack.c.l.b16 %v871
    %v4916 = vunpack.c.h.b16 %v871
    %v4917 = vunpack.c.l.b16 %v872
    %v4918 = vunpack.c.h.b16 %v872
    %v4919 = vunpack.c.l.b16 %v873
    %v4920 = vunpack.c.h.b16 %v873
    %v4921 = vunpack.c.l.b16 %v874
    %v4922 = vunpack.c.h.b16 %v874
    %v4923 = vunpack.c.l.b16 %v875
    %v4924 = vunpack.c.h.b16 %v875
    %v4925 = vunpack.c.l.b16 %v876
    %v4926 = vunpack.c.h.b16 %v876
    %v4927 = vunpack.c.l.b16 %v877
    %v4928 = vunpack.c.h.b16 %v877
    %v4929 = vunpack.c.l.b16 %v878
    %v4930 = vunpack.c.l.b16 %v879
    %v4931 = vunpack.c.h.b16 %v879
    %v4932 = vunpack.c.l.b16 %v880
    %v4933 = vunpack.c.h.b16 %v880
    %v4934 = vunpack.c.l.b16 %v881
    %v4935 = vunpack.c.h.b16 %v881
    %v4936 = vunpack.c.l.b16 %v882
    %v4937 = vunpack.c.h.b16 %v882
    %v4938 = vunpack.c.l.b16 %v883
    %v4939 = vunpack.c.h.b16 %v883
    %v4940 = vunpack.c.l.b16 %v884
    %v4941 = vunpack.c.h.b16 %v884
    %v4942 = vunpack.c.l.b16 %v885
    %v4943 = vunpack.c.h.b16 %v885
    %v4944 = vunpack.c.l.b16 %v886
    %v4945 = vunpack.c.l.b16 %v887
    %v4946 = vunpack.c.h.b16 %v887
    %v4947 = vunpack.c.l.b16 %v888
    %v4948 = vunpack.c.h.b16 %v888
    %v4949 = vunpack.c.l.b16 %v889
    %v4950 = vunpack.c.h.b16 %v889
    %v4951 = vunpack.c.l.b16 %v890
    %v4952 = vunpack.c.h.b16 %v890
    %v4953 = vunpack.c.l.b16 %v891
    %v4954 = vunpack.c.h.b16 %v891
    %v4955 = vunpack.c.l.b16 %v892
    %v4956 = vunpack.c.h.b16 %v892
    %v4957 = vunpack.c.l.b16 %v893
    %v4958 = vunpack.c.h.b16 %v893
    %v4959 = vunpack.c.l.b16 %v894
    %v4960 = vunpack.c.l.b16 %v895
    %v4961 = vunpack.c.h.b16 %v895
    %v4962 = vunpack.c.l.b16 %v896
    %v4963 = vunpack.c.h.b16 %v896
    %v4964 = vunpack.c.l.b16 %v897
    %v4965 = vunpack.c.h.b16 %v897
    %v4966 = vunpack.c.l.b16 %v898
    %v4967 = vunpack.c.h.b16 %v898
    %v4968 = vunpack.c.l.b16 %v899
    %v4969 = vunpack.c.h.b16 %v899
    %v4970 = vunpack.c.l.b16 %v900
    %v4971 = vunpack.c.h.b16 %v900
    %v4972 = vunpack.c.l.b16 %v901
    %v4973 = vunpack.c.h.b16 %v901
    %v4974 = vunpack.c.l.b16 %v902
    %v4975 = vunpack.c.l.b16 %v903
    %v4976 = vunpack.c.h.b16 %v903
    %v4977 = vunpack.c.l.b16 %v904
    %v4978 = vunpack.c.h.b16 %v904
    %v4979 = vunpack.c.l.b16 %v905
    %v4980 = vunpack.c.h.b16 %v905
    %v4981 = vunpack.c.l.b16 %v906
    %v4982 = vunpack.c.h.b16 %v906
    %v4983 = vunpack.c.l.b16 %v907
    %v4984 = vunpack.c.h.b16 %v907
    %v4985 = vunpack.c.l.b16 %v908
    %v4986 = vunpack.c.h.b16 %v908
    %v4987 = vunpack.c.l.b16 %v909
    %v4988 = vunpack.c.h.b16 %v909
    %v4989 = vunpack.c.l.b16 %v910
    %v4990 = vunpack.c.l.b16 %v911
    %v4991 = vunpack.c.h.b16 %v911
    %v4992 = vunpack.c.l.b16 %v912
    %v4993 = vunpack.c.h.b16 %v912
    %v4994 = vunpack.c.l.b16 %v913
    %v4995 = vunpack.c.h.b16 %v913
    %v4996 = vunpack.c.l.b16 %v914
    %v4997 = vunpack.c.h.b16 %v914
    %v4998 = vunpack.c.l.b16 %v915
    %v4999 = vunpack.c.h.b16 %v915
    %v5000 = vunpack.c.l.b16 %v916
    %v5001 = vunpack.c.h.b16 %v916
    %v5002 = vunpack.c.l.b16 %v917
    %v5003 = vunpack.c.h.b16 %v917
    %v5004 = vunpack.c.l.b16 %v918
    %v5005 = vunpack.c.l.b16 %v919
    %v5006 = vunpack.c.h.b16 %v919
    %v5007 = vunpack.c.l.b16 %v920
    %v5008 = vunpack.c.h.b16 %v920
    %v5009 = vunpack.c.l.b16 %v921
    %v5010 = vunpack.c.h.b16 %v921
    %v5011 = vunpack.c.l.b16 %v922
    %v5012 = vunpack.c.h.b16 %v922
    %v5013 = vunpack.c.l.b16 %v923
    %v5014 = vunpack.c.h.b16 %v923
    %v5015 = vunpack.c.l.b16 %v924
    %v5016 = vunpack.c.h.b16 %v924
    %v5017 = vunpack.c.l.b16 %v925
    %v5018 = vunpack.c.h.b16 %v925
    %v5019 = vunpack.c.l.b16 %v926
    %v5020 = vunpack.c.l.b16 %v927
    %v5021 = vunpack.c.h.b16 %v927
    %v5022 = vunpack.c.l.b16 %v928
    %v5023 = vunpack.c.h.b16 %v928
    %v5024 = vunpack.c.l.b16 %v929
    %v5025 = vunpack.c.h.b16 %v929
    %v5026 = vunpack.c.l.b16 %v930
    %v5027 = vunpack.c.h.b16 %v930
    %v5028 = vunpack.c.l.b16 %v931
    %v5029 = vunpack.c.h.b16 %v931
    %v5030 = vunpack.c.l.b16 %v932
    %v5031 = vunpack.c.h.b16 %v932
    %v5032 = vunpack.c.l.b16 %v933
    %v5033 = vunpack.c.h.b16 %v933
    %v5034 = vunpack.c.l.b16 %v934
    %v5035 = vunpack.c.l.b16 %v935
    %v5036 = vunpack.c.h.b16 %v935
    %v5037 = vunpack.c.l.b16 %v936
    %v5038 = vunpack.c.h.b16 %v936
    %v5039 = vunpack.c.l.b16 %v937
    %v5040 = vunpack.c.h.b16 %v937
    %v5041 = vunpack.c.l.b16 %v938
    %v5042 = vunpack.c.h.b16 %v938
    %v5043 = vunpack.c.l.b16 %v939
    %v5044 = vunpack.c.h.b16 %v939
    %v5045 = vunpack.c.l.b16 %v940
    %v5046 = vunpack.c.h.b16 %v940
    %v5047 = vunpack.c.l.b16 %v941
    %v5048 = vunpack.c.h.b16 %v941
    %v5049 = vunpack.c.l.b16 %v942
    %v5050 = vunpack.c.l.b16 %v943
    %v5051 = vunpack.c.h.b16 %v943
    %v5052 = vunpack.c.l.b16 %v944
    %v5053 = vunpack.c.h.b16 %v944
    %v5054 = vunpack.c.l.b16 %v945
    %v5055 = vunpack.c.h.b16 %v945
    %v5056 = vunpack.c.l.b16 %v946
    %v5057 = vunpack.c.h.b16 %v946
    %v5058 = vunpack.c.l.b16 %v947
    %v5059 = vunpack.c.h.b16 %v947
    %v5060 = vunpack.c.l.b16 %v948
    %v5061 = vunpack.c.h.b16 %v948
    %v5062 = vunpack.c.l.b16 %v949
    %v5063 = vunpack.c.h.b16 %v949
    %v5064 = vunpack.c.l.b16 %v950
    %v5065 = vunpack.c.l.b16 %v951
    %v5066 = vunpack.c.h.b16 %v951
    %v5067 = vunpack.c.l.b16 %v952
    %v5068 = vunpack.c.h.b16 %v952
    %v5069 = vunpack.c.l.b16 %v953
    %v5070 = vunpack.c.h.b16 %v953
    %v5071 = vunpack.c.l.b16 %v954
    %v5072 = vunpack.c.h.b16 %v954
    %v5073 = vunpack.c.l.b16 %v955
    %v5074 = vunpack.c.h.b16 %v955
    %v5075 = vunpack.c.l.b16 %v956
    %v5076 = vunpack.c.h.b16 %v956
    %v5077 = vunpack.c.l.b16 %v957
    %v5078 = vunpack.c.h.b16 %v957
    %v5079 = vunpack.c.l.b16 %v958
    %v5080 = vunpack.c.l.b16 %v959
    %v5081 = vunpack.c.h.b16 %v959
    %v5082 = vunpack.c.l.b16 %v960
    %v5083 = vunpack.c.h.b16 %v960
    %v5084 = vunpack.c.l.b16 %v961
    %v5085 = vunpack.c.h.b16 %v961
    %v5086 = vunpack.c.l.b16 %v962
    %v5087 = vunpack.c.h.b16 %v962
    %v5088 = vunpack.c.l.b16 %v963
    %v5089 = vunpack.c.h.b16 %v963
    %v5090 = vunpack.c.l.b16 %v964
    %v5091 = vunpack.c.h.b16 %v964
    %v5092 = vunpack.c.l.b16 %v965
    %v5093 = vunpack.c.h.b16 %v965
    %v5094 = vunpack.c.l.b16 %v966
    %v5095 = vunpack.c.l.b16 %v967
    %v5096 = vunpack.c.h.b16 %v967
    %v5097 = vunpack.c.l.b16 %v968
    %v5098 = vunpack.c.h.b16 %v968
    %v5099 = vunpack.c.l.b16 %v969
    %v5100 = vunpack.c.h.b16 %v969
    %v5101 = vunpack.c.l.b16 %v970
    %v5102 = vunpack.c.h.b16 %v970
    %v5103 = vunpack.c.l.b16 %v971
    %v5104 = vunpack.c.h.b16 %v971
    %v5105 = vunpack.c.l.b16 %v972
    %v5106 = vunpack.c.h.b16 %v972
    %v5107 = vunpack.c.l.b16 %v973
    %v5108 = vunpack.c.h.b16 %v973
    %v5109 = vunpack.c.l.b16 %v974
    %v5110 = vunpack.c.l.b16 %v975
    %v5111 = vunpack.c.h.b16 %v975
    %v5112 = vunpack.c.l.b16 %v976
    %v5113 = vunpack.c.h.b16 %v976
    %v5114 = vunpack.c.l.b16 %v977
    %v5115 = vunpack.c.h.b16 %v977
    %v5116 = vunpack.c.l.b16 %v978
    %v5117 = vunpack.c.h.b16 %v978
    %v5118 = vunpack.c.l.b16 %v979
    %v5119 = vunpack.c.h.b16 %v979
    %v5120 = vunpack.c.l.b16 %v980
    %v5121 = vunpack.c.h.b16 %v980
    %v5122 = vunpack.c.l.b16 %v981
    %v5123 = vunpack.c.h.b16 %v981
    %v5124 = vunpack.c.l.b16 %v982
    %v5125 = vunpack.c.l.b16 %v983
    %v5126 = vunpack.c.h.b16 %v983
    %v5127 = vunpack.c.l.b16 %v984
    %v5128 = vunpack.c.h.b16 %v984
    %v5129 = vunpack.c.l.b16 %v985
    %v5130 = vunpack.c.h.b16 %v985
    %v5131 = vunpack.c.l.b16 %v986
    %v5132 = vunpack.c.h.b16 %v986
    %v5133 = vunpack.c.l.b16 %v987
    %v5134 = vunpack.c.h.b16 %v987
    %v5135 = vunpack.c.l.b16 %v988
    %v5136 = vunpack.c.h.b16 %v988
    %v5137 = vunpack.c.l.b16 %v989
    %v5138 = vunpack.c.h.b16 %v989
    %v5139 = vunpack.c.l.b16 %v990
    %v5140 = vunpack.c.l.b16 %v991
    %v5141 = vunpack.c.h.b16 %v991
    %v5142 = vunpack.c.l.b16 %v992
    %v5143 = vunpack.c.h.b16 %v992
    %v5144 = vunpack.c.l.b16 %v993
    %v5145 = vunpack.c.h.b16 %v993
    %v5146 = vunpack.c.l.b16 %v994
    %v5147 = vunpack.c.h.b16 %v994
    %v5148 = vunpack.c.l.b16 %v995
    %v5149 = vunpack.c.h.b16 %v995
    %v5150 = vunpack.c.l.b16 %v996
    %v5151 = vunpack.c.h.b16 %v996
    %v5152 = vunpack.c.l.b16 %v997
    %v5153 = vunpack.c.h.b16 %v997
    %v5154 = vunpack.c.l.b16 %v998
    %v5155 = vunpack.c.l.b16 %v999
    %v5156 = vunpack.c.h.b16 %v999
    %v5157 = vunpack.c.l.b16 %v1000
    %v5158 = vunpack.c.h.b16 %v1000
    %v5159 = vunpack.c.l.b16 %v1001
    %v5160 = vunpack.c.h.b16 %v1001
    %v5161 = vunpack.c.l.b16 %v1002
    %v5162 = vunpack.c.h.b16 %v1002
    %v5163 = vunpack.c.l.b16 %v1003
    %v5164 = vunpack.c.h.b16 %v1003
    %v5165 = vunpack.c.l.b16 %v1004
    %v5166 = vunpack.c.h.b16 %v1004
    %v5167 = vunpack.c.l.b16 %v1005
    %v5168 = vunpack.c.h.b16 %v1005
    %v5169 = vunpack.c.l.b16 %v1006
    %v5170 = vunpack.c.l.b16 %v1007
    %v5171 = vunpack.c.h.b16 %v1007
    %v5172 = vunpack.c.l.b16 %v1008
    %v5173 = vunpack.c.h.b16 %v1008
    %v5174 = vunpack.c.l.b16 %v1009
    %v5175 = vunpack.c.h.b16 %v1009
    %v5176 = vunpack.c.l.b16 %v1010
    %v5177 = vunpack.c.h.b16 %v1010
    %v5178 = vunpack.c.l.b16 %v1011
    %v5179 = vunpack.c.h.b16 %v1011
    %v5180 = vunpack.c.l.b16 %v1012
    %v5181 = vunpack.c.h.b16 %v1012
    %v5182 = vunpack.c.l.b16 %v1013
    %v5183 = vunpack.c.h.b16 %v1013
    %v5184 = vunpack.c.l.b16 %v1014
    %v5185 = vunpack.c.l.b16 %v1015
    %v5186 = vunpack.c.h.b16 %v1015
    %v5187 = vunpack.c.l.b16 %v1016
    %v5188 = vunpack.c.h.b16 %v1016
    %v5189 = vunpack.c.l.b16 %v1017
    %v5190 = vunpack.c.h.b16 %v1017
    %v5191 = vunpack.c.l.b16 %v1018
    %v5192 = vunpack.c.h.b16 %v1018
    %v5193 = vunpack.c.l.b16 %v1019
    %v5194 = vunpack.c.h.b16 %v1019
    %v5195 = vunpack.c.l.b16 %v1020
    %v5196 = vunpack.c.h.b16 %v1020
    %v5197 = vunpack.c.l.b16 %v1021
    %v5198 = vunpack.c.h.b16 %v1021
    %v5199 = vunpack.c.l.b16 %v1022
    %v5200 = vunpack.c.l.b16 %v1023
    %v5201 = vunpack.c.h.b16 %v1023
    %v5202 = vunpack.c.l.b16 %v1024
    %v5203 = vunpack.c.h.b16 %v1024
    %v5204 = vunpack.c.l.b16 %v1025
    %v5205 = vunpack.c.h.b16 %v1025
    %v5206 = vunpack.c.l.b16 %v1026
    %v5207 = vunpack.c.h.b16 %v1026
    %v5208 = vunpack.c.l.b16 %v1027
    %v5209 = vunpack.c.h.b16 %v1027
    %v5210 = vunpack.c.l.b16 %v1028
    %v5211 = vunpack.c.h.b16 %v1028
    %v5212 = vunpack.c.l.b16 %v1029
    %v5213 = vunpack.c.h.b16 %v1029
    %v5214 = vunpack.c.l.b16 %v1030
    %v5215 = vunpack.c.l.b16 %v1031
    %v5216 = vunpack.c.h.b16 %v1031
    %v5217 = vunpack.c.l.b16 %v1032
    %v5218 = vunpack.c.h.b16 %v1032
    %v5219 = vunpack.c.l.b16 %v1033
    %v5220 = vunpack.c.h.b16 %v1033
    %v5221 = vunpack.c.l.b16 %v1034
    %v5222 = vunpack.c.h.b16 %v1034
    %v5223 = vunpack.c.l.b16 %v1035
    %v5224 = vunpack.c.h.b16 %v1035
    %v5225 = vunpack.c.l.b16 %v1036
    %v5226 = vunpack.c.h.b16 %v1036
    %v5227 = vunpack.c.l.b16 %v1037
    %v5228 = vunpack.c.h.b16 %v1037
    %v5229 = vunpack.c.l.b16 %v1038
    %v5230 = vunpack.c.l.b16 %v1039
    %v5231 = vunpack.c.h.b16 %v1039
    %v5232 = vunpack.c.l.b16 %v1040
    %v5233 = vunpack.c.h.b16 %v1040
    %v5234 = vunpack.c.l.b16 %v1041
    %v5235 = vunpack.c.h.b16 %v1041
    %v5236 = vunpack.c.l.b16 %v1042
    %v5237 = vunpack.c.h.b16 %v1042
    %v5238 = vunpack.c.l.b16 %v1043
    %v5239 = vunpack.c.h.b16 %v1043
    %v5240 = vunpack.c.l.b16 %v1044
    %v5241 = vunpack.c.h.b16 %v1044
    %v5242 = vunpack.c.l.b16 %v1045
    %v5243 = vunpack.c.h.b16 %v1045
    %v5244 = vunpack.c.l.b16 %v1046
    %v5245 = vpack.c.b16 %v4540, %v4525
    %v5246 = vpack.c.b16 %v4541, %v4526
    %v5247 = vpack.c.b16 %v4542, %v4527
    %v5248 = vpack.c.b16 %v4543, %v4528
    %v5249 = vpack.c.b16 %v4544, %v4529
    %v5250 = vpack.c.b16 %v4545, %v4530
    %v5251 = vpack.c.b16 %v4546, %v4531
    %v5252 = vpack.c.b16 %v4547, %v4532
    %v5253 = vpack.c.b16 %v4548, %v4533
    %v5254 = vpack.c.b16 %v4549, %v4534
    %v5255 = vpack.c.b16 %v4550, %v4535
    %v5256 = vpack.c.b16 %v4551, %v4536
    %v5257 = vpack.c.b16 %v4552, %v4537
    %v5258 = vpack.c.b16 %v4553, %v4538
    %v5259 = vpack.c.b16 %v4554, %v4539
    %v5260 = vpack.c.b16 %v4570, %v4555
    %v5261 = vpack.c.b16 %v4571, %v4556
    %v5262 = vpack.c.b16 %v4572, %v4557
    %v5263 = vpack.c.b16 %v4573, %v4558
    %v5264 = vpack.c.b16 %v4574, %v4559
    %v5265 = vpack.c.b16 %v4575, %v4560
    %v5266 = vpack.c.b16 %v4576, %v4561
    %v5267 = vpack.c.b16 %v4577, %v4562
    %v5268 = vpack.c.b16 %v4578, %v4563
    %v5269 = vpack.c.b16 %v4579, %v4564
    %v5270 = vpack.c.b16 %v4580, %v4565
    %v5271 = vpack.c.b16 %v4581, %v4566
    %v5272 = vpack.c.b16 %v4582, %v4567
    %v5273 = vpack.c.b16 %v4583, %v4568
    %v5274 = vpack.c.b16 %v4584, %v4569
    %v5275 = vpack.c.b16 %v4600, %v4585
    %v5276 = vpack.c.b16 %v4601, %v4586
    %v5277 = vpack.c.b16 %v4602, %v4587
    %v5278 = vpack.c.b16 %v4603, %v4588
    %v5279 = vpack.c.b16 %v4604, %v4589
    %v5280 = vpack.c.b16 %v4605, %v4590
    %v5281 = vpack.c.b16 %v4606, %v4591
    %v5282 = vpack.c.b16 %v4607, %v4592
    %v5283 = vpack.c.b16 %v4608, %v4593
    %v5284 = vpack.c.b16 %v4609, %v4594
    %v5285 = vpack.c.b16 %v4610, %v4595
    %v5286 = vpack.c.b16 %v4611, %v4596
    %v5287 = vpack.c.b16 %v4612, %v4597
    %v5288 = vpack.c.b16 %v4613, %v4598
    %v5289 = vpack.c.b16 %v4614, %v4599
    %v5290 = vpack.c.b16 %v4630, %v4615
    %v5291 = vpack.c.b16 %v4631, %v4616
    %v5292 = vpack.c.b16 %v4632, %v4617
    %v5293 = vpack.c.b16 %v4633, %v4618
    %v5294 = vpack.c.b16 %v4634, %v4619
    %v5295 = vpack.c.b16 %v4635, %v4620
    %v5296 = vpack.c.b16 %v4636, %v4621
    %v5297 = vpack.c.b16 %v4637, %v4622
    %v5298 = vpack.c.b16 %v4638, %v4623
    %v5299 = vpack.c.b16 %v4639, %v4624
    %v5300 = vpack.c.b16 %v4640, %v4625
    %v5301 = vpack.c.b16 %v4641, %v4626
    %v5302 = vpack.c.b16 %v4642, %v4627
    %v5303 = vpack.c.b16 %v4643, %v4628
    %v5304 = vpack.c.b16 %v4644, %v4629
    %v5305 = vpack.c.b16 %v4660, %v4645
    %v5306 = vpack.c.b16 %v4661, %v4646
    %v5307 = vpack.c.b16 %v4662, %v4647
    %v5308 = vpack.c.b16 %v4663, %v4648
    %v5309 = vpack.c.b16 %v4664, %v4649
    %v5310 = vpack.c.b16 %v4665, %v4650
    %v5311 = vpack.c.b16 %v4666, %v4651
    %v5312 = vpack.c.b16 %v4667, %v4652
    %v5313 = vpack.c.b16 %v4668, %v4653
    %v5314 = vpack.c.b16 %v4669, %v4654
    %v5315 = vpack.c.b16 %v4670, %v4655
    %v5316 = vpack.c.b16 %v4671, %v4656
    %v5317 = vpack.c.b16 %v4672, %v4657
    %v5318 = vpack.c.b16 %v4673, %v4658
    %v5319 = vpack.c.b16 %v4674, %v4659
    %v5320 = vpack.c.b16 %v4690, %v4675
    %v5321 = vpack.c.b16 %v4691, %v4676
    %v5322 = vpack.c.b16 %v4692, %v4677
    %v5323 = vpack.c.b16 %v4693, %v4678
    %v5324 = vpack.c.b16 %v4694, %v4679
    %v5325 = vpack.c.b16 %v4695, %v4680
    %v5326 = vpack.c.b16 %v4696, %v4681
    %v5327 = vpack.c.b16 %v4697, %v4682
    %v5328 = vpack.c.b16 %v4698, %v4683
    %v5329 = vpack.c.b16 %v4699, %v4684
    %v5330 = vpack.c.b16 %v4700, %v4685
    %v5331 = vpack.c.b16 %v4701, %v4686
    %v5332 = vpack.c.b16 %v4702, %v4687
    %v5333 = vpack.c.b16 %v4703, %v4688
    %v5334 = vpack.c.b16 %v4704, %v4689
    %v5335 = vpack.c.b16 %v4720, %v4705
    %v5336 = vpack.c.b16 %v4721, %v4706
    %v5337 = vpack.c.b16 %v4722, %v4707
    %v5338 = vpack.c.b16 %v4723, %v4708
    %v5339 = vpack.c.b16 %v4724, %v4709
    %v5340 = vpack.c.b16 %v4725, %v4710
    %v5341 = vpack.c.b16 %v4726, %v4711
    %v5342 = vpack.c.b16 %v4727, %v4712
    %v5343 = vpack.c.b16 %v4728, %v4713
    %v5344 = vpack.c.b16 %v4729, %v4714
    %v5345 = vpack.c.b16 %v4730, %v4715
    %v5346 = vpack.c.b16 %v4731, %v4716
    %v5347 = vpack.c.b16 %v4732, %v4717
    %v5348 = vpack.c.b16 %v4733, %v4718
    %v5349 = vpack.c.b16 %v4734, %v4719
    %v5350 = vpack.c.b16 %v4750, %v4735
    %v5351 = vpack.c.b16 %v4751, %v4736
    %v5352 = vpack.c.b16 %v4752, %v4737
    %v5353 = vpack.c.b16 %v4753, %v4738
    %v5354 = vpack.c.b16 %v4754, %v4739
    %v5355 = vpack.c.b16 %v4755, %v4740
    %v5356 = vpack.c.b16 %v4756, %v4741
    %v5357 = vpack.c.b16 %v4757, %v4742
    %v5358 = vpack.c.b16 %v4758, %v4743
    %v5359 = vpack.c.b16 %v4759, %v4744
    %v5360 = vpack.c.b16 %v4760, %v4745
    %v5361 = vpack.c.b16 %v4761, %v4746
    %v5362 = vpack.c.b16 %v4762, %v4747
    %v5363 = vpack.c.b16 %v4763, %v4748
    %v5364 = vpack.c.b16 %v4764, %v4749
    %v5365 = vpack.c.b16 %v4780, %v4765
    %v5366 = vpack.c.b16 %v4781, %v4766
    %v5367 = vpack.c.b16 %v4782, %v4767
    %v5368 = vpack.c.b16 %v4783, %v4768
    %v5369 = vpack.c.b16 %v4784, %v4769
    %v5370 = vpack.c.b16 %v4785, %v4770
    %v5371 = vpack.c.b16 %v4786, %v4771
    %v5372 = vpack.c.b16 %v4787, %v4772
    %v5373 = vpack.c.b16 %v4788, %v4773
    %v5374 = vpack.c.b16 %v4789, %v4774
    %v5375 = vpack.c.b16 %v4790, %v4775
    %v5376 = vpack.c.b16 %v4791, %v4776
    %v5377 = vpack.c.b16 %v4792, %v4777
    %v5378 = vpack.c.b16 %v4793, %v4778
    %v5379 = vpack.c.b16 %v4794, %v4779
    %v5380 = vpack.c.b16 %v4810, %v4795
    %v5381 = vpack.c.b16 %v4811, %v4796
    %v5382 = vpack.c.b16 %v4812, %v4797
    %v5383 = vpack.c.b16 %v4813, %v4798
    %v5384 = vpack.c.b16 %v4814, %v4799
    %v5385 = vpack.c.b16 %v4815, %v4800
    %v5386 = vpack.c.b16 %v4816, %v4801
    %v5387 = vpack.c.b16 %v4817, %v4802
    %v5388 = vpack.c.b16 %v4818, %v4803
    %v5389 = vpack.c.b16 %v4819, %v4804
    %v5390 = vpack.c.b16 %v4820, %v4805
    %v5391 = vpack.c.b16 %v4821, %v4806
    %v5392 = vpack.c.b16 %v4822, %v4807
    %v5393 = vpack.c.b16 %v4823, %v4808
    %v5394 = vpack.c.b16 %v4824, %v4809
    %v5395 = vpack.c.b16 %v4840, %v4825
    %v5396 = vpack.c.b16 %v4841, %v4826
    %v5397 = vpack.c.b16 %v4842, %v4827
    %v5398 = vpack.c.b16 %v4843, %v4828
    %v5399 = vpack.c.b16 %v4844, %v4829
    %v5400 = vpack.c.b16 %v4845, %v4830
    %v5401 = vpack.c.b16 %v4846, %v4831
    %v5402 = vpack.c.b16 %v4847, %v4832
    %v5403 = vpack.c.b16 %v4848, %v4833
    %v5404 = vpack.c.b16 %v4849, %v4834
    %v5405 = vpack.c.b16 %v4850, %v4835
    %v5406 = vpack.c.b16 %v4851, %v4836
    %v5407 = vpack.c.b16 %v4852, %v4837
    %v5408 = vpack.c.b16 %v4853, %v4838
    %v5409 = vpack.c.b16 %v4854, %v4839
    %v5410 = vpack.c.b16 %v4870, %v4855
    %v5411 = vpack.c.b16 %v4871, %v4856
    %v5412 = vpack.c.b16 %v4872, %v4857
    %v5413 = vpack.c.b16 %v4873, %v4858
    %v5414 = vpack.c.b16 %v4874, %v4859
    %v5415 = vpack.c.b16 %v4875, %v4860
    %v5416 = vpack.c.b16 %v4876, %v4861
    %v5417 = vpack.c.b16 %v4877, %v4862
    %v5418 = vpack.c.b16 %v4878, %v4863
    %v5419 = vpack.c.b16 %v4879, %v4864
    %v5420 = vpack.c.b16 %v4880, %v4865
    %v5421 = vpack.c.b16 %v4881, %v4866
    %v5422 = vpack.c.b16 %v4882, %v4867
    %v5423 = vpack.c.b16 %v4883, %v4868
    %v5424 = vpack.c.b16 %v4884, %v4869
    %v5425 = vpack.c.b16 %v4900, %v4885
    %v5426 = vpack.c.b16 %v4901, %v4886
    %v5427 = vpack.c.b16 %v4902, %v4887
    %v5428 = vpack.c.b16 %v4903, %v4888
    %v5429 = vpack.c.b16 %v4904, %v4889
    %v5430 = vpack.c.b16 %v4905, %v4890
    %v5431 = vpack.c.b16 %v4906, %v4891
    %v5432 = vpack.c.b16 %v4907, %v4892
    %v5433 = vpack.c.b16 %v4908, %v4893
    %v5434 = vpack.c.b16 %v4909, %v4894
    %v5435 = vpack.c.b16 %v4910, %v4895
    %v5436 = vpack.c.b16 %v4911, %v4896
    %v5437 = vpack.c.b16 %v4912, %v4897
    %v5438 = vpack.c.b16 %v4913, %v4898
    %v5439 = vpack.c.b16 %v4914, %v4899
    %v5440 = vpack.c.b16 %v4930, %v4915
    %v5441 = vpack.c.b16 %v4931, %v4916
    %v5442 = vpack.c.b16 %v4932, %v4917
    %v5443 = vpack.c.b16 %v4933, %v4918
    %v5444 = vpack.c.b16 %v4934, %v4919
    %v5445 = vpack.c.b16 %v4935, %v4920
    %v5446 = vpack.c.b16 %v4936, %v4921
    %v5447 = vpack.c.b16 %v4937, %v4922
    %v5448 = vpack.c.b16 %v4938, %v4923
    %v5449 = vpack.c.b16 %v4939, %v4924
    %v5450 = vpack.c.b16 %v4940, %v4925
    %v5451 = vpack.c.b16 %v4941, %v4926
    %v5452 = vpack.c.b16 %v4942, %v4927
    %v5453 = vpack.c.b16 %v4943, %v4928
    %v5454 = vpack.c.b16 %v4944, %v4929
    %v5455 = vpack.c.b16 %v4960, %v4945
    %v5456 = vpack.c.b16 %v4961, %v4946
    %v5457 = vpack.c.b16 %v4962, %v4947
    %v5458 = vpack.c.b16 %v4963, %v4948
    %v5459 = vpack.c.b16 %v4964, %v4949
    %v5460 = vpack.c.b16 %v4965, %v4950
    %v5461 = vpack.c.b16 %v4966, %v4951
    %v5462 = vpack.c.b16 %v4967, %v4952
    %v5463 = vpack.c.b16 %v4968, %v4953
    %v5464 = vpack.c.b16 %v4969, %v4954
    %v5465 = vpack.c.b16 %v4970, %v4955
    %v5466 = vpack.c.b16 %v4971, %v4956
    %v5467 = vpack.c.b16 %v4972, %v4957
    %v5468 = vpack.c.b16 %v4973, %v4958
    %v5469 = vpack.c.b16 %v4974, %v4959
    %v5470 = vpack.c.b16 %v4990, %v4975
    %v5471 = vpack.c.b16 %v4991, %v4976
    %v5472 = vpack.c.b16 %v4992, %v4977
    %v5473 = vpack.c.b16 %v4993, %v4978
    %v5474 = vpack.c.b16 %v4994, %v4979
    %v5475 = vpack.c.b16 %v4995, %v4980
    %v5476 = vpack.c.b16 %v4996, %v4981
    %v5477 = vpack.c.b16 %v4997, %v4982
    %v5478 = vpack.c.b16 %v4998, %v4983
    %v5479 = vpack.c.b16 %v4999, %v4984
    %v5480 = vpack.c.b16 %v5000, %v4985
    %v5481 = vpack.c.b16 %v5001, %v4986
    %v5482 = vpack.c.b16 %v5002, %v4987
    %v5483 = vpack.c.b16 %v5003, %v4988
    %v5484 = vpack.c.b16 %v5004, %v4989
    %v5485 = vpack.c.b16 %v5020, %v5005
    %v5486 = vpack.c.b16 %v5021, %v5006
    %v5487 = vpack.c.b16 %v5022, %v5007
    %v5488 = vpack.c.b16 %v5023, %v5008
    %v5489 = vpack.c.b16 %v5024, %v5009
    %v5490 = vpack.c.b16 %v5025, %v5010
    %v5491 = vpack.c.b16 %v5026, %v5011
    %v5492 = vpack.c.b16 %v5027, %v5012
    %v5493 = vpack.c.b16 %v5028, %v5013
    %v5494 = vpack.c.b16 %v5029, %v5014
    %v5495 = vpack.c.b16 %v5030, %v5015
    %v5496 = vpack.c.b16 %v5031, %v5016
    %v5497 = vpack.c.b16 %v5032, %v5017
    %v5498 = vpack.c.b16 %v5033, %v5018
    %v5499 = vpack.c.b16 %v5034, %v5019
    %v5500 = vpack.c.b16 %v5050, %v5035
    %v5501 = vpack.c.b16 %v5051, %v5036
    %v5502 = vpack.c.b16 %v5052, %v5037
    %v5503 = vpack.c.b16 %v5053, %v5038
    %v5504 = vpack.c.b16 %v5054, %v5039
    %v5505 = vpack.c.b16 %v5055, %v5040
    %v5506 = vpack.c.b16 %v5056, %v5041
    %v5507 = vpack.c.b16 %v5057, %v5042
    %v5508 = vpack.c.b16 %v5058, %v5043
    %v5509 = vpack.c.b16 %v5059, %v5044
    %v5510 = vpack.c.b16 %v5060, %v5045
    %v5511 = vpack.c.b16 %v5061, %v5046
    %v5512 = vpack.c.b16 %v5062, %v5047
    %v5513 = vpack.c.b16 %v5063, %v5048
    %v5514 = vpack.c.b16 %v5064, %v5049
    %v5515 = vpack.c.b16 %v5080, %v5065
    %v5516 = vpack.c.b16 %v5081, %v5066
    %v5517 = vpack.c.b16 %v5082, %v5067
    %v5518 = vpack.c.b16 %v5083, %v5068
    %v5519 = vpack.c.b16 %v5084, %v5069
    %v5520 = vpack.c.b16 %v5085, %v5070
    %v5521 = vpack.c.b16 %v5086, %v5071
    %v5522 = vpack.c.b16 %v5087, %v5072
    %v5523 = vpack.c.b16 %v5088, %v5073
    %v5524 = vpack.c.b16 %v5089, %v5074
    %v5525 = vpack.c.b16 %v5090, %v5075
    %v5526 = vpack.c.b16 %v5091, %v5076
    %v5527 = vpack.c.b16 %v5092, %v5077
    %v5528 = vpack.c.b16 %v5093, %v5078
    %v5529 = vpack.c.b16 %v5094, %v5079
    %v5530 = vpack.c.b16 %v5110, %v5095
    %v5531 = vpack.c.b16 %v5111, %v5096
    %v5532 = vpack.c.b16 %v5112, %v5097
    %v5533 = vpack.c.b16 %v5113, %v5098
    %v5534 = vpack.c.b16 %v5114, %v5099
    %v5535 = vpack.c.b16 %v5115, %v5100
    %v5536 = vpack.c.b16 %v5116, %v5101
    %v5537 = vpack.c.b16 %v5117, %v5102
    %v5538 = vpack.c.b16 %v5118, %v5103
    %v5539 = vpack.c.b16 %v5119, %v5104
    %v5540 = vpack.c.b16 %v5120, %v5105
    %v5541 = vpack.c.b16 %v5121, %v5106
    %v5542 = vpack.c.b16 %v5122, %v5107
    %v5543 = vpack.c.b16 %v5123, %v5108
    %v5544 = vpack.c.b16 %v5124, %v5109
    %v5545 = vpack.c.b16 %v5140, %v5125
    %v5546 = vpack.c.b16 %v5141, %v5126
    %v5547 = vpack.c.b16 %v5142, %v5127
    %v5548 = vpack.c.b16 %v5143, %v5128
    %v5549 = vpack.c.b16 %v5144, %v5129
    %v5550 = vpack.c.b16 %v5145, %v5130
    %v5551 = vpack.c.b16 %v5146, %v5131
    %v5552 = vpack.c.b16 %v5147, %v5132
    %v5553 = vpack.c.b16 %v5148, %v5133
    %v5554 = vpack.c.b16 %v5149, %v5134
    %v5555 = vpack.c.b16 %v5150, %v5135
    %v5556 = vpack.c.b16 %v5151, %v5136
    %v5557 = vpack.c.b16 %v5152, %v5137
    %v5558 = vpack.c.b16 %v5153, %v5138
    %v5559 = vpack.c.b16 %v5154, %v5139
    %v5560 = vpack.c.b16 %v5170, %v5155
    %v5561 = vpack.c.b16 %v5171, %v5156
    %v5562 = vpack.c.b16 %v5172, %v5157
    %v5563 = vpack.c.b16 %v5173, %v5158
    %v5564 = vpack.c.b16 %v5174, %v5159
    %v5565 = vpack.c.b16 %v5175, %v5160
    %v5566 = vpack.c.b16 %v5176, %v5161
    %v5567 = vpack.c.b16 %v5177, %v5162
    %v5568 = vpack.c.b16 %v5178, %v5163
    %v5569 = vpack.c.b16 %v5179, %v5164
    %v5570 = vpack.c.b16 %v5180, %v5165
    %v5571 = vpack.c.b16 %v5181, %v5166
    %v5572 = vpack.c.b16 %v5182, %v5167
    %v5573 = vpack.c.b16 %v5183, %v5168
    %v5574 = vpack.c.b16 %v5184, %v5169
    %v5575 = vpack.c.b16 %v5200, %v5185
    %v5576 = vpack.c.b16 %v5201, %v5186
    %v5577 = vpack.c.b16 %v5202, %v5187
    %v5578 = vpack.c.b16 %v5203, %v5188
    %v5579 = vpack.c.b16 %v5204, %v5189
    %v5580 = vpack.c.b16 %v5205, %v5190
    %v5581 = vpack.c.b16 %v5206, %v5191
    %v5582 = vpack.c.b16 %v5207, %v5192
    %v5583 = vpack.c.b16 %v5208, %v5193
    %v5584 = vpack.c.b16 %v5209, %v5194
    %v5585 = vpack.c.b16 %v5210, %v5195
    %v5586 = vpack.c.b16 %v5211, %v5196
    %v5587 = vpack.c.b16 %v5212, %v5197
    %v5588 = vpack.c.b16 %v5213, %v5198
    %v5589 = vpack.c.b16 %v5214, %v5199
    %v5590 = vpack.c.b16 %v5230, %v5215
    %v5591 = vpack.c.b16 %v5231, %v5216
    %v5592 = vpack.c.b16 %v5232, %v5217
    %v5593 = vpack.c.b16 %v5233, %v5218
    %v5594 = vpack.c.b16 %v5234, %v5219
    %v5595 = vpack.c.b16 %v5235, %v5220
    %v5596 = vpack.c.b16 %v5236, %v5221
    %v5597 = vpack.c.b16 %v5237, %v5222
    %v5598 = vpack.c.b16 %v5238, %v5223
    %v5599 = vpack.c.b16 %v5239, %v5224
    %v5600 = vpack.c.b16 %v5240, %v5225
    %v5601 = vpack.c.b16 %v5241, %v5226
    %v5602 = vpack.c.b16 %v5242, %v5227
    %v5603 = vpack.c.b16 %v5243, %v5228
    %v5604 = vpack.c.b16 %v5244, %v5229
    %5965 = vmatprep.subr.bf16.mxu0 %v5246
    %5966 = vmatpush1.bf16.msra.mxu0 %v5245
    %5967 = vmatprep.subr.bf16.mxu0 %v5261
    %5968 = vmatpush1.bf16.msra.mxu0 %v5260
    %5969 = vmatprep.subr.bf16.mxu0 %v5276
    %5970 = vmatpush1.bf16.msra.mxu0 %v5275
    %5971 = vmatprep.subr.bf16.mxu0 %v5291
    %5972 = vmatpush1.bf16.msra.mxu0 %v5290
    %5973 = vmatprep.subr.bf16.mxu0 %v5306
    %5974 = vmatpush1.bf16.msra.mxu0 %v5305
    %5975 = vmatprep.subr.bf16.mxu0 %v5321
    %5976 = vmatpush1.bf16.msra.mxu0 %v5320
    %5977 = vmatprep.subr.bf16.mxu0 %v5336
    %5978 = vmatpush1.bf16.msra.mxu0 %v5335
    %5979 = vmatprep.subr.bf16.mxu0 %v5351
    %5980 = vmatpush1.bf16.msra.mxu0 %v5350
    %5981 = vmatprep.subr.bf16.mxu0 %v5366
    %5982 = vmatpush1.bf16.msra.mxu0 %v5365
    %5983 = vmatprep.subr.bf16.mxu0 %v5381
    %5984 = vmatpush1.bf16.msra.mxu0 %v5380
    %5985 = vmatprep.subr.bf16.mxu0 %v5396
    %5986 = vmatpush1.bf16.msra.mxu0 %v5395
    %5987 = vmatprep.subr.bf16.mxu0 %v5411
    %5988 = vmatpush1.bf16.msra.mxu0 %v5410
    %5989 = vmatprep.subr.bf16.mxu0 %v5426
    %5990 = vmatpush1.bf16.msra.mxu0 %v5425
    %5991 = vmatprep.subr.bf16.mxu0 %v5441
    %5992 = vmatpush1.bf16.msra.mxu0 %v5440
    %5993 = vmatprep.subr.bf16.mxu0 %v5456
    %5994 = vmatpush1.bf16.msra.mxu0 %v5455
    %5995 = vmatprep.subr.bf16.mxu0 %v5471
    %5996 = vmatpush1.bf16.msra.mxu0 %v5470
    %5997 = vmatprep.mubr.bf16.mxu0 %v4062
    %5998 = vmatmul.mubr.bf16.gmra.mrb[0].mxu0 %v4061
    %v5999 = vpop.f32.mrb[0].mxu0
    %v6000 = vadd.f32 %v4069, %v5999
    %v6001 = vpop.f32.mrb[0].mxu0
    %v6002 = vadd.f32 %v4073, %v6001
    %v6003 = vpop.f32.mrb[0].mxu0
    %v6004 = vpop.f32.mrb[0].mxu0
    %6005 = vdwg.mxu0
    %6006 = vmatprep.subr.bf16.mxu0 %v5486
    %6007 = vmatpush1.bf16.msra.mxu0 %v5485
    %6008 = vmatprep.subr.bf16.mxu0 %v5501
    %6009 = vmatpush1.bf16.msra.mxu0 %v5500
    %6010 = vmatprep.subr.bf16.mxu0 %v5516
    %6011 = vmatpush1.bf16.msra.mxu0 %v5515
    %6012 = vmatprep.subr.bf16.mxu0 %v5531
    %6013 = vmatpush1.bf16.msra.mxu0 %v5530
    %6014 = vmatprep.subr.bf16.mxu0 %v5546
    %6015 = vmatpush1.bf16.msra.mxu0 %v5545
    %6016 = vmatprep.subr.bf16.mxu0 %v5561
    %6017 = vmatpush1.bf16.msra.mxu0 %v5560
    %6018 = vmatprep.subr.bf16.mxu0 %v5576
    %6019 = vmatpush1.bf16.msra.mxu0 %v5575
    %6020 = vmatprep.subr.bf16.mxu0 %v5591
    %6021 = vmatpush1.bf16.msra.mxu0 %v5590
    %6022 = vmatprep.subr.bf16.mxu0 0
    %6023 = vmatpush1.bf16.msra.mxu0 0
    %6024 = vmatprep.subr.bf16.mxu0 0
    %6025 = vmatpush1.bf16.msra.mxu0 0
    %6026 = vmatprep.subr.bf16.mxu0 0
    %6027 = vmatpush1.bf16.msra.mxu0 0
    %6028 = vmatprep.subr.bf16.mxu0 0
    %6029 = vmatpush1.bf16.msra.mxu0 0
    %6030 = vmatprep.subr.bf16.mxu0 0
    %6031 = vmatpush1.bf16.msra.mxu0 0
    %6032 = vmatprep.subr.bf16.mxu0 0
    %6033 = vmatpush1.bf16.msra.mxu0 0
    %6034 = vmatprep.subr.bf16.mxu0 0
    %6035 = vmatpush1.bf16.msra.mxu0 0
    %6036 = vmatprep.subr.bf16.mxu0 0
    %6037 = vmatpush1.bf16.msra.mxu0 0
    %6038 = vmatprep.mubr.bf16.mxu0 0
    %6039 = vmatmul.mubr.bf16.gmra.mrb[0].mxu0 %v4063
    %v6040 = vpop.f32.mrb[0].mxu0
    %v6041 = vadd.f32 %v6000, %v6040
    %v6042 = vpop.f32.mrb[0].mxu0
    %v6043 = vadd.f32 %v6002, %v6042
    %v6044 = vpop.f32.mrb[0].mxu0
    %v6045 = vpop.f32.mrb[0].mxu0
    %6046 = vdwg.mxu0
    %6047 = vmatprep.subr.bf16.mxu0 %v5248
    %6048 = vmatpush1.bf16.msra.mxu0 %v5247
    %6049 = vmatprep.subr.bf16.mxu0 %v5263
    %6050 = vmatpush1.bf16.msra.mxu0 %v5262
    %6051 = vmatprep.subr.bf16.mxu0 %v5278
    %6052 = vmatpush1.bf16.msra.mxu0 %v5277
    %6053 = vmatprep.subr.bf16.mxu0 %v5293
    %6054 = vmatpush1.bf16.msra.mxu0 %v5292
    %6055 = vmatprep.subr.bf16.mxu0 %v5308
    %6056 = vmatpush1.bf16.msra.mxu0 %v5307
    %6057 = vmatprep.subr.bf16.mxu0 %v5323
    %6058 = vmatpush1.bf16.msra.mxu0 %v5322
    %6059 = vmatprep.subr.bf16.mxu0 %v5338
    %6060 = vmatpush1.bf16.msra.mxu0 %v5337
    %6061 = vmatprep.subr.bf16.mxu0 %v5353
    %6062 = vmatpush1.bf16.msra.mxu0 %v5352
    %6063 = vmatprep.subr.bf16.mxu0 %v5368
    %6064 = vmatpush1.bf16.msra.mxu0 %v5367
    %6065 = vmatprep.subr.bf16.mxu0 %v5383
    %6066 = vmatpush1.bf16.msra.mxu0 %v5382
    %6067 = vmatprep.subr.bf16.mxu0 %v5398
    %6068 = vmatpush1.bf16.msra.mxu0 %v5397
    %6069 = vmatprep.subr.bf16.mxu0 %v5413
    %6070 = vmatpush1.bf16.msra.mxu0 %v5412
    %6071 = vmatprep.subr.bf16.mxu0 %v5428
    %6072 = vmatpush1.bf16.msra.mxu0 %v5427
    %6073 = vmatprep.subr.bf16.mxu0 %v5443
    %6074 = vmatpush1.bf16.msra.mxu0 %v5442
    %6075 = vmatprep.subr.bf16.mxu0 %v5458
    %6076 = vmatpush1.bf16.msra.mxu0 %v5457
    %6077 = vmatprep.subr.bf16.mxu0 %v5473
    %6078 = vmatpush1.bf16.msra.mxu0 %v5472
    %6079 = vmatprep.mubr.bf16.mxu0 %v4062
    %6080 = vmatmul.mubr.bf16.gmra.mrb[0].mxu0 %v4061
    %v6081 = vpop.f32.mrb[0].mxu0
    %v6082 = vadd.f32 %v4077, %v6081
    %v6083 = vpop.f32.mrb[0].mxu0
    %v6084 = vadd.f32 %v4081, %v6083
    %v6085 = vpop.f32.mrb[0].mxu0
    %v6086 = vpop.f32.mrb[0].mxu0
    %6087 = vdwg.mxu0
    %6088 = vmatprep.subr.bf16.mxu0 %v5488
    %6089 = vmatpush1.bf16.msra.mxu0 %v5487
    %6090 = vmatprep.subr.bf16.mxu0 %v5503
    %6091 = vmatpush1.bf16.msra.mxu0 %v5502
    %6092 = vmatprep.subr.bf16.mxu0 %v5518
    %6093 = vmatpush1.bf16.msra.mxu0 %v5517
    %6094 = vmatprep.subr.bf16.mxu0 %v5533
    %6095 = vmatpush1.bf16.msra.mxu0 %v5532
    %6096 = vmatprep.subr.bf16.mxu0 %v5548
    %6097 = vmatpush1.bf16.msra.mxu0 %v5547
    %6098 = vmatprep.subr.bf16.mxu0 %v5563
    %6099 = vmatpush1.bf16.msra.mxu0 %v5562
    %6100 = vmatprep.subr.bf16.mxu0 %v5578
    %6101 = vmatpush1.bf16.msra.mxu0 %v5577
    %6102 = vmatprep.subr.bf16.mxu0 %v5593
    %6103 = vmatpush1.bf16.msra.mxu0 %v5592
    %6104 = vmatprep.subr.bf16.mxu0 0
    %6105 = vmatpush1.bf16.msra.mxu0 0
    %6106 = vmatprep.subr.bf16.mxu0 0
    %6107 = vmatpush1.bf16.msra.mxu0 0
    %6108 = vmatprep.subr.bf16.mxu0 0
    %6109 = vmatpush1.bf16.msra.mxu0 0
    %6110 = vmatprep.subr.bf16.mxu0 0
    %6111 = vmatpush1.bf16.msra.mxu0 0
    %6112 = vmatprep.subr.bf16.mxu0 0
    %6113 = vmatpush1.bf16.msra.mxu0 0
    %6114 = vmatprep.subr.bf16.mxu0 0
    %6115 = vmatpush1.bf16.msra.mxu0 0
    %6116 = vmatprep.subr.bf16.mxu0 0
    %6117 = vmatpush1.bf16.msra.mxu0 0
    %6118 = vmatprep.subr.bf16.mxu0 0
    %6119 = vmatpush1.bf16.msra.mxu0 0
    %6120 = vmatprep.mubr.bf16.mxu0 0
    %6121 = vmatmul.mubr.bf16.gmra.mrb[0].mxu0 %v4063
    %v6122 = vpop.f32.mrb[0].mxu0
    %v6123 = vadd.f32 %v6082, %v6122
    %v6124 = vpop.f32.mrb[0].mxu0
    %v6125 = vadd.f32 %v6084, %v6124
    %v6126 = vpop.f32.mrb[0].mxu0
    %v6127 = vpop.f32.mrb[0].mxu0
    %6128 = vdwg.mxu0
    %6129 = vmatprep.subr.bf16.mxu0 %v5250
    %6130 = vmatpush1.bf16.msra.mxu0 %v5249
    %6131 = vmatprep.subr.bf16.mxu0 %v5265
    %6132 = vmatpush1.bf16.msra.mxu0 %v5264
    %6133 = vmatprep.subr.bf16.mxu0 %v5280
    %6134 = vmatpush1.bf16.msra.mxu0 %v5279
    %6135 = vmatprep.subr.bf16.mxu0 %v5295
    %6136 = vmatpush1.bf16.msra.mxu0 %v5294
    %6137 = vmatprep.subr.bf16.mxu0 %v5310
    %6138 = vmatpush1.bf16.msra.mxu0 %v5309
    %6139 = vmatprep.subr.bf16.mxu0 %v5325
    %6140 = vmatpush1.bf16.msra.mxu0 %v5324
    %6141 = vmatprep.subr.bf16.mxu0 %v5340
    %6142 = vmatpush1.bf16.msra.mxu0 %v5339
    %6143 = vmatprep.subr.bf16.mxu0 %v5355
    %6144 = vmatpush1.bf16.msra.mxu0 %v5354
    %6145 = vmatprep.subr.bf16.mxu0 %v5370
    %6146 = vmatpush1.bf16.msra.mxu0 %v5369
    %6147 = vmatprep.subr.bf16.mxu0 %v5385
    %6148 = vmatpush1.bf16.msra.mxu0 %v5384
    %6149 = vmatprep.subr.bf16.mxu0 %v5400
    %6150 = vmatpush1.bf16.msra.mxu0 %v5399
    %6151 = vmatprep.subr.bf16.mxu0 %v5415
    %6152 = vmatpush1.bf16.msra.mxu0 %v5414
    %6153 = vmatprep.subr.bf16.mxu0 %v5430
    %6154 = vmatpush1.bf16.msra.mxu0 %v5429
    %6155 = vmatprep.subr.bf16.mxu0 %v5445
    %6156 = vmatpush1.bf16.msra.mxu0 %v5444
    %6157 = vmatprep.subr.bf16.mxu0 %v5460
    %6158 = vmatpush1.bf16.msra.mxu0 %v5459
    %6159 = vmatprep.subr.bf16.mxu0 %v5475
    %6160 = vmatpush1.bf16.msra.mxu0 %v5474
    %6161 = vmatprep.mubr.bf16.mxu0 %v4062
    %6162 = vmatmul.mubr.bf16.gmra.mrb[0].mxu0 %v4061
    %v6163 = vpop.f32.mrb[0].mxu0
    %v6164 = vadd.f32 %v4085, %v6163
    %v6165 = vpop.f32.mrb[0].mxu0
    %v6166 = vadd.f32 %v4089, %v6165
    %v6167 = vpop.f32.mrb[0].mxu0
    %v6168 = vpop.f32.mrb[0].mxu0
    %6169 = vdwg.mxu0
    %6170 = vmatprep.subr.bf16.mxu0 %v5490
    %6171 = vmatpush1.bf16.msra.mxu0 %v5489
    %6172 = vmatprep.subr.bf16.mxu0 %v5505
    %6173 = vmatpush1.bf16.msra.mxu0 %v5504
    %6174 = vmatprep.subr.bf16.mxu0 %v5520
    %6175 = vmatpush1.bf16.msra.mxu0 %v5519
    %6176 = vmatprep.subr.bf16.mxu0 %v5535
    %6177 = vmatpush1.bf16.msra.mxu0 %v5534
    %6178 = vmatprep.subr.bf16.mxu0 %v5550
    %6179 = vmatpush1.bf16.msra.mxu0 %v5549
    %6180 = vmatprep.subr.bf16.mxu0 %v5565
    %6181 = vmatpush1.bf16.msra.mxu0 %v5564
    %6182 = vmatprep.subr.bf16.mxu0 %v5580
    %6183 = vmatpush1.bf16.msra.mxu0 %v5579
    %6184 = vmatprep.subr.bf16.mxu0 %v5595
    %6185 = vmatpush1.bf16.msra.mxu0 %v5594
    %6186 = vmatprep.subr.bf16.mxu0 0
    %6187 = vmatpush1.bf16.msra.mxu0 0
    %6188 = vmatprep.subr.bf16.mxu0 0
    %6189 = vmatpush1.bf16.msra.mxu0 0
    %6190 = vmatprep.subr.bf16.mxu0 0
    %6191 = vmatpush1.bf16.msra.mxu0 0
    %6192 = vmatprep.subr.bf16.mxu0 0
    %6193 = vmatpush1.bf16.msra.mxu0 0
    %6194 = vmatprep.subr.bf16.mxu0 0
    %6195 = vmatpush1.bf16.msra.mxu0 0
    %6196 = vmatprep.subr.bf16.mxu0 0
    %6197 = vmatpush1.bf16.msra.mxu0 0
    %6198 = vmatprep.subr.bf16.mxu0 0
    %6199 = vmatpush1.bf16.msra.mxu0 0
    %6200 = vmatprep.subr.bf16.mxu0 0
    %6201 = vmatpush1.bf16.msra.mxu0 0
    %6202 = vmatprep.mubr.bf16.mxu0 0
    %6203 = vmatmul.mubr.bf16.gmra.mrb[0].mxu0 %v4063
    %v6204 = vpop.f32.mrb[0].mxu0
    %v6205 = vadd.f32 %v6164, %v6204
    %v6206 = vpop.f32.mrb[0].mxu0
    %v6207 = vadd.f32 %v6166, %v6206
    %v6208 = vpop.f32.mrb[0].mxu0
    %v6209 = vpop.f32.mrb[0].mxu0
    %6210 = vdwg.mxu0
    %6211 = vmatprep.subr.bf16.mxu0 %v5252
    %6212 = vmatpush1.bf16.msra.mxu0 %v5251
    %6213 = vmatprep.subr.bf16.mxu0 %v5267
    %6214 = vmatpush1.bf16.msra.mxu0 %v5266
    %6215 = vmatprep.subr.bf16.mxu0 %v5282
    %6216 = vmatpush1.bf16.msra.mxu0 %v5281
    %6217 = vmatprep.subr.bf16.mxu0 %v5297
    %6218 = vmatpush1.bf16.msra.mxu0 %v5296
    %6219 = vmatprep.subr.bf16.mxu0 %v5312
    %6220 = vmatpush1.bf16.msra.mxu0 %v5311
    %6221 = vmatprep.subr.bf16.mxu0 %v5327
    %6222 = vmatpush1.bf16.msra.mxu0 %v5326
    %6223 = vmatprep.subr.bf16.mxu0 %v5342
    %6224 = vmatpush1.bf16.msra.mxu0 %v5341
    %6225 = vmatprep.subr.bf16.mxu0 %v5357
    %6226 = vmatpush1.bf16.msra.mxu0 %v5356
    %6227 = vmatprep.subr.bf16.mxu0 %v5372
    %6228 = vmatpush1.bf16.msra.mxu0 %v5371
    %6229 = vmatprep.subr.bf16.mxu0 %v5387
    %6230 = vmatpush1.bf16.msra.mxu0 %v5386
    %6231 = vmatprep.subr.bf16.mxu0 %v5402
    %6232 = vmatpush1.bf16.msra.mxu0 %v5401
    %6233 = vmatprep.subr.bf16.mxu0 %v5417
    %6234 = vmatpush1.bf16.msra.mxu0 %v5416
    %6235 = vmatprep.subr.bf16.mxu0 %v5432
    %6236 = vmatpush1.bf16.msra.mxu0 %v5431
    %6237 = vmatprep.subr.bf16.mxu0 %v5447
    %6238 = vmatpush1.bf16.msra.mxu0 %v5446
    %6239 = vmatprep.subr.bf16.mxu0 %v5462
    %6240 = vmatpush1.bf16.msra.mxu0 %v5461
    %6241 = vmatprep.subr.bf16.mxu0 %v5477
    %6242 = vmatpush1.bf16.msra.mxu0 %v5476
    %6243 = vmatprep.mubr.bf16.mxu0 %v4062
    %6244 = vmatmul.mubr.bf16.gmra.mrb[0].mxu0 %v4061
    %v6245 = vpop.f32.mrb[0].mxu0
    %v6246 = vadd.f32 %v4093, %v6245
    %v6247 = vpop.f32.mrb[0].mxu0
    %v6248 = vadd.f32 %v4097, %v6247
    %v6249 = vpop.f32.mrb[0].mxu0
    %v6250 = vpop.f32.mrb[0].mxu0
    %6251 = vdwg.mxu0
    %6252 = vmatprep.subr.bf16.mxu0 %v5492
    %6253 = vmatpush1.bf16.msra.mxu0 %v5491
    %6254 = vmatprep.subr.bf16.mxu0 %v5507
    %6255 = vmatpush1.bf16.msra.mxu0 %v5506
    %6256 = vmatprep.subr.bf16.mxu0 %v5522
    %6257 = vmatpush1.bf16.msra.mxu0 %v5521
    %6258 = vmatprep.subr.bf16.mxu0 %v5537
    %6259 = vmatpush1.bf16.msra.mxu0 %v5536
    %6260 = vmatprep.subr.bf16.mxu0 %v5552
    %6261 = vmatpush1.bf16.msra.mxu0 %v5551
    %6262 = vmatprep.subr.bf16.mxu0 %v5567
    %6263 = vmatpush1.bf16.msra.mxu0 %v5566
    %6264 = vmatprep.subr.bf16.mxu0 %v5582
    %6265 = vmatpush1.bf16.msra.mxu0 %v5581
    %6266 = vmatprep.subr.bf16.mxu0 %v5597
    %6267 = vmatpush1.bf16.msra.mxu0 %v5596
    %6268 = vmatprep.subr.bf16.mxu0 0
    %6269 = vmatpush1.bf16.msra.mxu0 0
    %6270 = vmatprep.subr.bf16.mxu0 0
    %6271 = vmatpush1.bf16.msra.mxu0 0
    %6272 = vmatprep.subr.bf16.mxu0 0
    %6273 = vmatpush1.bf16.msra.mxu0 0
    %6274 = vmatprep.subr.bf16.mxu0 0
    %6275 = vmatpush1.bf16.msra.mxu0 0
    %6276 = vmatprep.subr.bf16.mxu0 0
    %6277 = vmatpush1.bf16.msra.mxu0 0
    %6278 = vmatprep.subr.bf16.mxu0 0
    %6279 = vmatpush1.bf16.msra.mxu0 0
    %6280 = vmatprep.subr.bf16.mxu0 0
    %6281 = vmatpush1.bf16.msra.mxu0 0
    %6282 = vmatprep.subr.bf16.mxu0 0
    %6283 = vmatpush1.bf16.msra.mxu0 0
    %6284 = vmatprep.mubr.bf16.mxu0 0
    %6285 = vmatmul.mubr.bf16.gmra.mrb[0].mxu0 %v4063
    %v6286 = vpop.f32.mrb[0].mxu0
    %v6287 = vadd.f32 %v6246, %v6286
    %v6288 = vpop.f32.mrb[0].mxu0
    %v6289 = vadd.f32 %v6248, %v6288
    %v6290 = vpop.f32.mrb[0].mxu0
    %v6291 = vpop.f32.mrb[0].mxu0
    %6292 = vdwg.mxu0
    %6293 = vmatprep.subr.bf16.mxu0 %v5254
    %6294 = vmatpush1.bf16.msra.mxu0 %v5253
    %6295 = vmatprep.subr.bf16.mxu0 %v5269
    %6296 = vmatpush1.bf16.msra.mxu0 %v5268
    %6297 = vmatprep.subr.bf16.mxu0 %v5284
    %6298 = vmatpush1.bf16.msra.mxu0 %v5283
    %6299 = vmatprep.subr.bf16.mxu0 %v5299
    %6300 = vmatpush1.bf16.msra.mxu0 %v5298
    %6301 = vmatprep.subr.bf16.mxu0 %v5314
    %6302 = vmatpush1.bf16.msra.mxu0 %v5313
    %6303 = vmatprep.subr.bf16.mxu0 %v5329
    %6304 = vmatpush1.bf16.msra.mxu0 %v5328
    %6305 = vmatprep.subr.bf16.mxu0 %v5344
    %6306 = vmatpush1.bf16.msra.mxu0 %v5343
    %6307 = vmatprep.subr.bf16.mxu0 %v5359
    %6308 = vmatpush1.bf16.msra.mxu0 %v5358
    %6309 = vmatprep.subr.bf16.mxu0 %v5374
    %6310 = vmatpush1.bf16.msra.mxu0 %v5373
    %6311 = vmatprep.subr.bf16.mxu0 %v5389
    %6312 = vmatpush1.bf16.msra.mxu0 %v5388
    %6313 = vmatprep.subr.bf16.mxu0 %v5404
    %6314 = vmatpush1.bf16.msra.mxu0 %v5403
    %6315 = vmatprep.subr.bf16.mxu0 %v5419
    %6316 = vmatpush1.bf16.msra.mxu0 %v5418
    %6317 = vmatprep.subr.bf16.mxu0 %v5434
    %6318 = vmatpush1.bf16.msra.mxu0 %v5433
    %6319 = vmatprep.subr.bf16.mxu0 %v5449
    %6320 = vmatpush1.bf16.msra.mxu0 %v5448
    %6321 = vmatprep.subr.bf16.mxu0 %v5464
    %6322 = vmatpush1.bf16.msra.mxu0 %v5463
    %6323 = vmatprep.subr.bf16.mxu0 %v5479
    %6324 = vmatpush1.bf16.msra.mxu0 %v5478
    %6325 = vmatprep.mubr.bf16.mxu0 %v4062
    %6326 = vmatmul.mubr.bf16.gmra.mrb[0].mxu0 %v4061
    %v6327 = vpop.f32.mrb[0].mxu0
    %v6328 = vadd.f32 %v4101, %v6327
    %v6329 = vpop.f32.mrb[0].mxu0
    %v6330 = vadd.f32 %v4105, %v6329
    %v6331 = vpop.f32.mrb[0].mxu0
    %v6332 = vpop.f32.mrb[0].mxu0
    %6333 = vdwg.mxu0
    %6334 = vmatprep.subr.bf16.mxu0 %v5494
    %6335 = vmatpush1.bf16.msra.mxu0 %v5493
    %6336 = vmatprep.subr.bf16.mxu0 %v5509
    %6337 = vmatpush1.bf16.msra.mxu0 %v5508
    %6338 = vmatprep.subr.bf16.mxu0 %v5524
    %6339 = vmatpush1.bf16.msra.mxu0 %v5523
    %6340 = vmatprep.subr.bf16.mxu0 %v5539
    %6341 = vmatpush1.bf16.msra.mxu0 %v5538
    %6342 = vmatprep.subr.bf16.mxu0 %v5554
    %6343 = vmatpush1.bf16.msra.mxu0 %v5553
    %6344 = vmatprep.subr.bf16.mxu0 %v5569
    %6345 = vmatpush1.bf16.msra.mxu0 %v5568
    %6346 = vmatprep.subr.bf16.mxu0 %v5584
    %6347 = vmatpush1.bf16.msra.mxu0 %v5583
    %6348 = vmatprep.subr.bf16.mxu0 %v5599
    %6349 = vmatpush1.bf16.msra.mxu0 %v5598
    %6350 = vmatprep.subr.bf16.mxu0 0
    %6351 = vmatpush1.bf16.msra.mxu0 0
    %6352 = vmatprep.subr.bf16.mxu0 0
    %6353 = vmatpush1.bf16.msra.mxu0 0
    %6354 = vmatprep.subr.bf16.mxu0 0
    %6355 = vmatpush1.bf16.msra.mxu0 0
    %6356 = vmatprep.subr.bf16.mxu0 0
    %6357 = vmatpush1.bf16.msra.mxu0 0
    %6358 = vmatprep.subr.bf16.mxu0 0
    %6359 = vmatpush1.bf16.msra.mxu0 0
    %6360 = vmatprep.subr.bf16.mxu0 0
    %6361 = vmatpush1.bf16.msra.mxu0 0
    %6362 = vmatprep.subr.bf16.mxu0 0
    %6363 = vmatpush1.bf16.msra.mxu0 0
    %6364 = vmatprep.subr.bf16.mxu0 0
    %6365 = vmatpush1.bf16.msra.mxu0 0
    %6366 = vmatprep.mubr.bf16.mxu0 0
    %6367 = vmatmul.mubr.bf16.gmra.mrb[0].mxu0 %v4063
    %v6368 = vpop.f32.mrb[0].mxu0
    %v6369 = vadd.f32 %v6328, %v6368
    %v6370 = vpop.f32.mrb[0].mxu0
    %v6371 = vadd.f32 %v6330, %v6370
    %v6372 = vpop.f32.mrb[0].mxu0
    %v6373 = vpop.f32.mrb[0].mxu0
    %6374 = vdwg.mxu0
    %6375 = vmatprep.subr.bf16.mxu0 %v5256
    %6376 = vmatpush1.bf16.msra.mxu0 %v5255
    %6377 = vmatprep.subr.bf16.mxu0 %v5271
    %6378 = vmatpush1.bf16.msra.mxu0 %v5270
    %6379 = vmatprep.subr.bf16.mxu0 %v5286
    %6380 = vmatpush1.bf16.msra.mxu0 %v5285
    %6381 = vmatprep.subr.bf16.mxu0 %v5301
    %6382 = vmatpush1.bf16.msra.mxu0 %v5300
    %6383 = vmatprep.subr.bf16.mxu0 %v5316
    %6384 = vmatpush1.bf16.msra.mxu0 %v5315
    %6385 = vmatprep.subr.bf16.mxu0 %v5331
    %6386 = vmatpush1.bf16.msra.mxu0 %v5330
    %6387 = vmatprep.subr.bf16.mxu0 %v5346
    %6388 = vmatpush1.bf16.msra.mxu0 %v5345
    %6389 = vmatprep.subr.bf16.mxu0 %v5361
    %6390 = vmatpush1.bf16.msra.mxu0 %v5360
    %6391 = vmatprep.subr.bf16.mxu0 %v5376
    %6392 = vmatpush1.bf16.msra.mxu0 %v5375
    %6393 = vmatprep.subr.bf16.mxu0 %v5391
    %6394 = vmatpush1.bf16.msra.mxu0 %v5390
    %6395 = vmatprep.subr.bf16.mxu0 %v5406
    %6396 = vmatpush1.bf16.msra.mxu0 %v5405
    %6397 = vmatprep.subr.bf16.mxu0 %v5421
    %6398 = vmatpush1.bf16.msra.mxu0 %v5420
    %6399 = vmatprep.subr.bf16.mxu0 %v5436
    %6400 = vmatpush1.bf16.msra.mxu0 %v5435
    %6401 = vmatprep.subr.bf16.mxu0 %v5451
    %6402 = vmatpush1.bf16.msra.mxu0 %v5450
    %6403 = vmatprep.subr.bf16.mxu0 %v5466
    %6404 = vmatpush1.bf16.msra.mxu0 %v5465
    %6405 = vmatprep.subr.bf16.mxu0 %v5481
    %6406 = vmatpush1.bf16.msra.mxu0 %v5480
    %6407 = vmatprep.mubr.bf16.mxu0 %v4062
    %6408 = vmatmul.mubr.bf16.gmra.mrb[0].mxu0 %v4061
    %v6409 = vpop.f32.mrb[0].mxu0
    %v6410 = vadd.f32 %v4109, %v6409
    %v6411 = vpop.f32.mrb[0].mxu0
    %v6412 = vadd.f32 %v4113, %v6411
    %v6413 = vpop.f32.mrb[0].mxu0
    %v6414 = vpop.f32.mrb[0].mxu0
    %6415 = vdwg.mxu0
    %6416 = vmatprep.subr.bf16.mxu0 %v5496
    %6417 = vmatpush1.bf16.msra.mxu0 %v5495
    %6418 = vmatprep.subr.bf16.mxu0 %v5511
    %6419 = vmatpush1.bf16.msra.mxu0 %v5510
    %6420 = vmatprep.subr.bf16.mxu0 %v5526
    %6421 = vmatpush1.bf16.msra.mxu0 %v5525
    %6422 = vmatprep.subr.bf16.mxu0 %v5541
    %6423 = vmatpush1.bf16.msra.mxu0 %v5540
    %6424 = vmatprep.subr.bf16.mxu0 %v5556
    %6425 = vmatpush1.bf16.msra.mxu0 %v5555
    %6426 = vmatprep.subr.bf16.mxu0 %v5571
    %6427 = vmatpush1.bf16.msra.mxu0 %v5570
    %6428 = vmatprep.subr.bf16.mxu0 %v5586
    %6429 = vmatpush1.bf16.msra.mxu0 %v5585
    %6430 = vmatprep.subr.bf16.mxu0 %v5601
    %6431 = vmatpush1.bf16.msra.mxu0 %v5600
    %6432 = vmatprep.subr.bf16.mxu0 0
    %6433 = vmatpush1.bf16.msra.mxu0 0
    %6434 = vmatprep.subr.bf16.mxu0 0
    %6435 = vmatpush1.bf16.msra.mxu0 0
    %6436 = vmatprep.subr.bf16.mxu0 0
    %6437 = vmatpush1.bf16.msra.mxu0 0
    %6438 = vmatprep.subr.bf16.mxu0 0
    %6439 = vmatpush1.bf16.msra.mxu0 0
    %6440 = vmatprep.subr.bf16.mxu0 0
    %6441 = vmatpush1.bf16.msra.mxu0 0
    %6442 = vmatprep.subr.bf16.mxu0 0
    %6443 = vmatpush1.bf16.msra.mxu0 0
    %6444 = vmatprep.subr.bf16.mxu0 0
    %6445 = vmatpush1.bf16.msra.mxu0 0
    %6446 = vmatprep.subr.bf16.mxu0 0
    %6447 = vmatpush1.bf16.msra.mxu0 0
    %6448 = vmatprep.mubr.bf16.mxu0 0
    %6449 = vmatmul.mubr.bf16.gmra.mrb[0].mxu0 %v4063
    %v6450 = vpop.f32.mrb[0].mxu0
    %v6451 = vadd.f32 %v6410, %v6450
    %v6452 = vpop.f32.mrb[0].mxu0
    %v6453 = vadd.f32 %v6412, %v6452
    %v6454 = vpop.f32.mrb[0].mxu0
    %v6455 = vpop.f32.mrb[0].mxu0
    %6456 = vdwg.mxu0
    %6457 = vmatprep.subr.bf16.mxu0 %v5258
    %6458 = vmatpush1.bf16.msra.mxu0 %v5257
    %6459 = vmatprep.subr.bf16.mxu0 %v5273
    %6460 = vmatpush1.bf16.msra.mxu0 %v5272
    %6461 = vmatprep.subr.bf16.mxu0 %v5288
    %6462 = vmatpush1.bf16.msra.mxu0 %v5287
    %6463 = vmatprep.subr.bf16.mxu0 %v5303
    %6464 = vmatpush1.bf16.msra.mxu0 %v5302
    %6465 = vmatprep.subr.bf16.mxu0 %v5318
    %6466 = vmatpush1.bf16.msra.mxu0 %v5317
    %6467 = vmatprep.subr.bf16.mxu0 %v5333
    %6468 = vmatpush1.bf16.msra.mxu0 %v5332
    %6469 = vmatprep.subr.bf16.mxu0 %v5348
    %6470 = vmatpush1.bf16.msra.mxu0 %v5347
    %6471 = vmatprep.subr.bf16.mxu0 %v5363
    %6472 = vmatpush1.bf16.msra.mxu0 %v5362
    %6473 = vmatprep.subr.bf16.mxu0 %v5378
    %6474 = vmatpush1.bf16.msra.mxu0 %v5377
    %6475 = vmatprep.subr.bf16.mxu0 %v5393
    %6476 = vmatpush1.bf16.msra.mxu0 %v5392
    %6477 = vmatprep.subr.bf16.mxu0 %v5408
    %6478 = vmatpush1.bf16.msra.mxu0 %v5407
    %6479 = vmatprep.subr.bf16.mxu0 %v5423
    %6480 = vmatpush1.bf16.msra.mxu0 %v5422
    %6481 = vmatprep.subr.bf16.mxu0 %v5438
    %6482 = vmatpush1.bf16.msra.mxu0 %v5437
    %6483 = vmatprep.subr.bf16.mxu0 %v5453
    %6484 = vmatpush1.bf16.msra.mxu0 %v5452
    %6485 = vmatprep.subr.bf16.mxu0 %v5468
    %6486 = vmatpush1.bf16.msra.mxu0 %v5467
    %6487 = vmatprep.subr.bf16.mxu0 %v5483
    %6488 = vmatpush1.bf16.msra.mxu0 %v5482
    %6489 = vmatprep.mubr.bf16.mxu0 %v4062
    %6490 = vmatmul.mubr.bf16.gmra.mrb[0].mxu0 %v4061
    %v6491 = vpop.f32.mrb[0].mxu0
    %v6492 = vadd.f32 %v4117, %v6491
    %v6493 = vpop.f32.mrb[0].mxu0
    %v6494 = vadd.f32 %v4121, %v6493
    %v6495 = vpop.f32.mrb[0].mxu0
    %v6496 = vpop.f32.mrb[0].mxu0
    %6497 = vdwg.mxu0
    %6498 = vmatprep.subr.bf16.mxu0 %v5498
    %6499 = vmatpush1.bf16.msra.mxu0 %v5497
    %6500 = vmatprep.subr.bf16.mxu0 %v5513
    %6501 = vmatpush1.bf16.msra.mxu0 %v5512
    %6502 = vmatprep.subr.bf16.mxu0 %v5528
    %6503 = vmatpush1.bf16.msra.mxu0 %v5527
    %6504 = vmatprep.subr.bf16.mxu0 %v5543
    %6505 = vmatpush1.bf16.msra.mxu0 %v5542
    %6506 = vmatprep.subr.bf16.mxu0 %v5558
    %6507 = vmatpush1.bf16.msra.mxu0 %v5557
    %6508 = vmatprep.subr.bf16.mxu0 %v5573
    %6509 = vmatpush1.bf16.msra.mxu0 %v5572
    %6510 = vmatprep.subr.bf16.mxu0 %v5588
    %6511 = vmatpush1.bf16.msra.mxu0 %v5587
    %6512 = vmatprep.subr.bf16.mxu0 %v5603
    %6513 = vmatpush1.bf16.msra.mxu0 %v5602
    %6514 = vmatprep.subr.bf16.mxu0 0
    %6515 = vmatpush1.bf16.msra.mxu0 0
    %6516 = vmatprep.subr.bf16.mxu0 0
    %6517 = vmatpush1.bf16.msra.mxu0 0
    %6518 = vmatprep.subr.bf16.mxu0 0
    %6519 = vmatpush1.bf16.msra.mxu0 0
    %6520 = vmatprep.subr.bf16.mxu0 0
    %6521 = vmatpush1.bf16.msra.mxu0 0
    %6522 = vmatprep.subr.bf16.mxu0 0
    %6523 = vmatpush1.bf16.msra.mxu0 0
    %6524 = vmatprep.subr.bf16.mxu0 0
    %6525 = vmatpush1.bf16.msra.mxu0 0
    %6526 = vmatprep.subr.bf16.mxu0 0
    %6527 = vmatpush1.bf16.msra.mxu0 0
    %6528 = vmatprep.subr.bf16.mxu0 0
    %6529 = vmatpush1.bf16.msra.mxu0 0
    %6530 = vmatprep.mubr.bf16.mxu0 0
    %6531 = vmatmul.mubr.bf16.gmra.mrb[0].mxu0 %v4063
    %v6532 = vpop.f32.mrb[0].mxu0
    %v6533 = vadd.f32 %v6492, %v6532
    %v6534 = vpop.f32.mrb[0].mxu0
    %v6535 = vadd.f32 %v6494, %v6534
    %v6536 = vpop.f32.mrb[0].mxu0
    %v6537 = vpop.f32.mrb[0].mxu0
    %6538 = vdwg.mxu0
    %6539 = vmatprep.subr.bf16.mxu0 0
    %6540 = vmatpush1.bf16.msra.mxu0 %v5259
    %6541 = vmatprep.subr.bf16.mxu0 0
    %6542 = vmatpush1.bf16.msra.mxu0 %v5274
    %6543 = vmatprep.subr.bf16.mxu0 0
    %6544 = vmatpush1.bf16.msra.mxu0 %v5289
    %6545 = vmatprep.subr.bf16.mxu0 0
    %6546 = vmatpush1.bf16.msra.mxu0 %v5304
    %6547 = vmatprep.subr.bf16.mxu0 0
    %6548 = vmatpush1.bf16.msra.mxu0 %v5319
    %6549 = vmatprep.subr.bf16.mxu0 0
    %6550 = vmatpush1.bf16.msra.mxu0 %v5334
    %6551 = vmatprep.subr.bf16.mxu0 0
    %6552 = vmatpush1.bf16.msra.mxu0 %v5349
    %6553 = vmatprep.subr.bf16.mxu0 0
    %6554 = vmatpush1.bf16.msra.mxu0 %v5364
    %6555 = vmatprep.subr.bf16.mxu0 0
    %6556 = vmatpush1.bf16.msra.mxu0 %v5379
    %6557 = vmatprep.subr.bf16.mxu0 0
    %6558 = vmatpush1.bf16.msra.mxu0 %v5394
    %6559 = vmatprep.subr.bf16.mxu0 0
    %6560 = vmatpush1.bf16.msra.mxu0 %v5409
    %6561 = vmatprep.subr.bf16.mxu0 0
    %6562 = vmatpush1.bf16.msra.mxu0 %v5424
    %6563 = vmatprep.subr.bf16.mxu0 0
    %6564 = vmatpush1.bf16.msra.mxu0 %v5439
    %6565 = vmatprep.subr.bf16.mxu0 0
    %6566 = vmatpush1.bf16.msra.mxu0 %v5454
    %6567 = vmatprep.subr.bf16.mxu0 0
    %6568 = vmatpush1.bf16.msra.mxu0 %v5469
    %6569 = vmatprep.subr.bf16.mxu0 0
    %6570 = vmatpush1.bf16.msra.mxu0 %v5484
    %6571 = vmatprep.mubr.bf16.mxu0 %v4062
    %6572 = vmatmul.mubr.bf16.gmra.mrb[0].mxu0 %v4061
    %v6573 = vpop.f32.mrb[0].mxu0
    %v6574 = vadd.f32 %v4125, %v6573
    %v6575 = vpop.f32.mrb[0].mxu0
    %v6576 = vpop.f32.mrb[0].mxu0
    %v6577 = vpop.f32.mrb[0].mxu0
    %6578 = vdwg.mxu0
    %6579 = vmatprep.subr.bf16.mxu0 0
    %6580 = vmatpush1.bf16.msra.mxu0 %v5499
    %6581 = vmatprep.subr.bf16.mxu0 0
    %6582 = vmatpush1.bf16.msra.mxu0 %v5514
    %6583 = vmatprep.subr.bf16.mxu0 0
    %6584 = vmatpush1.bf16.msra.mxu0 %v5529
    %6585 = vmatprep.subr.bf16.mxu0 0
    %6586 = vmatpush1.bf16.msra.mxu0 %v5544
    %6587 = vmatprep.subr.bf16.mxu0 0
    %6588 = vmatpush1.bf16.msra.mxu0 %v5559
    %6589 = vmatprep.subr.bf16.mxu0 0
    %6590 = vmatpush1.bf16.msra.mxu0 %v5574
    %6591 = vmatprep.subr.bf16.mxu0 0
    %6592 = vmatpush1.bf16.msra.mxu0 %v5589
    %6593 = vmatprep.subr.bf16.mxu0 0
    %6594 = vmatpush1.bf16.msra.mxu0 %v5604
    %6595 = vmatprep.subr.bf16.mxu0 0
    %6596 = vmatpush1.bf16.msra.mxu0 0
    %6597 = vmatprep.subr.bf16.mxu0 0
    %6598 = vmatpush1.bf16.msra.mxu0 0
    %6599 = vmatprep.subr.bf16.mxu0 0
    %6600 = vmatpush1.bf16.msra.mxu0 0
    %6601 = vmatprep.subr.bf16.mxu0 0
    %6602 = vmatpush1.bf16.msra.mxu0 0
    %6603 = vmatprep.subr.bf16.mxu0 0
    %6604 = vmatpush1.bf16.msra.mxu0 0
    %6605 = vmatprep.subr.bf16.mxu0 0
    %6606 = vmatpush1.bf16.msra.mxu0 0
    %6607 = vmatprep.subr.bf16.mxu0 0
    %6608 = vmatpush1.bf16.msra.mxu0 0
    %6609 = vmatprep.subr.bf16.mxu0 0
    %6610 = vmatpush1.bf16.msra.mxu0 0
    %6611 = vmatprep.mubr.bf16.mxu0 0
    %6612 = vmatmul.mubr.bf16.gmra.mrb[0].mxu0 %v4063
    %v6613 = vpop.f32.mrb[0].mxu0
    %v6614 = vadd.f32 %v6574, %v6613
    %v6615 = vpop.f32.mrb[0].mxu0
    %v6616 = vpop.f32.mrb[0].mxu0
    %v6617 = vpop.f32.mrb[0].mxu0
    %6618 = vdwg.mxu0
    %v6619 = vmax.f32 %v6041, 0.0
    %v6620 = vmax.f32 %v6043, 0.0
    %v6621 = vmax.f32 %v6123, 0.0
    %v6622 = vmax.f32 %v6125, 0.0
    %v6623 = vmax.f32 %v6205, 0.0
    %v6624 = vmax.f32 %v6207, 0.0
    %v6625 = vmax.f32 %v6287, 0.0
    %v6626 = vmax.f32 %v6289, 0.0
    %v6627 = vmax.f32 %v6369, 0.0
    %v6628 = vmax.f32 %v6371, 0.0
    %v6629 = vmax.f32 %v6451, 0.0
    %v6630 = vmax.f32 %v6453, 0.0
    %v6631 = vpack.c.bf16 %v6619, %v6619
    %v6632 = vpack.c.bf16 %v6620, %v6620
    %v6633 = vpack.c.bf16 %v6621, %v6621
    %v6634 = vpack.c.bf16 %v6622, %v6622
    %v6635 = vpack.c.bf16 %v6623, %v6623
    %v6636 = vpack.c.bf16 %v6624, %v6624
    %v6637 = vpack.c.bf16 %v6625, %v6625
    %v6638 = vpack.c.bf16 %v6626, %v6626
    %v6639 = vpack.c.bf16 %v6627, %v6627
    %v6640 = vpack.c.bf16 %v6628, %v6628
    %v6641 = vpack.c.bf16 %v6629, %v6629
    %v6642 = vpack.c.bf16 %v6630, %v6630
    %v6644 = vlaneseq
    %v6645 = vshrl.u32 %v6644, 7
    %v6646 = vsub.s32 0, %v6645
    %v6647 = vrot.slane %v1511, %v6646
    %v6648 = vlaneseq
    %v6649 = vshrl.u32 %v6648, 7
    %v6650 = vsub.s32 1, %v6649
    %v6651 = vrot.slane %v1511, %v6650
    %v6652 = vlaneseq
    %v6653 = vshrl.u32 %v6652, 7
    %v6654 = vsub.s32 2, %v6653
    %v6655 = vrot.slane %v1511, %v6654
    %v7043 = vunpack.c.l.b16 %v1047
    %v7044 = vunpack.c.h.b16 %v1047
    %v7045 = vunpack.c.l.b16 %v1048
    %v7046 = vunpack.c.l.b16 %v1049
    %v7047 = vunpack.c.h.b16 %v1049
    %v7048 = vunpack.c.l.b16 %v1050
    %v7049 = vunpack.c.l.b16 %v1051
    %v7050 = vunpack.c.h.b16 %v1051
    %v7051 = vunpack.c.l.b16 %v1052
    %v7052 = vunpack.c.l.b16 %v1053
    %v7053 = vunpack.c.h.b16 %v1053
    %v7054 = vunpack.c.l.b16 %v1054
    %v7055 = vunpack.c.l.b16 %v1055
    %v7056 = vunpack.c.h.b16 %v1055
    %v7057 = vunpack.c.l.b16 %v1056
    %v7058 = vunpack.c.l.b16 %v1057
    %v7059 = vunpack.c.h.b16 %v1057
    %v7060 = vunpack.c.l.b16 %v1058
    %v7061 = vunpack.c.l.b16 %v1059
    %v7062 = vunpack.c.h.b16 %v1059
    %v7063 = vunpack.c.l.b16 %v1060
    %v7064 = vunpack.c.l.b16 %v1061
    %v7065 = vunpack.c.h.b16 %v1061
    %v7066 = vunpack.c.l.b16 %v1062
    %v7067 = vunpack.c.l.b16 %v1063
    %v7068 = vunpack.c.h.b16 %v1063
    %v7069 = vunpack.c.l.b16 %v1064
    %v7070 = vunpack.c.l.b16 %v1065
    %v7071 = vunpack.c.h.b16 %v1065
    %v7072 = vunpack.c.l.b16 %v1066
    %v7073 = vunpack.c.l.b16 %v1067
    %v7074 = vunpack.c.h.b16 %v1067
    %v7075 = vunpack.c.l.b16 %v1068
    %v7076 = vunpack.c.l.b16 %v1069
    %v7077 = vunpack.c.h.b16 %v1069
    %v7078 = vunpack.c.l.b16 %v1070
    %v7079 = vunpack.c.l.b16 %v1071
    %v7080 = vunpack.c.h.b16 %v1071
    %v7081 = vunpack.c.l.b16 %v1072
    %v7082 = vunpack.c.l.b16 %v1073
    %v7083 = vunpack.c.h.b16 %v1073
    %v7084 = vunpack.c.l.b16 %v1074
    %v7085 = vunpack.c.l.b16 %v1075
    %v7086 = vunpack.c.h.b16 %v1075
    %v7087 = vunpack.c.l.b16 %v1076
    %v7088 = vunpack.c.l.b16 %v1077
    %v7089 = vunpack.c.h.b16 %v1077
    %v7090 = vunpack.c.l.b16 %v1078
    %v7091 = vunpack.c.l.b16 %v1079
    %v7092 = vunpack.c.h.b16 %v1079
    %v7093 = vunpack.c.l.b16 %v1080
    %v7094 = vunpack.c.l.b16 %v1081
    %v7095 = vunpack.c.h.b16 %v1081
    %v7096 = vunpack.c.l.b16 %v1082
    %v7097 = vunpack.c.l.b16 %v1083
    %v7098 = vunpack.c.h.b16 %v1083
    %v7099 = vunpack.c.l.b16 %v1084
    %v7100 = vunpack.c.l.b16 %v1085
    %v7101 = vunpack.c.h.b16 %v1085
    %v7102 = vunpack.c.l.b16 %v1086
    %v7103 = vunpack.c.l.b16 %v1087
    %v7104 = vunpack.c.h.b16 %v1087
    %v7105 = vunpack.c.l.b16 %v1088
    %v7106 = vunpack.c.l.b16 %v1089
    %v7107 = vunpack.c.h.b16 %v1089
    %v7108 = vunpack.c.l.b16 %v1090
    %v7109 = vunpack.c.l.b16 %v1091
    %v7110 = vunpack.c.h.b16 %v1091
    %v7111 = vunpack.c.l.b16 %v1092
    %v7112 = vunpack.c.l.b16 %v1093
    %v7113 = vunpack.c.h.b16 %v1093
    %v7114 = vunpack.c.l.b16 %v1094
    %v7115 = vunpack.c.l.b16 %v1095
    %v7116 = vunpack.c.h.b16 %v1095
    %v7117 = vunpack.c.l.b16 %v1096
    %v7118 = vunpack.c.l.b16 %v1097
    %v7119 = vunpack.c.h.b16 %v1097
    %v7120 = vunpack.c.l.b16 %v1098
    %v7121 = vunpack.c.l.b16 %v1099
    %v7122 = vunpack.c.h.b16 %v1099
    %v7123 = vunpack.c.l.b16 %v1100
    %v7124 = vunpack.c.l.b16 %v1101
    %v7125 = vunpack.c.h.b16 %v1101
    %v7126 = vunpack.c.l.b16 %v1102
    %v7127 = vunpack.c.l.b16 %v1103
    %v7128 = vunpack.c.h.b16 %v1103
    %v7129 = vunpack.c.l.b16 %v1104
    %v7130 = vunpack.c.l.b16 %v1105
    %v7131 = vunpack.c.h.b16 %v1105
    %v7132 = vunpack.c.l.b16 %v1106
    %v7133 = vunpack.c.l.b16 %v1107
    %v7134 = vunpack.c.h.b16 %v1107
    %v7135 = vunpack.c.l.b16 %v1108
    %v7136 = vunpack.c.l.b16 %v1109
    %v7137 = vunpack.c.h.b16 %v1109
    %v7138 = vunpack.c.l.b16 %v1110
    %v7139 = vunpack.c.l.b16 %v1111
    %v7140 = vunpack.c.h.b16 %v1111
    %v7141 = vunpack.c.l.b16 %v1112
    %v7142 = vunpack.c.l.b16 %v1113
    %v7143 = vunpack.c.h.b16 %v1113
    %v7144 = vunpack.c.l.b16 %v1114
    %v7145 = vunpack.c.l.b16 %v1115
    %v7146 = vunpack.c.h.b16 %v1115
    %v7147 = vunpack.c.l.b16 %v1116
    %v7148 = vunpack.c.l.b16 %v1117
    %v7149 = vunpack.c.h.b16 %v1117
    %v7150 = vunpack.c.l.b16 %v1118
    %v7151 = vunpack.c.l.b16 %v1119
    %v7152 = vunpack.c.h.b16 %v1119
    %v7153 = vunpack.c.l.b16 %v1120
    %v7154 = vunpack.c.l.b16 %v1121
    %v7155 = vunpack.c.h.b16 %v1121
    %v7156 = vunpack.c.l.b16 %v1122
    %v7157 = vunpack.c.l.b16 %v1123
    %v7158 = vunpack.c.h.b16 %v1123
    %v7159 = vunpack.c.l.b16 %v1124
    %v7160 = vunpack.c.l.b16 %v1125
    %v7161 = vunpack.c.h.b16 %v1125
    %v7162 = vunpack.c.l.b16 %v1126
    %v7163 = vunpack.c.l.b16 %v1127
    %v7164 = vunpack.c.h.b16 %v1127
    %v7165 = vunpack.c.l.b16 %v1128
    %v7166 = vunpack.c.l.b16 %v1129
    %v7167 = vunpack.c.h.b16 %v1129
    %v7168 = vunpack.c.l.b16 %v1130
    %v7169 = vunpack.c.l.b16 %v1131
    %v7170 = vunpack.c.h.b16 %v1131
    %v7171 = vunpack.c.l.b16 %v1132
    %v7172 = vunpack.c.l.b16 %v1133
    %v7173 = vunpack.c.h.b16 %v1133
    %v7174 = vunpack.c.l.b16 %v1134
    %v7175 = vunpack.c.l.b16 %v1135
    %v7176 = vunpack.c.h.b16 %v1135
    %v7177 = vunpack.c.l.b16 %v1136
    %v7178 = vunpack.c.l.b16 %v1137
    %v7179 = vunpack.c.h.b16 %v1137
    %v7180 = vunpack.c.l.b16 %v1138
    %v7181 = vunpack.c.l.b16 %v1139
    %v7182 = vunpack.c.h.b16 %v1139
    %v7183 = vunpack.c.l.b16 %v1140
    %v7184 = vunpack.c.l.b16 %v1141
    %v7185 = vunpack.c.h.b16 %v1141
    %v7186 = vunpack.c.l.b16 %v1142
    %v7187 = vunpack.c.l.b16 %v1143
    %v7188 = vunpack.c.h.b16 %v1143
    %v7189 = vunpack.c.l.b16 %v1144
    %v7190 = vunpack.c.l.b16 %v1145
    %v7191 = vunpack.c.h.b16 %v1145
    %v7192 = vunpack.c.l.b16 %v1146
    %v7193 = vunpack.c.l.b16 %v1147
    %v7194 = vunpack.c.h.b16 %v1147
    %v7195 = vunpack.c.l.b16 %v1148
    %v7196 = vunpack.c.l.b16 %v1149
    %v7197 = vunpack.c.h.b16 %v1149
    %v7198 = vunpack.c.l.b16 %v1150
    %v7199 = vunpack.c.l.b16 %v1151
    %v7200 = vunpack.c.h.b16 %v1151
    %v7201 = vunpack.c.l.b16 %v1152
    %v7202 = vunpack.c.l.b16 %v1153
    %v7203 = vunpack.c.h.b16 %v1153
    %v7204 = vunpack.c.l.b16 %v1154
    %v7205 = vunpack.c.l.b16 %v1155
    %v7206 = vunpack.c.h.b16 %v1155
    %v7207 = vunpack.c.l.b16 %v1156
    %v7208 = vunpack.c.l.b16 %v1157
    %v7209 = vunpack.c.h.b16 %v1157
    %v7210 = vunpack.c.l.b16 %v1158
    %v7211 = vunpack.c.l.b16 %v1159
    %v7212 = vunpack.c.h.b16 %v1159
    %v7213 = vunpack.c.l.b16 %v1160
    %v7214 = vunpack.c.l.b16 %v1161
    %v7215 = vunpack.c.h.b16 %v1161
    %v7216 = vunpack.c.l.b16 %v1162
    %v7217 = vunpack.c.l.b16 %v1163
    %v7218 = vunpack.c.h.b16 %v1163
    %v7219 = vunpack.c.l.b16 %v1164
    %v7220 = vunpack.c.l.b16 %v1165
    %v7221 = vunpack.c.h.b16 %v1165
    %v7222 = vunpack.c.l.b16 %v1166
    %v7223 = vunpack.c.l.b16 %v1167
    %v7224 = vunpack.c.h.b16 %v1167
    %v7225 = vunpack.c.l.b16 %v1168
    %v7226 = vunpack.c.l.b16 %v1169
    %v7227 = vunpack.c.h.b16 %v1169
    %v7228 = vunpack.c.l.b16 %v1170
    %v7229 = vunpack.c.l.b16 %v1171
    %v7230 = vunpack.c.h.b16 %v1171
    %v7231 = vunpack.c.l.b16 %v1172
    %v7232 = vunpack.c.l.b16 %v1173
    %v7233 = vunpack.c.h.b16 %v1173
    %v7234 = vunpack.c.l.b16 %v1174
    %v7235 = vunpack.c.l.b16 %v1175
    %v7236 = vunpack.c.h.b16 %v1175
    %v7237 = vunpack.c.l.b16 %v1176
    %v7238 = vunpack.c.l.b16 %v1177
    %v7239 = vunpack.c.h.b16 %v1177
    %v7240 = vunpack.c.l.b16 %v1178
    %v7241 = vunpack.c.l.b16 %v1179
    %v7242 = vunpack.c.h.b16 %v1179
    %v7243 = vunpack.c.l.b16 %v1180
    %v7244 = vunpack.c.l.b16 %v1181
    %v7245 = vunpack.c.h.b16 %v1181
    %v7246 = vunpack.c.l.b16 %v1182
    %v7247 = vunpack.c.l.b16 %v1183
    %v7248 = vunpack.c.h.b16 %v1183
    %v7249 = vunpack.c.l.b16 %v1184
    %v7250 = vunpack.c.l.b16 %v1185
    %v7251 = vunpack.c.h.b16 %v1185
    %v7252 = vunpack.c.l.b16 %v1186
    %v7253 = vunpack.c.l.b16 %v1187
    %v7254 = vunpack.c.h.b16 %v1187
    %v7255 = vunpack.c.l.b16 %v1188
    %v7256 = vunpack.c.l.b16 %v1189
    %v7257 = vunpack.c.h.b16 %v1189
    %v7258 = vunpack.c.l.b16 %v1190
    %v7259 = vunpack.c.l.b16 %v1191
    %v7260 = vunpack.c.h.b16 %v1191
    %v7261 = vunpack.c.l.b16 %v1192
    %v7262 = vunpack.c.l.b16 %v1193
    %v7263 = vunpack.c.h.b16 %v1193
    %v7264 = vunpack.c.l.b16 %v1194
    %v7265 = vunpack.c.l.b16 %v1195
    %v7266 = vunpack.c.h.b16 %v1195
    %v7267 = vunpack.c.l.b16 %v1196
    %v7268 = vunpack.c.l.b16 %v1197
    %v7269 = vunpack.c.h.b16 %v1197
    %v7270 = vunpack.c.l.b16 %v1198
    %v7271 = vunpack.c.l.b16 %v1199
    %v7272 = vunpack.c.h.b16 %v1199
    %v7273 = vunpack.c.l.b16 %v1200
    %v7274 = vunpack.c.l.b16 %v1201
    %v7275 = vunpack.c.h.b16 %v1201
    %v7276 = vunpack.c.l.b16 %v1202
    %v7277 = vunpack.c.l.b16 %v1203
    %v7278 = vunpack.c.h.b16 %v1203
    %v7279 = vunpack.c.l.b16 %v1204
    %v7280 = vunpack.c.l.b16 %v1205
    %v7281 = vunpack.c.h.b16 %v1205
    %v7282 = vunpack.c.l.b16 %v1206
    %v7283 = vunpack.c.l.b16 %v1207
    %v7284 = vunpack.c.h.b16 %v1207
    %v7285 = vunpack.c.l.b16 %v1208
    %v7286 = vunpack.c.l.b16 %v1209
    %v7287 = vunpack.c.h.b16 %v1209
    %v7288 = vunpack.c.l.b16 %v1210
    %v7289 = vunpack.c.l.b16 %v1211
    %v7290 = vunpack.c.h.b16 %v1211
    %v7291 = vunpack.c.l.b16 %v1212
    %v7292 = vunpack.c.l.b16 %v1213
    %v7293 = vunpack.c.h.b16 %v1213
    %v7294 = vunpack.c.l.b16 %v1214
    %v7295 = vunpack.c.l.b16 %v1215
    %v7296 = vunpack.c.h.b16 %v1215
    %v7297 = vunpack.c.l.b16 %v1216
    %v7298 = vunpack.c.l.b16 %v1217
    %v7299 = vunpack.c.h.b16 %v1217
    %v7300 = vunpack.c.l.b16 %v1218
    %v7301 = vunpack.c.l.b16 %v1219
    %v7302 = vunpack.c.h.b16 %v1219
    %v7303 = vunpack.c.l.b16 %v1220
    %v7304 = vunpack.c.l.b16 %v1221
    %v7305 = vunpack.c.h.b16 %v1221
    %v7306 = vunpack.c.l.b16 %v1222
    %v7307 = vunpack.c.l.b16 %v1223
    %v7308 = vunpack.c.h.b16 %v1223
    %v7309 = vunpack.c.l.b16 %v1224
    %v7310 = vunpack.c.l.b16 %v1225
    %v7311 = vunpack.c.h.b16 %v1225
    %v7312 = vunpack.c.l.b16 %v1226
    %v7313 = vunpack.c.l.b16 %v1227
    %v7314 = vunpack.c.h.b16 %v1227
    %v7315 = vunpack.c.l.b16 %v1228
    %v7316 = vunpack.c.l.b16 %v1229
    %v7317 = vunpack.c.h.b16 %v1229
    %v7318 = vunpack.c.l.b16 %v1230
    %v7319 = vunpack.c.l.b16 %v1231
    %v7320 = vunpack.c.h.b16 %v1231
    %v7321 = vunpack.c.l.b16 %v1232
    %v7322 = vunpack.c.l.b16 %v1233
    %v7323 = vunpack.c.h.b16 %v1233
    %v7324 = vunpack.c.l.b16 %v1234
    %v7325 = vunpack.c.l.b16 %v1235
    %v7326 = vunpack.c.h.b16 %v1235
    %v7327 = vunpack.c.l.b16 %v1236
    %v7328 = vunpack.c.l.b16 %v1237
    %v7329 = vunpack.c.h.b16 %v1237
    %v7330 = vunpack.c.l.b16 %v1238
    %v7331 = vunpack.c.l.b16 %v1239
    %v7332 = vunpack.c.h.b16 %v1239
    %v7333 = vunpack.c.l.b16 %v1240
    %v7334 = vunpack.c.l.b16 %v1241
    %v7335 = vunpack.c.h.b16 %v1241
    %v7336 = vunpack.c.l.b16 %v1242
    %v7337 = vunpack.c.l.b16 %v1243
    %v7338 = vunpack.c.h.b16 %v1243
    %v7339 = vunpack.c.l.b16 %v1244
    %v7340 = vunpack.c.l.b16 %v1245
    %v7341 = vunpack.c.h.b16 %v1245
    %v7342 = vunpack.c.l.b16 %v1246
    %v7343 = vunpack.c.l.b16 %v1247
    %v7344 = vunpack.c.h.b16 %v1247
    %v7345 = vunpack.c.l.b16 %v1248
    %v7346 = vunpack.c.l.b16 %v1249
    %v7347 = vunpack.c.h.b16 %v1249
    %v7348 = vunpack.c.l.b16 %v1250
    %v7349 = vunpack.c.l.b16 %v1251
    %v7350 = vunpack.c.h.b16 %v1251
    %v7351 = vunpack.c.l.b16 %v1252
    %v7352 = vunpack.c.l.b16 %v1253
    %v7353 = vunpack.c.h.b16 %v1253
    %v7354 = vunpack.c.l.b16 %v1254
    %v7355 = vunpack.c.l.b16 %v1255
    %v7356 = vunpack.c.h.b16 %v1255
    %v7357 = vunpack.c.l.b16 %v1256
    %v7358 = vunpack.c.l.b16 %v1257
    %v7359 = vunpack.c.h.b16 %v1257
    %v7360 = vunpack.c.l.b16 %v1258
    %v7361 = vunpack.c.l.b16 %v1259
    %v7362 = vunpack.c.h.b16 %v1259
    %v7363 = vunpack.c.l.b16 %v1260
    %v7364 = vunpack.c.l.b16 %v1261
    %v7365 = vunpack.c.h.b16 %v1261
    %v7366 = vunpack.c.l.b16 %v1262
    %v7367 = vunpack.c.l.b16 %v1263
    %v7368 = vunpack.c.h.b16 %v1263
    %v7369 = vunpack.c.l.b16 %v1264
    %v7370 = vunpack.c.l.b16 %v1265
    %v7371 = vunpack.c.h.b16 %v1265
    %v7372 = vunpack.c.l.b16 %v1266
    %v7373 = vunpack.c.l.b16 %v1267
    %v7374 = vunpack.c.h.b16 %v1267
    %v7375 = vunpack.c.l.b16 %v1268
    %v7376 = vunpack.c.l.b16 %v1269
    %v7377 = vunpack.c.h.b16 %v1269
    %v7378 = vunpack.c.l.b16 %v1270
    %v7379 = vunpack.c.l.b16 %v1271
    %v7380 = vunpack.c.h.b16 %v1271
    %v7381 = vunpack.c.l.b16 %v1272
    %v7382 = vunpack.c.l.b16 %v1273
    %v7383 = vunpack.c.h.b16 %v1273
    %v7384 = vunpack.c.l.b16 %v1274
    %v7385 = vunpack.c.l.b16 %v1275
    %v7386 = vunpack.c.h.b16 %v1275
    %v7387 = vunpack.c.l.b16 %v1276
    %v7388 = vunpack.c.l.b16 %v1277
    %v7389 = vunpack.c.h.b16 %v1277
    %v7390 = vunpack.c.l.b16 %v1278
    %v7391 = vunpack.c.l.b16 %v1279
    %v7392 = vunpack.c.h.b16 %v1279
    %v7393 = vunpack.c.l.b16 %v1280
    %v7394 = vunpack.c.l.b16 %v1281
    %v7395 = vunpack.c.h.b16 %v1281
    %v7396 = vunpack.c.l.b16 %v1282
    %v7397 = vunpack.c.l.b16 %v1283
    %v7398 = vunpack.c.h.b16 %v1283
    %v7399 = vunpack.c.l.b16 %v1284
    %v7400 = vunpack.c.l.b16 %v1285
    %v7401 = vunpack.c.h.b16 %v1285
    %v7402 = vunpack.c.l.b16 %v1286
    %v7403 = vunpack.c.l.b16 %v1287
    %v7404 = vunpack.c.h.b16 %v1287
    %v7405 = vunpack.c.l.b16 %v1288
    %v7406 = vunpack.c.l.b16 %v1289
    %v7407 = vunpack.c.h.b16 %v1289
    %v7408 = vunpack.c.l.b16 %v1290
    %v7409 = vunpack.c.l.b16 %v1291
    %v7410 = vunpack.c.h.b16 %v1291
    %v7411 = vunpack.c.l.b16 %v1292
    %v7412 = vunpack.c.l.b16 %v1293
    %v7413 = vunpack.c.h.b16 %v1293
    %v7414 = vunpack.c.l.b16 %v1294
    %v7415 = vunpack.c.l.b16 %v1295
    %v7416 = vunpack.c.h.b16 %v1295
    %v7417 = vunpack.c.l.b16 %v1296
    %v7418 = vunpack.c.l.b16 %v1297
    %v7419 = vunpack.c.h.b16 %v1297
    %v7420 = vunpack.c.l.b16 %v1298
    %v7421 = vunpack.c.l.b16 %v1299
    %v7422 = vunpack.c.h.b16 %v1299
    %v7423 = vunpack.c.l.b16 %v1300
    %v7424 = vunpack.c.l.b16 %v1301
    %v7425 = vunpack.c.h.b16 %v1301
    %v7426 = vunpack.c.l.b16 %v1302
    %v7427 = vunpack.c.l.b16 %v1303
    %v7428 = vunpack.c.h.b16 %v1303
    %v7429 = vunpack.c.l.b16 %v1304
    %v7430 = vunpack.c.l.b16 %v1305
    %v7431 = vunpack.c.h.b16 %v1305
    %v7432 = vunpack.c.l.b16 %v1306
    %v7433 = vunpack.c.l.b16 %v1307
    %v7434 = vunpack.c.h.b16 %v1307
    %v7435 = vunpack.c.l.b16 %v1308
    %v7436 = vunpack.c.l.b16 %v1309
    %v7437 = vunpack.c.h.b16 %v1309
    %v7438 = vunpack.c.l.b16 %v1310
    %v7439 = vunpack.c.l.b16 %v1311
    %v7440 = vunpack.c.h.b16 %v1311
    %v7441 = vunpack.c.l.b16 %v1312
    %v7442 = vunpack.c.l.b16 %v1313
    %v7443 = vunpack.c.h.b16 %v1313
    %v7444 = vunpack.c.l.b16 %v1314
    %v7445 = vunpack.c.l.b16 %v1315
    %v7446 = vunpack.c.h.b16 %v1315
    %v7447 = vunpack.c.l.b16 %v1316
    %v7448 = vunpack.c.l.b16 %v1317
    %v7449 = vunpack.c.h.b16 %v1317
    %v7450 = vunpack.c.l.b16 %v1318
    %v7451 = vunpack.c.l.b16 %v1319
    %v7452 = vunpack.c.h.b16 %v1319
    %v7453 = vunpack.c.l.b16 %v1320
    %v7454 = vunpack.c.l.b16 %v1321
    %v7455 = vunpack.c.h.b16 %v1321
    %v7456 = vunpack.c.l.b16 %v1322
    %v7457 = vunpack.c.l.b16 %v1323
    %v7458 = vunpack.c.h.b16 %v1323
    %v7459 = vunpack.c.l.b16 %v1324
    %v7460 = vunpack.c.l.b16 %v1325
    %v7461 = vunpack.c.h.b16 %v1325
    %v7462 = vunpack.c.l.b16 %v1326
    %v7463 = vunpack.c.l.b16 %v1327
    %v7464 = vunpack.c.h.b16 %v1327
    %v7465 = vunpack.c.l.b16 %v1328
    %v7466 = vunpack.c.l.b16 %v1329
    %v7467 = vunpack.c.h.b16 %v1329
    %v7468 = vunpack.c.l.b16 %v1330
    %v7469 = vunpack.c.l.b16 %v1331
    %v7470 = vunpack.c.h.b16 %v1331
    %v7471 = vunpack.c.l.b16 %v1332
    %v7472 = vunpack.c.l.b16 %v1333
    %v7473 = vunpack.c.h.b16 %v1333
    %v7474 = vunpack.c.l.b16 %v1334
    %v7475 = vunpack.c.l.b16 %v1335
    %v7476 = vunpack.c.h.b16 %v1335
    %v7477 = vunpack.c.l.b16 %v1336
    %v7478 = vunpack.c.l.b16 %v1337
    %v7479 = vunpack.c.h.b16 %v1337
    %v7480 = vunpack.c.l.b16 %v1338
    %v7481 = vunpack.c.l.b16 %v1339
    %v7482 = vunpack.c.h.b16 %v1339
    %v7483 = vunpack.c.l.b16 %v1340
    %v7484 = vunpack.c.l.b16 %v1341
    %v7485 = vunpack.c.h.b16 %v1341
    %v7486 = vunpack.c.l.b16 %v1342
    %v7487 = vunpack.c.l.b16 %v1343
    %v7488 = vunpack.c.h.b16 %v1343
    %v7489 = vunpack.c.l.b16 %v1344
    %v7490 = vunpack.c.l.b16 %v1345
    %v7491 = vunpack.c.h.b16 %v1345
    %v7492 = vunpack.c.l.b16 %v1346
    %v7493 = vunpack.c.l.b16 %v1347
    %v7494 = vunpack.c.h.b16 %v1347
    %v7495 = vunpack.c.l.b16 %v1348
    %v7496 = vunpack.c.l.b16 %v1349
    %v7497 = vunpack.c.h.b16 %v1349
    %v7498 = vunpack.c.l.b16 %v1350
    %v7499 = vunpack.c.l.b16 %v1351
    %v7500 = vunpack.c.h.b16 %v1351
    %v7501 = vunpack.c.l.b16 %v1352
    %v7502 = vunpack.c.l.b16 %v1353
    %v7503 = vunpack.c.h.b16 %v1353
    %v7504 = vunpack.c.l.b16 %v1354
    %v7505 = vunpack.c.l.b16 %v1355
    %v7506 = vunpack.c.h.b16 %v1355
    %v7507 = vunpack.c.l.b16 %v1356
    %v7508 = vunpack.c.l.b16 %v1357
    %v7509 = vunpack.c.h.b16 %v1357
    %v7510 = vunpack.c.l.b16 %v1358
    %v7511 = vunpack.c.l.b16 %v1359
    %v7512 = vunpack.c.h.b16 %v1359
    %v7513 = vunpack.c.l.b16 %v1360
    %v7514 = vunpack.c.l.b16 %v1361
    %v7515 = vunpack.c.h.b16 %v1361
    %v7516 = vunpack.c.l.b16 %v1362
    %v7517 = vunpack.c.l.b16 %v1363
    %v7518 = vunpack.c.h.b16 %v1363
    %v7519 = vunpack.c.l.b16 %v1364
    %v7520 = vunpack.c.l.b16 %v1365
    %v7521 = vunpack.c.h.b16 %v1365
    %v7522 = vunpack.c.l.b16 %v1366
    %v7523 = vunpack.c.l.b16 %v1367
    %v7524 = vunpack.c.h.b16 %v1367
    %v7525 = vunpack.c.l.b16 %v1368
    %v7526 = vunpack.c.l.b16 %v1369
    %v7527 = vunpack.c.h.b16 %v1369
    %v7528 = vunpack.c.l.b16 %v1370
    %v7529 = vunpack.c.l.b16 %v1371
    %v7530 = vunpack.c.h.b16 %v1371
    %v7531 = vunpack.c.l.b16 %v1372
    %v7532 = vunpack.c.l.b16 %v1373
    %v7533 = vunpack.c.h.b16 %v1373
    %v7534 = vunpack.c.l.b16 %v1374
    %v7535 = vunpack.c.l.b16 %v1375
    %v7536 = vunpack.c.h.b16 %v1375
    %v7537 = vunpack.c.l.b16 %v1376
    %v7538 = vunpack.c.l.b16 %v1377
    %v7539 = vunpack.c.h.b16 %v1377
    %v7540 = vunpack.c.l.b16 %v1378
    %v7541 = vunpack.c.l.b16 %v1379
    %v7542 = vunpack.c.h.b16 %v1379
    %v7543 = vunpack.c.l.b16 %v1380
    %v7544 = vunpack.c.l.b16 %v1381
    %v7545 = vunpack.c.h.b16 %v1381
    %v7546 = vunpack.c.l.b16 %v1382
    %v7547 = vunpack.c.l.b16 %v1383
    %v7548 = vunpack.c.h.b16 %v1383
    %v7549 = vunpack.c.l.b16 %v1384
    %v7550 = vunpack.c.l.b16 %v1385
    %v7551 = vunpack.c.h.b16 %v1385
    %v7552 = vunpack.c.l.b16 %v1386
    %v7553 = vunpack.c.l.b16 %v1387
    %v7554 = vunpack.c.h.b16 %v1387
    %v7555 = vunpack.c.l.b16 %v1388
    %v7556 = vunpack.c.l.b16 %v1389
    %v7557 = vunpack.c.h.b16 %v1389
    %v7558 = vunpack.c.l.b16 %v1390
    %v7559 = vunpack.c.l.b16 %v1391
    %v7560 = vunpack.c.h.b16 %v1391
    %v7561 = vunpack.c.l.b16 %v1392
    %v7562 = vunpack.c.l.b16 %v1393
    %v7563 = vunpack.c.h.b16 %v1393
    %v7564 = vunpack.c.l.b16 %v1394
    %v7565 = vunpack.c.l.b16 %v1395
    %v7566 = vunpack.c.h.b16 %v1395
    %v7567 = vunpack.c.l.b16 %v1396
    %v7568 = vunpack.c.l.b16 %v1397
    %v7569 = vunpack.c.h.b16 %v1397
    %v7570 = vunpack.c.l.b16 %v1398
    %v7571 = vunpack.c.l.b16 %v1399
    %v7572 = vunpack.c.h.b16 %v1399
    %v7573 = vunpack.c.l.b16 %v1400
    %v7574 = vunpack.c.l.b16 %v1401
    %v7575 = vunpack.c.h.b16 %v1401
    %v7576 = vunpack.c.l.b16 %v1402
    %v7577 = vunpack.c.l.b16 %v1403
    %v7578 = vunpack.c.h.b16 %v1403
    %v7579 = vunpack.c.l.b16 %v1404
    %v7580 = vunpack.c.l.b16 %v1405
    %v7581 = vunpack.c.h.b16 %v1405
    %v7582 = vunpack.c.l.b16 %v1406
    %v7583 = vunpack.c.l.b16 %v1407
    %v7584 = vunpack.c.h.b16 %v1407
    %v7585 = vunpack.c.l.b16 %v1408
    %v7586 = vunpack.c.l.b16 %v1409
    %v7587 = vunpack.c.h.b16 %v1409
    %v7588 = vunpack.c.l.b16 %v1410
    %v7589 = vunpack.c.l.b16 %v1411
    %v7590 = vunpack.c.h.b16 %v1411
    %v7591 = vunpack.c.l.b16 %v1412
    %v7592 = vunpack.c.l.b16 %v1413
    %v7593 = vunpack.c.h.b16 %v1413
    %v7594 = vunpack.c.l.b16 %v1414
    %v7595 = vunpack.c.l.b16 %v1415
    %v7596 = vunpack.c.h.b16 %v1415
    %v7597 = vunpack.c.l.b16 %v1416
    %v7598 = vunpack.c.l.b16 %v1417
    %v7599 = vunpack.c.h.b16 %v1417
    %v7600 = vunpack.c.l.b16 %v1418
    %v7601 = vunpack.c.l.b16 %v1419
    %v7602 = vunpack.c.h.b16 %v1419
    %v7603 = vunpack.c.l.b16 %v1420
    %v7604 = vunpack.c.l.b16 %v1421
    %v7605 = vunpack.c.h.b16 %v1421
    %v7606 = vunpack.c.l.b16 %v1422
    %v7607 = vunpack.c.l.b16 %v1423
    %v7608 = vunpack.c.h.b16 %v1423
    %v7609 = vunpack.c.l.b16 %v1424
    %v7610 = vunpack.c.l.b16 %v1425
    %v7611 = vunpack.c.h.b16 %v1425
    %v7612 = vunpack.c.l.b16 %v1426
    %v7613 = vunpack.c.l.b16 %v1427
    %v7614 = vunpack.c.h.b16 %v1427
    %v7615 = vunpack.c.l.b16 %v1428
    %v7616 = vunpack.c.l.b16 %v1429
    %v7617 = vunpack.c.h.b16 %v1429
    %v7618 = vunpack.c.l.b16 %v1430
    %v7619 = vpack.c.b16 %v7046, %v7043
    %v7620 = vpack.c.b16 %v7047, %v7044
    %v7621 = vpack.c.b16 %v7048, %v7045
    %v7622 = vpack.c.b16 %v7052, %v7049
    %v7623 = vpack.c.b16 %v7053, %v7050
    %v7624 = vpack.c.b16 %v7054, %v7051
    %v7625 = vpack.c.b16 %v7058, %v7055
    %v7626 = vpack.c.b16 %v7059, %v7056
    %v7627 = vpack.c.b16 %v7060, %v7057
    %v7628 = vpack.c.b16 %v7064, %v7061
    %v7629 = vpack.c.b16 %v7065, %v7062
    %v7630 = vpack.c.b16 %v7066, %v7063
    %v7631 = vpack.c.b16 %v7070, %v7067
    %v7632 = vpack.c.b16 %v7071, %v7068
    %v7633 = vpack.c.b16 %v7072, %v7069
    %v7634 = vpack.c.b16 %v7076, %v7073
    %v7635 = vpack.c.b16 %v7077, %v7074
    %v7636 = vpack.c.b16 %v7078, %v7075
    %v7637 = vpack.c.b16 %v7082, %v7079
    %v7638 = vpack.c.b16 %v7083, %v7080
    %v7639 = vpack.c.b16 %v7084, %v7081
    %v7640 = vpack.c.b16 %v7088, %v7085
    %v7641 = vpack.c.b16 %v7089, %v7086
    %v7642 = vpack.c.b16 %v7090, %v7087
    %v7643 = vpack.c.b16 %v7094, %v7091
    %v7644 = vpack.c.b16 %v7095, %v7092
    %v7645 = vpack.c.b16 %v7096, %v7093
    %v7646 = vpack.c.b16 %v7100, %v7097
    %v7647 = vpack.c.b16 %v7101, %v7098
    %v7648 = vpack.c.b16 %v7102, %v7099
    %v7649 = vpack.c.b16 %v7106, %v7103
    %v7650 = vpack.c.b16 %v7107, %v7104
    %v7651 = vpack.c.b16 %v7108, %v7105
    %v7652 = vpack.c.b16 %v7112, %v7109
    %v7653 = vpack.c.b16 %v7113, %v7110
    %v7654 = vpack.c.b16 %v7114, %v7111
    %v7655 = vpack.c.b16 %v7118, %v7115
    %v7656 = vpack.c.b16 %v7119, %v7116
    %v7657 = vpack.c.b16 %v7120, %v7117
    %v7658 = vpack.c.b16 %v7124, %v7121
    %v7659 = vpack.c.b16 %v7125, %v7122
    %v7660 = vpack.c.b16 %v7126, %v7123
    %v7661 = vpack.c.b16 %v7130, %v7127
    %v7662 = vpack.c.b16 %v7131, %v7128
    %v7663 = vpack.c.b16 %v7132, %v7129
    %v7664 = vpack.c.b16 %v7136, %v7133
    %v7665 = vpack.c.b16 %v7137, %v7134
    %v7666 = vpack.c.b16 %v7138, %v7135
    %v7667 = vpack.c.b16 %v7142, %v7139
    %v7668 = vpack.c.b16 %v7143, %v7140
    %v7669 = vpack.c.b16 %v7144, %v7141
    %v7670 = vpack.c.b16 %v7148, %v7145
    %v7671 = vpack.c.b16 %v7149, %v7146
    %v7672 = vpack.c.b16 %v7150, %v7147
    %v7673 = vpack.c.b16 %v7154, %v7151
    %v7674 = vpack.c.b16 %v7155, %v7152
    %v7675 = vpack.c.b16 %v7156, %v7153
    %v7676 = vpack.c.b16 %v7160, %v7157
    %v7677 = vpack.c.b16 %v7161, %v7158
    %v7678 = vpack.c.b16 %v7162, %v7159
    %v7679 = vpack.c.b16 %v7166, %v7163
    %v7680 = vpack.c.b16 %v7167, %v7164
    %v7681 = vpack.c.b16 %v7168, %v7165
    %v7682 = vpack.c.b16 %v7172, %v7169
    %v7683 = vpack.c.b16 %v7173, %v7170
    %v7684 = vpack.c.b16 %v7174, %v7171
    %v7685 = vpack.c.b16 %v7178, %v7175
    %v7686 = vpack.c.b16 %v7179, %v7176
    %v7687 = vpack.c.b16 %v7180, %v7177
    %v7688 = vpack.c.b16 %v7184, %v7181
    %v7689 = vpack.c.b16 %v7185, %v7182
    %v7690 = vpack.c.b16 %v7186, %v7183
    %v7691 = vpack.c.b16 %v7190, %v7187
    %v7692 = vpack.c.b16 %v7191, %v7188
    %v7693 = vpack.c.b16 %v7192, %v7189
    %v7694 = vpack.c.b16 %v7196, %v7193
    %v7695 = vpack.c.b16 %v7197, %v7194
    %v7696 = vpack.c.b16 %v7198, %v7195
    %v7697 = vpack.c.b16 %v7202, %v7199
    %v7698 = vpack.c.b16 %v7203, %v7200
    %v7699 = vpack.c.b16 %v7204, %v7201
    %v7700 = vpack.c.b16 %v7208, %v7205
    %v7701 = vpack.c.b16 %v7209, %v7206
    %v7702 = vpack.c.b16 %v7210, %v7207
    %v7703 = vpack.c.b16 %v7214, %v7211
    %v7704 = vpack.c.b16 %v7215, %v7212
    %v7705 = vpack.c.b16 %v7216, %v7213
    %v7706 = vpack.c.b16 %v7220, %v7217
    %v7707 = vpack.c.b16 %v7221, %v7218
    %v7708 = vpack.c.b16 %v7222, %v7219
    %v7709 = vpack.c.b16 %v7226, %v7223
    %v7710 = vpack.c.b16 %v7227, %v7224
    %v7711 = vpack.c.b16 %v7228, %v7225
    %v7712 = vpack.c.b16 %v7232, %v7229
    %v7713 = vpack.c.b16 %v7233, %v7230
    %v7714 = vpack.c.b16 %v7234, %v7231
    %v7715 = vpack.c.b16 %v7238, %v7235
    %v7716 = vpack.c.b16 %v7239, %v7236
    %v7717 = vpack.c.b16 %v7240, %v7237
    %v7718 = vpack.c.b16 %v7244, %v7241
    %v7719 = vpack.c.b16 %v7245, %v7242
    %v7720 = vpack.c.b16 %v7246, %v7243
    %v7721 = vpack.c.b16 %v7250, %v7247
    %v7722 = vpack.c.b16 %v7251, %v7248
    %v7723 = vpack.c.b16 %v7252, %v7249
    %v7724 = vpack.c.b16 %v7256, %v7253
    %v7725 = vpack.c.b16 %v7257, %v7254
    %v7726 = vpack.c.b16 %v7258, %v7255
    %v7727 = vpack.c.b16 %v7262, %v7259
    %v7728 = vpack.c.b16 %v7263, %v7260
    %v7729 = vpack.c.b16 %v7264, %v7261
    %v7730 = vpack.c.b16 %v7268, %v7265
    %v7731 = vpack.c.b16 %v7269, %v7266
    %v7732 = vpack.c.b16 %v7270, %v7267
    %v7733 = vpack.c.b16 %v7274, %v7271
    %v7734 = vpack.c.b16 %v7275, %v7272
    %v7735 = vpack.c.b16 %v7276, %v7273
    %v7736 = vpack.c.b16 %v7280, %v7277
    %v7737 = vpack.c.b16 %v7281, %v7278
    %v7738 = vpack.c.b16 %v7282, %v7279
    %v7739 = vpack.c.b16 %v7286, %v7283
    %v7740 = vpack.c.b16 %v7287, %v7284
    %v7741 = vpack.c.b16 %v7288, %v7285
    %v7742 = vpack.c.b16 %v7292, %v7289
    %v7743 = vpack.c.b16 %v7293, %v7290
    %v7744 = vpack.c.b16 %v7294, %v7291
    %v7745 = vpack.c.b16 %v7298, %v7295
    %v7746 = vpack.c.b16 %v7299, %v7296
    %v7747 = vpack.c.b16 %v7300, %v7297
    %v7748 = vpack.c.b16 %v7304, %v7301
    %v7749 = vpack.c.b16 %v7305, %v7302
    %v7750 = vpack.c.b16 %v7306, %v7303
    %v7751 = vpack.c.b16 %v7310, %v7307
    %v7752 = vpack.c.b16 %v7311, %v7308
    %v7753 = vpack.c.b16 %v7312, %v7309
    %v7754 = vpack.c.b16 %v7316, %v7313
    %v7755 = vpack.c.b16 %v7317, %v7314
    %v7756 = vpack.c.b16 %v7318, %v7315
    %v7757 = vpack.c.b16 %v7322, %v7319
    %v7758 = vpack.c.b16 %v7323, %v7320
    %v7759 = vpack.c.b16 %v7324, %v7321
    %v7760 = vpack.c.b16 %v7328, %v7325
    %v7761 = vpack.c.b16 %v7329, %v7326
    %v7762 = vpack.c.b16 %v7330, %v7327
    %v7763 = vpack.c.b16 %v7334, %v7331
    %v7764 = vpack.c.b16 %v7335, %v7332
    %v7765 = vpack.c.b16 %v7336, %v7333
    %v7766 = vpack.c.b16 %v7340, %v7337
    %v7767 = vpack.c.b16 %v7341, %v7338
    %v7768 = vpack.c.b16 %v7342, %v7339
    %v7769 = vpack.c.b16 %v7346, %v7343
    %v7770 = vpack.c.b16 %v7347, %v7344
    %v7771 = vpack.c.b16 %v7348, %v7345
    %v7772 = vpack.c.b16 %v7352, %v7349
    %v7773 = vpack.c.b16 %v7353, %v7350
    %v7774 = vpack.c.b16 %v7354, %v7351
    %v7775 = vpack.c.b16 %v7358, %v7355
    %v7776 = vpack.c.b16 %v7359, %v7356
    %v7777 = vpack.c.b16 %v7360, %v7357
    %v7778 = vpack.c.b16 %v7364, %v7361
    %v7779 = vpack.c.b16 %v7365, %v7362
    %v7780 = vpack.c.b16 %v7366, %v7363
    %v7781 = vpack.c.b16 %v7370, %v7367
    %v7782 = vpack.c.b16 %v7371, %v7368
    %v7783 = vpack.c.b16 %v7372, %v7369
    %v7784 = vpack.c.b16 %v7376, %v7373
    %v7785 = vpack.c.b16 %v7377, %v7374
    %v7786 = vpack.c.b16 %v7378, %v7375
    %v7787 = vpack.c.b16 %v7382, %v7379
    %v7788 = vpack.c.b16 %v7383, %v7380
    %v7789 = vpack.c.b16 %v7384, %v7381
    %v7790 = vpack.c.b16 %v7388, %v7385
    %v7791 = vpack.c.b16 %v7389, %v7386
    %v7792 = vpack.c.b16 %v7390, %v7387
    %v7793 = vpack.c.b16 %v7394, %v7391
    %v7794 = vpack.c.b16 %v7395, %v7392
    %v7795 = vpack.c.b16 %v7396, %v7393
    %v7796 = vpack.c.b16 %v7400, %v7397
    %v7797 = vpack.c.b16 %v7401, %v7398
    %v7798 = vpack.c.b16 %v7402, %v7399
    %v7799 = vpack.c.b16 %v7406, %v7403
    %v7800 = vpack.c.b16 %v7407, %v7404
    %v7801 = vpack.c.b16 %v7408, %v7405
    %v7802 = vpack.c.b16 %v7412, %v7409
    %v7803 = vpack.c.b16 %v7413, %v7410
    %v7804 = vpack.c.b16 %v7414, %v7411
    %v7805 = vpack.c.b16 %v7418, %v7415
    %v7806 = vpack.c.b16 %v7419, %v7416
    %v7807 = vpack.c.b16 %v7420, %v7417
    %v7808 = vpack.c.b16 %v7424, %v7421
    %v7809 = vpack.c.b16 %v7425, %v7422
    %v7810 = vpack.c.b16 %v7426, %v7423
    %v7811 = vpack.c.b16 %v7430, %v7427
    %v7812 = vpack.c.b16 %v7431, %v7428
    %v7813 = vpack.c.b16 %v7432, %v7429
    %v7814 = vpack.c.b16 %v7436, %v7433
    %v7815 = vpack.c.b16 %v7437, %v7434
    %v7816 = vpack.c.b16 %v7438, %v7435
    %v7817 = vpack.c.b16 %v7442, %v7439
    %v7818 = vpack.c.b16 %v7443, %v7440
    %v7819 = vpack.c.b16 %v7444, %v7441
    %v7820 = vpack.c.b16 %v7448, %v7445
    %v7821 = vpack.c.b16 %v7449, %v7446
    %v7822 = vpack.c.b16 %v7450, %v7447
    %v7823 = vpack.c.b16 %v7454, %v7451
    %v7824 = vpack.c.b16 %v7455, %v7452
    %v7825 = vpack.c.b16 %v7456, %v7453
    %v7826 = vpack.c.b16 %v7460, %v7457
    %v7827 = vpack.c.b16 %v7461, %v7458
    %v7828 = vpack.c.b16 %v7462, %v7459
    %v7829 = vpack.c.b16 %v7466, %v7463
    %v7830 = vpack.c.b16 %v7467, %v7464
    %v7831 = vpack.c.b16 %v7468, %v7465
    %v7832 = vpack.c.b16 %v7472, %v7469
    %v7833 = vpack.c.b16 %v7473, %v7470
    %v7834 = vpack.c.b16 %v7474, %v7471
    %v7835 = vpack.c.b16 %v7478, %v7475
    %v7836 = vpack.c.b16 %v7479, %v7476
    %v7837 = vpack.c.b16 %v7480, %v7477
    %v7838 = vpack.c.b16 %v7484, %v7481
    %v7839 = vpack.c.b16 %v7485, %v7482
    %v7840 = vpack.c.b16 %v7486, %v7483
    %v7841 = vpack.c.b16 %v7490, %v7487
    %v7842 = vpack.c.b16 %v7491, %v7488
    %v7843 = vpack.c.b16 %v7492, %v7489
    %v7844 = vpack.c.b16 %v7496, %v7493
    %v7845 = vpack.c.b16 %v7497, %v7494
    %v7846 = vpack.c.b16 %v7498, %v7495
    %v7847 = vpack.c.b16 %v7502, %v7499
    %v7848 = vpack.c.b16 %v7503, %v7500
    %v7849 = vpack.c.b16 %v7504, %v7501
    %v7850 = vpack.c.b16 %v7508, %v7505
    %v7851 = vpack.c.b16 %v7509, %v7506
    %v7852 = vpack.c.b16 %v7510, %v7507
    %v7853 = vpack.c.b16 %v7514, %v7511
    %v7854 = vpack.c.b16 %v7515, %v7512
    %v7855 = vpack.c.b16 %v7516, %v7513
    %v7856 = vpack.c.b16 %v7520, %v7517
    %v7857 = vpack.c.b16 %v7521, %v7518
    %v7858 = vpack.c.b16 %v7522, %v7519
    %v7859 = vpack.c.b16 %v7526, %v7523
    %v7860 = vpack.c.b16 %v7527, %v7524
    %v7861 = vpack.c.b16 %v7528, %v7525
    %v7862 = vpack.c.b16 %v7532, %v7529
    %v7863 = vpack.c.b16 %v7533, %v7530
    %v7864 = vpack.c.b16 %v7534, %v7531
    %v7865 = vpack.c.b16 %v7538, %v7535
    %v7866 = vpack.c.b16 %v7539, %v7536
    %v7867 = vpack.c.b16 %v7540, %v7537
    %v7868 = vpack.c.b16 %v7544, %v7541
    %v7869 = vpack.c.b16 %v7545, %v7542
    %v7870 = vpack.c.b16 %v7546, %v7543
    %v7871 = vpack.c.b16 %v7550, %v7547
    %v7872 = vpack.c.b16 %v7551, %v7548
    %v7873 = vpack.c.b16 %v7552, %v7549
    %v7874 = vpack.c.b16 %v7556, %v7553
    %v7875 = vpack.c.b16 %v7557, %v7554
    %v7876 = vpack.c.b16 %v7558, %v7555
    %v7877 = vpack.c.b16 %v7562, %v7559
    %v7878 = vpack.c.b16 %v7563, %v7560
    %v7879 = vpack.c.b16 %v7564, %v7561
    %v7880 = vpack.c.b16 %v7568, %v7565
    %v7881 = vpack.c.b16 %v7569, %v7566
    %v7882 = vpack.c.b16 %v7570, %v7567
    %v7883 = vpack.c.b16 %v7574, %v7571
    %v7884 = vpack.c.b16 %v7575, %v7572
    %v7885 = vpack.c.b16 %v7576, %v7573
    %v7886 = vpack.c.b16 %v7580, %v7577
    %v7887 = vpack.c.b16 %v7581, %v7578
    %v7888 = vpack.c.b16 %v7582, %v7579
    %v7889 = vpack.c.b16 %v7586, %v7583
    %v7890 = vpack.c.b16 %v7587, %v7584
    %v7891 = vpack.c.b16 %v7588, %v7585
    %v7892 = vpack.c.b16 %v7592, %v7589
    %v7893 = vpack.c.b16 %v7593, %v7590
    %v7894 = vpack.c.b16 %v7594, %v7591
    %v7895 = vpack.c.b16 %v7598, %v7595
    %v7896 = vpack.c.b16 %v7599, %v7596
    %v7897 = vpack.c.b16 %v7600, %v7597
    %v7898 = vpack.c.b16 %v7604, %v7601
    %v7899 = vpack.c.b16 %v7605, %v7602
    %v7900 = vpack.c.b16 %v7606, %v7603
    %v7901 = vpack.c.b16 %v7610, %v7607
    %v7902 = vpack.c.b16 %v7611, %v7608
    %v7903 = vpack.c.b16 %v7612, %v7609
    %v7904 = vpack.c.b16 %v7616, %v7613
    %v7905 = vpack.c.b16 %v7617, %v7614
    %v7906 = vpack.c.b16 %v7618, %v7615
    %8195 = vmatprep.subr.bf16.mxu0 %v7620
    %8196 = vmatpush1.bf16.msra.mxu0 %v7619
    %8197 = vmatprep.subr.bf16.mxu0 %v7623
    %8198 = vmatpush1.bf16.msra.mxu0 %v7622
    %8199 = vmatprep.subr.bf16.mxu0 %v7626
    %8200 = vmatpush1.bf16.msra.mxu0 %v7625
    %8201 = vmatprep.subr.bf16.mxu0 %v7629
    %8202 = vmatpush1.bf16.msra.mxu0 %v7628
    %8203 = vmatprep.subr.bf16.mxu0 %v7632
    %8204 = vmatpush1.bf16.msra.mxu0 %v7631
    %8205 = vmatprep.subr.bf16.mxu0 %v7635
    %8206 = vmatpush1.bf16.msra.mxu0 %v7634
    %8207 = vmatprep.subr.bf16.mxu0 %v7638
    %8208 = vmatpush1.bf16.msra.mxu0 %v7637
    %8209 = vmatprep.subr.bf16.mxu0 %v7641
    %8210 = vmatpush1.bf16.msra.mxu0 %v7640
    %8211 = vmatprep.subr.bf16.mxu0 %v7644
    %8212 = vmatpush1.bf16.msra.mxu0 %v7643
    %8213 = vmatprep.subr.bf16.mxu0 %v7647
    %8214 = vmatpush1.bf16.msra.mxu0 %v7646
    %8215 = vmatprep.subr.bf16.mxu0 %v7650
    %8216 = vmatpush1.bf16.msra.mxu0 %v7649
    %8217 = vmatprep.subr.bf16.mxu0 %v7653
    %8218 = vmatpush1.bf16.msra.mxu0 %v7652
    %8219 = vmatprep.subr.bf16.mxu0 %v7656
    %8220 = vmatpush1.bf16.msra.mxu0 %v7655
    %8221 = vmatprep.subr.bf16.mxu0 %v7659
    %8222 = vmatpush1.bf16.msra.mxu0 %v7658
    %8223 = vmatprep.subr.bf16.mxu0 %v7662
    %8224 = vmatpush1.bf16.msra.mxu0 %v7661
    %8225 = vmatprep.subr.bf16.mxu0 %v7665
    %8226 = vmatpush1.bf16.msra.mxu0 %v7664
    %8227 = vmatprep.mubr.bf16.mxu0 %v6632
    %8228 = vmatmul.mubr.bf16.gmra.mrb[0].mxu0 %v6631
    %v8229 = vpop.f32.mrb[0].mxu0
    %v8230 = vadd.f32 %v6647, %v8229
    %v8231 = vpop.f32.mrb[0].mxu0
    %v8232 = vadd.f32 %v6651, %v8231
    %v8233 = vpop.f32.mrb[0].mxu0
    %v8234 = vpop.f32.mrb[0].mxu0
    %8235 = vdwg.mxu0
    %8236 = vmatprep.subr.bf16.mxu0 %v7668
    %8237 = vmatpush1.bf16.msra.mxu0 %v7667
    %8238 = vmatprep.subr.bf16.mxu0 %v7671
    %8239 = vmatpush1.bf16.msra.mxu0 %v7670
    %8240 = vmatprep.subr.bf16.mxu0 %v7674
    %8241 = vmatpush1.bf16.msra.mxu0 %v7673
    %8242 = vmatprep.subr.bf16.mxu0 %v7677
    %8243 = vmatpush1.bf16.msra.mxu0 %v7676
    %8244 = vmatprep.subr.bf16.mxu0 %v7680
    %8245 = vmatpush1.bf16.msra.mxu0 %v7679
    %8246 = vmatprep.subr.bf16.mxu0 %v7683
    %8247 = vmatpush1.bf16.msra.mxu0 %v7682
    %8248 = vmatprep.subr.bf16.mxu0 %v7686
    %8249 = vmatpush1.bf16.msra.mxu0 %v7685
    %8250 = vmatprep.subr.bf16.mxu0 %v7689
    %8251 = vmatpush1.bf16.msra.mxu0 %v7688
    %8252 = vmatprep.subr.bf16.mxu0 %v7692
    %8253 = vmatpush1.bf16.msra.mxu0 %v7691
    %8254 = vmatprep.subr.bf16.mxu0 %v7695
    %8255 = vmatpush1.bf16.msra.mxu0 %v7694
    %8256 = vmatprep.subr.bf16.mxu0 %v7698
    %8257 = vmatpush1.bf16.msra.mxu0 %v7697
    %8258 = vmatprep.subr.bf16.mxu0 %v7701
    %8259 = vmatpush1.bf16.msra.mxu0 %v7700
    %8260 = vmatprep.subr.bf16.mxu0 %v7704
    %8261 = vmatpush1.bf16.msra.mxu0 %v7703
    %8262 = vmatprep.subr.bf16.mxu0 %v7707
    %8263 = vmatpush1.bf16.msra.mxu0 %v7706
    %8264 = vmatprep.subr.bf16.mxu0 %v7710
    %8265 = vmatpush1.bf16.msra.mxu0 %v7709
    %8266 = vmatprep.subr.bf16.mxu0 %v7713
    %8267 = vmatpush1.bf16.msra.mxu0 %v7712
    %8268 = vmatprep.mubr.bf16.mxu0 %v6634
    %8269 = vmatmul.mubr.bf16.gmra.mrb[0].mxu0 %v6633
    %v8270 = vpop.f32.mrb[0].mxu0
    %v8271 = vadd.f32 %v8230, %v8270
    %v8272 = vpop.f32.mrb[0].mxu0
    %v8273 = vadd.f32 %v8232, %v8272
    %v8274 = vpop.f32.mrb[0].mxu0
    %v8275 = vpop.f32.mrb[0].mxu0
    %8276 = vdwg.mxu0
    %8277 = vmatprep.subr.bf16.mxu0 %v7716
    %8278 = vmatpush1.bf16.msra.mxu0 %v7715
    %8279 = vmatprep.subr.bf16.mxu0 %v7719
    %8280 = vmatpush1.bf16.msra.mxu0 %v7718
    %8281 = vmatprep.subr.bf16.mxu0 %v7722
    %8282 = vmatpush1.bf16.msra.mxu0 %v7721
    %8283 = vmatprep.subr.bf16.mxu0 %v7725
    %8284 = vmatpush1.bf16.msra.mxu0 %v7724
    %8285 = vmatprep.subr.bf16.mxu0 %v7728
    %8286 = vmatpush1.bf16.msra.mxu0 %v7727
    %8287 = vmatprep.subr.bf16.mxu0 %v7731
    %8288 = vmatpush1.bf16.msra.mxu0 %v7730
    %8289 = vmatprep.subr.bf16.mxu0 %v7734
    %8290 = vmatpush1.bf16.msra.mxu0 %v7733
    %8291 = vmatprep.subr.bf16.mxu0 %v7737
    %8292 = vmatpush1.bf16.msra.mxu0 %v7736
    %8293 = vmatprep.subr.bf16.mxu0 %v7740
    %8294 = vmatpush1.bf16.msra.mxu0 %v7739
    %8295 = vmatprep.subr.bf16.mxu0 %v7743
    %8296 = vmatpush1.bf16.msra.mxu0 %v7742
    %8297 = vmatprep.subr.bf16.mxu0 %v7746
    %8298 = vmatpush1.bf16.msra.mxu0 %v7745
    %8299 = vmatprep.subr.bf16.mxu0 %v7749
    %8300 = vmatpush1.bf16.msra.mxu0 %v7748
    %8301 = vmatprep.subr.bf16.mxu0 %v7752
    %8302 = vmatpush1.bf16.msra.mxu0 %v7751
    %8303 = vmatprep.subr.bf16.mxu0 %v7755
    %8304 = vmatpush1.bf16.msra.mxu0 %v7754
    %8305 = vmatprep.subr.bf16.mxu0 %v7758
    %8306 = vmatpush1.bf16.msra.mxu0 %v7757
    %8307 = vmatprep.subr.bf16.mxu0 %v7761
    %8308 = vmatpush1.bf16.msra.mxu0 %v7760
    %8309 = vmatprep.mubr.bf16.mxu0 %v6636
    %8310 = vmatmul.mubr.bf16.gmra.mrb[0].mxu0 %v6635
    %v8311 = vpop.f32.mrb[0].mxu0
    %v8312 = vadd.f32 %v8271, %v8311
    %v8313 = vpop.f32.mrb[0].mxu0
    %v8314 = vadd.f32 %v8273, %v8313
    %v8315 = vpop.f32.mrb[0].mxu0
    %v8316 = vpop.f32.mrb[0].mxu0
    %8317 = vdwg.mxu0
    %8318 = vmatprep.subr.bf16.mxu0 %v7764
    %8319 = vmatpush1.bf16.msra.mxu0 %v7763
    %8320 = vmatprep.subr.bf16.mxu0 %v7767
    %8321 = vmatpush1.bf16.msra.mxu0 %v7766
    %8322 = vmatprep.subr.bf16.mxu0 %v7770
    %8323 = vmatpush1.bf16.msra.mxu0 %v7769
    %8324 = vmatprep.subr.bf16.mxu0 %v7773
    %8325 = vmatpush1.bf16.msra.mxu0 %v7772
    %8326 = vmatprep.subr.bf16.mxu0 %v7776
    %8327 = vmatpush1.bf16.msra.mxu0 %v7775
    %8328 = vmatprep.subr.bf16.mxu0 %v7779
    %8329 = vmatpush1.bf16.msra.mxu0 %v7778
    %8330 = vmatprep.subr.bf16.mxu0 %v7782
    %8331 = vmatpush1.bf16.msra.mxu0 %v7781
    %8332 = vmatprep.subr.bf16.mxu0 %v7785
    %8333 = vmatpush1.bf16.msra.mxu0 %v7784
    %8334 = vmatprep.subr.bf16.mxu0 %v7788
    %8335 = vmatpush1.bf16.msra.mxu0 %v7787
    %8336 = vmatprep.subr.bf16.mxu0 %v7791
    %8337 = vmatpush1.bf16.msra.mxu0 %v7790
    %8338 = vmatprep.subr.bf16.mxu0 %v7794
    %8339 = vmatpush1.bf16.msra.mxu0 %v7793
    %8340 = vmatprep.subr.bf16.mxu0 %v7797
    %8341 = vmatpush1.bf16.msra.mxu0 %v7796
    %8342 = vmatprep.subr.bf16.mxu0 %v7800
    %8343 = vmatpush1.bf16.msra.mxu0 %v7799
    %8344 = vmatprep.subr.bf16.mxu0 %v7803
    %8345 = vmatpush1.bf16.msra.mxu0 %v7802
    %8346 = vmatprep.subr.bf16.mxu0 %v7806
    %8347 = vmatpush1.bf16.msra.mxu0 %v7805
    %8348 = vmatprep.subr.bf16.mxu0 %v7809
    %8349 = vmatpush1.bf16.msra.mxu0 %v7808
    %8350 = vmatprep.mubr.bf16.mxu0 %v6638
    %8351 = vmatmul.mubr.bf16.gmra.mrb[0].mxu0 %v6637
    %v8352 = vpop.f32.mrb[0].mxu0
    %v8353 = vadd.f32 %v8312, %v8352
    %v8354 = vpop.f32.mrb[0].mxu0
    %v8355 = vadd.f32 %v8314, %v8354
    %v8356 = vpop.f32.mrb[0].mxu0
    %v8357 = vpop.f32.mrb[0].mxu0
    %8358 = vdwg.mxu0
    %8359 = vmatprep.subr.bf16.mxu0 %v7812
    %8360 = vmatpush1.bf16.msra.mxu0 %v7811
    %8361 = vmatprep.subr.bf16.mxu0 %v7815
    %8362 = vmatpush1.bf16.msra.mxu0 %v7814
    %8363 = vmatprep.subr.bf16.mxu0 %v7818
    %8364 = vmatpush1.bf16.msra.mxu0 %v7817
    %8365 = vmatprep.subr.bf16.mxu0 %v7821
    %8366 = vmatpush1.bf16.msra.mxu0 %v7820
    %8367 = vmatprep.subr.bf16.mxu0 %v7824
    %8368 = vmatpush1.bf16.msra.mxu0 %v7823
    %8369 = vmatprep.subr.bf16.mxu0 %v7827
    %8370 = vmatpush1.bf16.msra.mxu0 %v7826
    %8371 = vmatprep.subr.bf16.mxu0 %v7830
    %8372 = vmatpush1.bf16.msra.mxu0 %v7829
    %8373 = vmatprep.subr.bf16.mxu0 %v7833
    %8374 = vmatpush1.bf16.msra.mxu0 %v7832
    %8375 = vmatprep.subr.bf16.mxu0 %v7836
    %8376 = vmatpush1.bf16.msra.mxu0 %v7835
    %8377 = vmatprep.subr.bf16.mxu0 %v7839
    %8378 = vmatpush1.bf16.msra.mxu0 %v7838
    %8379 = vmatprep.subr.bf16.mxu0 %v7842
    %8380 = vmatpush1.bf16.msra.mxu0 %v7841
    %8381 = vmatprep.subr.bf16.mxu0 %v7845
    %8382 = vmatpush1.bf16.msra.mxu0 %v7844
    %8383 = vmatprep.subr.bf16.mxu0 %v7848
    %8384 = vmatpush1.bf16.msra.mxu0 %v7847
    %8385 = vmatprep.subr.bf16.mxu0 %v7851
    %8386 = vmatpush1.bf16.msra.mxu0 %v7850
    %8387 = vmatprep.subr.bf16.mxu0 %v7854
    %8388 = vmatpush1.bf16.msra.mxu0 %v7853
    %8389 = vmatprep.subr.bf16.mxu0 %v7857
    %8390 = vmatpush1.bf16.msra.mxu0 %v7856
    %8391 = vmatprep.mubr.bf16.mxu0 %v6640
    %8392 = vmatmul.mubr.bf16.gmra.mrb[0].mxu0 %v6639
    %v8393 = vpop.f32.mrb[0].mxu0
    %v8394 = vadd.f32 %v8353, %v8393
    %v8395 = vpop.f32.mrb[0].mxu0
    %v8396 = vadd.f32 %v8355, %v8395
    %v8397 = vpop.f32.mrb[0].mxu0
    %v8398 = vpop.f32.mrb[0].mxu0
    %8399 = vdwg.mxu0
    %8400 = vmatprep.subr.bf16.mxu0 %v7860
    %8401 = vmatpush1.bf16.msra.mxu0 %v7859
    %8402 = vmatprep.subr.bf16.mxu0 %v7863
    %8403 = vmatpush1.bf16.msra.mxu0 %v7862
    %8404 = vmatprep.subr.bf16.mxu0 %v7866
    %8405 = vmatpush1.bf16.msra.mxu0 %v7865
    %8406 = vmatprep.subr.bf16.mxu0 %v7869
    %8407 = vmatpush1.bf16.msra.mxu0 %v7868
    %8408 = vmatprep.subr.bf16.mxu0 %v7872
    %8409 = vmatpush1.bf16.msra.mxu0 %v7871
    %8410 = vmatprep.subr.bf16.mxu0 %v7875
    %8411 = vmatpush1.bf16.msra.mxu0 %v7874
    %8412 = vmatprep.subr.bf16.mxu0 %v7878
    %8413 = vmatpush1.bf16.msra.mxu0 %v7877
    %8414 = vmatprep.subr.bf16.mxu0 %v7881
    %8415 = vmatpush1.bf16.msra.mxu0 %v7880
    %8416 = vmatprep.subr.bf16.mxu0 %v7884
    %8417 = vmatpush1.bf16.msra.mxu0 %v7883
    %8418 = vmatprep.subr.bf16.mxu0 %v7887
    %8419 = vmatpush1.bf16.msra.mxu0 %v7886
    %8420 = vmatprep.subr.bf16.mxu0 %v7890
    %8421 = vmatpush1.bf16.msra.mxu0 %v7889
    %8422 = vmatprep.subr.bf16.mxu0 %v7893
    %8423 = vmatpush1.bf16.msra.mxu0 %v7892
    %8424 = vmatprep.subr.bf16.mxu0 %v7896
    %8425 = vmatpush1.bf16.msra.mxu0 %v7895
    %8426 = vmatprep.subr.bf16.mxu0 %v7899
    %8427 = vmatpush1.bf16.msra.mxu0 %v7898
    %8428 = vmatprep.subr.bf16.mxu0 %v7902
    %8429 = vmatpush1.bf16.msra.mxu0 %v7901
    %8430 = vmatprep.subr.bf16.mxu0 %v7905
    %8431 = vmatpush1.bf16.msra.mxu0 %v7904
    %8432 = vmatprep.mubr.bf16.mxu0 %v6642
    %8433 = vmatmul.mubr.bf16.gmra.mrb[0].mxu0 %v6641
    %v8434 = vpop.f32.mrb[0].mxu0
    %v8435 = vadd.f32 %v8394, %v8434
    %v8436 = vpop.f32.mrb[0].mxu0
    %v8437 = vadd.f32 %v8396, %v8436
    %v8438 = vpop.f32.mrb[0].mxu0
    %v8439 = vpop.f32.mrb[0].mxu0
    %8440 = vdwg.mxu0
    %8441 = vmatprep.subr.bf16.mxu0 0
    %8442 = vmatpush1.bf16.msra.mxu0 %v7621
    %8443 = vmatprep.subr.bf16.mxu0 0
    %8444 = vmatpush1.bf16.msra.mxu0 %v7624
    %8445 = vmatprep.subr.bf16.mxu0 0
    %8446 = vmatpush1.bf16.msra.mxu0 %v7627
    %8447 = vmatprep.subr.bf16.mxu0 0
    %8448 = vmatpush1.bf16.msra.mxu0 %v7630
    %8449 = vmatprep.subr.bf16.mxu0 0
    %8450 = vmatpush1.bf16.msra.mxu0 %v7633
    %8451 = vmatprep.subr.bf16.mxu0 0
    %8452 = vmatpush1.bf16.msra.mxu0 %v7636
    %8453 = vmatprep.subr.bf16.mxu0 0
    %8454 = vmatpush1.bf16.msra.mxu0 %v7639
    %8455 = vmatprep.subr.bf16.mxu0 0
    %8456 = vmatpush1.bf16.msra.mxu0 %v7642
    %8457 = vmatprep.subr.bf16.mxu0 0
    %8458 = vmatpush1.bf16.msra.mxu0 %v7645
    %8459 = vmatprep.subr.bf16.mxu0 0
    %8460 = vmatpush1.bf16.msra.mxu0 %v7648
    %8461 = vmatprep.subr.bf16.mxu0 0
    %8462 = vmatpush1.bf16.msra.mxu0 %v7651
    %8463 = vmatprep.subr.bf16.mxu0 0
    %8464 = vmatpush1.bf16.msra.mxu0 %v7654
    %8465 = vmatprep.subr.bf16.mxu0 0
    %8466 = vmatpush1.bf16.msra.mxu0 %v7657
    %8467 = vmatprep.subr.bf16.mxu0 0
    %8468 = vmatpush1.bf16.msra.mxu0 %v7660
    %8469 = vmatprep.subr.bf16.mxu0 0
    %8470 = vmatpush1.bf16.msra.mxu0 %v7663
    %8471 = vmatprep.subr.bf16.mxu0 0
    %8472 = vmatpush1.bf16.msra.mxu0 %v7666
    %8473 = vmatprep.mubr.bf16.mxu0 %v6632
    %8474 = vmatmul.mubr.bf16.gmra.mrb[0].mxu0 %v6631
    %v8475 = vpop.f32.mrb[0].mxu0
    %v8476 = vadd.f32 %v6655, %v8475
    %v8477 = vpop.f32.mrb[0].mxu0
    %v8478 = vpop.f32.mrb[0].mxu0
    %v8479 = vpop.f32.mrb[0].mxu0
    %8480 = vdwg.mxu0
    %8481 = vmatprep.subr.bf16.mxu0 0
    %8482 = vmatpush1.bf16.msra.mxu0 %v7669
    %8483 = vmatprep.subr.bf16.mxu0 0
    %8484 = vmatpush1.bf16.msra.mxu0 %v7672
    %8485 = vmatprep.subr.bf16.mxu0 0
    %8486 = vmatpush1.bf16.msra.mxu0 %v7675
    %8487 = vmatprep.subr.bf16.mxu0 0
    %8488 = vmatpush1.bf16.msra.mxu0 %v7678
    %8489 = vmatprep.subr.bf16.mxu0 0
    %8490 = vmatpush1.bf16.msra.mxu0 %v7681
    %8491 = vmatprep.subr.bf16.mxu0 0
    %8492 = vmatpush1.bf16.msra.mxu0 %v7684
    %8493 = vmatprep.subr.bf16.mxu0 0
    %8494 = vmatpush1.bf16.msra.mxu0 %v7687
    %8495 = vmatprep.subr.bf16.mxu0 0
    %8496 = vmatpush1.bf16.msra.mxu0 %v7690
    %8497 = vmatprep.subr.bf16.mxu0 0
    %8498 = vmatpush1.bf16.msra.mxu0 %v7693
    %8499 = vmatprep.subr.bf16.mxu0 0
    %8500 = vmatpush1.bf16.msra.mxu0 %v7696
    %8501 = vmatprep.subr.bf16.mxu0 0
    %8502 = vmatpush1.bf16.msra.mxu0 %v7699
    %8503 = vmatprep.subr.bf16.mxu0 0
    %8504 = vmatpush1.bf16.msra.mxu0 %v7702
    %8505 = vmatprep.subr.bf16.mxu0 0
    %8506 = vmatpush1.bf16.msra.mxu0 %v7705
    %8507 = vmatprep.subr.bf16.mxu0 0
    %8508 = vmatpush1.bf16.msra.mxu0 %v7708
    %8509 = vmatprep.subr.bf16.mxu0 0
    %8510 = vmatpush1.bf16.msra.mxu0 %v7711
    %8511 = vmatprep.subr.bf16.mxu0 0
    %8512 = vmatpush1.bf16.msra.mxu0 %v7714
    %8513 = vmatprep.mubr.bf16.mxu0 %v6634
    %8514 = vmatmul.mubr.bf16.gmra.mrb[0].mxu0 %v6633
    %v8515 = vpop.f32.mrb[0].mxu0
    %v8516 = vadd.f32 %v8476, %v8515
    %v8517 = vpop.f32.mrb[0].mxu0
    %v8518 = vpop.f32.mrb[0].mxu0
    %v8519 = vpop.f32.mrb[0].mxu0
    %8520 = vdwg.mxu0
    %8521 = vmatprep.subr.bf16.mxu0 0
    %8522 = vmatpush1.bf16.msra.mxu0 %v7717
    %8523 = vmatprep.subr.bf16.mxu0 0
    %8524 = vmatpush1.bf16.msra.mxu0 %v7720
    %8525 = vmatprep.subr.bf16.mxu0 0
    %8526 = vmatpush1.bf16.msra.mxu0 %v7723
    %8527 = vmatprep.subr.bf16.mxu0 0
    %8528 = vmatpush1.bf16.msra.mxu0 %v7726
    %8529 = vmatprep.subr.bf16.mxu0 0
    %8530 = vmatpush1.bf16.msra.mxu0 %v7729
    %8531 = vmatprep.subr.bf16.mxu0 0
    %8532 = vmatpush1.bf16.msra.mxu0 %v7732
    %8533 = vmatprep.subr.bf16.mxu0 0
    %8534 = vmatpush1.bf16.msra.mxu0 %v7735
    %8535 = vmatprep.subr.bf16.mxu0 0
    %8536 = vmatpush1.bf16.msra.mxu0 %v7738
    %8537 = vmatprep.subr.bf16.mxu0 0
    %8538 = vmatpush1.bf16.msra.mxu0 %v7741
    %8539 = vmatprep.subr.bf16.mxu0 0
    %8540 = vmatpush1.bf16.msra.mxu0 %v7744
    %8541 = vmatprep.subr.bf16.mxu0 0
    %8542 = vmatpush1.bf16.msra.mxu0 %v7747
    %8543 = vmatprep.subr.bf16.mxu0 0
    %8544 = vmatpush1.bf16.msra.mxu0 %v7750
    %8545 = vmatprep.subr.bf16.mxu0 0
    %8546 = vmatpush1.bf16.msra.mxu0 %v7753
    %8547 = vmatprep.subr.bf16.mxu0 0
    %8548 = vmatpush1.bf16.msra.mxu0 %v7756
    %8549 = vmatprep.subr.bf16.mxu0 0
    %8550 = vmatpush1.bf16.msra.mxu0 %v7759
    %8551 = vmatprep.subr.bf16.mxu0 0
    %8552 = vmatpush1.bf16.msra.mxu0 %v7762
    %8553 = vmatprep.mubr.bf16.mxu0 %v6636
    %8554 = vmatmul.mubr.bf16.gmra.mrb[0].mxu0 %v6635
    %v8555 = vpop.f32.mrb[0].mxu0
    %v8556 = vadd.f32 %v8516, %v8555
    %v8557 = vpop.f32.mrb[0].mxu0
    %v8558 = vpop.f32.mrb[0].mxu0
    %v8559 = vpop.f32.mrb[0].mxu0
    %8560 = vdwg.mxu0
    %8561 = vmatprep.subr.bf16.mxu0 0
    %8562 = vmatpush1.bf16.msra.mxu0 %v7765
    %8563 = vmatprep.subr.bf16.mxu0 0
    %8564 = vmatpush1.bf16.msra.mxu0 %v7768
    %8565 = vmatprep.subr.bf16.mxu0 0
    %8566 = vmatpush1.bf16.msra.mxu0 %v7771
    %8567 = vmatprep.subr.bf16.mxu0 0
    %8568 = vmatpush1.bf16.msra.mxu0 %v7774
    %8569 = vmatprep.subr.bf16.mxu0 0
    %8570 = vmatpush1.bf16.msra.mxu0 %v7777
    %8571 = vmatprep.subr.bf16.mxu0 0
    %8572 = vmatpush1.bf16.msra.mxu0 %v7780
    %8573 = vmatprep.subr.bf16.mxu0 0
    %8574 = vmatpush1.bf16.msra.mxu0 %v7783
    %8575 = vmatprep.subr.bf16.mxu0 0
    %8576 = vmatpush1.bf16.msra.mxu0 %v7786
    %8577 = vmatprep.subr.bf16.mxu0 0
    %8578 = vmatpush1.bf16.msra.mxu0 %v7789
    %8579 = vmatprep.subr.bf16.mxu0 0
    %8580 = vmatpush1.bf16.msra.mxu0 %v7792
    %8581 = vmatprep.subr.bf16.mxu0 0
    %8582 = vmatpush1.bf16.msra.mxu0 %v7795
    %8583 = vmatprep.subr.bf16.mxu0 0
    %8584 = vmatpush1.bf16.msra.mxu0 %v7798
    %8585 = vmatprep.subr.bf16.mxu0 0
    %8586 = vmatpush1.bf16.msra.mxu0 %v7801
    %8587 = vmatprep.subr.bf16.mxu0 0
    %8588 = vmatpush1.bf16.msra.mxu0 %v7804
    %8589 = vmatprep.subr.bf16.mxu0 0
    %8590 = vmatpush1.bf16.msra.mxu0 %v7807
    %8591 = vmatprep.subr.bf16.mxu0 0
    %8592 = vmatpush1.bf16.msra.mxu0 %v7810
    %8593 = vmatprep.mubr.bf16.mxu0 %v6638
    %8594 = vmatmul.mubr.bf16.gmra.mrb[0].mxu0 %v6637
    %v8595 = vpop.f32.mrb[0].mxu0
    %v8596 = vadd.f32 %v8556, %v8595
    %v8597 = vpop.f32.mrb[0].mxu0
    %v8598 = vpop.f32.mrb[0].mxu0
    %v8599 = vpop.f32.mrb[0].mxu0
    %8600 = vdwg.mxu0
    %8601 = vmatprep.subr.bf16.mxu0 0
    %8602 = vmatpush1.bf16.msra.mxu0 %v7813
    %8603 = vmatprep.subr.bf16.mxu0 0
    %8604 = vmatpush1.bf16.msra.mxu0 %v7816
    %8605 = vmatprep.subr.bf16.mxu0 0
    %8606 = vmatpush1.bf16.msra.mxu0 %v7819
    %8607 = vmatprep.subr.bf16.mxu0 0
    %8608 = vmatpush1.bf16.msra.mxu0 %v7822
    %8609 = vmatprep.subr.bf16.mxu0 0
    %8610 = vmatpush1.bf16.msra.mxu0 %v7825
    %8611 = vmatprep.subr.bf16.mxu0 0
    %8612 = vmatpush1.bf16.msra.mxu0 %v7828
    %8613 = vmatprep.subr.bf16.mxu0 0
    %8614 = vmatpush1.bf16.msra.mxu0 %v7831
    %8615 = vmatprep.subr.bf16.mxu0 0
    %8616 = vmatpush1.bf16.msra.mxu0 %v7834
    %8617 = vmatprep.subr.bf16.mxu0 0
    %8618 = vmatpush1.bf16.msra.mxu0 %v7837
    %8619 = vmatprep.subr.bf16.mxu0 0
    %8620 = vmatpush1.bf16.msra.mxu0 %v7840
    %8621 = vmatprep.subr.bf16.mxu0 0
    %8622 = vmatpush1.bf16.msra.mxu0 %v7843
    %8623 = vmatprep.subr.bf16.mxu0 0
    %8624 = vmatpush1.bf16.msra.mxu0 %v7846
    %8625 = vmatprep.subr.bf16.mxu0 0
    %8626 = vmatpush1.bf16.msra.mxu0 %v7849
    %8627 = vmatprep.subr.bf16.mxu0 0
    %8628 = vmatpush1.bf16.msra.mxu0 %v7852
    %8629 = vmatprep.subr.bf16.mxu0 0
    %8630 = vmatpush1.bf16.msra.mxu0 %v7855
    %8631 = vmatprep.subr.bf16.mxu0 0
    %8632 = vmatpush1.bf16.msra.mxu0 %v7858
    %8633 = vmatprep.mubr.bf16.mxu0 %v6640
    %8634 = vmatmul.mubr.bf16.gmra.mrb[0].mxu0 %v6639
    %v8635 = vpop.f32.mrb[0].mxu0
    %v8636 = vadd.f32 %v8596, %v8635
    %v8637 = vpop.f32.mrb[0].mxu0
    %v8638 = vpop.f32.mrb[0].mxu0
    %v8639 = vpop.f32.mrb[0].mxu0
    %8640 = vdwg.mxu0
    %8641 = vmatprep.subr.bf16.mxu0 0
    %8642 = vmatpush1.bf16.msra.mxu0 %v7861
    %8643 = vmatprep.subr.bf16.mxu0 0
    %8644 = vmatpush1.bf16.msra.mxu0 %v7864
    %8645 = vmatprep.subr.bf16.mxu0 0
    %8646 = vmatpush1.bf16.msra.mxu0 %v7867
    %8647 = vmatprep.subr.bf16.mxu0 0
    %8648 = vmatpush1.bf16.msra.mxu0 %v7870
    %8649 = vmatprep.subr.bf16.mxu0 0
    %8650 = vmatpush1.bf16.msra.mxu0 %v7873
    %8651 = vmatprep.subr.bf16.mxu0 0
    %8652 = vmatpush1.bf16.msra.mxu0 %v7876
    %8653 = vmatprep.subr.bf16.mxu0 0
    %8654 = vmatpush1.bf16.msra.mxu0 %v7879
    %8655 = vmatprep.subr.bf16.mxu0 0
    %8656 = vmatpush1.bf16.msra.mxu0 %v7882
    %8657 = vmatprep.subr.bf16.mxu0 0
    %8658 = vmatpush1.bf16.msra.mxu0 %v7885
    %8659 = vmatprep.subr.bf16.mxu0 0
    %8660 = vmatpush1.bf16.msra.mxu0 %v7888
    %8661 = vmatprep.subr.bf16.mxu0 0
    %8662 = vmatpush1.bf16.msra.mxu0 %v7891
    %8663 = vmatprep.subr.bf16.mxu0 0
    %8664 = vmatpush1.bf16.msra.mxu0 %v7894
    %8665 = vmatprep.subr.bf16.mxu0 0
    %8666 = vmatpush1.bf16.msra.mxu0 %v7897
    %8667 = vmatprep.subr.bf16.mxu0 0
    %8668 = vmatpush1.bf16.msra.mxu0 %v7900
    %8669 = vmatprep.subr.bf16.mxu0 0
    %8670 = vmatpush1.bf16.msra.mxu0 %v7903
    %8671 = vmatprep.subr.bf16.mxu0 0
    %8672 = vmatpush1.bf16.msra.mxu0 %v7906
    %8673 = vmatprep.mubr.bf16.mxu0 %v6642
    %8674 = vmatmul.mubr.bf16.gmra.mrb[0].mxu0 %v6641
    %v8675 = vpop.f32.mrb[0].mxu0
    %v8676 = vadd.f32 %v8636, %v8675
    %v8677 = vpop.f32.mrb[0].mxu0
    %v8678 = vpop.f32.mrb[0].mxu0
    %v8679 = vpop.f32.mrb[0].mxu0
    %8680 = vdwg.mxu0
    %v8681 = vadd.f32 %v8435, %v4000
    %v8682 = vadd.f32 %v8437, %v2793
    %v8683 = vadd.f32 %v8676, %v2794
    %v8684 = vadd.f32 %v8681, %v6533
    %v8685 = vadd.f32 %v8682, %v6535
    %v8686 = vadd.f32 %v8683, %v6614
    %v8687 = vadd.f32 %v8684, %v3150
    %v8688 = vadd.f32 %v8685, %v3151
    %v8689 = vadd.f32 %v8686, %v3152
    %v8690 = vadd.f32 %v8687, %v2356
    %v8691 = vpack.c.bf16 %v8690, %v8690
    %v8692 = vpack.c.bf16 %v8688, %v8688
    %v8693 = vpack.c.bf16 %v8689, %v8689
    %v8695 = vlaneseq
    %v8696 = vshrl.u32 %v8695, 7
    %v8697 = vsub.s32 0, %v8696
    %v8698 = vrot.slane %v1512, %v8697
    %v8748 = vunpack.c.l.b16 %v1431
    %v8749 = vunpack.c.l.b16 %v1432
    %v8750 = vunpack.c.l.b16 %v1433
    %v8751 = vunpack.c.l.b16 %v1434
    %v8752 = vunpack.c.l.b16 %v1435
    %v8753 = vunpack.c.l.b16 %v1436
    %v8754 = vunpack.c.l.b16 %v1437
    %v8755 = vunpack.c.l.b16 %v1438
    %v8756 = vunpack.c.l.b16 %v1439
    %v8757 = vunpack.c.l.b16 %v1440
    %v8758 = vunpack.c.l.b16 %v1441
    %v8759 = vunpack.c.l.b16 %v1442
    %v8760 = vunpack.c.l.b16 %v1443
    %v8761 = vunpack.c.l.b16 %v1444
    %v8762 = vunpack.c.l.b16 %v1445
    %v8763 = vunpack.c.l.b16 %v1446
    %v8764 = vunpack.c.l.b16 %v1447
    %v8765 = vunpack.c.l.b16 %v1448
    %v8766 = vunpack.c.l.b16 %v1449
    %v8767 = vunpack.c.l.b16 %v1450
    %v8768 = vunpack.c.l.b16 %v1451
    %v8769 = vunpack.c.l.b16 %v1452
    %v8770 = vunpack.c.l.b16 %v1453
    %v8771 = vunpack.c.l.b16 %v1454
    %v8772 = vunpack.c.l.b16 %v1455
    %v8773 = vunpack.c.l.b16 %v1456
    %v8774 = vunpack.c.l.b16 %v1457
    %v8775 = vunpack.c.l.b16 %v1458
    %v8776 = vunpack.c.l.b16 %v1459
    %v8777 = vunpack.c.l.b16 %v1460
    %v8778 = vunpack.c.l.b16 %v1461
    %v8779 = vunpack.c.l.b16 %v1462
    %v8780 = vunpack.c.l.b16 %v1463
    %v8781 = vunpack.c.l.b16 %v1464
    %v8782 = vunpack.c.l.b16 %v1465
    %v8783 = vunpack.c.l.b16 %v1466
    %v8784 = vunpack.c.l.b16 %v1467
    %v8785 = vunpack.c.l.b16 %v1468
    %v8786 = vunpack.c.l.b16 %v1469
    %v8787 = vunpack.c.l.b16 %v1470
    %v8788 = vunpack.c.l.b16 %v1471
    %v8789 = vunpack.c.l.b16 %v1472
    %v8790 = vunpack.c.l.b16 %v1473
    %v8791 = vunpack.c.l.b16 %v1474
    %v8792 = vunpack.c.l.b16 %v1475
    %v8793 = vunpack.c.l.b16 %v1476
    %v8794 = vunpack.c.l.b16 %v1477
    %v8795 = vunpack.c.l.b16 %v1478
    %v8796 = vpack.c.b16 %v8749, %v8748
    %v8797 = vpack.c.b16 %v8751, %v8750
    %v8798 = vpack.c.b16 %v8753, %v8752
    %v8799 = vpack.c.b16 %v8755, %v8754
    %v8800 = vpack.c.b16 %v8757, %v8756
    %v8801 = vpack.c.b16 %v8759, %v8758
    %v8802 = vpack.c.b16 %v8761, %v8760
    %v8803 = vpack.c.b16 %v8763, %v8762
    %v8804 = vpack.c.b16 %v8765, %v8764
    %v8805 = vpack.c.b16 %v8767, %v8766
    %v8806 = vpack.c.b16 %v8769, %v8768
    %v8807 = vpack.c.b16 %v8771, %v8770
    %v8808 = vpack.c.b16 %v8773, %v8772
    %v8809 = vpack.c.b16 %v8775, %v8774
    %v8810 = vpack.c.b16 %v8777, %v8776
    %v8811 = vpack.c.b16 %v8779, %v8778
    %v8812 = vpack.c.b16 %v8781, %v8780
    %v8813 = vpack.c.b16 %v8783, %v8782
    %v8814 = vpack.c.b16 %v8785, %v8784
    %v8815 = vpack.c.b16 %v8787, %v8786
    %v8816 = vpack.c.b16 %v8789, %v8788
    %v8817 = vpack.c.b16 %v8791, %v8790
    %v8818 = vpack.c.b16 %v8793, %v8792
    %v8819 = vpack.c.b16 %v8795, %v8794
    %8844 = vmatprep.subr.bf16.mxu0 0
    %8845 = vmatpush1.bf16.msra.mxu0 %v8796
    %8846 = vmatprep.subr.bf16.mxu0 0
    %8847 = vmatpush1.bf16.msra.mxu0 %v8797
    %8848 = vmatprep.subr.bf16.mxu0 0
    %8849 = vmatpush1.bf16.msra.mxu0 %v8798
    %8850 = vmatprep.subr.bf16.mxu0 0
    %8851 = vmatpush1.bf16.msra.mxu0 %v8799
    %8852 = vmatprep.subr.bf16.mxu0 0
    %8853 = vmatpush1.bf16.msra.mxu0 %v8800
    %8854 = vmatprep.subr.bf16.mxu0 0
    %8855 = vmatpush1.bf16.msra.mxu0 %v8801
    %8856 = vmatprep.subr.bf16.mxu0 0
    %8857 = vmatpush1.bf16.msra.mxu0 %v8802
    %8858 = vmatprep.subr.bf16.mxu0 0
    %8859 = vmatpush1.bf16.msra.mxu0 %v8803
    %8860 = vmatprep.subr.bf16.mxu0 0
    %8861 = vmatpush1.bf16.msra.mxu0 %v8804
    %8862 = vmatprep.subr.bf16.mxu0 0
    %8863 = vmatpush1.bf16.msra.mxu0 %v8805
    %8864 = vmatprep.subr.bf16.mxu0 0
    %8865 = vmatpush1.bf16.msra.mxu0 %v8806
    %8866 = vmatprep.subr.bf16.mxu0 0
    %8867 = vmatpush1.bf16.msra.mxu0 %v8807
    %8868 = vmatprep.subr.bf16.mxu0 0
    %8869 = vmatpush1.bf16.msra.mxu0 %v8808
    %8870 = vmatprep.subr.bf16.mxu0 0
    %8871 = vmatpush1.bf16.msra.mxu0 %v8809
    %8872 = vmatprep.subr.bf16.mxu0 0
    %8873 = vmatpush1.bf16.msra.mxu0 %v8810
    %8874 = vmatprep.subr.bf16.mxu0 0
    %8875 = vmatpush1.bf16.msra.mxu0 %v8811
    %8876 = vmatprep.mubr.bf16.mxu0 %v8692
    %8877 = vmatmul.mubr.bf16.gmra.mrb[0].mxu0 %v8691
    %v8878 = vpop.f32.mrb[0].mxu0
    %v8879 = vadd.f32 %v8698, %v8878
    %v8880 = vpop.f32.mrb[0].mxu0
    %v8881 = vpop.f32.mrb[0].mxu0
    %v8882 = vpop.f32.mrb[0].mxu0
    %8883 = vdwg.mxu0
    %8884 = vmatprep.subr.bf16.mxu0 0
    %8885 = vmatpush1.bf16.msra.mxu0 %v8812
    %8886 = vmatprep.subr.bf16.mxu0 0
    %8887 = vmatpush1.bf16.msra.mxu0 %v8813
    %8888 = vmatprep.subr.bf16.mxu0 0
    %8889 = vmatpush1.bf16.msra.mxu0 %v8814
    %8890 = vmatprep.subr.bf16.mxu0 0
    %8891 = vmatpush1.bf16.msra.mxu0 %v8815
    %8892 = vmatprep.subr.bf16.mxu0 0
    %8893 = vmatpush1.bf16.msra.mxu0 %v8816
    %8894 = vmatprep.subr.bf16.mxu0 0
    %8895 = vmatpush1.bf16.msra.mxu0 %v8817
    %8896 = vmatprep.subr.bf16.mxu0 0
    %8897 = vmatpush1.bf16.msra.mxu0 %v8818
    %8898 = vmatprep.subr.bf16.mxu0 0
    %8899 = vmatpush1.bf16.msra.mxu0 %v8819
    %8900 = vmatprep.subr.bf16.mxu0 0
    %8901 = vmatpush1.bf16.msra.mxu0 0
    %8902 = vmatprep.subr.bf16.mxu0 0
    %8903 = vmatpush1.bf16.msra.mxu0 0
    %8904 = vmatprep.subr.bf16.mxu0 0
    %8905 = vmatpush1.bf16.msra.mxu0 0
    %8906 = vmatprep.subr.bf16.mxu0 0
    %8907 = vmatpush1.bf16.msra.mxu0 0
    %8908 = vmatprep.subr.bf16.mxu0 0
    %8909 = vmatpush1.bf16.msra.mxu0 0
    %8910 = vmatprep.subr.bf16.mxu0 0
    %8911 = vmatpush1.bf16.msra.mxu0 0
    %8912 = vmatprep.subr.bf16.mxu0 0
    %8913 = vmatpush1.bf16.msra.mxu0 0
    %8914 = vmatprep.subr.bf16.mxu0 0
    %8915 = vmatpush1.bf16.msra.mxu0 0
    %8916 = vmatprep.mubr.bf16.mxu0 0
    %8917 = vmatmul.mubr.bf16.gmra.mrb[0].mxu0 %v8693
    %v8918 = vpop.f32.mrb[0].mxu0
    %v8919 = vadd.f32 %v8879, %v8918
    %v8920 = vpop.f32.mrb[0].mxu0
    %v8921 = vpop.f32.mrb[0].mxu0
    %v8922 = vpop.f32.mrb[0].mxu0
    %8923 = vdwg.mxu0
    %8924 = vst [vmem:[#allocation32] sm:$0xff] %v8919
    // Predicated region
    $region154: #{tpu_custom_call.1} parent=1 // pred_check
      _
    $region155: #{tpu_custom_call.1} parent=1 // pred_check_branch
      %8926 = sbr.rel (0) target = $region157
    $region156: #{tpu_custom_call.1} parent=1 // pred_region
      %s8928 = ssub.s32 128, 128
      %8929 = vsyncadd [#allocation4], %s8928
      %s8931 = sshll.u32 [#allocation32], 4
      %s8932 = int_to_ptr.vmem [resolvable:$true] %s8931
      %8934 = dma.vmem_to_hbm [thread:$0]  %s8932, 128, %s19, [#allocation4]
    $region157: #{tpu_custom_call.1} parent=1 // pred_fallthru
      _
    // Predicated region
    $region158: #{tpu_custom_call.1} parent=1 // pred_check
      _
    $region159: #{tpu_custom_call.1} parent=1 // pred_check_branch
      %8936 = sbr.rel (0) target = $region161
    $region160: #{tpu_custom_call.1} parent=1 // pred_region
      %8937 = dma.done [#allocation4], 128
    $region161: #{tpu_custom_call.1} parent=1 // pred_fallthru
      _
    %8938 = vsyncpa [#allocation3], 1
    %8939 = vsyncpa [#allocation6], 1
    %8940 = vsyncpa [#allocation9], 1
    %8941 = vsyncpa [#allocation12], 1
    %8942 = vsyncpa [#allocation15], 1
    %8943 = vsyncpa [#allocation18], 1
    %8944 = vsyncpa [#allocation21], 1
    %8945 = vsyncpa [#allocation24], 1
    %8946 = vsyncpa [#allocation27], 1
    %8947 = vsyncpa [#allocation30], 1
    %8948 = vsyncpa [#allocation4], 1

</llo_original>
